<compile_context>
chip_gen: v7x
topology: tpu7x:2x2x1
jax: 0.10.0
libtpu: 0.0.40
codegen_flags: <defaults>
</compile_context>

<pallas_src>
import jax
import jax.numpy as jnp
from jax.experimental import pallas as pl
from jax.experimental.pallas import tpu as pltpu

MATMUL_DTYPE = jnp.bfloat16   # MXU operand / xproj transport dtype (state & accum stay f32)
MAX_BATCH_BLOCK = 256         # cap on batch rows handled per grid step


# ----------------------------------------------------------------------------
# Fused kernel: fwd + bwd LSTM recurrence with per-step partial attention
# logits, then an online-softmax pooling pass over the produced sequence.
# ----------------------------------------------------------------------------
def _bilstm_attention_kernel(xpf_ref, xpb_ref, whf_ref, whb_ref,
                             waf_ref, wab_ref,
                             out_ref, pool_ref,
                             lf_scr, lb_scr):
    T, B, G = xpf_ref.shape          # G = 4H
    H = G // 4

    waf = waf_ref[...]               # (1, H) forward half of Linear(2H, 1) weight
    wab = wab_ref[...]               # (1, H) backward half

    def cell(xp_t, h, c, whh_ref):
        # gates (B, 4H) f32 in kernel order [i | f | o | g]; recurrent matmul on the
        # MXU with bf16 operands and f32 accumulation.
        gates = xp_t.astype(jnp.float32) + jnp.dot(
            h.astype(whh_ref.dtype), whh_ref[...],
            preferred_element_type=jnp.float32)
        sg = jax.nn.sigmoid(gates[:, :3 * H])            # i, f, o only (no wasted g-sigmoid)
        g = jnp.tanh(gates[:, 3 * H:])
        c_new = sg[:, H:2 * H] * c + sg[:, 0:H] * g
        h_new = sg[:, 2 * H:3 * H] * jnp.tanh(c_new)
        return h_new, c_new

    def rec_step(t, carry):
        h_f, c_f, h_b, c_b = carry
        tb = T - 1 - t
        h_f, c_f = cell(xpf_ref[t], h_f, c_f, whf_ref)   # forward direction, time t
        h_b, c_b = cell(xpb_ref[tb], h_b, c_b, whb_ref)  # backward direction, time tb
        # lane-aligned halves of the merged (T, B, 2H) output (unmasked full-vreg stores)
        out_ref[t, :, 0:H] = h_f
        out_ref[tb, :, H:2 * H] = h_b
        # partial attention logits while h is still in vregs (XLU lane reductions)
        lf_scr[t] = jnp.sum(h_f * waf, axis=-1, keepdims=True)
        lb_scr[tb] = jnp.sum(h_b * wab, axis=-1, keepdims=True)
        return h_f, c_f, h_b, c_b

    z = jnp.zeros((B, H), jnp.float32)
    unroll = True if T <= 16 else 2
    # h0 = c0 = 0 as in the PyTorch default.
    jax.lax.fori_loop(0, T, rec_step, (z, z, z, z), unroll=unroll)

    # ---- attention over time: online softmax + weighted pooling -------------
    # logit_t = w_f . h_f[t] + w_b . h_b[t]   (bias dropped: cancels in softmax)
    def attn_step(t, carry):
        m, den, pf, pb = carry
        logit = lf_scr[t] + lb_scr[t]                    # (B, 1)
        h_f = out_ref[t, :, 0:H]
        h_b = out_ref[t, :, H:2 * H]
        m_new = jnp.maximum(m, logit)
        alpha = jnp.exp(m - m_new)
        p = jnp.exp(logit - m_new)
        den = den * alpha + p
        pf = pf * alpha + p * h_f
        pb = pb * alpha + p * h_b
        return m_new, den, pf, pb

    m0 = jnp.full((B, 1), -jnp.inf, jnp.float32)
    d0 = jnp.zeros((B, 1), jnp.float32)
    p0 = jnp.zeros((B, H), jnp.float32)
    _, den, pf, pb = jax.lax.fori_loop(0, T, attn_step, (m0, d0, p0, p0),
                                       unroll=unroll)
    inv = pl.reciprocal(den, approx=True)                # (B, 1)
    pool_ref[:, 0:H] = pf * inv
    pool_ref[:, H:2 * H] = pb * inv


# ----------------------------------------------------------------------------
# Wrapper: gate-layout permutation, hoisted bf16 input projection, one fused
# pallas_call, minimal post-processing.
# ----------------------------------------------------------------------------
def _round_up(x, m):
    return (x + m - 1) // m * m


def _permute_ifog(w, H):
    # PyTorch gate order [i, f, g, o]  ->  kernel order [i, f, o, g] (last-dim columns)
    return jnp.concatenate([w[..., :2 * H], w[..., 3 * H:4 * H], w[..., 2 * H:3 * H]],
                           axis=-1)


@jax.jit
def bilstm_attention_forward(params, x):
    """x: (B, T, input_dim). Returns (weighted_sum (B, 2H), lstm_out (B, T, 2H))."""
    B, T, D = x.shape
    H = params["w_hh_f"].shape[0]
    assert H % 128 == 0, "lane-aligned gate slices require hidden_dim % 128 == 0"
    x = x.astype(jnp.float32)

    # Adaptive, sublane-tile-aligned batch block (16 keeps bf16 blocks tile-aligned).
    BB = min(MAX_BATCH_BLOCK, _round_up(B, 16))
    Bp = _round_up(B, BB)
    if Bp != B:
        x = jnp.pad(x, ((0, Bp - B), (0, 0), (0, 0)))

    # Permute gate columns once (tiny tensors) so the kernel uses [i, f, o, g].
    wiF = _permute_ifog(params["w_ih_f"], H)
    wiB = _permute_ifog(params["w_ih_b"], H)
    whF = _permute_ifog(params["w_hh_f"], H)
    whB = _permute_ifog(params["w_hh_b"], H)
    bF = _permute_ifog(params["b_f"], H)
    bB = _permute_ifog(params["b_b"], H)

    # Hoisted input projection: ONE matmul per direction for all timesteps, default
    # (fast) matmul precision, (b_ih + b_hh) folded in, shipped time-major in bf16.
    xproj_f = (jnp.einsum("btd,dg->tbg", x, wiF) + bF).astype(MATMUL_DTYPE)
    xproj_b = (jnp.einsum("btd,dg->tbg", x, wiB) + bB).astype(MATMUL_DTYPE)

    nblk = Bp // BB

    # Rough per-grid-step VMEM footprint; raise the scoped limit when tiles are big.
    est = (4 * T * BB * 4 * H * 2        # xproj blocks (bf16, double-buffered, 2 dirs)
           + 2 * T * BB * 2 * H * 4      # lstm_out block (f32, double-buffered)
           + 2 * BB * 2 * H * 4          # pooled block
           + 4 * H * 4 * H * 2           # recurrent weights (bf16, 2 dirs, 2 bufs)
           + 2 * T * BB * 128 * 4)       # logit scratches (lane-padded)
    vmem_limit = None
    if est > 24 * 1024 * 1024:
        vmem_limit = min(int(est * 1.25), 100 * 1024 * 1024)

    out, pooled = pl.pallas_call(
        _bilstm_attention_kernel,
        grid=(nblk,),
        in_specs=[
            pl.BlockSpec((T, BB, 4 * H), lambda b: (0, b, 0)),   # xproj fwd (bf16)
            pl.BlockSpec((T, BB, 4 * H), lambda b: (0, b, 0)),   # xproj bwd (bf16)
            pl.BlockSpec((H, 4 * H), lambda b: (0, 0)),          # W_hh fwd (bf16)
            pl.BlockSpec((H, 4 * H), lambda b: (0, 0)),          # W_hh bwd (bf16)
            pl.BlockSpec((1, H), lambda b: (0, 0)),              # attn weight (fwd half)
            pl.BlockSpec((1, H), lambda b: (0, 0)),              # attn weight (bwd half)
        ],
        out_specs=(
            pl.BlockSpec((T, BB, 2 * H), lambda b: (0, b, 0)),   # lstm_out (time-major)
            pl.BlockSpec((BB, 2 * H), lambda b: (b, 0)),         # pooled
        ),
        out_shape=(
            jax.ShapeDtypeStruct((T, Bp, 2 * H), jnp.float32),
            jax.ShapeDtypeStruct((Bp, 2 * H), jnp.float32),
        ),
        scratch_shapes=[
            pltpu.VMEM((T, BB, 1), jnp.float32),                 # fwd partial logits
            pltpu.VMEM((T, BB, 1), jnp.float32),                 # bwd partial logits
        ],
        compiler_params=pltpu.CompilerParams(
            dimension_semantics=("parallel",),                   # batch blocks independent
            vmem_limit_bytes=vmem_limit),
    )(xproj_f, xproj_b,
      whF.astype(MATMUL_DTYPE), whB.astype(MATMUL_DTYPE),
      params["w_attn_f"], params["w_attn_b"])

    lstm_out = jnp.transpose(out, (1, 0, 2))[:B]                 # (B, T, 2H)
    return pooled[:B], lstm_out


# ----------------------------------------------------------------------------
# Pure-JAX (XLA) reference of the PyTorch forward, mirroring the kernel's bf16
# casts (xproj transport + recurrent matmul operands) so tolerances stay tight.
# ----------------------------------------------------------------------------
@jax.jit
def reference_forward(params, x):
    B, T, D = x.shape
    H = params["w_hh_f"].shape[0]
    x = x.astype(jnp.float32)

    def run_direction(w_ih, w_hh, b, reverse):
        w_hh = w_hh.astype(MATMUL_DTYPE)
        xproj = (jnp.einsum("btd,dg->btg", x, w_ih) + b
                 ).astype(MATMUL_DTYPE).astype(jnp.float32)
        h = jnp.zeros((B, H), jnp.float32)
        c = jnp.zeros((B, H), jnp.float32)
        hs = [None] * T
        order = range(T - 1, -1, -1) if reverse else range(T)
        for t in order:
            gates = xproj[:, t, :] + jnp.dot(h.astype(MATMUL_DTYPE), w_hh,
                                             preferred_element_type=jnp.float32)
            i = jax.nn.sigmoid(gates[:, 0 * H:1 * H])
            f = jax.nn.sigmoid(gates[:, 1 * H:2 * H])
            g = jnp.tanh(gates[:, 2 * H:3 * H])
            o = jax.nn.sigmoid(gates[:, 3 * H:4 * H])
            c = f * c + i * g
            h = o * jnp.tanh(c)
            hs[t] = h
        return jnp.stack(hs, axis=1)                              # (B, T, H)

    out_f = run_direction(params["w_ih_f"], params["w_hh_f"], params["b_f"], False)
    out_b = run_direction(params["w_ih_b"], params["w_hh_b"], params["b_b"], True)
    lstm_out = jnp.concatenate([out_f, out_b], axis=-1)           # (B, T, 2H)
    w_attn = jnp.concatenate([params["w_attn_f"], params["w_attn_b"]], axis=-1)  # (1, 2H)
    scores = jnp.einsum("bth,gh->btg", lstm_out, w_attn) + params["b_attn"]
    attn = jax.nn.softmax(scores, axis=1)
    pooled = jnp.sum(lstm_out * attn, axis=1)
    return pooled, lstm_out


# ----------------------------------------------------------------------------
# Deterministic parameter init (PyTorch-style uniform bounds).  LSTM weights are
# stored pre-transposed ((in, 4H) / (H, 4H)) in PyTorch gate order [i, f, g, o]
# with b_ih + b_hh pre-summed; the attention Linear(2H, 1) weight is stored split
# into its fwd/bwd halves.
# ----------------------------------------------------------------------------
def init_params(key, input_dim, hidden_dim):
    H = hidden_dim
    k_lstm = 1.0 / (H ** 0.5)
    k_attn = 1.0 / ((2 * H) ** 0.5)
    ks = jax.random.split(key, 9)

    def u(kk, shape, bound):
        return jax.random.uniform(kk, shape, jnp.float32, -bound, bound)

    return {
        "w_ih_f": u(ks[0], (input_dim, 4 * H), k_lstm),
        "w_hh_f": u(ks[1], (H, 4 * H), k_lstm),
        "b_f":    u(ks[2], (4 * H,), k_lstm),
        "w_ih_b": u(ks[3], (input_dim, 4 * H), k_lstm),
        "w_hh_b": u(ks[4], (H, 4 * H), k_lstm),
        "b_b":    u(ks[5], (4 * H,), k_lstm),
        "w_attn_f": u(ks[6], (1, H), k_attn),
        "w_attn_b": u(ks[7], (1, H), k_attn),
        "b_attn":   u(ks[8], (1,), k_attn),
    }


if __name__ == "__main__":
    INPUT_DIM = 100     # module-level input_dim in the reference file
    HIDDEN_DIM = 128    # module-level hidden_dim in the reference file
    B, T = 2, 8         # small batch / sequence for the demo
    # NOTE: num_classes is unused by the PyTorch module's forward (only stored).

    key = jax.random.PRNGKey(0)
    kp, kx = jax.random.split(key)
    params = init_params(kp, INPUT_DIM, HIDDEN_DIM)
    x = jax.random.normal(kx, (B, T, INPUT_DIM), jnp.float32)

    pooled, lstm_out = jax.block_until_ready(bilstm_attention_forward(params, x))
    assert pooled.shape == (B, 2 * HIDDEN_DIM), pooled.shape
    assert lstm_out.shape == (B, T, 2 * HIDDEN_DIM), lstm_out.shape

    ref_pooled, ref_out = reference_forward(params, x)
    assert bool(jnp.allclose(lstm_out, ref_out, atol=1e-2, rtol=1e-2)), (
        "lstm_out mismatch, max abs diff=%e" % float(jnp.max(jnp.abs(lstm_out - ref_out))))
    assert bool(jnp.allclose(pooled, ref_pooled, atol=1e-2, rtol=1e-2)), (
        "pooled mismatch, max abs diff=%e" % float(jnp.max(jnp.abs(pooled - ref_pooled))))

    print("KERNEL_OK")
</pallas_src>

<mosaic_0001>
module attributes {stable_mosaic.version = 11 : i64} {
  func.func @_bilstm_attention_kernel(%arg0: i32, %arg1: memref<8x16x512xbf16, #tpu.memory_space<vmem>>, %arg2: memref<8x16x512xbf16, #tpu.memory_space<vmem>>, %arg3: memref<128x512xbf16, #tpu.memory_space<vmem>>, %arg4: memref<128x512xbf16, #tpu.memory_space<vmem>>, %arg5: memref<1x128xf32, #tpu.memory_space<vmem>>, %arg6: memref<1x128xf32, #tpu.memory_space<vmem>>, %arg7: memref<8x16x256xf32, #tpu.memory_space<vmem>>, %arg8: memref<16x256xf32, #tpu.memory_space<vmem>>, %arg9: memref<8x16x1xf32, #tpu.memory_space<vmem>>, %arg10: memref<8x16x1xf32, #tpu.memory_space<vmem>>) attributes {dimension_semantics = [#tpu.dimension_semantics<parallel>], iteration_bounds = array<i64: 1>, scalar_prefetch = 0 : i64, scratch_operands = 2 : i64, tpu.core_type = #tpu.core_type<tc>, window_params = [{transform_indices = @transform_0, window_bounds = array<i64: 8, 16, 512>}, {transform_indices = @transform_1, window_bounds = array<i64: 8, 16, 512>}, {pipeline_mode = #tpu.pipeline_mode<synchronous>, transform_indices = @transform_2, window_bounds = array<i64: 128, 512>}, {pipeline_mode = #tpu.pipeline_mode<synchronous>, transform_indices = @transform_3, window_bounds = array<i64: 128, 512>}, {pipeline_mode = #tpu.pipeline_mode<synchronous>, transform_indices = @transform_4, window_bounds = array<i64: 1, 128>}, {pipeline_mode = #tpu.pipeline_mode<synchronous>, transform_indices = @transform_5, window_bounds = array<i64: 1, 128>}, {transform_indices = @transform_6, window_bounds = array<i64: 8, 16, 256>}, {transform_indices = @transform_7, window_bounds = array<i64: 16, 256>}]} {
    %c0 = arith.constant 0 : index
    %c0_0 = arith.constant 0 : index
    %0 = vector.load %arg5[%c0, %c0_0] : memref<1x128xf32, #tpu.memory_space<vmem>>, vector<1x128xf32>
    %c0_1 = arith.constant 0 : index
    %c0_2 = arith.constant 0 : index
    %1 = vector.load %arg6[%c0_1, %c0_2] : memref<1x128xf32, #tpu.memory_space<vmem>>, vector<1x128xf32>
    %cst = arith.constant 0.000000e+00 : f32
    %2 = vector.broadcast %cst : f32 to vector<16x128xf32>
    %c0_i32 = arith.constant 0 : i32
    %c7_i32 = arith.constant 7 : i32
    %3 = arith.subi %c7_i32, %c0_i32 : i32
    %4 = arith.index_cast %c0_i32 : i32 to index
    %c0_3 = arith.constant 0 : index
    %c0_4 = arith.constant 0 : index
    %5 = vector.load %arg1[%4, %c0_3, %c0_4] : memref<8x16x512xbf16, #tpu.memory_space<vmem>>, vector<1x16x512xbf16>
    %6 = vector.shape_cast %5 : vector<1x16x512xbf16> to vector<16x512xbf16>
    %7 = arith.extf %6 : vector<16x512xbf16> to vector<16x512xf32>
    %8 = arith.truncf %2 : vector<16x128xf32> to vector<16x128xbf16>
    %c0_5 = arith.constant 0 : index
    %c0_6 = arith.constant 0 : index
    %9 = vector.load %arg3[%c0_5, %c0_6] : memref<128x512xbf16, #tpu.memory_space<vmem>>, vector<128x512xbf16>
    %cst_7 = arith.constant dense<0.000000e+00> : vector<16x512xf32>
    %10 = tpu.matmul %8, %9, %cst_7 {dimension_numbers = #tpu.dot_dimension_numbers<[1], [0], [0], [1], [0, 0, 1, 1], [], []>} : vector<16x128xbf16>, vector<128x512xbf16>, vector<16x512xf32> -> vector<16x512xf32>
    %11 = arith.addf %7, %10 : vector<16x512xf32>
    %12 = vector.extract_strided_slice %11 {offsets = [0, 0], sizes = [16, 384], strides = [1, 1]} : vector<16x512xf32> to vector<16x384xf32>
    %13 = arith.negf %12 : vector<16x384xf32>
    %14 = math.exp %13 : vector<16x384xf32>
    %cst_8 = arith.constant 1.000000e+00 : f32
    %15 = vector.broadcast %cst_8 : f32 to vector<16x384xf32>
    %16 = arith.addf %15, %14 : vector<16x384xf32>
    %17 = arith.divf %15, %16 : vector<16x384xf32>
    %18 = vector.extract_strided_slice %11 {offsets = [0, 384], sizes = [16, 128], strides = [1, 1]} : vector<16x512xf32> to vector<16x128xf32>
    %19 = math.tanh %18 : vector<16x128xf32>
    %20 = vector.extract_strided_slice %17 {offsets = [0, 128], sizes = [16, 128], strides = [1, 1]} : vector<16x384xf32> to vector<16x128xf32>
    %21 = arith.mulf %20, %2 : vector<16x128xf32>
    %22 = vector.extract_strided_slice %17 {offsets = [0, 0], sizes = [16, 128], strides = [1, 1]} : vector<16x384xf32> to vector<16x128xf32>
    %23 = arith.mulf %22, %19 : vector<16x128xf32>
    %24 = arith.addf %21, %23 : vector<16x128xf32>
    %25 = vector.extract_strided_slice %17 {offsets = [0, 256], sizes = [16, 128], strides = [1, 1]} : vector<16x384xf32> to vector<16x128xf32>
    %26 = math.tanh %24 : vector<16x128xf32>
    %27 = arith.mulf %25, %26 : vector<16x128xf32>
    %28 = arith.index_cast %3 : i32 to index
    %c0_9 = arith.constant 0 : index
    %c0_10 = arith.constant 0 : index
    %29 = vector.load %arg2[%28, %c0_9, %c0_10] : memref<8x16x512xbf16, #tpu.memory_space<vmem>>, vector<1x16x512xbf16>
    %30 = vector.shape_cast %29 : vector<1x16x512xbf16> to vector<16x512xbf16>
    %31 = arith.extf %30 : vector<16x512xbf16> to vector<16x512xf32>
    %32 = arith.truncf %2 : vector<16x128xf32> to vector<16x128xbf16>
    %c0_11 = arith.constant 0 : index
    %c0_12 = arith.constant 0 : index
    %33 = vector.load %arg4[%c0_11, %c0_12] : memref<128x512xbf16, #tpu.memory_space<vmem>>, vector<128x512xbf16>
    %cst_13 = arith.constant dense<0.000000e+00> : vector<16x512xf32>
    %34 = tpu.matmul %32, %33, %cst_13 {dimension_numbers = #tpu.dot_dimension_numbers<[1], [0], [0], [1], [0, 0, 1, 1], [], []>} : vector<16x128xbf16>, vector<128x512xbf16>, vector<16x512xf32> -> vector<16x512xf32>
    %35 = arith.addf %31, %34 : vector<16x512xf32>
    %36 = vector.extract_strided_slice %35 {offsets = [0, 0], sizes = [16, 384], strides = [1, 1]} : vector<16x512xf32> to vector<16x384xf32>
    %37 = arith.negf %36 : vector<16x384xf32>
    %38 = math.exp %37 : vector<16x384xf32>
    %cst_14 = arith.constant 1.000000e+00 : f32
    %39 = vector.broadcast %cst_14 : f32 to vector<16x384xf32>
    %40 = arith.addf %39, %38 : vector<16x384xf32>
    %41 = arith.divf %39, %40 : vector<16x384xf32>
    %42 = vector.extract_strided_slice %35 {offsets = [0, 384], sizes = [16, 128], strides = [1, 1]} : vector<16x512xf32> to vector<16x128xf32>
    %43 = math.tanh %42 : vector<16x128xf32>
    %44 = vector.extract_strided_slice %41 {offsets = [0, 128], sizes = [16, 128], strides = [1, 1]} : vector<16x384xf32> to vector<16x128xf32>
    %45 = arith.mulf %44, %2 : vector<16x128xf32>
    %46 = vector.extract_strided_slice %41 {offsets = [0, 0], sizes = [16, 128], strides = [1, 1]} : vector<16x384xf32> to vector<16x128xf32>
    %47 = arith.mulf %46, %43 : vector<16x128xf32>
    %48 = arith.addf %45, %47 : vector<16x128xf32>
    %49 = vector.extract_strided_slice %41 {offsets = [0, 256], sizes = [16, 128], strides = [1, 1]} : vector<16x384xf32> to vector<16x128xf32>
    %50 = math.tanh %48 : vector<16x128xf32>
    %51 = arith.mulf %49, %50 : vector<16x128xf32>
    %52 = arith.index_cast %c0_i32 : i32 to index
    %c0_15 = arith.constant 0 : index
    %c0_16 = arith.constant 0 : index
    %53 = vector.load %arg7[%52, %c0_15, %c0_16] : memref<8x16x256xf32, #tpu.memory_space<vmem>>, vector<1x16x128xf32>
    %54 = vector.shape_cast %53 : vector<1x16x128xf32> to vector<16x128xf32>
    %55 = vector.shape_cast %27 : vector<16x128xf32> to vector<1x16x128xf32>
    tpu.vector_store %arg7[%52, %c0_15, %c0_16], %55 {strides = array<i32>} : memref<8x16x256xf32, #tpu.memory_space<vmem>>, vector<1x16x128xf32>,
    %56 = arith.index_cast %3 : i32 to index
    %c0_17 = arith.constant 0 : index
    %c128 = arith.constant 128 : index
    %57 = vector.load %arg7[%56, %c0_17, %c128] : memref<8x16x256xf32, #tpu.memory_space<vmem>>, vector<1x16x128xf32>
    %58 = vector.shape_cast %57 : vector<1x16x128xf32> to vector<16x128xf32>
    %59 = vector.shape_cast %51 : vector<16x128xf32> to vector<1x16x128xf32>
    tpu.vector_store %arg7[%56, %c0_17, %c128], %59 {strides = array<i32>} : memref<8x16x256xf32, #tpu.memory_space<vmem>>, vector<1x16x128xf32>,
    %60 = vector.broadcast %0 : vector<1x128xf32> to vector<16x128xf32>
    %61 = arith.mulf %27, %60 : vector<16x128xf32>
    %cst_18 = arith.constant dense<0.000000e+00> : vector<16xf32>
    %62 = vector.multi_reduction <add>, %61, %cst_18 [1] : vector<16x128xf32> to vector<16xf32>
    %63 = vector.shape_cast %62 : vector<16xf32> to vector<16x1xf32>
    %64 = arith.index_cast %c0_i32 : i32 to index
    %c0_19 = arith.constant 0 : index
    %c0_20 = arith.constant 0 : index
    %65 = vector.load %arg9[%64, %c0_19, %c0_20] : memref<8x16x1xf32, #tpu.memory_space<vmem>>, vector<1x16x1xf32>
    %66 = vector.shape_cast %65 : vector<1x16x1xf32> to vector<16x1xf32>
    %67 = vector.shape_cast %63 : vector<16x1xf32> to vector<1x16x1xf32>
    tpu.vector_store %arg9[%64, %c0_19, %c0_20], %67 {strides = array<i32>} : memref<8x16x1xf32, #tpu.memory_space<vmem>>, vector<1x16x1xf32>,
    %68 = vector.broadcast %1 : vector<1x128xf32> to vector<16x128xf32>
    %69 = arith.mulf %51, %68 : vector<16x128xf32>
    %cst_21 = arith.constant dense<0.000000e+00> : vector<16xf32>
    %70 = vector.multi_reduction <add>, %69, %cst_21 [1] : vector<16x128xf32> to vector<16xf32>
    %71 = vector.shape_cast %70 : vector<16xf32> to vector<16x1xf32>
    %72 = arith.index_cast %3 : i32 to index
    %c0_22 = arith.constant 0 : index
    %c0_23 = arith.constant 0 : index
    %73 = vector.load %arg10[%72, %c0_22, %c0_23] : memref<8x16x1xf32, #tpu.memory_space<vmem>>, vector<1x16x1xf32>
    %74 = vector.shape_cast %73 : vector<1x16x1xf32> to vector<16x1xf32>
    %75 = vector.shape_cast %71 : vector<16x1xf32> to vector<1x16x1xf32>
    tpu.vector_store %arg10[%72, %c0_22, %c0_23], %75 {strides = array<i32>} : memref<8x16x1xf32, #tpu.memory_space<vmem>>, vector<1x16x1xf32>,
    %c1_i32 = arith.constant 1 : i32
    %c7_i32_24 = arith.constant 7 : i32
    %76 = arith.subi %c7_i32_24, %c1_i32 : i32
    %77 = arith.index_cast %c1_i32 : i32 to index
    %c0_25 = arith.constant 0 : index
    %c0_26 = arith.constant 0 : index
    %78 = vector.load %arg1[%77, %c0_25, %c0_26] : memref<8x16x512xbf16, #tpu.memory_space<vmem>>, vector<1x16x512xbf16>
    %79 = vector.shape_cast %78 : vector<1x16x512xbf16> to vector<16x512xbf16>
    %80 = arith.extf %79 : vector<16x512xbf16> to vector<16x512xf32>
    %81 = arith.truncf %27 : vector<16x128xf32> to vector<16x128xbf16>
    %c0_27 = arith.constant 0 : index
    %c0_28 = arith.constant 0 : index
    %82 = vector.load %arg3[%c0_27, %c0_28] : memref<128x512xbf16, #tpu.memory_space<vmem>>, vector<128x512xbf16>
    %cst_29 = arith.constant dense<0.000000e+00> : vector<16x512xf32>
    %83 = tpu.matmul %81, %82, %cst_29 {dimension_numbers = #tpu.dot_dimension_numbers<[1], [0], [0], [1], [0, 0, 1, 1], [], []>} : vector<16x128xbf16>, vector<128x512xbf16>, vector<16x512xf32> -> vector<16x512xf32>
    %84 = arith.addf %80, %83 : vector<16x512xf32>
    %85 = vector.extract_strided_slice %84 {offsets = [0, 0], sizes = [16, 384], strides = [1, 1]} : vector<16x512xf32> to vector<16x384xf32>
    %86 = arith.negf %85 : vector<16x384xf32>
    %87 = math.exp %86 : vector<16x384xf32>
    %cst_30 = arith.constant 1.000000e+00 : f32
    %88 = vector.broadcast %cst_30 : f32 to vector<16x384xf32>
    %89 = arith.addf %88, %87 : vector<16x384xf32>
    %90 = arith.divf %88, %89 : vector<16x384xf32>
    %91 = vector.extract_strided_slice %84 {offsets = [0, 384], sizes = [16, 128], strides = [1, 1]} : vector<16x512xf32> to vector<16x128xf32>
    %92 = math.tanh %91 : vector<16x128xf32>
    %93 = vector.extract_strided_slice %90 {offsets = [0, 128], sizes = [16, 128], strides = [1, 1]} : vector<16x384xf32> to vector<16x128xf32>
    %94 = arith.mulf %93, %24 : vector<16x128xf32>
    %95 = vector.extract_strided_slice %90 {offsets = [0, 0], sizes = [16, 128], strides = [1, 1]} : vector<16x384xf32> to vector<16x128xf32>
    %96 = arith.mulf %95, %92 : vector<16x128xf32>
    %97 = arith.addf %94, %96 : vector<16x128xf32>
    %98 = vector.extract_strided_slice %90 {offsets = [0, 256], sizes = [16, 128], strides = [1, 1]} : vector<16x384xf32> to vector<16x128xf32>
    %99 = math.tanh %97 : vector<16x128xf32>
    %100 = arith.mulf %98, %99 : vector<16x128xf32>
    %101 = arith.index_cast %76 : i32 to index
    %c0_31 = arith.constant 0 : index
    %c0_32 = arith.constant 0 : index
    %102 = vector.load %arg2[%101, %c0_31, %c0_32] : memref<8x16x512xbf16, #tpu.memory_space<vmem>>, vector<1x16x512xbf16>
    %103 = vector.shape_cast %102 : vector<1x16x512xbf16> to vector<16x512xbf16>
    %104 = arith.extf %103 : vector<16x512xbf16> to vector<16x512xf32>
    %105 = arith.truncf %51 : vector<16x128xf32> to vector<16x128xbf16>
    %c0_33 = arith.constant 0 : index
    %c0_34 = arith.constant 0 : index
    %106 = vector.load %arg4[%c0_33, %c0_34] : memref<128x512xbf16, #tpu.memory_space<vmem>>, vector<128x512xbf16>
    %cst_35 = arith.constant dense<0.000000e+00> : vector<16x512xf32>
    %107 = tpu.matmul %105, %106, %cst_35 {dimension_numbers = #tpu.dot_dimension_numbers<[1], [0], [0], [1], [0, 0, 1, 1], [], []>} : vector<16x128xbf16>, vector<128x512xbf16>, vector<16x512xf32> -> vector<16x512xf32>
    %108 = arith.addf %104, %107 : vector<16x512xf32>
    %109 = vector.extract_strided_slice %108 {offsets = [0, 0], sizes = [16, 384], strides = [1, 1]} : vector<16x512xf32> to vector<16x384xf32>
    %110 = arith.negf %109 : vector<16x384xf32>
    %111 = math.exp %110 : vector<16x384xf32>
    %cst_36 = arith.constant 1.000000e+00 : f32
    %112 = vector.broadcast %cst_36 : f32 to vector<16x384xf32>
    %113 = arith.addf %112, %111 : vector<16x384xf32>
    %114 = arith.divf %112, %113 : vector<16x384xf32>
    %115 = vector.extract_strided_slice %108 {offsets = [0, 384], sizes = [16, 128], strides = [1, 1]} : vector<16x512xf32> to vector<16x128xf32>
    %116 = math.tanh %115 : vector<16x128xf32>
    %117 = vector.extract_strided_slice %114 {offsets = [0, 128], sizes = [16, 128], strides = [1, 1]} : vector<16x384xf32> to vector<16x128xf32>
    %118 = arith.mulf %117, %48 : vector<16x128xf32>
    %119 = vector.extract_strided_slice %114 {offsets = [0, 0], sizes = [16, 128], strides = [1, 1]} : vector<16x384xf32> to vector<16x128xf32>
    %120 = arith.mulf %119, %116 : vector<16x128xf32>
    %121 = arith.addf %118, %120 : vector<16x128xf32>
    %122 = vector.extract_strided_slice %114 {offsets = [0, 256], sizes = [16, 128], strides = [1, 1]} : vector<16x384xf32> to vector<16x128xf32>
    %123 = math.tanh %121 : vector<16x128xf32>
    %124 = arith.mulf %122, %123 : vector<16x128xf32>
    %125 = arith.index_cast %c1_i32 : i32 to index
    %c0_37 = arith.constant 0 : index
    %c0_38 = arith.constant 0 : index
    %126 = vector.load %arg7[%125, %c0_37, %c0_38] : memref<8x16x256xf32, #tpu.memory_space<vmem>>, vector<1x16x128xf32>
    %127 = vector.shape_cast %126 : vector<1x16x128xf32> to vector<16x128xf32>
    %128 = vector.shape_cast %100 : vector<16x128xf32> to vector<1x16x128xf32>
    tpu.vector_store %arg7[%125, %c0_37, %c0_38], %128 {strides = array<i32>} : memref<8x16x256xf32, #tpu.memory_space<vmem>>, vector<1x16x128xf32>,
    %129 = arith.index_cast %76 : i32 to index
    %c0_39 = arith.constant 0 : index
    %c128_40 = arith.constant 128 : index
    %130 = vector.load %arg7[%129, %c0_39, %c128_40] : memref<8x16x256xf32, #tpu.memory_space<vmem>>, vector<1x16x128xf32>
    %131 = vector.shape_cast %130 : vector<1x16x128xf32> to vector<16x128xf32>
    %132 = vector.shape_cast %124 : vector<16x128xf32> to vector<1x16x128xf32>
    tpu.vector_store %arg7[%129, %c0_39, %c128_40], %132 {strides = array<i32>} : memref<8x16x256xf32, #tpu.memory_space<vmem>>, vector<1x16x128xf32>,
    %133 = vector.broadcast %0 : vector<1x128xf32> to vector<16x128xf32>
    %134 = arith.mulf %100, %133 : vector<16x128xf32>
    %cst_41 = arith.constant dense<0.000000e+00> : vector<16xf32>
    %135 = vector.multi_reduction <add>, %134, %cst_41 [1] : vector<16x128xf32> to vector<16xf32>
    %136 = vector.shape_cast %135 : vector<16xf32> to vector<16x1xf32>
    %137 = arith.index_cast %c1_i32 : i32 to index
    %c0_42 = arith.constant 0 : index
    %c0_43 = arith.constant 0 : index
    %138 = vector.load %arg9[%137, %c0_42, %c0_43] : memref<8x16x1xf32, #tpu.memory_space<vmem>>, vector<1x16x1xf32>
    %139 = vector.shape_cast %138 : vector<1x16x1xf32> to vector<16x1xf32>
    %140 = vector.shape_cast %136 : vector<16x1xf32> to vector<1x16x1xf32>
    tpu.vector_store %arg9[%137, %c0_42, %c0_43], %140 {strides = array<i32>} : memref<8x16x1xf32, #tpu.memory_space<vmem>>, vector<1x16x1xf32>,
    %141 = vector.broadcast %1 : vector<1x128xf32> to vector<16x128xf32>
    %142 = arith.mulf %124, %141 : vector<16x128xf32>
    %cst_44 = arith.constant dense<0.000000e+00> : vector<16xf32>
    %143 = vector.multi_reduction <add>, %142, %cst_44 [1] : vector<16x128xf32> to vector<16xf32>
    %144 = vector.shape_cast %143 : vector<16xf32> to vector<16x1xf32>
    %145 = arith.index_cast %76 : i32 to index
    %c0_45 = arith.constant 0 : index
    %c0_46 = arith.constant 0 : index
    %146 = vector.load %arg10[%145, %c0_45, %c0_46] : memref<8x16x1xf32, #tpu.memory_space<vmem>>, vector<1x16x1xf32>
    %147 = vector.shape_cast %146 : vector<1x16x1xf32> to vector<16x1xf32>
    %148 = vector.shape_cast %144 : vector<16x1xf32> to vector<1x16x1xf32>
    tpu.vector_store %arg10[%145, %c0_45, %c0_46], %148 {strides = array<i32>} : memref<8x16x1xf32, #tpu.memory_space<vmem>>, vector<1x16x1xf32>,
    %c2_i32 = arith.constant 2 : i32
    %c7_i32_47 = arith.constant 7 : i32
    %149 = arith.subi %c7_i32_47, %c2_i32 : i32
    %150 = arith.index_cast %c2_i32 : i32 to index
    %c0_48 = arith.constant 0 : index
    %c0_49 = arith.constant 0 : index
    %151 = vector.load %arg1[%150, %c0_48, %c0_49] : memref<8x16x512xbf16, #tpu.memory_space<vmem>>, vector<1x16x512xbf16>
    %152 = vector.shape_cast %151 : vector<1x16x512xbf16> to vector<16x512xbf16>
    %153 = arith.extf %152 : vector<16x512xbf16> to vector<16x512xf32>
    %154 = arith.truncf %100 : vector<16x128xf32> to vector<16x128xbf16>
    %c0_50 = arith.constant 0 : index
    %c0_51 = arith.constant 0 : index
    %155 = vector.load %arg3[%c0_50, %c0_51] : memref<128x512xbf16, #tpu.memory_space<vmem>>, vector<128x512xbf16>
    %cst_52 = arith.constant dense<0.000000e+00> : vector<16x512xf32>
    %156 = tpu.matmul %154, %155, %cst_52 {dimension_numbers = #tpu.dot_dimension_numbers<[1], [0], [0], [1], [0, 0, 1, 1], [], []>} : vector<16x128xbf16>, vector<128x512xbf16>, vector<16x512xf32> -> vector<16x512xf32>
    %157 = arith.addf %153, %156 : vector<16x512xf32>
    %158 = vector.extract_strided_slice %157 {offsets = [0, 0], sizes = [16, 384], strides = [1, 1]} : vector<16x512xf32> to vector<16x384xf32>
    %159 = arith.negf %158 : vector<16x384xf32>
    %160 = math.exp %159 : vector<16x384xf32>
    %cst_53 = arith.constant 1.000000e+00 : f32
    %161 = vector.broadcast %cst_53 : f32 to vector<16x384xf32>
    %162 = arith.addf %161, %160 : vector<16x384xf32>
    %163 = arith.divf %161, %162 : vector<16x384xf32>
    %164 = vector.extract_strided_slice %157 {offsets = [0, 384], sizes = [16, 128], strides = [1, 1]} : vector<16x512xf32> to vector<16x128xf32>
    %165 = math.tanh %164 : vector<16x128xf32>
    %166 = vector.extract_strided_slice %163 {offsets = [0, 128], sizes = [16, 128], strides = [1, 1]} : vector<16x384xf32> to vector<16x128xf32>
    %167 = arith.mulf %166, %97 : vector<16x128xf32>
    %168 = vector.extract_strided_slice %163 {offsets = [0, 0], sizes = [16, 128], strides = [1, 1]} : vector<16x384xf32> to vector<16x128xf32>
    %169 = arith.mulf %168, %165 : vector<16x128xf32>
    %170 = arith.addf %167, %169 : vector<16x128xf32>
    %171 = vector.extract_strided_slice %163 {offsets = [0, 256], sizes = [16, 128], strides = [1, 1]} : vector<16x384xf32> to vector<16x128xf32>
    %172 = math.tanh %170 : vector<16x128xf32>
    %173 = arith.mulf %171, %172 : vector<16x128xf32>
    %174 = arith.index_cast %149 : i32 to index
    %c0_54 = arith.constant 0 : index
    %c0_55 = arith.constant 0 : index
    %175 = vector.load %arg2[%174, %c0_54, %c0_55] : memref<8x16x512xbf16, #tpu.memory_space<vmem>>, vector<1x16x512xbf16>
    %176 = vector.shape_cast %175 : vector<1x16x512xbf16> to vector<16x512xbf16>
    %177 = arith.extf %176 : vector<16x512xbf16> to vector<16x512xf32>
    %178 = arith.truncf %124 : vector<16x128xf32> to vector<16x128xbf16>
    %c0_56 = arith.constant 0 : index
    %c0_57 = arith.constant 0 : index
    %179 = vector.load %arg4[%c0_56, %c0_57] : memref<128x512xbf16, #tpu.memory_space<vmem>>, vector<128x512xbf16>
    %cst_58 = arith.constant dense<0.000000e+00> : vector<16x512xf32>
    %180 = tpu.matmul %178, %179, %cst_58 {dimension_numbers = #tpu.dot_dimension_numbers<[1], [0], [0], [1], [0, 0, 1, 1], [], []>} : vector<16x128xbf16>, vector<128x512xbf16>, vector<16x512xf32> -> vector<16x512xf32>
    %181 = arith.addf %177, %180 : vector<16x512xf32>
    %182 = vector.extract_strided_slice %181 {offsets = [0, 0], sizes = [16, 384], strides = [1, 1]} : vector<16x512xf32> to vector<16x384xf32>
    %183 = arith.negf %182 : vector<16x384xf32>
    %184 = math.exp %183 : vector<16x384xf32>
    %cst_59 = arith.constant 1.000000e+00 : f32
    %185 = vector.broadcast %cst_59 : f32 to vector<16x384xf32>
    %186 = arith.addf %185, %184 : vector<16x384xf32>
    %187 = arith.divf %185, %186 : vector<16x384xf32>
    %188 = vector.extract_strided_slice %181 {offsets = [0, 384], sizes = [16, 128], strides = [1, 1]} : vector<16x512xf32> to vector<16x128xf32>
    %189 = math.tanh %188 : vector<16x128xf32>
    %190 = vector.extract_strided_slice %187 {offsets = [0, 128], sizes = [16, 128], strides = [1, 1]} : vector<16x384xf32> to vector<16x128xf32>
    %191 = arith.mulf %190, %121 : vector<16x128xf32>
    %192 = vector.extract_strided_slice %187 {offsets = [0, 0], sizes = [16, 128], strides = [1, 1]} : vector<16x384xf32> to vector<16x128xf32>
    %193 = arith.mulf %192, %189 : vector<16x128xf32>
    %194 = arith.addf %191, %193 : vector<16x128xf32>
    %195 = vector.extract_strided_slice %187 {offsets = [0, 256], sizes = [16, 128], strides = [1, 1]} : vector<16x384xf32> to vector<16x128xf32>
    %196 = math.tanh %194 : vector<16x128xf32>
    %197 = arith.mulf %195, %196 : vector<16x128xf32>
    %198 = arith.index_cast %c2_i32 : i32 to index
    %c0_60 = arith.constant 0 : index
    %c0_61 = arith.constant 0 : index
    %199 = vector.load %arg7[%198, %c0_60, %c0_61] : memref<8x16x256xf32, #tpu.memory_space<vmem>>, vector<1x16x128xf32>
    %200 = vector.shape_cast %199 : vector<1x16x128xf32> to vector<16x128xf32>
    %201 = vector.shape_cast %173 : vector<16x128xf32> to vector<1x16x128xf32>
    tpu.vector_store %arg7[%198, %c0_60, %c0_61], %201 {strides = array<i32>} : memref<8x16x256xf32, #tpu.memory_space<vmem>>, vector<1x16x128xf32>,
    %202 = arith.index_cast %149 : i32 to index
    %c0_62 = arith.constant 0 : index
    %c128_63 = arith.constant 128 : index
    %203 = vector.load %arg7[%202, %c0_62, %c128_63] : memref<8x16x256xf32, #tpu.memory_space<vmem>>, vector<1x16x128xf32>
    %204 = vector.shape_cast %203 : vector<1x16x128xf32> to vector<16x128xf32>
    %205 = vector.shape_cast %197 : vector<16x128xf32> to vector<1x16x128xf32>
    tpu.vector_store %arg7[%202, %c0_62, %c128_63], %205 {strides = array<i32>} : memref<8x16x256xf32, #tpu.memory_space<vmem>>, vector<1x16x128xf32>,
    %206 = vector.broadcast %0 : vector<1x128xf32> to vector<16x128xf32>
    %207 = arith.mulf %173, %206 : vector<16x128xf32>
    %cst_64 = arith.constant dense<0.000000e+00> : vector<16xf32>
    %208 = vector.multi_reduction <add>, %207, %cst_64 [1] : vector<16x128xf32> to vector<16xf32>
    %209 = vector.shape_cast %208 : vector<16xf32> to vector<16x1xf32>
    %210 = arith.index_cast %c2_i32 : i32 to index
    %c0_65 = arith.constant 0 : index
    %c0_66 = arith.constant 0 : index
    %211 = vector.load %arg9[%210, %c0_65, %c0_66] : memref<8x16x1xf32, #tpu.memory_space<vmem>>, vector<1x16x1xf32>
    %212 = vector.shape_cast %211 : vector<1x16x1xf32> to vector<16x1xf32>
    %213 = vector.shape_cast %209 : vector<16x1xf32> to vector<1x16x1xf32>
    tpu.vector_store %arg9[%210, %c0_65, %c0_66], %213 {strides = array<i32>} : memref<8x16x1xf32, #tpu.memory_space<vmem>>, vector<1x16x1xf32>,
    %214 = vector.broadcast %1 : vector<1x128xf32> to vector<16x128xf32>
    %215 = arith.mulf %197, %214 : vector<16x128xf32>
    %cst_67 = arith.constant dense<0.000000e+00> : vector<16xf32>
    %216 = vector.multi_reduction <add>, %215, %cst_67 [1] : vector<16x128xf32> to vector<16xf32>
    %217 = vector.shape_cast %216 : vector<16xf32> to vector<16x1xf32>
    %218 = arith.index_cast %149 : i32 to index
    %c0_68 = arith.constant 0 : index
    %c0_69 = arith.constant 0 : index
    %219 = vector.load %arg10[%218, %c0_68, %c0_69] : memref<8x16x1xf32, #tpu.memory_space<vmem>>, vector<1x16x1xf32>
    %220 = vector.shape_cast %219 : vector<1x16x1xf32> to vector<16x1xf32>
    %221 = vector.shape_cast %217 : vector<16x1xf32> to vector<1x16x1xf32>
    tpu.vector_store %arg10[%218, %c0_68, %c0_69], %221 {strides = array<i32>} : memref<8x16x1xf32, #tpu.memory_space<vmem>>, vector<1x16x1xf32>,
    %c3_i32 = arith.constant 3 : i32
    %c7_i32_70 = arith.constant 7 : i32
    %222 = arith.subi %c7_i32_70, %c3_i32 : i32
    %223 = arith.index_cast %c3_i32 : i32 to index
    %c0_71 = arith.constant 0 : index
    %c0_72 = arith.constant 0 : index
    %224 = vector.load %arg1[%223, %c0_71, %c0_72] : memref<8x16x512xbf16, #tpu.memory_space<vmem>>, vector<1x16x512xbf16>
    %225 = vector.shape_cast %224 : vector<1x16x512xbf16> to vector<16x512xbf16>
    %226 = arith.extf %225 : vector<16x512xbf16> to vector<16x512xf32>
    %227 = arith.truncf %173 : vector<16x128xf32> to vector<16x128xbf16>
    %c0_73 = arith.constant 0 : index
    %c0_74 = arith.constant 0 : index
    %228 = vector.load %arg3[%c0_73, %c0_74] : memref<128x512xbf16, #tpu.memory_space<vmem>>, vector<128x512xbf16>
    %cst_75 = arith.constant dense<0.000000e+00> : vector<16x512xf32>
    %229 = tpu.matmul %227, %228, %cst_75 {dimension_numbers = #tpu.dot_dimension_numbers<[1], [0], [0], [1], [0, 0, 1, 1], [], []>} : vector<16x128xbf16>, vector<128x512xbf16>, vector<16x512xf32> -> vector<16x512xf32>
    %230 = arith.addf %226, %229 : vector<16x512xf32>
    %231 = vector.extract_strided_slice %230 {offsets = [0, 0], sizes = [16, 384], strides = [1, 1]} : vector<16x512xf32> to vector<16x384xf32>
    %232 = arith.negf %231 : vector<16x384xf32>
    %233 = math.exp %232 : vector<16x384xf32>
    %cst_76 = arith.constant 1.000000e+00 : f32
    %234 = vector.broadcast %cst_76 : f32 to vector<16x384xf32>
    %235 = arith.addf %234, %233 : vector<16x384xf32>
    %236 = arith.divf %234, %235 : vector<16x384xf32>
    %237 = vector.extract_strided_slice %230 {offsets = [0, 384], sizes = [16, 128], strides = [1, 1]} : vector<16x512xf32> to vector<16x128xf32>
    %238 = math.tanh %237 : vector<16x128xf32>
    %239 = vector.extract_strided_slice %236 {offsets = [0, 128], sizes = [16, 128], strides = [1, 1]} : vector<16x384xf32> to vector<16x128xf32>
    %240 = arith.mulf %239, %170 : vector<16x128xf32>
    %241 = vector.extract_strided_slice %236 {offsets = [0, 0], sizes = [16, 128], strides = [1, 1]} : vector<16x384xf32> to vector<16x128xf32>
    %242 = arith.mulf %241, %238 : vector<16x128xf32>
    %243 = arith.addf %240, %242 : vector<16x128xf32>
    %244 = vector.extract_strided_slice %236 {offsets = [0, 256], sizes = [16, 128], strides = [1, 1]} : vector<16x384xf32> to vector<16x128xf32>
    %245 = math.tanh %243 : vector<16x128xf32>
    %246 = arith.mulf %244, %245 : vector<16x128xf32>
    %247 = arith.index_cast %222 : i32 to index
    %c0_77 = arith.constant 0 : index
    %c0_78 = arith.constant 0 : index
    %248 = vector.load %arg2[%247, %c0_77, %c0_78] : memref<8x16x512xbf16, #tpu.memory_space<vmem>>, vector<1x16x512xbf16>
    %249 = vector.shape_cast %248 : vector<1x16x512xbf16> to vector<16x512xbf16>
    %250 = arith.extf %249 : vector<16x512xbf16> to vector<16x512xf32>
    %251 = arith.truncf %197 : vector<16x128xf32> to vector<16x128xbf16>
    %c0_79 = arith.constant 0 : index
    %c0_80 = arith.constant 0 : index
    %252 = vector.load %arg4[%c0_79, %c0_80] : memref<128x512xbf16, #tpu.memory_space<vmem>>, vector<128x512xbf16>
    %cst_81 = arith.constant dense<0.000000e+00> : vector<16x512xf32>
    %253 = tpu.matmul %251, %252, %cst_81 {dimension_numbers = #tpu.dot_dimension_numbers<[1], [0], [0], [1], [0, 0, 1, 1], [], []>} : vector<16x128xbf16>, vector<128x512xbf16>, vector<16x512xf32> -> vector<16x512xf32>
    %254 = arith.addf %250, %253 : vector<16x512xf32>
    %255 = vector.extract_strided_slice %254 {offsets = [0, 0], sizes = [16, 384], strides = [1, 1]} : vector<16x512xf32> to vector<16x384xf32>
    %256 = arith.negf %255 : vector<16x384xf32>
    %257 = math.exp %256 : vector<16x384xf32>
    %cst_82 = arith.constant 1.000000e+00 : f32
    %258 = vector.broadcast %cst_82 : f32 to vector<16x384xf32>
    %259 = arith.addf %258, %257 : vector<16x384xf32>
    %260 = arith.divf %258, %259 : vector<16x384xf32>
    %261 = vector.extract_strided_slice %254 {offsets = [0, 384], sizes = [16, 128], strides = [1, 1]} : vector<16x512xf32> to vector<16x128xf32>
    %262 = math.tanh %261 : vector<16x128xf32>
    %263 = vector.extract_strided_slice %260 {offsets = [0, 128], sizes = [16, 128], strides = [1, 1]} : vector<16x384xf32> to vector<16x128xf32>
    %264 = arith.mulf %263, %194 : vector<16x128xf32>
    %265 = vector.extract_strided_slice %260 {offsets = [0, 0], sizes = [16, 128], strides = [1, 1]} : vector<16x384xf32> to vector<16x128xf32>
    %266 = arith.mulf %265, %262 : vector<16x128xf32>
    %267 = arith.addf %264, %266 : vector<16x128xf32>
    %268 = vector.extract_strided_slice %260 {offsets = [0, 256], sizes = [16, 128], strides = [1, 1]} : vector<16x384xf32> to vector<16x128xf32>
    %269 = math.tanh %267 : vector<16x128xf32>
    %270 = arith.mulf %268, %269 : vector<16x128xf32>
    %271 = arith.index_cast %c3_i32 : i32 to index
    %c0_83 = arith.constant 0 : index
    %c0_84 = arith.constant 0 : index
    %272 = vector.load %arg7[%271, %c0_83, %c0_84] : memref<8x16x256xf32, #tpu.memory_space<vmem>>, vector<1x16x128xf32>
    %273 = vector.shape_cast %272 : vector<1x16x128xf32> to vector<16x128xf32>
    %274 = vector.shape_cast %246 : vector<16x128xf32> to vector<1x16x128xf32>
    tpu.vector_store %arg7[%271, %c0_83, %c0_84], %274 {strides = array<i32>} : memref<8x16x256xf32, #tpu.memory_space<vmem>>, vector<1x16x128xf32>,
    %275 = arith.index_cast %222 : i32 to index
    %c0_85 = arith.constant 0 : index
    %c128_86 = arith.constant 128 : index
    %276 = vector.load %arg7[%275, %c0_85, %c128_86] : memref<8x16x256xf32, #tpu.memory_space<vmem>>, vector<1x16x128xf32>
    %277 = vector.shape_cast %276 : vector<1x16x128xf32> to vector<16x128xf32>
    %278 = vector.shape_cast %270 : vector<16x128xf32> to vector<1x16x128xf32>
    tpu.vector_store %arg7[%275, %c0_85, %c128_86], %278 {strides = array<i32>} : memref<8x16x256xf32, #tpu.memory_space<vmem>>, vector<1x16x128xf32>,
    %279 = vector.broadcast %0 : vector<1x128xf32> to vector<16x128xf32>
    %280 = arith.mulf %246, %279 : vector<16x128xf32>
    %cst_87 = arith.constant dense<0.000000e+00> : vector<16xf32>
    %281 = vector.multi_reduction <add>, %280, %cst_87 [1] : vector<16x128xf32> to vector<16xf32>
    %282 = vector.shape_cast %281 : vector<16xf32> to vector<16x1xf32>
    %283 = arith.index_cast %c3_i32 : i32 to index
    %c0_88 = arith.constant 0 : index
    %c0_89 = arith.constant 0 : index
    %284 = vector.load %arg9[%283, %c0_88, %c0_89] : memref<8x16x1xf32, #tpu.memory_space<vmem>>, vector<1x16x1xf32>
    %285 = vector.shape_cast %284 : vector<1x16x1xf32> to vector<16x1xf32>
    %286 = vector.shape_cast %282 : vector<16x1xf32> to vector<1x16x1xf32>
    tpu.vector_store %arg9[%283, %c0_88, %c0_89], %286 {strides = array<i32>} : memref<8x16x1xf32, #tpu.memory_space<vmem>>, vector<1x16x1xf32>,
    %287 = vector.broadcast %1 : vector<1x128xf32> to vector<16x128xf32>
    %288 = arith.mulf %270, %287 : vector<16x128xf32>
    %cst_90 = arith.constant dense<0.000000e+00> : vector<16xf32>
    %289 = vector.multi_reduction <add>, %288, %cst_90 [1] : vector<16x128xf32> to vector<16xf32>
    %290 = vector.shape_cast %289 : vector<16xf32> to vector<16x1xf32>
    %291 = arith.index_cast %222 : i32 to index
    %c0_91 = arith.constant 0 : index
    %c0_92 = arith.constant 0 : index
    %292 = vector.load %arg10[%291, %c0_91, %c0_92] : memref<8x16x1xf32, #tpu.memory_space<vmem>>, vector<1x16x1xf32>
    %293 = vector.shape_cast %292 : vector<1x16x1xf32> to vector<16x1xf32>
    %294 = vector.shape_cast %290 : vector<16x1xf32> to vector<1x16x1xf32>
    tpu.vector_store %arg10[%291, %c0_91, %c0_92], %294 {strides = array<i32>} : memref<8x16x1xf32, #tpu.memory_space<vmem>>, vector<1x16x1xf32>,
    %c4_i32 = arith.constant 4 : i32
    %c7_i32_93 = arith.constant 7 : i32
    %295 = arith.subi %c7_i32_93, %c4_i32 : i32
    %296 = arith.index_cast %c4_i32 : i32 to index
    %c0_94 = arith.constant 0 : index
    %c0_95 = arith.constant 0 : index
    %297 = vector.load %arg1[%296, %c0_94, %c0_95] : memref<8x16x512xbf16, #tpu.memory_space<vmem>>, vector<1x16x512xbf16>
    %298 = vector.shape_cast %297 : vector<1x16x512xbf16> to vector<16x512xbf16>
    %299 = arith.extf %298 : vector<16x512xbf16> to vector<16x512xf32>
    %300 = arith.truncf %246 : vector<16x128xf32> to vector<16x128xbf16>
    %c0_96 = arith.constant 0 : index
    %c0_97 = arith.constant 0 : index
    %301 = vector.load %arg3[%c0_96, %c0_97] : memref<128x512xbf16, #tpu.memory_space<vmem>>, vector<128x512xbf16>
    %cst_98 = arith.constant dense<0.000000e+00> : vector<16x512xf32>
    %302 = tpu.matmul %300, %301, %cst_98 {dimension_numbers = #tpu.dot_dimension_numbers<[1], [0], [0], [1], [0, 0, 1, 1], [], []>} : vector<16x128xbf16>, vector<128x512xbf16>, vector<16x512xf32> -> vector<16x512xf32>
    %303 = arith.addf %299, %302 : vector<16x512xf32>
    %304 = vector.extract_strided_slice %303 {offsets = [0, 0], sizes = [16, 384], strides = [1, 1]} : vector<16x512xf32> to vector<16x384xf32>
    %305 = arith.negf %304 : vector<16x384xf32>
    %306 = math.exp %305 : vector<16x384xf32>
    %cst_99 = arith.constant 1.000000e+00 : f32
    %307 = vector.broadcast %cst_99 : f32 to vector<16x384xf32>
    %308 = arith.addf %307, %306 : vector<16x384xf32>
    %309 = arith.divf %307, %308 : vector<16x384xf32>
    %310 = vector.extract_strided_slice %303 {offsets = [0, 384], sizes = [16, 128], strides = [1, 1]} : vector<16x512xf32> to vector<16x128xf32>
    %311 = math.tanh %310 : vector<16x128xf32>
    %312 = vector.extract_strided_slice %309 {offsets = [0, 128], sizes = [16, 128], strides = [1, 1]} : vector<16x384xf32> to vector<16x128xf32>
    %313 = arith.mulf %312, %243 : vector<16x128xf32>
    %314 = vector.extract_strided_slice %309 {offsets = [0, 0], sizes = [16, 128], strides = [1, 1]} : vector<16x384xf32> to vector<16x128xf32>
    %315 = arith.mulf %314, %311 : vector<16x128xf32>
    %316 = arith.addf %313, %315 : vector<16x128xf32>
    %317 = vector.extract_strided_slice %309 {offsets = [0, 256], sizes = [16, 128], strides = [1, 1]} : vector<16x384xf32> to vector<16x128xf32>
    %318 = math.tanh %316 : vector<16x128xf32>
    %319 = arith.mulf %317, %318 : vector<16x128xf32>
    %320 = arith.index_cast %295 : i32 to index
    %c0_100 = arith.constant 0 : index
    %c0_101 = arith.constant 0 : index
    %321 = vector.load %arg2[%320, %c0_100, %c0_101] : memref<8x16x512xbf16, #tpu.memory_space<vmem>>, vector<1x16x512xbf16>
    %322 = vector.shape_cast %321 : vector<1x16x512xbf16> to vector<16x512xbf16>
    %323 = arith.extf %322 : vector<16x512xbf16> to vector<16x512xf32>
    %324 = arith.truncf %270 : vector<16x128xf32> to vector<16x128xbf16>
    %c0_102 = arith.constant 0 : index
    %c0_103 = arith.constant 0 : index
    %325 = vector.load %arg4[%c0_102, %c0_103] : memref<128x512xbf16, #tpu.memory_space<vmem>>, vector<128x512xbf16>
    %cst_104 = arith.constant dense<0.000000e+00> : vector<16x512xf32>
    %326 = tpu.matmul %324, %325, %cst_104 {dimension_numbers = #tpu.dot_dimension_numbers<[1], [0], [0], [1], [0, 0, 1, 1], [], []>} : vector<16x128xbf16>, vector<128x512xbf16>, vector<16x512xf32> -> vector<16x512xf32>
    %327 = arith.addf %323, %326 : vector<16x512xf32>
    %328 = vector.extract_strided_slice %327 {offsets = [0, 0], sizes = [16, 384], strides = [1, 1]} : vector<16x512xf32> to vector<16x384xf32>
    %329 = arith.negf %328 : vector<16x384xf32>
    %330 = math.exp %329 : vector<16x384xf32>
    %cst_105 = arith.constant 1.000000e+00 : f32
    %331 = vector.broadcast %cst_105 : f32 to vector<16x384xf32>
    %332 = arith.addf %331, %330 : vector<16x384xf32>
    %333 = arith.divf %331, %332 : vector<16x384xf32>
    %334 = vector.extract_strided_slice %327 {offsets = [0, 384], sizes = [16, 128], strides = [1, 1]} : vector<16x512xf32> to vector<16x128xf32>
    %335 = math.tanh %334 : vector<16x128xf32>
    %336 = vector.extract_strided_slice %333 {offsets = [0, 128], sizes = [16, 128], strides = [1, 1]} : vector<16x384xf32> to vector<16x128xf32>
    %337 = arith.mulf %336, %267 : vector<16x128xf32>
    %338 = vector.extract_strided_slice %333 {offsets = [0, 0], sizes = [16, 128], strides = [1, 1]} : vector<16x384xf32> to vector<16x128xf32>
    %339 = arith.mulf %338, %335 : vector<16x128xf32>
    %340 = arith.addf %337, %339 : vector<16x128xf32>
    %341 = vector.extract_strided_slice %333 {offsets = [0, 256], sizes = [16, 128], strides = [1, 1]} : vector<16x384xf32> to vector<16x128xf32>
    %342 = math.tanh %340 : vector<16x128xf32>
    %343 = arith.mulf %341, %342 : vector<16x128xf32>
    %344 = arith.index_cast %c4_i32 : i32 to index
    %c0_106 = arith.constant 0 : index
    %c0_107 = arith.constant 0 : index
    %345 = vector.load %arg7[%344, %c0_106, %c0_107] : memref<8x16x256xf32, #tpu.memory_space<vmem>>, vector<1x16x128xf32>
    %346 = vector.shape_cast %345 : vector<1x16x128xf32> to vector<16x128xf32>
    %347 = vector.shape_cast %319 : vector<16x128xf32> to vector<1x16x128xf32>
    tpu.vector_store %arg7[%344, %c0_106, %c0_107], %347 {strides = array<i32>} : memref<8x16x256xf32, #tpu.memory_space<vmem>>, vector<1x16x128xf32>,
    %348 = arith.index_cast %295 : i32 to index
    %c0_108 = arith.constant 0 : index
    %c128_109 = arith.constant 128 : index
    %349 = vector.load %arg7[%348, %c0_108, %c128_109] : memref<8x16x256xf32, #tpu.memory_space<vmem>>, vector<1x16x128xf32>
    %350 = vector.shape_cast %349 : vector<1x16x128xf32> to vector<16x128xf32>
    %351 = vector.shape_cast %343 : vector<16x128xf32> to vector<1x16x128xf32>
    tpu.vector_store %arg7[%348, %c0_108, %c128_109], %351 {strides = array<i32>} : memref<8x16x256xf32, #tpu.memory_space<vmem>>, vector<1x16x128xf32>,
    %352 = vector.broadcast %0 : vector<1x128xf32> to vector<16x128xf32>
    %353 = arith.mulf %319, %352 : vector<16x128xf32>
    %cst_110 = arith.constant dense<0.000000e+00> : vector<16xf32>
    %354 = vector.multi_reduction <add>, %353, %cst_110 [1] : vector<16x128xf32> to vector<16xf32>
    %355 = vector.shape_cast %354 : vector<16xf32> to vector<16x1xf32>
    %356 = arith.index_cast %c4_i32 : i32 to index
    %c0_111 = arith.constant 0 : index
    %c0_112 = arith.constant 0 : index
    %357 = vector.load %arg9[%356, %c0_111, %c0_112] : memref<8x16x1xf32, #tpu.memory_space<vmem>>, vector<1x16x1xf32>
    %358 = vector.shape_cast %357 : vector<1x16x1xf32> to vector<16x1xf32>
    %359 = vector.shape_cast %355 : vector<16x1xf32> to vector<1x16x1xf32>
    tpu.vector_store %arg9[%356, %c0_111, %c0_112], %359 {strides = array<i32>} : memref<8x16x1xf32, #tpu.memory_space<vmem>>, vector<1x16x1xf32>,
    %360 = vector.broadcast %1 : vector<1x128xf32> to vector<16x128xf32>
    %361 = arith.mulf %343, %360 : vector<16x128xf32>
    %cst_113 = arith.constant dense<0.000000e+00> : vector<16xf32>
    %362 = vector.multi_reduction <add>, %361, %cst_113 [1] : vector<16x128xf32> to vector<16xf32>
    %363 = vector.shape_cast %362 : vector<16xf32> to vector<16x1xf32>
    %364 = arith.index_cast %295 : i32 to index
    %c0_114 = arith.constant 0 : index
    %c0_115 = arith.constant 0 : index
    %365 = vector.load %arg10[%364, %c0_114, %c0_115] : memref<8x16x1xf32, #tpu.memory_space<vmem>>, vector<1x16x1xf32>
    %366 = vector.shape_cast %365 : vector<1x16x1xf32> to vector<16x1xf32>
    %367 = vector.shape_cast %363 : vector<16x1xf32> to vector<1x16x1xf32>
    tpu.vector_store %arg10[%364, %c0_114, %c0_115], %367 {strides = array<i32>} : memref<8x16x1xf32, #tpu.memory_space<vmem>>, vector<1x16x1xf32>,
    %c5_i32 = arith.constant 5 : i32
    %c7_i32_116 = arith.constant 7 : i32
    %368 = arith.subi %c7_i32_116, %c5_i32 : i32
    %369 = arith.index_cast %c5_i32 : i32 to index
    %c0_117 = arith.constant 0 : index
    %c0_118 = arith.constant 0 : index
    %370 = vector.load %arg1[%369, %c0_117, %c0_118] : memref<8x16x512xbf16, #tpu.memory_space<vmem>>, vector<1x16x512xbf16>
    %371 = vector.shape_cast %370 : vector<1x16x512xbf16> to vector<16x512xbf16>
    %372 = arith.extf %371 : vector<16x512xbf16> to vector<16x512xf32>
    %373 = arith.truncf %319 : vector<16x128xf32> to vector<16x128xbf16>
    %c0_119 = arith.constant 0 : index
    %c0_120 = arith.constant 0 : index
    %374 = vector.load %arg3[%c0_119, %c0_120] : memref<128x512xbf16, #tpu.memory_space<vmem>>, vector<128x512xbf16>
    %cst_121 = arith.constant dense<0.000000e+00> : vector<16x512xf32>
    %375 = tpu.matmul %373, %374, %cst_121 {dimension_numbers = #tpu.dot_dimension_numbers<[1], [0], [0], [1], [0, 0, 1, 1], [], []>} : vector<16x128xbf16>, vector<128x512xbf16>, vector<16x512xf32> -> vector<16x512xf32>
    %376 = arith.addf %372, %375 : vector<16x512xf32>
    %377 = vector.extract_strided_slice %376 {offsets = [0, 0], sizes = [16, 384], strides = [1, 1]} : vector<16x512xf32> to vector<16x384xf32>
    %378 = arith.negf %377 : vector<16x384xf32>
    %379 = math.exp %378 : vector<16x384xf32>
    %cst_122 = arith.constant 1.000000e+00 : f32
    %380 = vector.broadcast %cst_122 : f32 to vector<16x384xf32>
    %381 = arith.addf %380, %379 : vector<16x384xf32>
    %382 = arith.divf %380, %381 : vector<16x384xf32>
    %383 = vector.extract_strided_slice %376 {offsets = [0, 384], sizes = [16, 128], strides = [1, 1]} : vector<16x512xf32> to vector<16x128xf32>
    %384 = math.tanh %383 : vector<16x128xf32>
    %385 = vector.extract_strided_slice %382 {offsets = [0, 128], sizes = [16, 128], strides = [1, 1]} : vector<16x384xf32> to vector<16x128xf32>
    %386 = arith.mulf %385, %316 : vector<16x128xf32>
    %387 = vector.extract_strided_slice %382 {offsets = [0, 0], sizes = [16, 128], strides = [1, 1]} : vector<16x384xf32> to vector<16x128xf32>
    %388 = arith.mulf %387, %384 : vector<16x128xf32>
    %389 = arith.addf %386, %388 : vector<16x128xf32>
    %390 = vector.extract_strided_slice %382 {offsets = [0, 256], sizes = [16, 128], strides = [1, 1]} : vector<16x384xf32> to vector<16x128xf32>
    %391 = math.tanh %389 : vector<16x128xf32>
    %392 = arith.mulf %390, %391 : vector<16x128xf32>
    %393 = arith.index_cast %368 : i32 to index
    %c0_123 = arith.constant 0 : index
    %c0_124 = arith.constant 0 : index
    %394 = vector.load %arg2[%393, %c0_123, %c0_124] : memref<8x16x512xbf16, #tpu.memory_space<vmem>>, vector<1x16x512xbf16>
    %395 = vector.shape_cast %394 : vector<1x16x512xbf16> to vector<16x512xbf16>
    %396 = arith.extf %395 : vector<16x512xbf16> to vector<16x512xf32>
    %397 = arith.truncf %343 : vector<16x128xf32> to vector<16x128xbf16>
    %c0_125 = arith.constant 0 : index
    %c0_126 = arith.constant 0 : index
    %398 = vector.load %arg4[%c0_125, %c0_126] : memref<128x512xbf16, #tpu.memory_space<vmem>>, vector<128x512xbf16>
    %cst_127 = arith.constant dense<0.000000e+00> : vector<16x512xf32>
    %399 = tpu.matmul %397, %398, %cst_127 {dimension_numbers = #tpu.dot_dimension_numbers<[1], [0], [0], [1], [0, 0, 1, 1], [], []>} : vector<16x128xbf16>, vector<128x512xbf16>, vector<16x512xf32> -> vector<16x512xf32>
    %400 = arith.addf %396, %399 : vector<16x512xf32>
    %401 = vector.extract_strided_slice %400 {offsets = [0, 0], sizes = [16, 384], strides = [1, 1]} : vector<16x512xf32> to vector<16x384xf32>
    %402 = arith.negf %401 : vector<16x384xf32>
    %403 = math.exp %402 : vector<16x384xf32>
    %cst_128 = arith.constant 1.000000e+00 : f32
    %404 = vector.broadcast %cst_128 : f32 to vector<16x384xf32>
    %405 = arith.addf %404, %403 : vector<16x384xf32>
    %406 = arith.divf %404, %405 : vector<16x384xf32>
    %407 = vector.extract_strided_slice %400 {offsets = [0, 384], sizes = [16, 128], strides = [1, 1]} : vector<16x512xf32> to vector<16x128xf32>
    %408 = math.tanh %407 : vector<16x128xf32>
    %409 = vector.extract_strided_slice %406 {offsets = [0, 128], sizes = [16, 128], strides = [1, 1]} : vector<16x384xf32> to vector<16x128xf32>
    %410 = arith.mulf %409, %340 : vector<16x128xf32>
    %411 = vector.extract_strided_slice %406 {offsets = [0, 0], sizes = [16, 128], strides = [1, 1]} : vector<16x384xf32> to vector<16x128xf32>
    %412 = arith.mulf %411, %408 : vector<16x128xf32>
    %413 = arith.addf %410, %412 : vector<16x128xf32>
    %414 = vector.extract_strided_slice %406 {offsets = [0, 256], sizes = [16, 128], strides = [1, 1]} : vector<16x384xf32> to vector<16x128xf32>
    %415 = math.tanh %413 : vector<16x128xf32>
    %416 = arith.mulf %414, %415 : vector<16x128xf32>
    %417 = arith.index_cast %c5_i32 : i32 to index
    %c0_129 = arith.constant 0 : index
    %c0_130 = arith.constant 0 : index
    %418 = vector.load %arg7[%417, %c0_129, %c0_130] : memref<8x16x256xf32, #tpu.memory_space<vmem>>, vector<1x16x128xf32>
    %419 = vector.shape_cast %418 : vector<1x16x128xf32> to vector<16x128xf32>
    %420 = vector.shape_cast %392 : vector<16x128xf32> to vector<1x16x128xf32>
    tpu.vector_store %arg7[%417, %c0_129, %c0_130], %420 {strides = array<i32>} : memref<8x16x256xf32, #tpu.memory_space<vmem>>, vector<1x16x128xf32>,
    %421 = arith.index_cast %368 : i32 to index
    %c0_131 = arith.constant 0 : index
    %c128_132 = arith.constant 128 : index
    %422 = vector.load %arg7[%421, %c0_131, %c128_132] : memref<8x16x256xf32, #tpu.memory_space<vmem>>, vector<1x16x128xf32>
    %423 = vector.shape_cast %422 : vector<1x16x128xf32> to vector<16x128xf32>
    %424 = vector.shape_cast %416 : vector<16x128xf32> to vector<1x16x128xf32>
    tpu.vector_store %arg7[%421, %c0_131, %c128_132], %424 {strides = array<i32>} : memref<8x16x256xf32, #tpu.memory_space<vmem>>, vector<1x16x128xf32>,
    %425 = vector.broadcast %0 : vector<1x128xf32> to vector<16x128xf32>
    %426 = arith.mulf %392, %425 : vector<16x128xf32>
    %cst_133 = arith.constant dense<0.000000e+00> : vector<16xf32>
    %427 = vector.multi_reduction <add>, %426, %cst_133 [1] : vector<16x128xf32> to vector<16xf32>
    %428 = vector.shape_cast %427 : vector<16xf32> to vector<16x1xf32>
    %429 = arith.index_cast %c5_i32 : i32 to index
    %c0_134 = arith.constant 0 : index
    %c0_135 = arith.constant 0 : index
    %430 = vector.load %arg9[%429, %c0_134, %c0_135] : memref<8x16x1xf32, #tpu.memory_space<vmem>>, vector<1x16x1xf32>
    %431 = vector.shape_cast %430 : vector<1x16x1xf32> to vector<16x1xf32>
    %432 = vector.shape_cast %428 : vector<16x1xf32> to vector<1x16x1xf32>
    tpu.vector_store %arg9[%429, %c0_134, %c0_135], %432 {strides = array<i32>} : memref<8x16x1xf32, #tpu.memory_space<vmem>>, vector<1x16x1xf32>,
    %433 = vector.broadcast %1 : vector<1x128xf32> to vector<16x128xf32>
    %434 = arith.mulf %416, %433 : vector<16x128xf32>
    %cst_136 = arith.constant dense<0.000000e+00> : vector<16xf32>
    %435 = vector.multi_reduction <add>, %434, %cst_136 [1] : vector<16x128xf32> to vector<16xf32>
    %436 = vector.shape_cast %435 : vector<16xf32> to vector<16x1xf32>
    %437 = arith.index_cast %368 : i32 to index
    %c0_137 = arith.constant 0 : index
    %c0_138 = arith.constant 0 : index
    %438 = vector.load %arg10[%437, %c0_137, %c0_138] : memref<8x16x1xf32, #tpu.memory_space<vmem>>, vector<1x16x1xf32>
    %439 = vector.shape_cast %438 : vector<1x16x1xf32> to vector<16x1xf32>
    %440 = vector.shape_cast %436 : vector<16x1xf32> to vector<1x16x1xf32>
    tpu.vector_store %arg10[%437, %c0_137, %c0_138], %440 {strides = array<i32>} : memref<8x16x1xf32, #tpu.memory_space<vmem>>, vector<1x16x1xf32>,
    %c6_i32 = arith.constant 6 : i32
    %c7_i32_139 = arith.constant 7 : i32
    %441 = arith.subi %c7_i32_139, %c6_i32 : i32
    %442 = arith.index_cast %c6_i32 : i32 to index
    %c0_140 = arith.constant 0 : index
    %c0_141 = arith.constant 0 : index
    %443 = vector.load %arg1[%442, %c0_140, %c0_141] : memref<8x16x512xbf16, #tpu.memory_space<vmem>>, vector<1x16x512xbf16>
    %444 = vector.shape_cast %443 : vector<1x16x512xbf16> to vector<16x512xbf16>
    %445 = arith.extf %444 : vector<16x512xbf16> to vector<16x512xf32>
    %446 = arith.truncf %392 : vector<16x128xf32> to vector<16x128xbf16>
    %c0_142 = arith.constant 0 : index
    %c0_143 = arith.constant 0 : index
    %447 = vector.load %arg3[%c0_142, %c0_143] : memref<128x512xbf16, #tpu.memory_space<vmem>>, vector<128x512xbf16>
    %cst_144 = arith.constant dense<0.000000e+00> : vector<16x512xf32>
    %448 = tpu.matmul %446, %447, %cst_144 {dimension_numbers = #tpu.dot_dimension_numbers<[1], [0], [0], [1], [0, 0, 1, 1], [], []>} : vector<16x128xbf16>, vector<128x512xbf16>, vector<16x512xf32> -> vector<16x512xf32>
    %449 = arith.addf %445, %448 : vector<16x512xf32>
    %450 = vector.extract_strided_slice %449 {offsets = [0, 0], sizes = [16, 384], strides = [1, 1]} : vector<16x512xf32> to vector<16x384xf32>
    %451 = arith.negf %450 : vector<16x384xf32>
    %452 = math.exp %451 : vector<16x384xf32>
    %cst_145 = arith.constant 1.000000e+00 : f32
    %453 = vector.broadcast %cst_145 : f32 to vector<16x384xf32>
    %454 = arith.addf %453, %452 : vector<16x384xf32>
    %455 = arith.divf %453, %454 : vector<16x384xf32>
    %456 = vector.extract_strided_slice %449 {offsets = [0, 384], sizes = [16, 128], strides = [1, 1]} : vector<16x512xf32> to vector<16x128xf32>
    %457 = math.tanh %456 : vector<16x128xf32>
    %458 = vector.extract_strided_slice %455 {offsets = [0, 128], sizes = [16, 128], strides = [1, 1]} : vector<16x384xf32> to vector<16x128xf32>
    %459 = arith.mulf %458, %389 : vector<16x128xf32>
    %460 = vector.extract_strided_slice %455 {offsets = [0, 0], sizes = [16, 128], strides = [1, 1]} : vector<16x384xf32> to vector<16x128xf32>
    %461 = arith.mulf %460, %457 : vector<16x128xf32>
    %462 = arith.addf %459, %461 : vector<16x128xf32>
    %463 = vector.extract_strided_slice %455 {offsets = [0, 256], sizes = [16, 128], strides = [1, 1]} : vector<16x384xf32> to vector<16x128xf32>
    %464 = math.tanh %462 : vector<16x128xf32>
    %465 = arith.mulf %463, %464 : vector<16x128xf32>
    %466 = arith.index_cast %441 : i32 to index
    %c0_146 = arith.constant 0 : index
    %c0_147 = arith.constant 0 : index
    %467 = vector.load %arg2[%466, %c0_146, %c0_147] : memref<8x16x512xbf16, #tpu.memory_space<vmem>>, vector<1x16x512xbf16>
    %468 = vector.shape_cast %467 : vector<1x16x512xbf16> to vector<16x512xbf16>
    %469 = arith.extf %468 : vector<16x512xbf16> to vector<16x512xf32>
    %470 = arith.truncf %416 : vector<16x128xf32> to vector<16x128xbf16>
    %c0_148 = arith.constant 0 : index
    %c0_149 = arith.constant 0 : index
    %471 = vector.load %arg4[%c0_148, %c0_149] : memref<128x512xbf16, #tpu.memory_space<vmem>>, vector<128x512xbf16>
    %cst_150 = arith.constant dense<0.000000e+00> : vector<16x512xf32>
    %472 = tpu.matmul %470, %471, %cst_150 {dimension_numbers = #tpu.dot_dimension_numbers<[1], [0], [0], [1], [0, 0, 1, 1], [], []>} : vector<16x128xbf16>, vector<128x512xbf16>, vector<16x512xf32> -> vector<16x512xf32>
    %473 = arith.addf %469, %472 : vector<16x512xf32>
    %474 = vector.extract_strided_slice %473 {offsets = [0, 0], sizes = [16, 384], strides = [1, 1]} : vector<16x512xf32> to vector<16x384xf32>
    %475 = arith.negf %474 : vector<16x384xf32>
    %476 = math.exp %475 : vector<16x384xf32>
    %cst_151 = arith.constant 1.000000e+00 : f32
    %477 = vector.broadcast %cst_151 : f32 to vector<16x384xf32>
    %478 = arith.addf %477, %476 : vector<16x384xf32>
    %479 = arith.divf %477, %478 : vector<16x384xf32>
    %480 = vector.extract_strided_slice %473 {offsets = [0, 384], sizes = [16, 128], strides = [1, 1]} : vector<16x512xf32> to vector<16x128xf32>
    %481 = math.tanh %480 : vector<16x128xf32>
    %482 = vector.extract_strided_slice %479 {offsets = [0, 128], sizes = [16, 128], strides = [1, 1]} : vector<16x384xf32> to vector<16x128xf32>
    %483 = arith.mulf %482, %413 : vector<16x128xf32>
    %484 = vector.extract_strided_slice %479 {offsets = [0, 0], sizes = [16, 128], strides = [1, 1]} : vector<16x384xf32> to vector<16x128xf32>
    %485 = arith.mulf %484, %481 : vector<16x128xf32>
    %486 = arith.addf %483, %485 : vector<16x128xf32>
    %487 = vector.extract_strided_slice %479 {offsets = [0, 256], sizes = [16, 128], strides = [1, 1]} : vector<16x384xf32> to vector<16x128xf32>
    %488 = math.tanh %486 : vector<16x128xf32>
    %489 = arith.mulf %487, %488 : vector<16x128xf32>
    %490 = arith.index_cast %c6_i32 : i32 to index
    %c0_152 = arith.constant 0 : index
    %c0_153 = arith.constant 0 : index
    %491 = vector.load %arg7[%490, %c0_152, %c0_153] : memref<8x16x256xf32, #tpu.memory_space<vmem>>, vector<1x16x128xf32>
    %492 = vector.shape_cast %491 : vector<1x16x128xf32> to vector<16x128xf32>
    %493 = vector.shape_cast %465 : vector<16x128xf32> to vector<1x16x128xf32>
    tpu.vector_store %arg7[%490, %c0_152, %c0_153], %493 {strides = array<i32>} : memref<8x16x256xf32, #tpu.memory_space<vmem>>, vector<1x16x128xf32>,
    %494 = arith.index_cast %441 : i32 to index
    %c0_154 = arith.constant 0 : index
    %c128_155 = arith.constant 128 : index
    %495 = vector.load %arg7[%494, %c0_154, %c128_155] : memref<8x16x256xf32, #tpu.memory_space<vmem>>, vector<1x16x128xf32>
    %496 = vector.shape_cast %495 : vector<1x16x128xf32> to vector<16x128xf32>
    %497 = vector.shape_cast %489 : vector<16x128xf32> to vector<1x16x128xf32>
    tpu.vector_store %arg7[%494, %c0_154, %c128_155], %497 {strides = array<i32>} : memref<8x16x256xf32, #tpu.memory_space<vmem>>, vector<1x16x128xf32>,
    %498 = vector.broadcast %0 : vector<1x128xf32> to vector<16x128xf32>
    %499 = arith.mulf %465, %498 : vector<16x128xf32>
    %cst_156 = arith.constant dense<0.000000e+00> : vector<16xf32>
    %500 = vector.multi_reduction <add>, %499, %cst_156 [1] : vector<16x128xf32> to vector<16xf32>
    %501 = vector.shape_cast %500 : vector<16xf32> to vector<16x1xf32>
    %502 = arith.index_cast %c6_i32 : i32 to index
    %c0_157 = arith.constant 0 : index
    %c0_158 = arith.constant 0 : index
    %503 = vector.load %arg9[%502, %c0_157, %c0_158] : memref<8x16x1xf32, #tpu.memory_space<vmem>>, vector<1x16x1xf32>
    %504 = vector.shape_cast %503 : vector<1x16x1xf32> to vector<16x1xf32>
    %505 = vector.shape_cast %501 : vector<16x1xf32> to vector<1x16x1xf32>
    tpu.vector_store %arg9[%502, %c0_157, %c0_158], %505 {strides = array<i32>} : memref<8x16x1xf32, #tpu.memory_space<vmem>>, vector<1x16x1xf32>,
    %506 = vector.broadcast %1 : vector<1x128xf32> to vector<16x128xf32>
    %507 = arith.mulf %489, %506 : vector<16x128xf32>
    %cst_159 = arith.constant dense<0.000000e+00> : vector<16xf32>
    %508 = vector.multi_reduction <add>, %507, %cst_159 [1] : vector<16x128xf32> to vector<16xf32>
    %509 = vector.shape_cast %508 : vector<16xf32> to vector<16x1xf32>
    %510 = arith.index_cast %441 : i32 to index
    %c0_160 = arith.constant 0 : index
    %c0_161 = arith.constant 0 : index
    %511 = vector.load %arg10[%510, %c0_160, %c0_161] : memref<8x16x1xf32, #tpu.memory_space<vmem>>, vector<1x16x1xf32>
    %512 = vector.shape_cast %511 : vector<1x16x1xf32> to vector<16x1xf32>
    %513 = vector.shape_cast %509 : vector<16x1xf32> to vector<1x16x1xf32>
    tpu.vector_store %arg10[%510, %c0_160, %c0_161], %513 {strides = array<i32>} : memref<8x16x1xf32, #tpu.memory_space<vmem>>, vector<1x16x1xf32>,
    %c7_i32_162 = arith.constant 7 : i32
    %c7_i32_163 = arith.constant 7 : i32
    %514 = arith.subi %c7_i32_163, %c7_i32_162 : i32
    %515 = arith.index_cast %c7_i32_162 : i32 to index
    %c0_164 = arith.constant 0 : index
    %c0_165 = arith.constant 0 : index
    %516 = vector.load %arg1[%515, %c0_164, %c0_165] : memref<8x16x512xbf16, #tpu.memory_space<vmem>>, vector<1x16x512xbf16>
    %517 = vector.shape_cast %516 : vector<1x16x512xbf16> to vector<16x512xbf16>
    %518 = arith.extf %517 : vector<16x512xbf16> to vector<16x512xf32>
    %519 = arith.truncf %465 : vector<16x128xf32> to vector<16x128xbf16>
    %c0_166 = arith.constant 0 : index
    %c0_167 = arith.constant 0 : index
    %520 = vector.load %arg3[%c0_166, %c0_167] : memref<128x512xbf16, #tpu.memory_space<vmem>>, vector<128x512xbf16>
    %cst_168 = arith.constant dense<0.000000e+00> : vector<16x512xf32>
    %521 = tpu.matmul %519, %520, %cst_168 {dimension_numbers = #tpu.dot_dimension_numbers<[1], [0], [0], [1], [0, 0, 1, 1], [], []>} : vector<16x128xbf16>, vector<128x512xbf16>, vector<16x512xf32> -> vector<16x512xf32>
    %522 = arith.addf %518, %521 : vector<16x512xf32>
    %523 = vector.extract_strided_slice %522 {offsets = [0, 0], sizes = [16, 384], strides = [1, 1]} : vector<16x512xf32> to vector<16x384xf32>
    %524 = arith.negf %523 : vector<16x384xf32>
    %525 = math.exp %524 : vector<16x384xf32>
    %cst_169 = arith.constant 1.000000e+00 : f32
    %526 = vector.broadcast %cst_169 : f32 to vector<16x384xf32>
    %527 = arith.addf %526, %525 : vector<16x384xf32>
    %528 = arith.divf %526, %527 : vector<16x384xf32>
    %529 = vector.extract_strided_slice %522 {offsets = [0, 384], sizes = [16, 128], strides = [1, 1]} : vector<16x512xf32> to vector<16x128xf32>
    %530 = math.tanh %529 : vector<16x128xf32>
    %531 = vector.extract_strided_slice %528 {offsets = [0, 128], sizes = [16, 128], strides = [1, 1]} : vector<16x384xf32> to vector<16x128xf32>
    %532 = arith.mulf %531, %462 : vector<16x128xf32>
    %533 = vector.extract_strided_slice %528 {offsets = [0, 0], sizes = [16, 128], strides = [1, 1]} : vector<16x384xf32> to vector<16x128xf32>
    %534 = arith.mulf %533, %530 : vector<16x128xf32>
    %535 = arith.addf %532, %534 : vector<16x128xf32>
    %536 = vector.extract_strided_slice %528 {offsets = [0, 256], sizes = [16, 128], strides = [1, 1]} : vector<16x384xf32> to vector<16x128xf32>
    %537 = math.tanh %535 : vector<16x128xf32>
    %538 = arith.mulf %536, %537 : vector<16x128xf32>
    %539 = arith.index_cast %514 : i32 to index
    %c0_170 = arith.constant 0 : index
    %c0_171 = arith.constant 0 : index
    %540 = vector.load %arg2[%539, %c0_170, %c0_171] : memref<8x16x512xbf16, #tpu.memory_space<vmem>>, vector<1x16x512xbf16>
    %541 = vector.shape_cast %540 : vector<1x16x512xbf16> to vector<16x512xbf16>
    %542 = arith.extf %541 : vector<16x512xbf16> to vector<16x512xf32>
    %543 = arith.truncf %489 : vector<16x128xf32> to vector<16x128xbf16>
    %c0_172 = arith.constant 0 : index
    %c0_173 = arith.constant 0 : index
    %544 = vector.load %arg4[%c0_172, %c0_173] : memref<128x512xbf16, #tpu.memory_space<vmem>>, vector<128x512xbf16>
    %cst_174 = arith.constant dense<0.000000e+00> : vector<16x512xf32>
    %545 = tpu.matmul %543, %544, %cst_174 {dimension_numbers = #tpu.dot_dimension_numbers<[1], [0], [0], [1], [0, 0, 1, 1], [], []>} : vector<16x128xbf16>, vector<128x512xbf16>, vector<16x512xf32> -> vector<16x512xf32>
    %546 = arith.addf %542, %545 : vector<16x512xf32>
    %547 = vector.extract_strided_slice %546 {offsets = [0, 0], sizes = [16, 384], strides = [1, 1]} : vector<16x512xf32> to vector<16x384xf32>
    %548 = arith.negf %547 : vector<16x384xf32>
    %549 = math.exp %548 : vector<16x384xf32>
    %cst_175 = arith.constant 1.000000e+00 : f32
    %550 = vector.broadcast %cst_175 : f32 to vector<16x384xf32>
    %551 = arith.addf %550, %549 : vector<16x384xf32>
    %552 = arith.divf %550, %551 : vector<16x384xf32>
    %553 = vector.extract_strided_slice %546 {offsets = [0, 384], sizes = [16, 128], strides = [1, 1]} : vector<16x512xf32> to vector<16x128xf32>
    %554 = math.tanh %553 : vector<16x128xf32>
    %555 = vector.extract_strided_slice %552 {offsets = [0, 128], sizes = [16, 128], strides = [1, 1]} : vector<16x384xf32> to vector<16x128xf32>
    %556 = arith.mulf %555, %486 : vector<16x128xf32>
    %557 = vector.extract_strided_slice %552 {offsets = [0, 0], sizes = [16, 128], strides = [1, 1]} : vector<16x384xf32> to vector<16x128xf32>
    %558 = arith.mulf %557, %554 : vector<16x128xf32>
    %559 = arith.addf %556, %558 : vector<16x128xf32>
    %560 = vector.extract_strided_slice %552 {offsets = [0, 256], sizes = [16, 128], strides = [1, 1]} : vector<16x384xf32> to vector<16x128xf32>
    %561 = math.tanh %559 : vector<16x128xf32>
    %562 = arith.mulf %560, %561 : vector<16x128xf32>
    %563 = arith.index_cast %c7_i32_162 : i32 to index
    %c0_176 = arith.constant 0 : index
    %c0_177 = arith.constant 0 : index
    %564 = vector.load %arg7[%563, %c0_176, %c0_177] : memref<8x16x256xf32, #tpu.memory_space<vmem>>, vector<1x16x128xf32>
    %565 = vector.shape_cast %564 : vector<1x16x128xf32> to vector<16x128xf32>
    %566 = vector.shape_cast %538 : vector<16x128xf32> to vector<1x16x128xf32>
    tpu.vector_store %arg7[%563, %c0_176, %c0_177], %566 {strides = array<i32>} : memref<8x16x256xf32, #tpu.memory_space<vmem>>, vector<1x16x128xf32>,
    %567 = arith.index_cast %514 : i32 to index
    %c0_178 = arith.constant 0 : index
    %c128_179 = arith.constant 128 : index
    %568 = vector.load %arg7[%567, %c0_178, %c128_179] : memref<8x16x256xf32, #tpu.memory_space<vmem>>, vector<1x16x128xf32>
    %569 = vector.shape_cast %568 : vector<1x16x128xf32> to vector<16x128xf32>
    %570 = vector.shape_cast %562 : vector<16x128xf32> to vector<1x16x128xf32>
    tpu.vector_store %arg7[%567, %c0_178, %c128_179], %570 {strides = array<i32>} : memref<8x16x256xf32, #tpu.memory_space<vmem>>, vector<1x16x128xf32>,
    %571 = vector.broadcast %0 : vector<1x128xf32> to vector<16x128xf32>
    %572 = arith.mulf %538, %571 : vector<16x128xf32>
    %cst_180 = arith.constant dense<0.000000e+00> : vector<16xf32>
    %573 = vector.multi_reduction <add>, %572, %cst_180 [1] : vector<16x128xf32> to vector<16xf32>
    %574 = vector.shape_cast %573 : vector<16xf32> to vector<16x1xf32>
    %575 = arith.index_cast %c7_i32_162 : i32 to index
    %c0_181 = arith.constant 0 : index
    %c0_182 = arith.constant 0 : index
    %576 = vector.load %arg9[%575, %c0_181, %c0_182] : memref<8x16x1xf32, #tpu.memory_space<vmem>>, vector<1x16x1xf32>
    %577 = vector.shape_cast %576 : vector<1x16x1xf32> to vector<16x1xf32>
    %578 = vector.shape_cast %574 : vector<16x1xf32> to vector<1x16x1xf32>
    tpu.vector_store %arg9[%575, %c0_181, %c0_182], %578 {strides = array<i32>} : memref<8x16x1xf32, #tpu.memory_space<vmem>>, vector<1x16x1xf32>,
    %579 = vector.broadcast %1 : vector<1x128xf32> to vector<16x128xf32>
    %580 = arith.mulf %562, %579 : vector<16x128xf32>
    %cst_183 = arith.constant dense<0.000000e+00> : vector<16xf32>
    %581 = vector.multi_reduction <add>, %580, %cst_183 [1] : vector<16x128xf32> to vector<16xf32>
    %582 = vector.shape_cast %581 : vector<16xf32> to vector<16x1xf32>
    %583 = arith.index_cast %514 : i32 to index
    %c0_184 = arith.constant 0 : index
    %c0_185 = arith.constant 0 : index
    %584 = vector.load %arg10[%583, %c0_184, %c0_185] : memref<8x16x1xf32, #tpu.memory_space<vmem>>, vector<1x16x1xf32>
    %585 = vector.shape_cast %584 : vector<1x16x1xf32> to vector<16x1xf32>
    %586 = vector.shape_cast %582 : vector<16x1xf32> to vector<1x16x1xf32>
    tpu.vector_store %arg10[%583, %c0_184, %c0_185], %586 {strides = array<i32>} : memref<8x16x1xf32, #tpu.memory_space<vmem>>, vector<1x16x1xf32>,
    %c8_i32 = arith.constant 8 : i32
    %cst_186 = arith.constant 0xFF800000 : f32
    %587 = vector.broadcast %cst_186 : f32 to vector<16x1xf32>
    %cst_187 = arith.constant 0.000000e+00 : f32
    %588 = vector.broadcast %cst_187 : f32 to vector<16x1xf32>
    %cst_188 = arith.constant 0.000000e+00 : f32
    %589 = vector.broadcast %cst_188 : f32 to vector<16x128xf32>
    %c0_i32_189 = arith.constant 0 : i32
    %590 = arith.index_cast %c0_i32_189 : i32 to index
    %c0_190 = arith.constant 0 : index
    %c0_191 = arith.constant 0 : index
    %591 = vector.load %arg9[%590, %c0_190, %c0_191] : memref<8x16x1xf32, #tpu.memory_space<vmem>>, vector<1x16x1xf32>
    %592 = vector.shape_cast %591 : vector<1x16x1xf32> to vector<16x1xf32>
    %593 = arith.index_cast %c0_i32_189 : i32 to index
    %c0_192 = arith.constant 0 : index
    %c0_193 = arith.constant 0 : index
    %594 = vector.load %arg10[%593, %c0_192, %c0_193] : memref<8x16x1xf32, #tpu.memory_space<vmem>>, vector<1x16x1xf32>
    %595 = vector.shape_cast %594 : vector<1x16x1xf32> to vector<16x1xf32>
    %596 = arith.addf %592, %595 : vector<16x1xf32>
    %597 = arith.index_cast %c0_i32_189 : i32 to index
    %c0_194 = arith.constant 0 : index
    %c0_195 = arith.constant 0 : index
    %598 = vector.load %arg7[%597, %c0_194, %c0_195] : memref<8x16x256xf32, #tpu.memory_space<vmem>>, vector<1x16x128xf32>
    %599 = vector.shape_cast %598 : vector<1x16x128xf32> to vector<16x128xf32>
    %600 = arith.index_cast %c0_i32_189 : i32 to index
    %c0_196 = arith.constant 0 : index
    %c128_197 = arith.constant 128 : index
    %601 = vector.load %arg7[%600, %c0_196, %c128_197] : memref<8x16x256xf32, #tpu.memory_space<vmem>>, vector<1x16x128xf32>
    %602 = vector.shape_cast %601 : vector<1x16x128xf32> to vector<16x128xf32>
    %603 = arith.maximumf %587, %596 : vector<16x1xf32>
    %604 = arith.subf %587, %603 : vector<16x1xf32>
    %605 = math.exp %604 : vector<16x1xf32>
    %606 = arith.subf %596, %603 : vector<16x1xf32>
    %607 = math.exp %606 : vector<16x1xf32>
    %608 = arith.mulf %588, %605 : vector<16x1xf32>
    %609 = arith.addf %608, %607 : vector<16x1xf32>
    %610 = vector.broadcast %605 : vector<16x1xf32> to vector<16x128xf32>
    %611 = arith.mulf %589, %610 : vector<16x128xf32>
    %612 = vector.broadcast %607 : vector<16x1xf32> to vector<16x128xf32>
    %613 = arith.mulf %612, %599 : vector<16x128xf32>
    %614 = arith.addf %611, %613 : vector<16x128xf32>
    %615 = vector.broadcast %605 : vector<16x1xf32> to vector<16x128xf32>
    %616 = arith.mulf %589, %615 : vector<16x128xf32>
    %617 = vector.broadcast %607 : vector<16x1xf32> to vector<16x128xf32>
    %618 = arith.mulf %617, %602 : vector<16x128xf32>
    %619 = arith.addf %616, %618 : vector<16x128xf32>
    %c1_i32_198 = arith.constant 1 : i32
    %620 = arith.index_cast %c1_i32_198 : i32 to index
    %c0_199 = arith.constant 0 : index
    %c0_200 = arith.constant 0 : index
    %621 = vector.load %arg9[%620, %c0_199, %c0_200] : memref<8x16x1xf32, #tpu.memory_space<vmem>>, vector<1x16x1xf32>
    %622 = vector.shape_cast %621 : vector<1x16x1xf32> to vector<16x1xf32>
    %623 = arith.index_cast %c1_i32_198 : i32 to index
    %c0_201 = arith.constant 0 : index
    %c0_202 = arith.constant 0 : index
    %624 = vector.load %arg10[%623, %c0_201, %c0_202] : memref<8x16x1xf32, #tpu.memory_space<vmem>>, vector<1x16x1xf32>
    %625 = vector.shape_cast %624 : vector<1x16x1xf32> to vector<16x1xf32>
    %626 = arith.addf %622, %625 : vector<16x1xf32>
    %627 = arith.index_cast %c1_i32_198 : i32 to index
    %c0_203 = arith.constant 0 : index
    %c0_204 = arith.constant 0 : index
    %628 = vector.load %arg7[%627, %c0_203, %c0_204] : memref<8x16x256xf32, #tpu.memory_space<vmem>>, vector<1x16x128xf32>
    %629 = vector.shape_cast %628 : vector<1x16x128xf32> to vector<16x128xf32>
    %630 = arith.index_cast %c1_i32_198 : i32 to index
    %c0_205 = arith.constant 0 : index
    %c128_206 = arith.constant 128 : index
    %631 = vector.load %arg7[%630, %c0_205, %c128_206] : memref<8x16x256xf32, #tpu.memory_space<vmem>>, vector<1x16x128xf32>
    %632 = vector.shape_cast %631 : vector<1x16x128xf32> to vector<16x128xf32>
    %633 = arith.maximumf %603, %626 : vector<16x1xf32>
    %634 = arith.subf %603, %633 : vector<16x1xf32>
    %635 = math.exp %634 : vector<16x1xf32>
    %636 = arith.subf %626, %633 : vector<16x1xf32>
    %637 = math.exp %636 : vector<16x1xf32>
    %638 = arith.mulf %609, %635 : vector<16x1xf32>
    %639 = arith.addf %638, %637 : vector<16x1xf32>
    %640 = vector.broadcast %635 : vector<16x1xf32> to vector<16x128xf32>
    %641 = arith.mulf %614, %640 : vector<16x128xf32>
    %642 = vector.broadcast %637 : vector<16x1xf32> to vector<16x128xf32>
    %643 = arith.mulf %642, %629 : vector<16x128xf32>
    %644 = arith.addf %641, %643 : vector<16x128xf32>
    %645 = vector.broadcast %635 : vector<16x1xf32> to vector<16x128xf32>
    %646 = arith.mulf %619, %645 : vector<16x128xf32>
    %647 = vector.broadcast %637 : vector<16x1xf32> to vector<16x128xf32>
    %648 = arith.mulf %647, %632 : vector<16x128xf32>
    %649 = arith.addf %646, %648 : vector<16x128xf32>
    %c2_i32_207 = arith.constant 2 : i32
    %650 = arith.index_cast %c2_i32_207 : i32 to index
    %c0_208 = arith.constant 0 : index
    %c0_209 = arith.constant 0 : index
    %651 = vector.load %arg9[%650, %c0_208, %c0_209] : memref<8x16x1xf32, #tpu.memory_space<vmem>>, vector<1x16x1xf32>
    %652 = vector.shape_cast %651 : vector<1x16x1xf32> to vector<16x1xf32>
    %653 = arith.index_cast %c2_i32_207 : i32 to index
    %c0_210 = arith.constant 0 : index
    %c0_211 = arith.constant 0 : index
    %654 = vector.load %arg10[%653, %c0_210, %c0_211] : memref<8x16x1xf32, #tpu.memory_space<vmem>>, vector<1x16x1xf32>
    %655 = vector.shape_cast %654 : vector<1x16x1xf32> to vector<16x1xf32>
    %656 = arith.addf %652, %655 : vector<16x1xf32>
    %657 = arith.index_cast %c2_i32_207 : i32 to index
    %c0_212 = arith.constant 0 : index
    %c0_213 = arith.constant 0 : index
    %658 = vector.load %arg7[%657, %c0_212, %c0_213] : memref<8x16x256xf32, #tpu.memory_space<vmem>>, vector<1x16x128xf32>
    %659 = vector.shape_cast %658 : vector<1x16x128xf32> to vector<16x128xf32>
    %660 = arith.index_cast %c2_i32_207 : i32 to index
    %c0_214 = arith.constant 0 : index
    %c128_215 = arith.constant 128 : index
    %661 = vector.load %arg7[%660, %c0_214, %c128_215] : memref<8x16x256xf32, #tpu.memory_space<vmem>>, vector<1x16x128xf32>
    %662 = vector.shape_cast %661 : vector<1x16x128xf32> to vector<16x128xf32>
    %663 = arith.maximumf %633, %656 : vector<16x1xf32>
    %664 = arith.subf %633, %663 : vector<16x1xf32>
    %665 = math.exp %664 : vector<16x1xf32>
    %666 = arith.subf %656, %663 : vector<16x1xf32>
    %667 = math.exp %666 : vector<16x1xf32>
    %668 = arith.mulf %639, %665 : vector<16x1xf32>
    %669 = arith.addf %668, %667 : vector<16x1xf32>
    %670 = vector.broadcast %665 : vector<16x1xf32> to vector<16x128xf32>
    %671 = arith.mulf %644, %670 : vector<16x128xf32>
    %672 = vector.broadcast %667 : vector<16x1xf32> to vector<16x128xf32>
    %673 = arith.mulf %672, %659 : vector<16x128xf32>
    %674 = arith.addf %671, %673 : vector<16x128xf32>
    %675 = vector.broadcast %665 : vector<16x1xf32> to vector<16x128xf32>
    %676 = arith.mulf %649, %675 : vector<16x128xf32>
    %677 = vector.broadcast %667 : vector<16x1xf32> to vector<16x128xf32>
    %678 = arith.mulf %677, %662 : vector<16x128xf32>
    %679 = arith.addf %676, %678 : vector<16x128xf32>
    %c3_i32_216 = arith.constant 3 : i32
    %680 = arith.index_cast %c3_i32_216 : i32 to index
    %c0_217 = arith.constant 0 : index
    %c0_218 = arith.constant 0 : index
    %681 = vector.load %arg9[%680, %c0_217, %c0_218] : memref<8x16x1xf32, #tpu.memory_space<vmem>>, vector<1x16x1xf32>
    %682 = vector.shape_cast %681 : vector<1x16x1xf32> to vector<16x1xf32>
    %683 = arith.index_cast %c3_i32_216 : i32 to index
    %c0_219 = arith.constant 0 : index
    %c0_220 = arith.constant 0 : index
    %684 = vector.load %arg10[%683, %c0_219, %c0_220] : memref<8x16x1xf32, #tpu.memory_space<vmem>>, vector<1x16x1xf32>
    %685 = vector.shape_cast %684 : vector<1x16x1xf32> to vector<16x1xf32>
    %686 = arith.addf %682, %685 : vector<16x1xf32>
    %687 = arith.index_cast %c3_i32_216 : i32 to index
    %c0_221 = arith.constant 0 : index
    %c0_222 = arith.constant 0 : index
    %688 = vector.load %arg7[%687, %c0_221, %c0_222] : memref<8x16x256xf32, #tpu.memory_space<vmem>>, vector<1x16x128xf32>
    %689 = vector.shape_cast %688 : vector<1x16x128xf32> to vector<16x128xf32>
    %690 = arith.index_cast %c3_i32_216 : i32 to index
    %c0_223 = arith.constant 0 : index
    %c128_224 = arith.constant 128 : index
    %691 = vector.load %arg7[%690, %c0_223, %c128_224] : memref<8x16x256xf32, #tpu.memory_space<vmem>>, vector<1x16x128xf32>
    %692 = vector.shape_cast %691 : vector<1x16x128xf32> to vector<16x128xf32>
    %693 = arith.maximumf %663, %686 : vector<16x1xf32>
    %694 = arith.subf %663, %693 : vector<16x1xf32>
    %695 = math.exp %694 : vector<16x1xf32>
    %696 = arith.subf %686, %693 : vector<16x1xf32>
    %697 = math.exp %696 : vector<16x1xf32>
    %698 = arith.mulf %669, %695 : vector<16x1xf32>
    %699 = arith.addf %698, %697 : vector<16x1xf32>
    %700 = vector.broadcast %695 : vector<16x1xf32> to vector<16x128xf32>
    %701 = arith.mulf %674, %700 : vector<16x128xf32>
    %702 = vector.broadcast %697 : vector<16x1xf32> to vector<16x128xf32>
    %703 = arith.mulf %702, %689 : vector<16x128xf32>
    %704 = arith.addf %701, %703 : vector<16x128xf32>
    %705 = vector.broadcast %695 : vector<16x1xf32> to vector<16x128xf32>
    %706 = arith.mulf %679, %705 : vector<16x128xf32>
    %707 = vector.broadcast %697 : vector<16x1xf32> to vector<16x128xf32>
    %708 = arith.mulf %707, %692 : vector<16x128xf32>
    %709 = arith.addf %706, %708 : vector<16x128xf32>
    %c4_i32_225 = arith.constant 4 : i32
    %710 = arith.index_cast %c4_i32_225 : i32 to index
    %c0_226 = arith.constant 0 : index
    %c0_227 = arith.constant 0 : index
    %711 = vector.load %arg9[%710, %c0_226, %c0_227] : memref<8x16x1xf32, #tpu.memory_space<vmem>>, vector<1x16x1xf32>
    %712 = vector.shape_cast %711 : vector<1x16x1xf32> to vector<16x1xf32>
    %713 = arith.index_cast %c4_i32_225 : i32 to index
    %c0_228 = arith.constant 0 : index
    %c0_229 = arith.constant 0 : index
    %714 = vector.load %arg10[%713, %c0_228, %c0_229] : memref<8x16x1xf32, #tpu.memory_space<vmem>>, vector<1x16x1xf32>
    %715 = vector.shape_cast %714 : vector<1x16x1xf32> to vector<16x1xf32>
    %716 = arith.addf %712, %715 : vector<16x1xf32>
    %717 = arith.index_cast %c4_i32_225 : i32 to index
    %c0_230 = arith.constant 0 : index
    %c0_231 = arith.constant 0 : index
    %718 = vector.load %arg7[%717, %c0_230, %c0_231] : memref<8x16x256xf32, #tpu.memory_space<vmem>>, vector<1x16x128xf32>
    %719 = vector.shape_cast %718 : vector<1x16x128xf32> to vector<16x128xf32>
    %720 = arith.index_cast %c4_i32_225 : i32 to index
    %c0_232 = arith.constant 0 : index
    %c128_233 = arith.constant 128 : index
    %721 = vector.load %arg7[%720, %c0_232, %c128_233] : memref<8x16x256xf32, #tpu.memory_space<vmem>>, vector<1x16x128xf32>
    %722 = vector.shape_cast %721 : vector<1x16x128xf32> to vector<16x128xf32>
    %723 = arith.maximumf %693, %716 : vector<16x1xf32>
    %724 = arith.subf %693, %723 : vector<16x1xf32>
    %725 = math.exp %724 : vector<16x1xf32>
    %726 = arith.subf %716, %723 : vector<16x1xf32>
    %727 = math.exp %726 : vector<16x1xf32>
    %728 = arith.mulf %699, %725 : vector<16x1xf32>
    %729 = arith.addf %728, %727 : vector<16x1xf32>
    %730 = vector.broadcast %725 : vector<16x1xf32> to vector<16x128xf32>
    %731 = arith.mulf %704, %730 : vector<16x128xf32>
    %732 = vector.broadcast %727 : vector<16x1xf32> to vector<16x128xf32>
    %733 = arith.mulf %732, %719 : vector<16x128xf32>
    %734 = arith.addf %731, %733 : vector<16x128xf32>
    %735 = vector.broadcast %725 : vector<16x1xf32> to vector<16x128xf32>
    %736 = arith.mulf %709, %735 : vector<16x128xf32>
    %737 = vector.broadcast %727 : vector<16x1xf32> to vector<16x128xf32>
    %738 = arith.mulf %737, %722 : vector<16x128xf32>
    %739 = arith.addf %736, %738 : vector<16x128xf32>
    %c5_i32_234 = arith.constant 5 : i32
    %740 = arith.index_cast %c5_i32_234 : i32 to index
    %c0_235 = arith.constant 0 : index
    %c0_236 = arith.constant 0 : index
    %741 = vector.load %arg9[%740, %c0_235, %c0_236] : memref<8x16x1xf32, #tpu.memory_space<vmem>>, vector<1x16x1xf32>
    %742 = vector.shape_cast %741 : vector<1x16x1xf32> to vector<16x1xf32>
    %743 = arith.index_cast %c5_i32_234 : i32 to index
    %c0_237 = arith.constant 0 : index
    %c0_238 = arith.constant 0 : index
    %744 = vector.load %arg10[%743, %c0_237, %c0_238] : memref<8x16x1xf32, #tpu.memory_space<vmem>>, vector<1x16x1xf32>
    %745 = vector.shape_cast %744 : vector<1x16x1xf32> to vector<16x1xf32>
    %746 = arith.addf %742, %745 : vector<16x1xf32>
    %747 = arith.index_cast %c5_i32_234 : i32 to index
    %c0_239 = arith.constant 0 : index
    %c0_240 = arith.constant 0 : index
    %748 = vector.load %arg7[%747, %c0_239, %c0_240] : memref<8x16x256xf32, #tpu.memory_space<vmem>>, vector<1x16x128xf32>
    %749 = vector.shape_cast %748 : vector<1x16x128xf32> to vector<16x128xf32>
    %750 = arith.index_cast %c5_i32_234 : i32 to index
    %c0_241 = arith.constant 0 : index
    %c128_242 = arith.constant 128 : index
    %751 = vector.load %arg7[%750, %c0_241, %c128_242] : memref<8x16x256xf32, #tpu.memory_space<vmem>>, vector<1x16x128xf32>
    %752 = vector.shape_cast %751 : vector<1x16x128xf32> to vector<16x128xf32>
    %753 = arith.maximumf %723, %746 : vector<16x1xf32>
    %754 = arith.subf %723, %753 : vector<16x1xf32>
    %755 = math.exp %754 : vector<16x1xf32>
    %756 = arith.subf %746, %753 : vector<16x1xf32>
    %757 = math.exp %756 : vector<16x1xf32>
    %758 = arith.mulf %729, %755 : vector<16x1xf32>
    %759 = arith.addf %758, %757 : vector<16x1xf32>
    %760 = vector.broadcast %755 : vector<16x1xf32> to vector<16x128xf32>
    %761 = arith.mulf %734, %760 : vector<16x128xf32>
    %762 = vector.broadcast %757 : vector<16x1xf32> to vector<16x128xf32>
    %763 = arith.mulf %762, %749 : vector<16x128xf32>
    %764 = arith.addf %761, %763 : vector<16x128xf32>
    %765 = vector.broadcast %755 : vector<16x1xf32> to vector<16x128xf32>
    %766 = arith.mulf %739, %765 : vector<16x128xf32>
    %767 = vector.broadcast %757 : vector<16x1xf32> to vector<16x128xf32>
    %768 = arith.mulf %767, %752 : vector<16x128xf32>
    %769 = arith.addf %766, %768 : vector<16x128xf32>
    %c6_i32_243 = arith.constant 6 : i32
    %770 = arith.index_cast %c6_i32_243 : i32 to index
    %c0_244 = arith.constant 0 : index
    %c0_245 = arith.constant 0 : index
    %771 = vector.load %arg9[%770, %c0_244, %c0_245] : memref<8x16x1xf32, #tpu.memory_space<vmem>>, vector<1x16x1xf32>
    %772 = vector.shape_cast %771 : vector<1x16x1xf32> to vector<16x1xf32>
    %773 = arith.index_cast %c6_i32_243 : i32 to index
    %c0_246 = arith.constant 0 : index
    %c0_247 = arith.constant 0 : index
    %774 = vector.load %arg10[%773, %c0_246, %c0_247] : memref<8x16x1xf32, #tpu.memory_space<vmem>>, vector<1x16x1xf32>
    %775 = vector.shape_cast %774 : vector<1x16x1xf32> to vector<16x1xf32>
    %776 = arith.addf %772, %775 : vector<16x1xf32>
    %777 = arith.index_cast %c6_i32_243 : i32 to index
    %c0_248 = arith.constant 0 : index
    %c0_249 = arith.constant 0 : index
    %778 = vector.load %arg7[%777, %c0_248, %c0_249] : memref<8x16x256xf32, #tpu.memory_space<vmem>>, vector<1x16x128xf32>
    %779 = vector.shape_cast %778 : vector<1x16x128xf32> to vector<16x128xf32>
    %780 = arith.index_cast %c6_i32_243 : i32 to index
    %c0_250 = arith.constant 0 : index
    %c128_251 = arith.constant 128 : index
    %781 = vector.load %arg7[%780, %c0_250, %c128_251] : memref<8x16x256xf32, #tpu.memory_space<vmem>>, vector<1x16x128xf32>
    %782 = vector.shape_cast %781 : vector<1x16x128xf32> to vector<16x128xf32>
    %783 = arith.maximumf %753, %776 : vector<16x1xf32>
    %784 = arith.subf %753, %783 : vector<16x1xf32>
    %785 = math.exp %784 : vector<16x1xf32>
    %786 = arith.subf %776, %783 : vector<16x1xf32>
    %787 = math.exp %786 : vector<16x1xf32>
    %788 = arith.mulf %759, %785 : vector<16x1xf32>
    %789 = arith.addf %788, %787 : vector<16x1xf32>
    %790 = vector.broadcast %785 : vector<16x1xf32> to vector<16x128xf32>
    %791 = arith.mulf %764, %790 : vector<16x128xf32>
    %792 = vector.broadcast %787 : vector<16x1xf32> to vector<16x128xf32>
    %793 = arith.mulf %792, %779 : vector<16x128xf32>
    %794 = arith.addf %791, %793 : vector<16x128xf32>
    %795 = vector.broadcast %785 : vector<16x1xf32> to vector<16x128xf32>
    %796 = arith.mulf %769, %795 : vector<16x128xf32>
    %797 = vector.broadcast %787 : vector<16x1xf32> to vector<16x128xf32>
    %798 = arith.mulf %797, %782 : vector<16x128xf32>
    %799 = arith.addf %796, %798 : vector<16x128xf32>
    %c7_i32_252 = arith.constant 7 : i32
    %800 = arith.index_cast %c7_i32_252 : i32 to index
    %c0_253 = arith.constant 0 : index
    %c0_254 = arith.constant 0 : index
    %801 = vector.load %arg9[%800, %c0_253, %c0_254] : memref<8x16x1xf32, #tpu.memory_space<vmem>>, vector<1x16x1xf32>
    %802 = vector.shape_cast %801 : vector<1x16x1xf32> to vector<16x1xf32>
    %803 = arith.index_cast %c7_i32_252 : i32 to index
    %c0_255 = arith.constant 0 : index
    %c0_256 = arith.constant 0 : index
    %804 = vector.load %arg10[%803, %c0_255, %c0_256] : memref<8x16x1xf32, #tpu.memory_space<vmem>>, vector<1x16x1xf32>
    %805 = vector.shape_cast %804 : vector<1x16x1xf32> to vector<16x1xf32>
    %806 = arith.addf %802, %805 : vector<16x1xf32>
    %807 = arith.index_cast %c7_i32_252 : i32 to index
    %c0_257 = arith.constant 0 : index
    %c0_258 = arith.constant 0 : index
    %808 = vector.load %arg7[%807, %c0_257, %c0_258] : memref<8x16x256xf32, #tpu.memory_space<vmem>>, vector<1x16x128xf32>
    %809 = vector.shape_cast %808 : vector<1x16x128xf32> to vector<16x128xf32>
    %810 = arith.index_cast %c7_i32_252 : i32 to index
    %c0_259 = arith.constant 0 : index
    %c128_260 = arith.constant 128 : index
    %811 = vector.load %arg7[%810, %c0_259, %c128_260] : memref<8x16x256xf32, #tpu.memory_space<vmem>>, vector<1x16x128xf32>
    %812 = vector.shape_cast %811 : vector<1x16x128xf32> to vector<16x128xf32>
    %813 = arith.maximumf %783, %806 : vector<16x1xf32>
    %814 = arith.subf %783, %813 : vector<16x1xf32>
    %815 = math.exp %814 : vector<16x1xf32>
    %816 = arith.subf %806, %813 : vector<16x1xf32>
    %817 = math.exp %816 : vector<16x1xf32>
    %818 = arith.mulf %789, %815 : vector<16x1xf32>
    %819 = arith.addf %818, %817 : vector<16x1xf32>
    %820 = vector.broadcast %815 : vector<16x1xf32> to vector<16x128xf32>
    %821 = arith.mulf %794, %820 : vector<16x128xf32>
    %822 = vector.broadcast %817 : vector<16x1xf32> to vector<16x128xf32>
    %823 = arith.mulf %822, %809 : vector<16x128xf32>
    %824 = arith.addf %821, %823 : vector<16x128xf32>
    %825 = vector.broadcast %815 : vector<16x1xf32> to vector<16x128xf32>
    %826 = arith.mulf %799, %825 : vector<16x128xf32>
    %827 = vector.broadcast %817 : vector<16x1xf32> to vector<16x128xf32>
    %828 = arith.mulf %827, %812 : vector<16x128xf32>
    %829 = arith.addf %826, %828 : vector<16x128xf32>
    %c8_i32_261 = arith.constant 8 : i32
    %830 = tpu.reciprocal %819 {approx = true} : vector<16x1xf32> -> vector<16x1xf32>
    %831 = vector.broadcast %830 : vector<16x1xf32> to vector<16x128xf32>
    %832 = arith.mulf %824, %831 : vector<16x128xf32>
    %c0_262 = arith.constant 0 : index
    %c0_263 = arith.constant 0 : index
    %833 = vector.load %arg8[%c0_262, %c0_263] : memref<16x256xf32, #tpu.memory_space<vmem>>, vector<16x128xf32>
    tpu.vector_store %arg8[%c0_262, %c0_263], %832 {strides = array<i32>} : memref<16x256xf32, #tpu.memory_space<vmem>>, vector<16x128xf32>,
    %834 = vector.broadcast %830 : vector<16x1xf32> to vector<16x128xf32>
    %835 = arith.mulf %829, %834 : vector<16x128xf32>
    %c0_264 = arith.constant 0 : index
    %c128_265 = arith.constant 128 : index
    %836 = vector.load %arg8[%c0_264, %c128_265] : memref<16x256xf32, #tpu.memory_space<vmem>>, vector<16x128xf32>
    tpu.vector_store %arg8[%c0_264, %c128_265], %835 {strides = array<i32>} : memref<16x256xf32, #tpu.memory_space<vmem>>, vector<16x128xf32>,
    return
  }
  func.func @transform_0(%arg0: i32) -> (i32, i32, i32) {
    %c0_i32 = arith.constant 0 : i32
    %c0_i32_0 = arith.constant 0 : i32
    %c0_i32_1 = arith.constant 0 : i32
    return %c0_i32, %arg0, %c0_i32_0 : i32, i32, i32
  }
  func.func @transform_1(%arg0: i32) -> (i32, i32, i32) {
    %c0_i32 = arith.constant 0 : i32
    %c0_i32_0 = arith.constant 0 : i32
    %c0_i32_1 = arith.constant 0 : i32
    return %c0_i32, %arg0, %c0_i32_0 : i32, i32, i32
  }
  func.func @transform_2(%arg0: i32) -> (i32, i32) {
    %c0_i32 = arith.constant 0 : i32
    %c0_i32_0 = arith.constant 0 : i32
    %c0_i32_1 = arith.constant 0 : i32
    return %c0_i32, %c0_i32_0 : i32, i32
  }
  func.func @transform_3(%arg0: i32) -> (i32, i32) {
    %c0_i32 = arith.constant 0 : i32
    %c0_i32_0 = arith.constant 0 : i32
    %c0_i32_1 = arith.constant 0 : i32
    return %c0_i32, %c0_i32_0 : i32, i32
  }
  func.func @transform_4(%arg0: i32) -> (i32, i32) {
    %c0_i32 = arith.constant 0 : i32
    %c0_i32_0 = arith.constant 0 : i32
    %c0_i32_1 = arith.constant 0 : i32
    return %c0_i32, %c0_i32_0 : i32, i32
  }
  func.func @transform_5(%arg0: i32) -> (i32, i32) {
    %c0_i32 = arith.constant 0 : i32
    %c0_i32_0 = arith.constant 0 : i32
    %c0_i32_1 = arith.constant 0 : i32
    return %c0_i32, %c0_i32_0 : i32, i32
  }
  func.func @transform_6(%arg0: i32) -> (i32, i32, i32) {
    %c0_i32 = arith.constant 0 : i32
    %c0_i32_0 = arith.constant 0 : i32
    %c0_i32_1 = arith.constant 0 : i32
    return %c0_i32, %arg0, %c0_i32_0 : i32, i32, i32
  }
  func.func @transform_7(%arg0: i32) -> (i32, i32) {
    %c0_i32 = arith.constant 0 : i32
    %c0_i32_0 = arith.constant 0 : i32
    return %arg0, %c0_i32 : i32, i32
  }
}

</mosaic_0001>

<llo_original>
// kernel: bilstm_attention_forward.1
$region0: #{bilstm_attention_forward.1}
  #allocation0 [shape = 'u32[]', space=smem, size = 0x4, offset = 0x4, fixed_abs, tag = 'smem constant byte address 0x4 - core index']
  #allocation1 [shape = 'u32[144,128]{1,0:T(1,128)}', space=vmem, size = 0x12000, scoped, tag = 'internal scratch']
  #allocation2 [shape = 'f32[8,16,1]{2,1,0:T(8,128)}', space=vmem, size = 0x10000, scoped, tag = 'scratch operand']
  #allocation3 [shape = 'f32[8,16,1]{2,1,0:T(8,128)}', space=vmem, size = 0x10000, scoped, tag = 'scratch operand']
  %s0 = inlined_call_operand.vmem [shape: bf16[8,16,512], index: 0, kind: input, shape index: {}]
  %s1 = inlined_call_operand.vmem [shape: bf16[8,16,512], index: 1, kind: input, shape index: {}]
  %s2 = inlined_call_operand.vmem [shape: bf16[128,512], index: 2, kind: input, shape index: {}]
  %s3 = inlined_call_operand.vmem [shape: bf16[128,512], index: 3, kind: input, shape index: {}]
  %s4 = inlined_call_operand.vmem [shape: f32[1,128], index: 4, kind: input, shape index: {}]
  %s5 = inlined_call_operand.vmem [shape: f32[1,128], index: 5, kind: input, shape index: {}]
  %s6 = inlined_call_operand.vmem [shape: f32[8,16,256], index: 6, kind: output, shape index: {0}]
  %s7 = inlined_call_operand.vmem [shape: f32[16,256], index: 7, kind: output, shape index: {1}]
  %8 = xla_tuple %s6, %s7
  %s9 = sld [smem:[#allocation0]]
  $region42: #{bilstm_attention_forward.1} parent=0
    _
  %s11 = ssub.s32 1, %s9
  %s12 = scalar_select 0, %s11, %s9
  // Predicated region
  $region2: #{bilstm_attention_forward.1} parent=0 // pred_check
    _
  $region3: #{bilstm_attention_forward.1} parent=0 // pred_check_branch
    %14 = sbr.rel (0) target = $region5
  $region4: #{bilstm_attention_forward.1} parent=0 // pred_region
    _
  $region5: #{bilstm_attention_forward.1} parent=0 // pred_fallthru
    _
  // Predicated region
  $region6: #{bilstm_attention_forward.1} parent=0 // pred_check
    _
  $region7: #{bilstm_attention_forward.1} parent=0 // pred_check_branch
    %16 = sbr.rel (0) target = $region9
  $region8: #{bilstm_attention_forward.1} parent=0 // pred_region
    _
  $region9: #{bilstm_attention_forward.1} parent=0 // pred_fallthru
    _
  // Predicated region
  $region10: #{bilstm_attention_forward.1} parent=0 // pred_check
    _
  $region11: #{bilstm_attention_forward.1} parent=0 // pred_check_branch
    %18 = sbr.rel (0) target = $region13
  $region12: #{bilstm_attention_forward.1} parent=0 // pred_region
    _
  $region13: #{bilstm_attention_forward.1} parent=0 // pred_fallthru
    _
  // Predicated region
  $region14: #{bilstm_attention_forward.1} parent=0 // pred_check
    _
  $region15: #{bilstm_attention_forward.1} parent=0 // pred_check_branch
    %20 = sbr.rel (0) target = $region17
  $region16: #{bilstm_attention_forward.1} parent=0 // pred_region
    _
  $region17: #{bilstm_attention_forward.1} parent=0 // pred_fallthru
    _
  // Predicated region
  $region18: #{bilstm_attention_forward.1} parent=0 // pred_check
    _
  $region19: #{bilstm_attention_forward.1} parent=0 // pred_check_branch
    %22 = sbr.rel (0) target = $region21
  $region20: #{bilstm_attention_forward.1} parent=0 // pred_region
    _
  $region21: #{bilstm_attention_forward.1} parent=0 // pred_fallthru
    _
  // Predicated region
  $region22: #{bilstm_attention_forward.1} parent=0 // pred_check
    _
  $region23: #{bilstm_attention_forward.1} parent=0 // pred_check_branch
    %24 = sbr.rel (0) target = $region25
  $region24: #{bilstm_attention_forward.1} parent=0 // pred_region
    _
  $region25: #{bilstm_attention_forward.1} parent=0 // pred_fallthru
    _
  %v26 = vld [vmem:[%s4] sm:$0x1]
  %v27 = vld [vmem:[%s5] sm:$0x1]
  %v28 = vld [vmem:[%s0] sm:$0xff]
  %v29 = vld [vmem:[%s0 + $0x8] sm:$0xff]
  %v30 = vld [vmem:[%s0 + $0x10] sm:$0xff]
  %v31 = vld [vmem:[%s0 + $0x18] sm:$0xff]
  %v32 = vunpack.c.l.bf16 %v28
  %v33 = vunpack.c.h.bf16 %v28
  %v34 = vunpack.c.l.bf16 %v29
  %v35 = vunpack.c.h.bf16 %v29
  %v36 = vunpack.c.l.bf16 %v30
  %v37 = vunpack.c.h.bf16 %v30
  %v38 = vunpack.c.l.bf16 %v31
  %v39 = vunpack.c.h.bf16 %v31
  %v40 = vld [vmem:[%s2] sm:$0xff]
  %v41 = vld [vmem:[%s2 + $0x8] sm:$0xff]
  %v42 = vld [vmem:[%s2 + $0x10] sm:$0xff]
  %v43 = vld [vmem:[%s2 + $0x18] sm:$0xff]
  %v44 = vld [vmem:[%s2 + $0x20] sm:$0xff]
  %v45 = vld [vmem:[%s2 + $0x28] sm:$0xff]
  %v46 = vld [vmem:[%s2 + $0x30] sm:$0xff]
  %v47 = vld [vmem:[%s2 + $0x38] sm:$0xff]
  %v48 = vld [vmem:[%s2 + $0x40] sm:$0xff]
  %v49 = vld [vmem:[%s2 + $0x48] sm:$0xff]
  %v50 = vld [vmem:[%s2 + $0x50] sm:$0xff]
  %v51 = vld [vmem:[%s2 + $0x58] sm:$0xff]
  %v52 = vld [vmem:[%s2 + $0x60] sm:$0xff]
  %v53 = vld [vmem:[%s2 + $0x68] sm:$0xff]
  %v54 = vld [vmem:[%s2 + $0x70] sm:$0xff]
  %v55 = vld [vmem:[%s2 + $0x78] sm:$0xff]
  %v56 = vld [vmem:[%s2 + $0x80] sm:$0xff]
  %v57 = vld [vmem:[%s2 + $0x88] sm:$0xff]
  %v58 = vld [vmem:[%s2 + $0x90] sm:$0xff]
  %v59 = vld [vmem:[%s2 + $0x98] sm:$0xff]
  %v60 = vld [vmem:[%s2 + $0xa0] sm:$0xff]
  %v61 = vld [vmem:[%s2 + $0xa8] sm:$0xff]
  %v62 = vld [vmem:[%s2 + $0xb0] sm:$0xff]
  %v63 = vld [vmem:[%s2 + $0xb8] sm:$0xff]
  %v64 = vld [vmem:[%s2 + $0xc0] sm:$0xff]
  %v65 = vld [vmem:[%s2 + $0xc8] sm:$0xff]
  %v66 = vld [vmem:[%s2 + $0xd0] sm:$0xff]
  %v67 = vld [vmem:[%s2 + $0xd8] sm:$0xff]
  %v68 = vld [vmem:[%s2 + $0xe0] sm:$0xff]
  %v69 = vld [vmem:[%s2 + $0xe8] sm:$0xff]
  %v70 = vld [vmem:[%s2 + $0xf0] sm:$0xff]
  %v71 = vld [vmem:[%s2 + $0xf8] sm:$0xff]
  %v104 = vunpack.c.l.b16 %v40
  %v105 = vunpack.c.h.b16 %v40
  %v106 = vunpack.c.l.b16 %v41
  %v107 = vunpack.c.h.b16 %v41
  %v108 = vunpack.c.l.b16 %v42
  %v109 = vunpack.c.h.b16 %v42
  %v110 = vunpack.c.l.b16 %v43
  %v111 = vunpack.c.h.b16 %v43
  %v112 = vunpack.c.l.b16 %v44
  %v113 = vunpack.c.h.b16 %v44
  %v114 = vunpack.c.l.b16 %v45
  %v115 = vunpack.c.h.b16 %v45
  %v116 = vunpack.c.l.b16 %v46
  %v117 = vunpack.c.h.b16 %v46
  %v118 = vunpack.c.l.b16 %v47
  %v119 = vunpack.c.h.b16 %v47
  %v120 = vunpack.c.l.b16 %v48
  %v121 = vunpack.c.h.b16 %v48
  %v122 = vunpack.c.l.b16 %v49
  %v123 = vunpack.c.h.b16 %v49
  %v124 = vunpack.c.l.b16 %v50
  %v125 = vunpack.c.h.b16 %v50
  %v126 = vunpack.c.l.b16 %v51
  %v127 = vunpack.c.h.b16 %v51
  %v128 = vunpack.c.l.b16 %v52
  %v129 = vunpack.c.h.b16 %v52
  %v130 = vunpack.c.l.b16 %v53
  %v131 = vunpack.c.h.b16 %v53
  %v132 = vunpack.c.l.b16 %v54
  %v133 = vunpack.c.h.b16 %v54
  %v134 = vunpack.c.l.b16 %v55
  %v135 = vunpack.c.h.b16 %v55
  %v136 = vunpack.c.l.b16 %v56
  %v137 = vunpack.c.h.b16 %v56
  %v138 = vunpack.c.l.b16 %v57
  %v139 = vunpack.c.h.b16 %v57
  %v140 = vunpack.c.l.b16 %v58
  %v141 = vunpack.c.h.b16 %v58
  %v142 = vunpack.c.l.b16 %v59
  %v143 = vunpack.c.h.b16 %v59
  %v144 = vunpack.c.l.b16 %v60
  %v145 = vunpack.c.h.b16 %v60
  %v146 = vunpack.c.l.b16 %v61
  %v147 = vunpack.c.h.b16 %v61
  %v148 = vunpack.c.l.b16 %v62
  %v149 = vunpack.c.h.b16 %v62
  %v150 = vunpack.c.l.b16 %v63
  %v151 = vunpack.c.h.b16 %v63
  %v152 = vunpack.c.l.b16 %v64
  %v153 = vunpack.c.h.b16 %v64
  %v154 = vunpack.c.l.b16 %v65
  %v155 = vunpack.c.h.b16 %v65
  %v156 = vunpack.c.l.b16 %v66
  %v157 = vunpack.c.h.b16 %v66
  %v158 = vunpack.c.l.b16 %v67
  %v159 = vunpack.c.h.b16 %v67
  %v160 = vunpack.c.l.b16 %v68
  %v161 = vunpack.c.h.b16 %v68
  %v162 = vunpack.c.l.b16 %v69
  %v163 = vunpack.c.h.b16 %v69
  %v164 = vunpack.c.l.b16 %v70
  %v165 = vunpack.c.h.b16 %v70
  %v166 = vunpack.c.l.b16 %v71
  %v167 = vunpack.c.h.b16 %v71
  %v168 = vpack.c.b16 %v108, %v104
  %v169 = vpack.c.b16 %v109, %v105
  %v170 = vpack.c.b16 %v110, %v106
  %v171 = vpack.c.b16 %v111, %v107
  %v172 = vpack.c.b16 %v116, %v112
  %v173 = vpack.c.b16 %v117, %v113
  %v174 = vpack.c.b16 %v118, %v114
  %v175 = vpack.c.b16 %v119, %v115
  %v176 = vpack.c.b16 %v124, %v120
  %v177 = vpack.c.b16 %v125, %v121
  %v178 = vpack.c.b16 %v126, %v122
  %v179 = vpack.c.b16 %v127, %v123
  %v180 = vpack.c.b16 %v132, %v128
  %v181 = vpack.c.b16 %v133, %v129
  %v182 = vpack.c.b16 %v134, %v130
  %v183 = vpack.c.b16 %v135, %v131
  %v184 = vpack.c.b16 %v140, %v136
  %v185 = vpack.c.b16 %v141, %v137
  %v186 = vpack.c.b16 %v142, %v138
  %v187 = vpack.c.b16 %v143, %v139
  %v188 = vpack.c.b16 %v148, %v144
  %v189 = vpack.c.b16 %v149, %v145
  %v190 = vpack.c.b16 %v150, %v146
  %v191 = vpack.c.b16 %v151, %v147
  %v192 = vpack.c.b16 %v156, %v152
  %v193 = vpack.c.b16 %v157, %v153
  %v194 = vpack.c.b16 %v158, %v154
  %v195 = vpack.c.b16 %v159, %v155
  %v196 = vpack.c.b16 %v164, %v160
  %v197 = vpack.c.b16 %v165, %v161
  %v198 = vpack.c.b16 %v166, %v162
  %v199 = vpack.c.b16 %v167, %v163
  %232 = vmatprep.subr.bf16.mxu0 %v169
  %233 = vmatpush1.bf16.msra.mxu0 %v168
  %234 = vmatprep.subr.bf16.mxu0 %v173
  %235 = vmatpush1.bf16.msra.mxu0 %v172
  %236 = vmatprep.subr.bf16.mxu0 %v177
  %237 = vmatpush1.bf16.msra.mxu0 %v176
  %238 = vmatprep.subr.bf16.mxu0 %v181
  %239 = vmatpush1.bf16.msra.mxu0 %v180
  %240 = vmatprep.subr.bf16.mxu0 %v185
  %241 = vmatpush1.bf16.msra.mxu0 %v184
  %242 = vmatprep.subr.bf16.mxu0 %v189
  %243 = vmatpush1.bf16.msra.mxu0 %v188
  %244 = vmatprep.subr.bf16.mxu0 %v193
  %245 = vmatpush1.bf16.msra.mxu0 %v192
  %246 = vmatprep.subr.bf16.mxu0 %v197
  %247 = vmatpush1.bf16.msra.mxu0 %v196
  %248 = vmatprep.subr.bf16.mxu0 0
  %249 = vmatpush1.bf16.msra.mxu0 0
  %250 = vmatprep.subr.bf16.mxu0 0
  %251 = vmatpush1.bf16.msra.mxu0 0
  %252 = vmatprep.subr.bf16.mxu0 0
  %253 = vmatpush1.bf16.msra.mxu0 0
  %254 = vmatprep.subr.bf16.mxu0 0
  %255 = vmatpush1.bf16.msra.mxu0 0
  %256 = vmatprep.subr.bf16.mxu0 0
  %257 = vmatpush1.bf16.msra.mxu0 0
  %258 = vmatprep.subr.bf16.mxu0 0
  %259 = vmatpush1.bf16.msra.mxu0 0
  %260 = vmatprep.subr.bf16.mxu0 0
  %261 = vmatpush1.bf16.msra.mxu0 0
  %262 = vmatprep.subr.bf16.mxu0 0
  %263 = vmatpush1.bf16.msra.mxu0 0
  %264 = vmatprep.mubr.bf16.mxu0 0
  %265 = vmatmul.mubr.bf16.gmra.mrb[0].mxu0 0
  %v266 = vpop.f32.mrb[0].mxu0
  %v267 = vadd.f32 0.0, %v266
  %v268 = vpop.f32.mrb[0].mxu0
  %v269 = vadd.f32 0.0, %v268
  %v270 = vpop.f32.mrb[0].mxu0
  %v271 = vadd.f32 0.0, %v270
  %v272 = vpop.f32.mrb[0].mxu0
  %v273 = vadd.f32 0.0, %v272
  %274 = vdwg.mxu0
  %275 = vmatprep.subr.bf16.mxu0 %v171
  %276 = vmatpush1.bf16.msra.mxu0 %v170
  %277 = vmatprep.subr.bf16.mxu0 %v175
  %278 = vmatpush1.bf16.msra.mxu0 %v174
  %279 = vmatprep.subr.bf16.mxu0 %v179
  %280 = vmatpush1.bf16.msra.mxu0 %v178
  %281 = vmatprep.subr.bf16.mxu0 %v183
  %282 = vmatpush1.bf16.msra.mxu0 %v182
  %283 = vmatprep.subr.bf16.mxu0 %v187
  %284 = vmatpush1.bf16.msra.mxu0 %v186
  %285 = vmatprep.subr.bf16.mxu0 %v191
  %286 = vmatpush1.bf16.msra.mxu0 %v190
  %287 = vmatprep.subr.bf16.mxu0 %v195
  %288 = vmatpush1.bf16.msra.mxu0 %v194
  %289 = vmatprep.subr.bf16.mxu0 %v199
  %290 = vmatpush1.bf16.msra.mxu0 %v198
  %291 = vmatprep.subr.bf16.mxu0 0
  %292 = vmatpush1.bf16.msra.mxu0 0
  %293 = vmatprep.subr.bf16.mxu0 0
  %294 = vmatpush1.bf16.msra.mxu0 0
  %295 = vmatprep.subr.bf16.mxu0 0
  %296 = vmatpush1.bf16.msra.mxu0 0
  %297 = vmatprep.subr.bf16.mxu0 0
  %298 = vmatpush1.bf16.msra.mxu0 0
  %299 = vmatprep.subr.bf16.mxu0 0
  %300 = vmatpush1.bf16.msra.mxu0 0
  %301 = vmatprep.subr.bf16.mxu0 0
  %302 = vmatpush1.bf16.msra.mxu0 0
  %303 = vmatprep.subr.bf16.mxu0 0
  %304 = vmatpush1.bf16.msra.mxu0 0
  %305 = vmatprep.subr.bf16.mxu0 0
  %306 = vmatpush1.bf16.msra.mxu0 0
  %307 = vmatprep.mubr.bf16.mxu0 0
  %308 = vmatmul.mubr.bf16.gmra.mrb[0].mxu0 0
  %v309 = vpop.f32.mrb[0].mxu0
  %v310 = vadd.f32 0.0, %v309
  %v311 = vpop.f32.mrb[0].mxu0
  %v312 = vadd.f32 0.0, %v311
  %v313 = vpop.f32.mrb[0].mxu0
  %v314 = vadd.f32 0.0, %v313
  %v315 = vpop.f32.mrb[0].mxu0
  %v316 = vadd.f32 0.0, %v315
  %317 = vdwg.mxu0
  %v318 = vadd.f32 %v32, %v267
  %v319 = vadd.f32 %v33, %v269
  %v320 = vadd.f32 %v34, %v310
  %v321 = vadd.f32 %v35, %v312
  %v322 = vadd.f32 %v36, %v271
  %v323 = vadd.f32 %v37, %v273
  %v324 = vadd.f32 %v38, %v314
  %v325 = vadd.f32 %v39, %v316
  %v326 = vxor.u32 %v318, 2147483648
  %v327 = vxor.u32 %v319, 2147483648
  %v328 = vxor.u32 %v320, 2147483648
  %v329 = vxor.u32 %v322, 2147483648
  %v330 = vxor.u32 %v323, 2147483648
  %v331 = vxor.u32 %v324, 2147483648
  %v332 = vmul.f32 %v326, 1.442695
  %v333 = vpow.pop %v332
  %v334 = vmul.f32 %v327, 1.442695
  %v335 = vpow.pop %v334
  %v336 = vmul.f32 %v328, 1.442695
  %v337 = vpow.pop %v336
  %v338 = vmul.f32 %v329, 1.442695
  %v339 = vpow.pop %v338
  %v340 = vmul.f32 %v330, 1.442695
  %v341 = vpow.pop %v340
  %v342 = vmul.f32 %v331, 1.442695
  %v343 = vpow.pop %v342
  %v344 = vadd.f32 %v333, 1.0
  %v345 = vadd.f32 %v335, 1.0
  %v346 = vadd.f32 %v337, 1.0
  %v347 = vadd.f32 %v339, 1.0
  %v348 = vadd.f32 %v341, 1.0
  %v349 = vadd.f32 %v343, 1.0
  %v350 = vrcp.pop %v344
  %v351 = vmul.f32 1.0, %v350
  %v352 = vrcp.pop %v345
  %v353 = vmul.f32 1.0, %v352
  %v354 = vrcp.pop %v346
  %v355 = vmul.f32 1.0, %v354
  %v356 = vrcp.pop %v347
  %v357 = vmul.f32 1.0, %v356
  %v358 = vrcp.pop %v348
  %v359 = vmul.f32 1.0, %v358
  %v360 = vrcp.pop %v349
  %v361 = vmul.f32 1.0, %v360
  %v362 = vtanh.pop %v321
  %v363 = vtanh.pop %v325
  %v364 = vmul.f32 %v353, 0.0
  %v365 = vmul.f32 %v359, 0.0
  %v366 = vmul.f32 %v351, %v362
  %v367 = vmul.f32 %v357, %v363
  %v368 = vadd.f32 %v364, %v366
  %v369 = vadd.f32 %v365, %v367
  %v370 = vtanh.pop %v368
  %v371 = vtanh.pop %v369
  %v372 = vmul.f32 %v355, %v370
  %v373 = vmul.f32 %v361, %v371
  %s374 = scalar_lea.vmem %s1, 224
  %v375 = vld [vmem:[%s374] sm:$0xff]
  %v376 = vld [vmem:[%s374 + $0x8] sm:$0xff]
  %v377 = vld [vmem:[%s374 + $0x10] sm:$0xff]
  %v378 = vld [vmem:[%s374 + $0x18] sm:$0xff]
  %v379 = vunpack.c.l.bf16 %v375
  %v380 = vunpack.c.h.bf16 %v375
  %v381 = vunpack.c.l.bf16 %v376
  %v382 = vunpack.c.h.bf16 %v376
  %v383 = vunpack.c.l.bf16 %v377
  %v384 = vunpack.c.h.bf16 %v377
  %v385 = vunpack.c.l.bf16 %v378
  %v386 = vunpack.c.h.bf16 %v378
  %v387 = vld [vmem:[%s3] sm:$0xff]
  %v388 = vld [vmem:[%s3 + $0x8] sm:$0xff]
  %v389 = vld [vmem:[%s3 + $0x10] sm:$0xff]
  %v390 = vld [vmem:[%s3 + $0x18] sm:$0xff]
  %v391 = vld [vmem:[%s3 + $0x20] sm:$0xff]
  %v392 = vld [vmem:[%s3 + $0x28] sm:$0xff]
  %v393 = vld [vmem:[%s3 + $0x30] sm:$0xff]
  %v394 = vld [vmem:[%s3 + $0x38] sm:$0xff]
  %v395 = vld [vmem:[%s3 + $0x40] sm:$0xff]
  %v396 = vld [vmem:[%s3 + $0x48] sm:$0xff]
  %v397 = vld [vmem:[%s3 + $0x50] sm:$0xff]
  %v398 = vld [vmem:[%s3 + $0x58] sm:$0xff]
  %v399 = vld [vmem:[%s3 + $0x60] sm:$0xff]
  %v400 = vld [vmem:[%s3 + $0x68] sm:$0xff]
  %v401 = vld [vmem:[%s3 + $0x70] sm:$0xff]
  %v402 = vld [vmem:[%s3 + $0x78] sm:$0xff]
  %v403 = vld [vmem:[%s3 + $0x80] sm:$0xff]
  %v404 = vld [vmem:[%s3 + $0x88] sm:$0xff]
  %v405 = vld [vmem:[%s3 + $0x90] sm:$0xff]
  %v406 = vld [vmem:[%s3 + $0x98] sm:$0xff]
  %v407 = vld [vmem:[%s3 + $0xa0] sm:$0xff]
  %v408 = vld [vmem:[%s3 + $0xa8] sm:$0xff]
  %v409 = vld [vmem:[%s3 + $0xb0] sm:$0xff]
  %v410 = vld [vmem:[%s3 + $0xb8] sm:$0xff]
  %v411 = vld [vmem:[%s3 + $0xc0] sm:$0xff]
  %v412 = vld [vmem:[%s3 + $0xc8] sm:$0xff]
  %v413 = vld [vmem:[%s3 + $0xd0] sm:$0xff]
  %v414 = vld [vmem:[%s3 + $0xd8] sm:$0xff]
  %v415 = vld [vmem:[%s3 + $0xe0] sm:$0xff]
  %v416 = vld [vmem:[%s3 + $0xe8] sm:$0xff]
  %v417 = vld [vmem:[%s3 + $0xf0] sm:$0xff]
  %v418 = vld [vmem:[%s3 + $0xf8] sm:$0xff]
  %v451 = vunpack.c.l.b16 %v387
  %v452 = vunpack.c.h.b16 %v387
  %v453 = vunpack.c.l.b16 %v388
  %v454 = vunpack.c.h.b16 %v388
  %v455 = vunpack.c.l.b16 %v389
  %v456 = vunpack.c.h.b16 %v389
  %v457 = vunpack.c.l.b16 %v390
  %v458 = vunpack.c.h.b16 %v390
  %v459 = vunpack.c.l.b16 %v391
  %v460 = vunpack.c.h.b16 %v391
  %v461 = vunpack.c.l.b16 %v392
  %v462 = vunpack.c.h.b16 %v392
  %v463 = vunpack.c.l.b16 %v393
  %v464 = vunpack.c.h.b16 %v393
  %v465 = vunpack.c.l.b16 %v394
  %v466 = vunpack.c.h.b16 %v394
  %v467 = vunpack.c.l.b16 %v395
  %v468 = vunpack.c.h.b16 %v395
  %v469 = vunpack.c.l.b16 %v396
  %v470 = vunpack.c.h.b16 %v396
  %v471 = vunpack.c.l.b16 %v397
  %v472 = vunpack.c.h.b16 %v397
  %v473 = vunpack.c.l.b16 %v398
  %v474 = vunpack.c.h.b16 %v398
  %v475 = vunpack.c.l.b16 %v399
  %v476 = vunpack.c.h.b16 %v399
  %v477 = vunpack.c.l.b16 %v400
  %v478 = vunpack.c.h.b16 %v400
  %v479 = vunpack.c.l.b16 %v401
  %v480 = vunpack.c.h.b16 %v401
  %v481 = vunpack.c.l.b16 %v402
  %v482 = vunpack.c.h.b16 %v402
  %v483 = vunpack.c.l.b16 %v403
  %v484 = vunpack.c.h.b16 %v403
  %v485 = vunpack.c.l.b16 %v404
  %v486 = vunpack.c.h.b16 %v404
  %v487 = vunpack.c.l.b16 %v405
  %v488 = vunpack.c.h.b16 %v405
  %v489 = vunpack.c.l.b16 %v406
  %v490 = vunpack.c.h.b16 %v406
  %v491 = vunpack.c.l.b16 %v407
  %v492 = vunpack.c.h.b16 %v407
  %v493 = vunpack.c.l.b16 %v408
  %v494 = vunpack.c.h.b16 %v408
  %v495 = vunpack.c.l.b16 %v409
  %v496 = vunpack.c.h.b16 %v409
  %v497 = vunpack.c.l.b16 %v410
  %v498 = vunpack.c.h.b16 %v410
  %v499 = vunpack.c.l.b16 %v411
  %v500 = vunpack.c.h.b16 %v411
  %v501 = vunpack.c.l.b16 %v412
  %v502 = vunpack.c.h.b16 %v412
  %v503 = vunpack.c.l.b16 %v413
  %v504 = vunpack.c.h.b16 %v413
  %v505 = vunpack.c.l.b16 %v414
  %v506 = vunpack.c.h.b16 %v414
  %v507 = vunpack.c.l.b16 %v415
  %v508 = vunpack.c.h.b16 %v415
  %v509 = vunpack.c.l.b16 %v416
  %v510 = vunpack.c.h.b16 %v416
  %v511 = vunpack.c.l.b16 %v417
  %v512 = vunpack.c.h.b16 %v417
  %v513 = vunpack.c.l.b16 %v418
  %v514 = vunpack.c.h.b16 %v418
  %v515 = vpack.c.b16 %v455, %v451
  %v516 = vpack.c.b16 %v456, %v452
  %v517 = vpack.c.b16 %v457, %v453
  %v518 = vpack.c.b16 %v458, %v454
  %v519 = vpack.c.b16 %v463, %v459
  %v520 = vpack.c.b16 %v464, %v460
  %v521 = vpack.c.b16 %v465, %v461
  %v522 = vpack.c.b16 %v466, %v462
  %v523 = vpack.c.b16 %v471, %v467
  %v524 = vpack.c.b16 %v472, %v468
  %v525 = vpack.c.b16 %v473, %v469
  %v526 = vpack.c.b16 %v474, %v470
  %v527 = vpack.c.b16 %v479, %v475
  %v528 = vpack.c.b16 %v480, %v476
  %v529 = vpack.c.b16 %v481, %v477
  %v530 = vpack.c.b16 %v482, %v478
  %v531 = vpack.c.b16 %v487, %v483
  %v532 = vpack.c.b16 %v488, %v484
  %v533 = vpack.c.b16 %v489, %v485
  %v534 = vpack.c.b16 %v490, %v486
  %v535 = vpack.c.b16 %v495, %v491
  %v536 = vpack.c.b16 %v496, %v492
  %v537 = vpack.c.b16 %v497, %v493
  %v538 = vpack.c.b16 %v498, %v494
  %v539 = vpack.c.b16 %v503, %v499
  %v540 = vpack.c.b16 %v504, %v500
  %v541 = vpack.c.b16 %v505, %v501
  %v542 = vpack.c.b16 %v506, %v502
  %v543 = vpack.c.b16 %v511, %v507
  %v544 = vpack.c.b16 %v512, %v508
  %v545 = vpack.c.b16 %v513, %v509
  %v546 = vpack.c.b16 %v514, %v510
  %579 = vmatprep.subr.bf16.mxu0 %v516
  %580 = vmatpush1.bf16.msra.mxu0 %v515
  %581 = vmatprep.subr.bf16.mxu0 %v520
  %582 = vmatpush1.bf16.msra.mxu0 %v519
  %583 = vmatprep.subr.bf16.mxu0 %v524
  %584 = vmatpush1.bf16.msra.mxu0 %v523
  %585 = vmatprep.subr.bf16.mxu0 %v528
  %586 = vmatpush1.bf16.msra.mxu0 %v527
  %587 = vmatprep.subr.bf16.mxu0 %v532
  %588 = vmatpush1.bf16.msra.mxu0 %v531
  %589 = vmatprep.subr.bf16.mxu0 %v536
  %590 = vmatpush1.bf16.msra.mxu0 %v535
  %591 = vmatprep.subr.bf16.mxu0 %v540
  %592 = vmatpush1.bf16.msra.mxu0 %v539
  %593 = vmatprep.subr.bf16.mxu0 %v544
  %594 = vmatpush1.bf16.msra.mxu0 %v543
  %595 = vmatprep.subr.bf16.mxu0 0
  %596 = vmatpush1.bf16.msra.mxu0 0
  %597 = vmatprep.subr.bf16.mxu0 0
  %598 = vmatpush1.bf16.msra.mxu0 0
  %599 = vmatprep.subr.bf16.mxu0 0
  %600 = vmatpush1.bf16.msra.mxu0 0
  %601 = vmatprep.subr.bf16.mxu0 0
  %602 = vmatpush1.bf16.msra.mxu0 0
  %603 = vmatprep.subr.bf16.mxu0 0
  %604 = vmatpush1.bf16.msra.mxu0 0
  %605 = vmatprep.subr.bf16.mxu0 0
  %606 = vmatpush1.bf16.msra.mxu0 0
  %607 = vmatprep.subr.bf16.mxu0 0
  %608 = vmatpush1.bf16.msra.mxu0 0
  %609 = vmatprep.subr.bf16.mxu0 0
  %610 = vmatpush1.bf16.msra.mxu0 0
  %611 = vmatprep.mubr.bf16.mxu0 0
  %612 = vmatmul.mubr.bf16.gmra.mrb[0].mxu0 0
  %v613 = vpop.f32.mrb[0].mxu0
  %v614 = vadd.f32 0.0, %v613
  %v615 = vpop.f32.mrb[0].mxu0
  %v616 = vadd.f32 0.0, %v615
  %v617 = vpop.f32.mrb[0].mxu0
  %v618 = vadd.f32 0.0, %v617
  %v619 = vpop.f32.mrb[0].mxu0
  %v620 = vadd.f32 0.0, %v619
  %621 = vdwg.mxu0
  %622 = vmatprep.subr.bf16.mxu0 %v518
  %623 = vmatpush1.bf16.msra.mxu0 %v517
  %624 = vmatprep.subr.bf16.mxu0 %v522
  %625 = vmatpush1.bf16.msra.mxu0 %v521
  %626 = vmatprep.subr.bf16.mxu0 %v526
  %627 = vmatpush1.bf16.msra.mxu0 %v525
  %628 = vmatprep.subr.bf16.mxu0 %v530
  %629 = vmatpush1.bf16.msra.mxu0 %v529
  %630 = vmatprep.subr.bf16.mxu0 %v534
  %631 = vmatpush1.bf16.msra.mxu0 %v533
  %632 = vmatprep.subr.bf16.mxu0 %v538
  %633 = vmatpush1.bf16.msra.mxu0 %v537
  %634 = vmatprep.subr.bf16.mxu0 %v542
  %635 = vmatpush1.bf16.msra.mxu0 %v541
  %636 = vmatprep.subr.bf16.mxu0 %v546
  %637 = vmatpush1.bf16.msra.mxu0 %v545
  %638 = vmatprep.subr.bf16.mxu0 0
  %639 = vmatpush1.bf16.msra.mxu0 0
  %640 = vmatprep.subr.bf16.mxu0 0
  %641 = vmatpush1.bf16.msra.mxu0 0
  %642 = vmatprep.subr.bf16.mxu0 0
  %643 = vmatpush1.bf16.msra.mxu0 0
  %644 = vmatprep.subr.bf16.mxu0 0
  %645 = vmatpush1.bf16.msra.mxu0 0
  %646 = vmatprep.subr.bf16.mxu0 0
  %647 = vmatpush1.bf16.msra.mxu0 0
  %648 = vmatprep.subr.bf16.mxu0 0
  %649 = vmatpush1.bf16.msra.mxu0 0
  %650 = vmatprep.subr.bf16.mxu0 0
  %651 = vmatpush1.bf16.msra.mxu0 0
  %652 = vmatprep.subr.bf16.mxu0 0
  %653 = vmatpush1.bf16.msra.mxu0 0
  %654 = vmatprep.mubr.bf16.mxu0 0
  %655 = vmatmul.mubr.bf16.gmra.mrb[0].mxu0 0
  %v656 = vpop.f32.mrb[0].mxu0
  %v657 = vadd.f32 0.0, %v656
  %v658 = vpop.f32.mrb[0].mxu0
  %v659 = vadd.f32 0.0, %v658
  %v660 = vpop.f32.mrb[0].mxu0
  %v661 = vadd.f32 0.0, %v660
  %v662 = vpop.f32.mrb[0].mxu0
  %v663 = vadd.f32 0.0, %v662
  %664 = vdwg.mxu0
  %v665 = vadd.f32 %v379, %v614
  %v666 = vadd.f32 %v380, %v616
  %v667 = vadd.f32 %v381, %v657
  %v668 = vadd.f32 %v382, %v659
  %v669 = vadd.f32 %v383, %v618
  %v670 = vadd.f32 %v384, %v620
  %v671 = vadd.f32 %v385, %v661
  %v672 = vadd.f32 %v386, %v663
  %v673 = vxor.u32 %v665, 2147483648
  %v674 = vxor.u32 %v666, 2147483648
  %v675 = vxor.u32 %v667, 2147483648
  %v676 = vxor.u32 %v669, 2147483648
  %v677 = vxor.u32 %v670, 2147483648
  %v678 = vxor.u32 %v671, 2147483648
  %v679 = vmul.f32 %v673, 1.442695
  %v680 = vpow.pop %v679
  %v681 = vmul.f32 %v674, 1.442695
  %v682 = vpow.pop %v681
  %v683 = vmul.f32 %v675, 1.442695
  %v684 = vpow.pop %v683
  %v685 = vmul.f32 %v676, 1.442695
  %v686 = vpow.pop %v685
  %v687 = vmul.f32 %v677, 1.442695
  %v688 = vpow.pop %v687
  %v689 = vmul.f32 %v678, 1.442695
  %v690 = vpow.pop %v689
  %v691 = vadd.f32 %v680, 1.0
  %v692 = vadd.f32 %v682, 1.0
  %v693 = vadd.f32 %v684, 1.0
  %v694 = vadd.f32 %v686, 1.0
  %v695 = vadd.f32 %v688, 1.0
  %v696 = vadd.f32 %v690, 1.0
  %v697 = vrcp.pop %v691
  %v698 = vmul.f32 1.0, %v697
  %v699 = vrcp.pop %v692
  %v700 = vmul.f32 1.0, %v699
  %v701 = vrcp.pop %v693
  %v702 = vmul.f32 1.0, %v701
  %v703 = vrcp.pop %v694
  %v704 = vmul.f32 1.0, %v703
  %v705 = vrcp.pop %v695
  %v706 = vmul.f32 1.0, %v705
  %v707 = vrcp.pop %v696
  %v708 = vmul.f32 1.0, %v707
  %v709 = vtanh.pop %v668
  %v710 = vtanh.pop %v672
  %v711 = vmul.f32 %v700, 0.0
  %v712 = vmul.f32 %v706, 0.0
  %v713 = vmul.f32 %v698, %v709
  %v714 = vmul.f32 %v704, %v710
  %v715 = vadd.f32 %v711, %v713
  %v716 = vadd.f32 %v712, %v714
  %v717 = vtanh.pop %v715
  %v718 = vtanh.pop %v716
  %v719 = vmul.f32 %v702, %v717
  %v720 = vmul.f32 %v708, %v718
  %721 = vst [vmem:[%s6] sm:$0xff] %v372
  %722 = vst [vmem:[%s6 + $0x10] sm:$0xff] %v373
  %s723 = scalar_lea.vmem %s6, 224
  %724 = vst [vmem:[%s723 + $0x8] sm:$0xff] %v719
  %725 = vst [vmem:[%s723 + $0x18] sm:$0xff] %v720
  %v727 = vlaneseq
  %v728 = vshrl.u32 %v727, 7
  %v729 = vsub.s32 0, %v728
  %v730 = vrot.slane %v26, %v729
  %v732 = vmul.f32 %v372, %v730
  %v733 = vmul.f32 %v373, %v730
  %734 = vadd.xlane.f32.xlu0 %v732
  %v735 = vpop.xlane.xlu0 %734
  %736 = vadd.xlane.f32.xlu0 %v733
  %v737 = vpop.xlane.xlu0 %736
  %vm738 = vcmask 7168
  %739 = vst.msk [vmem:[#allocation2] sm:$0xff] %vm738, %v735
  %740 = vst.msk [vmem:[#allocation2 + $0x8] sm:$0xff] %vm738, %v737
  %v742 = vlaneseq
  %v743 = vshrl.u32 %v742, 7
  %v744 = vsub.s32 0, %v743
  %v745 = vrot.slane %v27, %v744
  %v747 = vmul.f32 %v719, %v745
  %v748 = vmul.f32 %v720, %v745
  %749 = vadd.xlane.f32.xlu0 %v747
  %v750 = vpop.xlane.xlu0 %749
  %751 = vadd.xlane.f32.xlu0 %v748
  %v752 = vpop.xlane.xlu0 %751
  %s753 = scalar_lea.vmem [#allocation3], 112
  %754 = vst.msk [vmem:[%s753] sm:$0xff] %vm738, %v750
  %755 = vst.msk [vmem:[%s753 + $0x8] sm:$0xff] %vm738, %v752
  %s756 = scalar_lea.vmem %s0, 32
  %v757 = vld [vmem:[%s756] sm:$0xff]
  %v758 = vld [vmem:[%s756 + $0x8] sm:$0xff]
  %v759 = vld [vmem:[%s756 + $0x10] sm:$0xff]
  %v760 = vld [vmem:[%s756 + $0x18] sm:$0xff]
  %v761 = vunpack.c.l.bf16 %v757
  %v762 = vunpack.c.h.bf16 %v757
  %v763 = vunpack.c.l.bf16 %v758
  %v764 = vunpack.c.h.bf16 %v758
  %v765 = vunpack.c.l.bf16 %v759
  %v766 = vunpack.c.h.bf16 %v759
  %v767 = vunpack.c.l.bf16 %v760
  %v768 = vunpack.c.h.bf16 %v760
  %v769 = vpack.c.bf16 %v373, %v372
  %v770 = vld [vmem:[%s2] sm:$0xff]
  %v771 = vld [vmem:[%s2 + $0x8] sm:$0xff]
  %v772 = vld [vmem:[%s2 + $0x10] sm:$0xff]
  %v773 = vld [vmem:[%s2 + $0x18] sm:$0xff]
  %v774 = vld [vmem:[%s2 + $0x20] sm:$0xff]
  %v775 = vld [vmem:[%s2 + $0x28] sm:$0xff]
  %v776 = vld [vmem:[%s2 + $0x30] sm:$0xff]
  %v777 = vld [vmem:[%s2 + $0x38] sm:$0xff]
  %v778 = vld [vmem:[%s2 + $0x40] sm:$0xff]
  %v779 = vld [vmem:[%s2 + $0x48] sm:$0xff]
  %v780 = vld [vmem:[%s2 + $0x50] sm:$0xff]
  %v781 = vld [vmem:[%s2 + $0x58] sm:$0xff]
  %v782 = vld [vmem:[%s2 + $0x60] sm:$0xff]
  %v783 = vld [vmem:[%s2 + $0x68] sm:$0xff]
  %v784 = vld [vmem:[%s2 + $0x70] sm:$0xff]
  %v785 = vld [vmem:[%s2 + $0x78] sm:$0xff]
  %v786 = vld [vmem:[%s2 + $0x80] sm:$0xff]
  %v787 = vld [vmem:[%s2 + $0x88] sm:$0xff]
  %v788 = vld [vmem:[%s2 + $0x90] sm:$0xff]
  %v789 = vld [vmem:[%s2 + $0x98] sm:$0xff]
  %v790 = vld [vmem:[%s2 + $0xa0] sm:$0xff]
  %v791 = vld [vmem:[%s2 + $0xa8] sm:$0xff]
  %v792 = vld [vmem:[%s2 + $0xb0] sm:$0xff]
  %v793 = vld [vmem:[%s2 + $0xb8] sm:$0xff]
  %v794 = vld [vmem:[%s2 + $0xc0] sm:$0xff]
  %v795 = vld [vmem:[%s2 + $0xc8] sm:$0xff]
  %v796 = vld [vmem:[%s2 + $0xd0] sm:$0xff]
  %v797 = vld [vmem:[%s2 + $0xd8] sm:$0xff]
  %v798 = vld [vmem:[%s2 + $0xe0] sm:$0xff]
  %v799 = vld [vmem:[%s2 + $0xe8] sm:$0xff]
  %v800 = vld [vmem:[%s2 + $0xf0] sm:$0xff]
  %v801 = vld [vmem:[%s2 + $0xf8] sm:$0xff]
  %v834 = vunpack.c.l.b16 %v770
  %v835 = vunpack.c.h.b16 %v770
  %v836 = vunpack.c.l.b16 %v771
  %v837 = vunpack.c.h.b16 %v771
  %v838 = vunpack.c.l.b16 %v772
  %v839 = vunpack.c.h.b16 %v772
  %v840 = vunpack.c.l.b16 %v773
  %v841 = vunpack.c.h.b16 %v773
  %v842 = vunpack.c.l.b16 %v774
  %v843 = vunpack.c.h.b16 %v774
  %v844 = vunpack.c.l.b16 %v775
  %v845 = vunpack.c.h.b16 %v775
  %v846 = vunpack.c.l.b16 %v776
  %v847 = vunpack.c.h.b16 %v776
  %v848 = vunpack.c.l.b16 %v777
  %v849 = vunpack.c.h.b16 %v777
  %v850 = vunpack.c.l.b16 %v778
  %v851 = vunpack.c.h.b16 %v778
  %v852 = vunpack.c.l.b16 %v779
  %v853 = vunpack.c.h.b16 %v779
  %v854 = vunpack.c.l.b16 %v780
  %v855 = vunpack.c.h.b16 %v780
  %v856 = vunpack.c.l.b16 %v781
  %v857 = vunpack.c.h.b16 %v781
  %v858 = vunpack.c.l.b16 %v782
  %v859 = vunpack.c.h.b16 %v782
  %v860 = vunpack.c.l.b16 %v783
  %v861 = vunpack.c.h.b16 %v783
  %v862 = vunpack.c.l.b16 %v784
  %v863 = vunpack.c.h.b16 %v784
  %v864 = vunpack.c.l.b16 %v785
  %v865 = vunpack.c.h.b16 %v785
  %v866 = vunpack.c.l.b16 %v786
  %v867 = vunpack.c.h.b16 %v786
  %v868 = vunpack.c.l.b16 %v787
  %v869 = vunpack.c.h.b16 %v787
  %v870 = vunpack.c.l.b16 %v788
  %v871 = vunpack.c.h.b16 %v788
  %v872 = vunpack.c.l.b16 %v789
  %v873 = vunpack.c.h.b16 %v789
  %v874 = vunpack.c.l.b16 %v790
  %v875 = vunpack.c.h.b16 %v790
  %v876 = vunpack.c.l.b16 %v791
  %v877 = vunpack.c.h.b16 %v791
  %v878 = vunpack.c.l.b16 %v792
  %v879 = vunpack.c.h.b16 %v792
  %v880 = vunpack.c.l.b16 %v793
  %v881 = vunpack.c.h.b16 %v793
  %v882 = vunpack.c.l.b16 %v794
  %v883 = vunpack.c.h.b16 %v794
  %v884 = vunpack.c.l.b16 %v795
  %v885 = vunpack.c.h.b16 %v795
  %v886 = vunpack.c.l.b16 %v796
  %v887 = vunpack.c.h.b16 %v796
  %v888 = vunpack.c.l.b16 %v797
  %v889 = vunpack.c.h.b16 %v797
  %v890 = vunpack.c.l.b16 %v798
  %v891 = vunpack.c.h.b16 %v798
  %v892 = vunpack.c.l.b16 %v799
  %v893 = vunpack.c.h.b16 %v799
  %v894 = vunpack.c.l.b16 %v800
  %v895 = vunpack.c.h.b16 %v800
  %v896 = vunpack.c.l.b16 %v801
  %v897 = vunpack.c.h.b16 %v801
  %v898 = vpack.c.b16 %v838, %v834
  %v899 = vpack.c.b16 %v839, %v835
  %v900 = vpack.c.b16 %v840, %v836
  %v901 = vpack.c.b16 %v841, %v837
  %v902 = vpack.c.b16 %v846, %v842
  %v903 = vpack.c.b16 %v847, %v843
  %v904 = vpack.c.b16 %v848, %v844
  %v905 = vpack.c.b16 %v849, %v845
  %v906 = vpack.c.b16 %v854, %v850
  %v907 = vpack.c.b16 %v855, %v851
  %v908 = vpack.c.b16 %v856, %v852
  %v909 = vpack.c.b16 %v857, %v853
  %v910 = vpack.c.b16 %v862, %v858
  %v911 = vpack.c.b16 %v863, %v859
  %v912 = vpack.c.b16 %v864, %v860
  %v913 = vpack.c.b16 %v865, %v861
  %v914 = vpack.c.b16 %v870, %v866
  %v915 = vpack.c.b16 %v871, %v867
  %v916 = vpack.c.b16 %v872, %v868
  %v917 = vpack.c.b16 %v873, %v869
  %v918 = vpack.c.b16 %v878, %v874
  %v919 = vpack.c.b16 %v879, %v875
  %v920 = vpack.c.b16 %v880, %v876
  %v921 = vpack.c.b16 %v881, %v877
  %v922 = vpack.c.b16 %v886, %v882
  %v923 = vpack.c.b16 %v887, %v883
  %v924 = vpack.c.b16 %v888, %v884
  %v925 = vpack.c.b16 %v889, %v885
  %v926 = vpack.c.b16 %v894, %v890
  %v927 = vpack.c.b16 %v895, %v891
  %v928 = vpack.c.b16 %v896, %v892
  %v929 = vpack.c.b16 %v897, %v893
  %962 = vmatprep.subr.bf16.mxu0 %v899
  %963 = vmatpush1.bf16.msra.mxu0 %v898
  %964 = vmatprep.subr.bf16.mxu0 %v903
  %965 = vmatpush1.bf16.msra.mxu0 %v902
  %966 = vmatprep.subr.bf16.mxu0 %v907
  %967 = vmatpush1.bf16.msra.mxu0 %v906
  %968 = vmatprep.subr.bf16.mxu0 %v911
  %969 = vmatpush1.bf16.msra.mxu0 %v910
  %970 = vmatprep.subr.bf16.mxu0 %v915
  %971 = vmatpush1.bf16.msra.mxu0 %v914
  %972 = vmatprep.subr.bf16.mxu0 %v919
  %973 = vmatpush1.bf16.msra.mxu0 %v918
  %974 = vmatprep.subr.bf16.mxu0 %v923
  %975 = vmatpush1.bf16.msra.mxu0 %v922
  %976 = vmatprep.subr.bf16.mxu0 %v927
  %977 = vmatpush1.bf16.msra.mxu0 %v926
  %978 = vmatprep.subr.bf16.mxu0 0
  %979 = vmatpush1.bf16.msra.mxu0 0
  %980 = vmatprep.subr.bf16.mxu0 0
  %981 = vmatpush1.bf16.msra.mxu0 0
  %982 = vmatprep.subr.bf16.mxu0 0
  %983 = vmatpush1.bf16.msra.mxu0 0
  %984 = vmatprep.subr.bf16.mxu0 0
  %985 = vmatpush1.bf16.msra.mxu0 0
  %986 = vmatprep.subr.bf16.mxu0 0
  %987 = vmatpush1.bf16.msra.mxu0 0
  %988 = vmatprep.subr.bf16.mxu0 0
  %989 = vmatpush1.bf16.msra.mxu0 0
  %990 = vmatprep.subr.bf16.mxu0 0
  %991 = vmatpush1.bf16.msra.mxu0 0
  %992 = vmatprep.subr.bf16.mxu0 0
  %993 = vmatpush1.bf16.msra.mxu0 0
  %994 = vmatprep.mubr.bf16.mxu0 0
  %995 = vmatmul.mubr.bf16.gmra.mrb[0].mxu0 %v769
  %v996 = vpop.f32.mrb[0].mxu0
  %v997 = vadd.f32 0.0, %v996
  %v998 = vpop.f32.mrb[0].mxu0
  %v999 = vadd.f32 0.0, %v998
  %v1000 = vpop.f32.mrb[0].mxu0
  %v1001 = vadd.f32 0.0, %v1000
  %v1002 = vpop.f32.mrb[0].mxu0
  %v1003 = vadd.f32 0.0, %v1002
  %1004 = vdwg.mxu0
  %1005 = vmatprep.subr.bf16.mxu0 %v901
  %1006 = vmatpush1.bf16.msra.mxu0 %v900
  %1007 = vmatprep.subr.bf16.mxu0 %v905
  %1008 = vmatpush1.bf16.msra.mxu0 %v904
  %1009 = vmatprep.subr.bf16.mxu0 %v909
  %1010 = vmatpush1.bf16.msra.mxu0 %v908
  %1011 = vmatprep.subr.bf16.mxu0 %v913
  %1012 = vmatpush1.bf16.msra.mxu0 %v912
  %1013 = vmatprep.subr.bf16.mxu0 %v917
  %1014 = vmatpush1.bf16.msra.mxu0 %v916
  %1015 = vmatprep.subr.bf16.mxu0 %v921
  %1016 = vmatpush1.bf16.msra.mxu0 %v920
  %1017 = vmatprep.subr.bf16.mxu0 %v925
  %1018 = vmatpush1.bf16.msra.mxu0 %v924
  %1019 = vmatprep.subr.bf16.mxu0 %v929
  %1020 = vmatpush1.bf16.msra.mxu0 %v928
  %1021 = vmatprep.subr.bf16.mxu0 0
  %1022 = vmatpush1.bf16.msra.mxu0 0
  %1023 = vmatprep.subr.bf16.mxu0 0
  %1024 = vmatpush1.bf16.msra.mxu0 0
  %1025 = vmatprep.subr.bf16.mxu0 0
  %1026 = vmatpush1.bf16.msra.mxu0 0
  %1027 = vmatprep.subr.bf16.mxu0 0
  %1028 = vmatpush1.bf16.msra.mxu0 0
  %1029 = vmatprep.subr.bf16.mxu0 0
  %1030 = vmatpush1.bf16.msra.mxu0 0
  %1031 = vmatprep.subr.bf16.mxu0 0
  %1032 = vmatpush1.bf16.msra.mxu0 0
  %1033 = vmatprep.subr.bf16.mxu0 0
  %1034 = vmatpush1.bf16.msra.mxu0 0
  %1035 = vmatprep.subr.bf16.mxu0 0
  %1036 = vmatpush1.bf16.msra.mxu0 0
  %1037 = vmatprep.mubr.bf16.mxu0 0
  %1038 = vmatmul.mubr.bf16.gmra.mrb[0].mxu0 %v769
  %v1039 = vpop.f32.mrb[0].mxu0
  %v1040 = vadd.f32 0.0, %v1039
  %v1041 = vpop.f32.mrb[0].mxu0
  %v1042 = vadd.f32 0.0, %v1041
  %v1043 = vpop.f32.mrb[0].mxu0
  %v1044 = vadd.f32 0.0, %v1043
  %v1045 = vpop.f32.mrb[0].mxu0
  %v1046 = vadd.f32 0.0, %v1045
  %1047 = vdwg.mxu0
  %v1048 = vadd.f32 %v761, %v997
  %v1049 = vadd.f32 %v762, %v999
  %v1050 = vadd.f32 %v763, %v1040
  %v1051 = vadd.f32 %v764, %v1042
  %v1052 = vadd.f32 %v765, %v1001
  %v1053 = vadd.f32 %v766, %v1003
  %v1054 = vadd.f32 %v767, %v1044
  %v1055 = vadd.f32 %v768, %v1046
  %v1056 = vxor.u32 %v1048, 2147483648
  %v1057 = vxor.u32 %v1049, 2147483648
  %v1058 = vxor.u32 %v1050, 2147483648
  %v1059 = vxor.u32 %v1052, 2147483648
  %v1060 = vxor.u32 %v1053, 2147483648
  %v1061 = vxor.u32 %v1054, 2147483648
  %v1062 = vmul.f32 %v1056, 1.442695
  %v1063 = vpow.pop %v1062
  %v1064 = vmul.f32 %v1057, 1.442695
  %v1065 = vpow.pop %v1064
  %v1066 = vmul.f32 %v1058, 1.442695
  %v1067 = vpow.pop %v1066
  %v1068 = vmul.f32 %v1059, 1.442695
  %v1069 = vpow.pop %v1068
  %v1070 = vmul.f32 %v1060, 1.442695
  %v1071 = vpow.pop %v1070
  %v1072 = vmul.f32 %v1061, 1.442695
  %v1073 = vpow.pop %v1072
  %v1074 = vadd.f32 %v1063, 1.0
  %v1075 = vadd.f32 %v1065, 1.0
  %v1076 = vadd.f32 %v1067, 1.0
  %v1077 = vadd.f32 %v1069, 1.0
  %v1078 = vadd.f32 %v1071, 1.0
  %v1079 = vadd.f32 %v1073, 1.0
  %v1080 = vrcp.pop %v1074
  %v1081 = vmul.f32 1.0, %v1080
  %v1082 = vrcp.pop %v1075
  %v1083 = vmul.f32 1.0, %v1082
  %v1084 = vrcp.pop %v1076
  %v1085 = vmul.f32 1.0, %v1084
  %v1086 = vrcp.pop %v1077
  %v1087 = vmul.f32 1.0, %v1086
  %v1088 = vrcp.pop %v1078
  %v1089 = vmul.f32 1.0, %v1088
  %v1090 = vrcp.pop %v1079
  %v1091 = vmul.f32 1.0, %v1090
  %v1092 = vtanh.pop %v1051
  %v1093 = vtanh.pop %v1055
  %v1094 = vmul.f32 %v1083, %v368
  %v1095 = vmul.f32 %v1089, %v369
  %v1096 = vmul.f32 %v1081, %v1092
  %v1097 = vmul.f32 %v1087, %v1093
  %v1098 = vadd.f32 %v1094, %v1096
  %v1099 = vadd.f32 %v1095, %v1097
  %v1100 = vtanh.pop %v1098
  %v1101 = vtanh.pop %v1099
  %v1102 = vmul.f32 %v1085, %v1100
  %v1103 = vmul.f32 %v1091, %v1101
  %s1104 = scalar_lea.vmem %s1, 192
  %v1105 = vld [vmem:[%s1104] sm:$0xff]
  %v1106 = vld [vmem:[%s1104 + $0x8] sm:$0xff]
  %v1107 = vld [vmem:[%s1104 + $0x10] sm:$0xff]
  %v1108 = vld [vmem:[%s1104 + $0x18] sm:$0xff]
  %v1109 = vunpack.c.l.bf16 %v1105
  %v1110 = vunpack.c.h.bf16 %v1105
  %v1111 = vunpack.c.l.bf16 %v1106
  %v1112 = vunpack.c.h.bf16 %v1106
  %v1113 = vunpack.c.l.bf16 %v1107
  %v1114 = vunpack.c.h.bf16 %v1107
  %v1115 = vunpack.c.l.bf16 %v1108
  %v1116 = vunpack.c.h.bf16 %v1108
  %v1117 = vpack.c.bf16 %v720, %v719
  %v1118 = vld [vmem:[%s3] sm:$0xff]
  %v1119 = vld [vmem:[%s3 + $0x8] sm:$0xff]
  %v1120 = vld [vmem:[%s3 + $0x10] sm:$0xff]
  %v1121 = vld [vmem:[%s3 + $0x18] sm:$0xff]
  %v1122 = vld [vmem:[%s3 + $0x20] sm:$0xff]
  %v1123 = vld [vmem:[%s3 + $0x28] sm:$0xff]
  %v1124 = vld [vmem:[%s3 + $0x30] sm:$0xff]
  %v1125 = vld [vmem:[%s3 + $0x38] sm:$0xff]
  %v1126 = vld [vmem:[%s3 + $0x40] sm:$0xff]
  %v1127 = vld [vmem:[%s3 + $0x48] sm:$0xff]
  %v1128 = vld [vmem:[%s3 + $0x50] sm:$0xff]
  %v1129 = vld [vmem:[%s3 + $0x58] sm:$0xff]
  %v1130 = vld [vmem:[%s3 + $0x60] sm:$0xff]
  %v1131 = vld [vmem:[%s3 + $0x68] sm:$0xff]
  %v1132 = vld [vmem:[%s3 + $0x70] sm:$0xff]
  %v1133 = vld [vmem:[%s3 + $0x78] sm:$0xff]
  %v1134 = vld [vmem:[%s3 + $0x80] sm:$0xff]
  %v1135 = vld [vmem:[%s3 + $0x88] sm:$0xff]
  %v1136 = vld [vmem:[%s3 + $0x90] sm:$0xff]
  %v1137 = vld [vmem:[%s3 + $0x98] sm:$0xff]
  %v1138 = vld [vmem:[%s3 + $0xa0] sm:$0xff]
  %v1139 = vld [vmem:[%s3 + $0xa8] sm:$0xff]
  %v1140 = vld [vmem:[%s3 + $0xb0] sm:$0xff]
  %v1141 = vld [vmem:[%s3 + $0xb8] sm:$0xff]
  %v1142 = vld [vmem:[%s3 + $0xc0] sm:$0xff]
  %v1143 = vld [vmem:[%s3 + $0xc8] sm:$0xff]
  %v1144 = vld [vmem:[%s3 + $0xd0] sm:$0xff]
  %v1145 = vld [vmem:[%s3 + $0xd8] sm:$0xff]
  %v1146 = vld [vmem:[%s3 + $0xe0] sm:$0xff]
  %v1147 = vld [vmem:[%s3 + $0xe8] sm:$0xff]
  %v1148 = vld [vmem:[%s3 + $0xf0] sm:$0xff]
  %v1149 = vld [vmem:[%s3 + $0xf8] sm:$0xff]
  %v1182 = vunpack.c.l.b16 %v1118
  %v1183 = vunpack.c.h.b16 %v1118
  %v1184 = vunpack.c.l.b16 %v1119
  %v1185 = vunpack.c.h.b16 %v1119
  %v1186 = vunpack.c.l.b16 %v1120
  %v1187 = vunpack.c.h.b16 %v1120
  %v1188 = vunpack.c.l.b16 %v1121
  %v1189 = vunpack.c.h.b16 %v1121
  %v1190 = vunpack.c.l.b16 %v1122
  %v1191 = vunpack.c.h.b16 %v1122
  %v1192 = vunpack.c.l.b16 %v1123
  %v1193 = vunpack.c.h.b16 %v1123
  %v1194 = vunpack.c.l.b16 %v1124
  %v1195 = vunpack.c.h.b16 %v1124
  %v1196 = vunpack.c.l.b16 %v1125
  %v1197 = vunpack.c.h.b16 %v1125
  %v1198 = vunpack.c.l.b16 %v1126
  %v1199 = vunpack.c.h.b16 %v1126
  %v1200 = vunpack.c.l.b16 %v1127
  %v1201 = vunpack.c.h.b16 %v1127
  %v1202 = vunpack.c.l.b16 %v1128
  %v1203 = vunpack.c.h.b16 %v1128
  %v1204 = vunpack.c.l.b16 %v1129
  %v1205 = vunpack.c.h.b16 %v1129
  %v1206 = vunpack.c.l.b16 %v1130
  %v1207 = vunpack.c.h.b16 %v1130
  %v1208 = vunpack.c.l.b16 %v1131
  %v1209 = vunpack.c.h.b16 %v1131
  %v1210 = vunpack.c.l.b16 %v1132
  %v1211 = vunpack.c.h.b16 %v1132
  %v1212 = vunpack.c.l.b16 %v1133
  %v1213 = vunpack.c.h.b16 %v1133
  %v1214 = vunpack.c.l.b16 %v1134
  %v1215 = vunpack.c.h.b16 %v1134
  %v1216 = vunpack.c.l.b16 %v1135
  %v1217 = vunpack.c.h.b16 %v1135
  %v1218 = vunpack.c.l.b16 %v1136
  %v1219 = vunpack.c.h.b16 %v1136
  %v1220 = vunpack.c.l.b16 %v1137
  %v1221 = vunpack.c.h.b16 %v1137
  %v1222 = vunpack.c.l.b16 %v1138
  %v1223 = vunpack.c.h.b16 %v1138
  %v1224 = vunpack.c.l.b16 %v1139
  %v1225 = vunpack.c.h.b16 %v1139
  %v1226 = vunpack.c.l.b16 %v1140
  %v1227 = vunpack.c.h.b16 %v1140
  %v1228 = vunpack.c.l.b16 %v1141
  %v1229 = vunpack.c.h.b16 %v1141
  %v1230 = vunpack.c.l.b16 %v1142
  %v1231 = vunpack.c.h.b16 %v1142
  %v1232 = vunpack.c.l.b16 %v1143
  %v1233 = vunpack.c.h.b16 %v1143
  %v1234 = vunpack.c.l.b16 %v1144
  %v1235 = vunpack.c.h.b16 %v1144
  %v1236 = vunpack.c.l.b16 %v1145
  %v1237 = vunpack.c.h.b16 %v1145
  %v1238 = vunpack.c.l.b16 %v1146
  %v1239 = vunpack.c.h.b16 %v1146
  %v1240 = vunpack.c.l.b16 %v1147
  %v1241 = vunpack.c.h.b16 %v1147
  %v1242 = vunpack.c.l.b16 %v1148
  %v1243 = vunpack.c.h.b16 %v1148
  %v1244 = vunpack.c.l.b16 %v1149
  %v1245 = vunpack.c.h.b16 %v1149
  %v1246 = vpack.c.b16 %v1186, %v1182
  %v1247 = vpack.c.b16 %v1187, %v1183
  %v1248 = vpack.c.b16 %v1188, %v1184
  %v1249 = vpack.c.b16 %v1189, %v1185
  %v1250 = vpack.c.b16 %v1194, %v1190
  %v1251 = vpack.c.b16 %v1195, %v1191
  %v1252 = vpack.c.b16 %v1196, %v1192
  %v1253 = vpack.c.b16 %v1197, %v1193
  %v1254 = vpack.c.b16 %v1202, %v1198
  %v1255 = vpack.c.b16 %v1203, %v1199
  %v1256 = vpack.c.b16 %v1204, %v1200
  %v1257 = vpack.c.b16 %v1205, %v1201
  %v1258 = vpack.c.b16 %v1210, %v1206
  %v1259 = vpack.c.b16 %v1211, %v1207
  %v1260 = vpack.c.b16 %v1212, %v1208
  %v1261 = vpack.c.b16 %v1213, %v1209
  %v1262 = vpack.c.b16 %v1218, %v1214
  %v1263 = vpack.c.b16 %v1219, %v1215
  %v1264 = vpack.c.b16 %v1220, %v1216
  %v1265 = vpack.c.b16 %v1221, %v1217
  %v1266 = vpack.c.b16 %v1226, %v1222
  %v1267 = vpack.c.b16 %v1227, %v1223
  %v1268 = vpack.c.b16 %v1228, %v1224
  %v1269 = vpack.c.b16 %v1229, %v1225
  %v1270 = vpack.c.b16 %v1234, %v1230
  %v1271 = vpack.c.b16 %v1235, %v1231
  %v1272 = vpack.c.b16 %v1236, %v1232
  %v1273 = vpack.c.b16 %v1237, %v1233
  %v1274 = vpack.c.b16 %v1242, %v1238
  %v1275 = vpack.c.b16 %v1243, %v1239
  %v1276 = vpack.c.b16 %v1244, %v1240
  %v1277 = vpack.c.b16 %v1245, %v1241
  %1310 = vmatprep.subr.bf16.mxu0 %v1247
  %1311 = vmatpush1.bf16.msra.mxu0 %v1246
  %1312 = vmatprep.subr.bf16.mxu0 %v1251
  %1313 = vmatpush1.bf16.msra.mxu0 %v1250
  %1314 = vmatprep.subr.bf16.mxu0 %v1255
  %1315 = vmatpush1.bf16.msra.mxu0 %v1254
  %1316 = vmatprep.subr.bf16.mxu0 %v1259
  %1317 = vmatpush1.bf16.msra.mxu0 %v1258
  %1318 = vmatprep.subr.bf16.mxu0 %v1263
  %1319 = vmatpush1.bf16.msra.mxu0 %v1262
  %1320 = vmatprep.subr.bf16.mxu0 %v1267
  %1321 = vmatpush1.bf16.msra.mxu0 %v1266
  %1322 = vmatprep.subr.bf16.mxu0 %v1271
  %1323 = vmatpush1.bf16.msra.mxu0 %v1270
  %1324 = vmatprep.subr.bf16.mxu0 %v1275
  %1325 = vmatpush1.bf16.msra.mxu0 %v1274
  %1326 = vmatprep.subr.bf16.mxu0 0
  %1327 = vmatpush1.bf16.msra.mxu0 0
  %1328 = vmatprep.subr.bf16.mxu0 0
  %1329 = vmatpush1.bf16.msra.mxu0 0
  %1330 = vmatprep.subr.bf16.mxu0 0
  %1331 = vmatpush1.bf16.msra.mxu0 0
  %1332 = vmatprep.subr.bf16.mxu0 0
  %1333 = vmatpush1.bf16.msra.mxu0 0
  %1334 = vmatprep.subr.bf16.mxu0 0
  %1335 = vmatpush1.bf16.msra.mxu0 0
  %1336 = vmatprep.subr.bf16.mxu0 0
  %1337 = vmatpush1.bf16.msra.mxu0 0
  %1338 = vmatprep.subr.bf16.mxu0 0
  %1339 = vmatpush1.bf16.msra.mxu0 0
  %1340 = vmatprep.subr.bf16.mxu0 0
  %1341 = vmatpush1.bf16.msra.mxu0 0
  %1342 = vmatprep.mubr.bf16.mxu0 0
  %1343 = vmatmul.mubr.bf16.gmra.mrb[0].mxu0 %v1117
  %v1344 = vpop.f32.mrb[0].mxu0
  %v1345 = vadd.f32 0.0, %v1344
  %v1346 = vpop.f32.mrb[0].mxu0
  %v1347 = vadd.f32 0.0, %v1346
  %v1348 = vpop.f32.mrb[0].mxu0
  %v1349 = vadd.f32 0.0, %v1348
  %v1350 = vpop.f32.mrb[0].mxu0
  %v1351 = vadd.f32 0.0, %v1350
  %1352 = vdwg.mxu0
  %1353 = vmatprep.subr.bf16.mxu0 %v1249
  %1354 = vmatpush1.bf16.msra.mxu0 %v1248
  %1355 = vmatprep.subr.bf16.mxu0 %v1253
  %1356 = vmatpush1.bf16.msra.mxu0 %v1252
  %1357 = vmatprep.subr.bf16.mxu0 %v1257
  %1358 = vmatpush1.bf16.msra.mxu0 %v1256
  %1359 = vmatprep.subr.bf16.mxu0 %v1261
  %1360 = vmatpush1.bf16.msra.mxu0 %v1260
  %1361 = vmatprep.subr.bf16.mxu0 %v1265
  %1362 = vmatpush1.bf16.msra.mxu0 %v1264
  %1363 = vmatprep.subr.bf16.mxu0 %v1269
  %1364 = vmatpush1.bf16.msra.mxu0 %v1268
  %1365 = vmatprep.subr.bf16.mxu0 %v1273
  %1366 = vmatpush1.bf16.msra.mxu0 %v1272
  %1367 = vmatprep.subr.bf16.mxu0 %v1277
  %1368 = vmatpush1.bf16.msra.mxu0 %v1276
  %1369 = vmatprep.subr.bf16.mxu0 0
  %1370 = vmatpush1.bf16.msra.mxu0 0
  %1371 = vmatprep.subr.bf16.mxu0 0
  %1372 = vmatpush1.bf16.msra.mxu0 0
  %1373 = vmatprep.subr.bf16.mxu0 0
  %1374 = vmatpush1.bf16.msra.mxu0 0
  %1375 = vmatprep.subr.bf16.mxu0 0
  %1376 = vmatpush1.bf16.msra.mxu0 0
  %1377 = vmatprep.subr.bf16.mxu0 0
  %1378 = vmatpush1.bf16.msra.mxu0 0
  %1379 = vmatprep.subr.bf16.mxu0 0
  %1380 = vmatpush1.bf16.msra.mxu0 0
  %1381 = vmatprep.subr.bf16.mxu0 0
  %1382 = vmatpush1.bf16.msra.mxu0 0
  %1383 = vmatprep.subr.bf16.mxu0 0
  %1384 = vmatpush1.bf16.msra.mxu0 0
  %1385 = vmatprep.mubr.bf16.mxu0 0
  %1386 = vmatmul.mubr.bf16.gmra.mrb[0].mxu0 %v1117
  %v1387 = vpop.f32.mrb[0].mxu0
  %v1388 = vadd.f32 0.0, %v1387
  %v1389 = vpop.f32.mrb[0].mxu0
  %v1390 = vadd.f32 0.0, %v1389
  %v1391 = vpop.f32.mrb[0].mxu0
  %v1392 = vadd.f32 0.0, %v1391
  %v1393 = vpop.f32.mrb[0].mxu0
  %v1394 = vadd.f32 0.0, %v1393
  %1395 = vdwg.mxu0
  %v1396 = vadd.f32 %v1109, %v1345
  %v1397 = vadd.f32 %v1110, %v1347
  %v1398 = vadd.f32 %v1111, %v1388
  %v1399 = vadd.f32 %v1112, %v1390
  %v1400 = vadd.f32 %v1113, %v1349
  %v1401 = vadd.f32 %v1114, %v1351
  %v1402 = vadd.f32 %v1115, %v1392
  %v1403 = vadd.f32 %v1116, %v1394
  %v1404 = vxor.u32 %v1396, 2147483648
  %v1405 = vxor.u32 %v1397, 2147483648
  %v1406 = vxor.u32 %v1398, 2147483648
  %v1407 = vxor.u32 %v1400, 2147483648
  %v1408 = vxor.u32 %v1401, 2147483648
  %v1409 = vxor.u32 %v1402, 2147483648
  %v1410 = vmul.f32 %v1404, 1.442695
  %v1411 = vpow.pop %v1410
  %v1412 = vmul.f32 %v1405, 1.442695
  %v1413 = vpow.pop %v1412
  %v1414 = vmul.f32 %v1406, 1.442695
  %v1415 = vpow.pop %v1414
  %v1416 = vmul.f32 %v1407, 1.442695
  %v1417 = vpow.pop %v1416
  %v1418 = vmul.f32 %v1408, 1.442695
  %v1419 = vpow.pop %v1418
  %v1420 = vmul.f32 %v1409, 1.442695
  %v1421 = vpow.pop %v1420
  %v1422 = vadd.f32 %v1411, 1.0
  %v1423 = vadd.f32 %v1413, 1.0
  %v1424 = vadd.f32 %v1415, 1.0
  %v1425 = vadd.f32 %v1417, 1.0
  %v1426 = vadd.f32 %v1419, 1.0
  %v1427 = vadd.f32 %v1421, 1.0
  %v1428 = vrcp.pop %v1422
  %v1429 = vmul.f32 1.0, %v1428
  %v1430 = vrcp.pop %v1423
  %v1431 = vmul.f32 1.0, %v1430
  %v1432 = vrcp.pop %v1424
  %v1433 = vmul.f32 1.0, %v1432
  %v1434 = vrcp.pop %v1425
  %v1435 = vmul.f32 1.0, %v1434
  %v1436 = vrcp.pop %v1426
  %v1437 = vmul.f32 1.0, %v1436
  %v1438 = vrcp.pop %v1427
  %v1439 = vmul.f32 1.0, %v1438
  %v1440 = vtanh.pop %v1399
  %v1441 = vtanh.pop %v1403
  %v1442 = vmul.f32 %v1431, %v715
  %v1443 = vmul.f32 %v1437, %v716
  %v1444 = vmul.f32 %v1429, %v1440
  %v1445 = vmul.f32 %v1435, %v1441
  %v1446 = vadd.f32 %v1442, %v1444
  %v1447 = vadd.f32 %v1443, %v1445
  %v1448 = vtanh.pop %v1446
  %v1449 = vtanh.pop %v1447
  %v1450 = vmul.f32 %v1433, %v1448
  %v1451 = vmul.f32 %v1439, %v1449
  %s1452 = scalar_lea.vmem %s6, 32
  %1453 = vst [vmem:[%s1452] sm:$0xff] %v1102
  %1454 = vst [vmem:[%s1452 + $0x10] sm:$0xff] %v1103
  %s1455 = scalar_lea.vmem %s6, 192
  %1456 = vst [vmem:[%s1455 + $0x8] sm:$0xff] %v1450
  %1457 = vst [vmem:[%s1455 + $0x18] sm:$0xff] %v1451
  %v1458 = vmul.f32 %v1102, %v730
  %v1459 = vmul.f32 %v1103, %v730
  %1460 = vadd.xlane.f32.xlu0 %v1458
  %v1461 = vpop.xlane.xlu0 %1460
  %1462 = vadd.xlane.f32.xlu0 %v1459
  %v1463 = vpop.xlane.xlu0 %1462
  %s1464 = scalar_lea.vmem [#allocation2], 16
  %1465 = vst.msk [vmem:[%s1464] sm:$0xff] %vm738, %v1461
  %1466 = vst.msk [vmem:[%s1464 + $0x8] sm:$0xff] %vm738, %v1463
  %v1467 = vmul.f32 %v1450, %v745
  %v1468 = vmul.f32 %v1451, %v745
  %1469 = vadd.xlane.f32.xlu0 %v1467
  %v1470 = vpop.xlane.xlu0 %1469
  %1471 = vadd.xlane.f32.xlu0 %v1468
  %v1472 = vpop.xlane.xlu0 %1471
  %s1473 = scalar_lea.vmem [#allocation3], 96
  %1474 = vst.msk [vmem:[%s1473] sm:$0xff] %vm738, %v1470
  %1475 = vst.msk [vmem:[%s1473 + $0x8] sm:$0xff] %vm738, %v1472
  %s1476 = scalar_lea.vmem %s0, 64
  %v1477 = vld [vmem:[%s1476] sm:$0xff]
  %v1478 = vld [vmem:[%s1476 + $0x8] sm:$0xff]
  %v1479 = vld [vmem:[%s1476 + $0x10] sm:$0xff]
  %v1480 = vld [vmem:[%s1476 + $0x18] sm:$0xff]
  %v1481 = vunpack.c.l.bf16 %v1477
  %v1482 = vunpack.c.h.bf16 %v1477
  %v1483 = vunpack.c.l.bf16 %v1478
  %v1484 = vunpack.c.h.bf16 %v1478
  %v1485 = vunpack.c.l.bf16 %v1479
  %v1486 = vunpack.c.h.bf16 %v1479
  %v1487 = vunpack.c.l.bf16 %v1480
  %v1488 = vunpack.c.h.bf16 %v1480
  %v1489 = vpack.c.bf16 %v1103, %v1102
  %v1490 = vld [vmem:[%s2] sm:$0xff]
  %v1491 = vld [vmem:[%s2 + $0x8] sm:$0xff]
  %v1492 = vld [vmem:[%s2 + $0x10] sm:$0xff]
  %v1493 = vld [vmem:[%s2 + $0x18] sm:$0xff]
  %v1494 = vld [vmem:[%s2 + $0x20] sm:$0xff]
  %v1495 = vld [vmem:[%s2 + $0x28] sm:$0xff]
  %v1496 = vld [vmem:[%s2 + $0x30] sm:$0xff]
  %v1497 = vld [vmem:[%s2 + $0x38] sm:$0xff]
  %v1498 = vld [vmem:[%s2 + $0x40] sm:$0xff]
  %v1499 = vld [vmem:[%s2 + $0x48] sm:$0xff]
  %v1500 = vld [vmem:[%s2 + $0x50] sm:$0xff]
  %v1501 = vld [vmem:[%s2 + $0x58] sm:$0xff]
  %v1502 = vld [vmem:[%s2 + $0x60] sm:$0xff]
  %v1503 = vld [vmem:[%s2 + $0x68] sm:$0xff]
  %v1504 = vld [vmem:[%s2 + $0x70] sm:$0xff]
  %v1505 = vld [vmem:[%s2 + $0x78] sm:$0xff]
  %v1506 = vld [vmem:[%s2 + $0x80] sm:$0xff]
  %v1507 = vld [vmem:[%s2 + $0x88] sm:$0xff]
  %v1508 = vld [vmem:[%s2 + $0x90] sm:$0xff]
  %v1509 = vld [vmem:[%s2 + $0x98] sm:$0xff]
  %v1510 = vld [vmem:[%s2 + $0xa0] sm:$0xff]
  %v1511 = vld [vmem:[%s2 + $0xa8] sm:$0xff]
  %v1512 = vld [vmem:[%s2 + $0xb0] sm:$0xff]
  %v1513 = vld [vmem:[%s2 + $0xb8] sm:$0xff]
  %v1514 = vld [vmem:[%s2 + $0xc0] sm:$0xff]
  %v1515 = vld [vmem:[%s2 + $0xc8] sm:$0xff]
  %v1516 = vld [vmem:[%s2 + $0xd0] sm:$0xff]
  %v1517 = vld [vmem:[%s2 + $0xd8] sm:$0xff]
  %v1518 = vld [vmem:[%s2 + $0xe0] sm:$0xff]
  %v1519 = vld [vmem:[%s2 + $0xe8] sm:$0xff]
  %v1520 = vld [vmem:[%s2 + $0xf0] sm:$0xff]
  %v1521 = vld [vmem:[%s2 + $0xf8] sm:$0xff]
  %v1554 = vunpack.c.l.b16 %v1490
  %v1555 = vunpack.c.h.b16 %v1490
  %v1556 = vunpack.c.l.b16 %v1491
  %v1557 = vunpack.c.h.b16 %v1491
  %v1558 = vunpack.c.l.b16 %v1492
  %v1559 = vunpack.c.h.b16 %v1492
  %v1560 = vunpack.c.l.b16 %v1493
  %v1561 = vunpack.c.h.b16 %v1493
  %v1562 = vunpack.c.l.b16 %v1494
  %v1563 = vunpack.c.h.b16 %v1494
  %v1564 = vunpack.c.l.b16 %v1495
  %v1565 = vunpack.c.h.b16 %v1495
  %v1566 = vunpack.c.l.b16 %v1496
  %v1567 = vunpack.c.h.b16 %v1496
  %v1568 = vunpack.c.l.b16 %v1497
  %v1569 = vunpack.c.h.b16 %v1497
  %v1570 = vunpack.c.l.b16 %v1498
  %v1571 = vunpack.c.h.b16 %v1498
  %v1572 = vunpack.c.l.b16 %v1499
  %v1573 = vunpack.c.h.b16 %v1499
  %v1574 = vunpack.c.l.b16 %v1500
  %v1575 = vunpack.c.h.b16 %v1500
  %v1576 = vunpack.c.l.b16 %v1501
  %v1577 = vunpack.c.h.b16 %v1501
  %v1578 = vunpack.c.l.b16 %v1502
  %v1579 = vunpack.c.h.b16 %v1502
  %v1580 = vunpack.c.l.b16 %v1503
  %v1581 = vunpack.c.h.b16 %v1503
  %v1582 = vunpack.c.l.b16 %v1504
  %v1583 = vunpack.c.h.b16 %v1504
  %v1584 = vunpack.c.l.b16 %v1505
  %v1585 = vunpack.c.h.b16 %v1505
  %v1586 = vunpack.c.l.b16 %v1506
  %v1587 = vunpack.c.h.b16 %v1506
  %v1588 = vunpack.c.l.b16 %v1507
  %v1589 = vunpack.c.h.b16 %v1507
  %v1590 = vunpack.c.l.b16 %v1508
  %v1591 = vunpack.c.h.b16 %v1508
  %v1592 = vunpack.c.l.b16 %v1509
  %v1593 = vunpack.c.h.b16 %v1509
  %v1594 = vunpack.c.l.b16 %v1510
  %v1595 = vunpack.c.h.b16 %v1510
  %v1596 = vunpack.c.l.b16 %v1511
  %v1597 = vunpack.c.h.b16 %v1511
  %v1598 = vunpack.c.l.b16 %v1512
  %v1599 = vunpack.c.h.b16 %v1512
  %v1600 = vunpack.c.l.b16 %v1513
  %v1601 = vunpack.c.h.b16 %v1513
  %v1602 = vunpack.c.l.b16 %v1514
  %v1603 = vunpack.c.h.b16 %v1514
  %v1604 = vunpack.c.l.b16 %v1515
  %v1605 = vunpack.c.h.b16 %v1515
  %v1606 = vunpack.c.l.b16 %v1516
  %v1607 = vunpack.c.h.b16 %v1516
  %v1608 = vunpack.c.l.b16 %v1517
  %v1609 = vunpack.c.h.b16 %v1517
  %v1610 = vunpack.c.l.b16 %v1518
  %v1611 = vunpack.c.h.b16 %v1518
  %v1612 = vunpack.c.l.b16 %v1519
  %v1613 = vunpack.c.h.b16 %v1519
  %v1614 = vunpack.c.l.b16 %v1520
  %v1615 = vunpack.c.h.b16 %v1520
  %v1616 = vunpack.c.l.b16 %v1521
  %v1617 = vunpack.c.h.b16 %v1521
  %v1618 = vpack.c.b16 %v1558, %v1554
  %v1619 = vpack.c.b16 %v1559, %v1555
  %v1620 = vpack.c.b16 %v1560, %v1556
  %v1621 = vpack.c.b16 %v1561, %v1557
  %v1622 = vpack.c.b16 %v1566, %v1562
  %v1623 = vpack.c.b16 %v1567, %v1563
  %v1624 = vpack.c.b16 %v1568, %v1564
  %v1625 = vpack.c.b16 %v1569, %v1565
  %v1626 = vpack.c.b16 %v1574, %v1570
  %v1627 = vpack.c.b16 %v1575, %v1571
  %v1628 = vpack.c.b16 %v1576, %v1572
  %v1629 = vpack.c.b16 %v1577, %v1573
  %v1630 = vpack.c.b16 %v1582, %v1578
  %v1631 = vpack.c.b16 %v1583, %v1579
  %v1632 = vpack.c.b16 %v1584, %v1580
  %v1633 = vpack.c.b16 %v1585, %v1581
  %v1634 = vpack.c.b16 %v1590, %v1586
  %v1635 = vpack.c.b16 %v1591, %v1587
  %v1636 = vpack.c.b16 %v1592, %v1588
  %v1637 = vpack.c.b16 %v1593, %v1589
  %v1638 = vpack.c.b16 %v1598, %v1594
  %v1639 = vpack.c.b16 %v1599, %v1595
  %v1640 = vpack.c.b16 %v1600, %v1596
  %v1641 = vpack.c.b16 %v1601, %v1597
  %v1642 = vpack.c.b16 %v1606, %v1602
  %v1643 = vpack.c.b16 %v1607, %v1603
  %v1644 = vpack.c.b16 %v1608, %v1604
  %v1645 = vpack.c.b16 %v1609, %v1605
  %v1646 = vpack.c.b16 %v1614, %v1610
  %v1647 = vpack.c.b16 %v1615, %v1611
  %v1648 = vpack.c.b16 %v1616, %v1612
  %v1649 = vpack.c.b16 %v1617, %v1613
  %1682 = vmatprep.subr.bf16.mxu0 %v1619
  %1683 = vmatpush1.bf16.msra.mxu0 %v1618
  %1684 = vmatprep.subr.bf16.mxu0 %v1623
  %1685 = vmatpush1.bf16.msra.mxu0 %v1622
  %1686 = vmatprep.subr.bf16.mxu0 %v1627
  %1687 = vmatpush1.bf16.msra.mxu0 %v1626
  %1688 = vmatprep.subr.bf16.mxu0 %v1631
  %1689 = vmatpush1.bf16.msra.mxu0 %v1630
  %1690 = vmatprep.subr.bf16.mxu0 %v1635
  %1691 = vmatpush1.bf16.msra.mxu0 %v1634
  %1692 = vmatprep.subr.bf16.mxu0 %v1639
  %1693 = vmatpush1.bf16.msra.mxu0 %v1638
  %1694 = vmatprep.subr.bf16.mxu0 %v1643
  %1695 = vmatpush1.bf16.msra.mxu0 %v1642
  %1696 = vmatprep.subr.bf16.mxu0 %v1647
  %1697 = vmatpush1.bf16.msra.mxu0 %v1646
  %1698 = vmatprep.subr.bf16.mxu0 0
  %1699 = vmatpush1.bf16.msra.mxu0 0
  %1700 = vmatprep.subr.bf16.mxu0 0
  %1701 = vmatpush1.bf16.msra.mxu0 0
  %1702 = vmatprep.subr.bf16.mxu0 0
  %1703 = vmatpush1.bf16.msra.mxu0 0
  %1704 = vmatprep.subr.bf16.mxu0 0
  %1705 = vmatpush1.bf16.msra.mxu0 0
  %1706 = vmatprep.subr.bf16.mxu0 0
  %1707 = vmatpush1.bf16.msra.mxu0 0
  %1708 = vmatprep.subr.bf16.mxu0 0
  %1709 = vmatpush1.bf16.msra.mxu0 0
  %1710 = vmatprep.subr.bf16.mxu0 0
  %1711 = vmatpush1.bf16.msra.mxu0 0
  %1712 = vmatprep.subr.bf16.mxu0 0
  %1713 = vmatpush1.bf16.msra.mxu0 0
  %1714 = vmatprep.mubr.bf16.mxu0 0
  %1715 = vmatmul.mubr.bf16.gmra.mrb[0].mxu0 %v1489
  %v1716 = vpop.f32.mrb[0].mxu0
  %v1717 = vadd.f32 0.0, %v1716
  %v1718 = vpop.f32.mrb[0].mxu0
  %v1719 = vadd.f32 0.0, %v1718
  %v1720 = vpop.f32.mrb[0].mxu0
  %v1721 = vadd.f32 0.0, %v1720
  %v1722 = vpop.f32.mrb[0].mxu0
  %v1723 = vadd.f32 0.0, %v1722
  %1724 = vdwg.mxu0
  %1725 = vmatprep.subr.bf16.mxu0 %v1621
  %1726 = vmatpush1.bf16.msra.mxu0 %v1620
  %1727 = vmatprep.subr.bf16.mxu0 %v1625
  %1728 = vmatpush1.bf16.msra.mxu0 %v1624
  %1729 = vmatprep.subr.bf16.mxu0 %v1629
  %1730 = vmatpush1.bf16.msra.mxu0 %v1628
  %1731 = vmatprep.subr.bf16.mxu0 %v1633
  %1732 = vmatpush1.bf16.msra.mxu0 %v1632
  %1733 = vmatprep.subr.bf16.mxu0 %v1637
  %1734 = vmatpush1.bf16.msra.mxu0 %v1636
  %1735 = vmatprep.subr.bf16.mxu0 %v1641
  %1736 = vmatpush1.bf16.msra.mxu0 %v1640
  %1737 = vmatprep.subr.bf16.mxu0 %v1645
  %1738 = vmatpush1.bf16.msra.mxu0 %v1644
  %1739 = vmatprep.subr.bf16.mxu0 %v1649
  %1740 = vmatpush1.bf16.msra.mxu0 %v1648
  %1741 = vmatprep.subr.bf16.mxu0 0
  %1742 = vmatpush1.bf16.msra.mxu0 0
  %1743 = vmatprep.subr.bf16.mxu0 0
  %1744 = vmatpush1.bf16.msra.mxu0 0
  %1745 = vmatprep.subr.bf16.mxu0 0
  %1746 = vmatpush1.bf16.msra.mxu0 0
  %1747 = vmatprep.subr.bf16.mxu0 0
  %1748 = vmatpush1.bf16.msra.mxu0 0
  %1749 = vmatprep.subr.bf16.mxu0 0
  %1750 = vmatpush1.bf16.msra.mxu0 0
  %1751 = vmatprep.subr.bf16.mxu0 0
  %1752 = vmatpush1.bf16.msra.mxu0 0
  %1753 = vmatprep.subr.bf16.mxu0 0
  %1754 = vmatpush1.bf16.msra.mxu0 0
  %1755 = vmatprep.subr.bf16.mxu0 0
  %1756 = vmatpush1.bf16.msra.mxu0 0
  %1757 = vmatprep.mubr.bf16.mxu0 0
  %1758 = vmatmul.mubr.bf16.gmra.mrb[0].mxu0 %v1489
  %v1759 = vpop.f32.mrb[0].mxu0
  %v1760 = vadd.f32 0.0, %v1759
  %v1761 = vpop.f32.mrb[0].mxu0
  %v1762 = vadd.f32 0.0, %v1761
  %v1763 = vpop.f32.mrb[0].mxu0
  %v1764 = vadd.f32 0.0, %v1763
  %v1765 = vpop.f32.mrb[0].mxu0
  %v1766 = vadd.f32 0.0, %v1765
  %1767 = vdwg.mxu0
  %v1768 = vadd.f32 %v1481, %v1717
  %v1769 = vadd.f32 %v1482, %v1719
  %v1770 = vadd.f32 %v1483, %v1760
  %v1771 = vadd.f32 %v1484, %v1762
  %v1772 = vadd.f32 %v1485, %v1721
  %v1773 = vadd.f32 %v1486, %v1723
  %v1774 = vadd.f32 %v1487, %v1764
  %v1775 = vadd.f32 %v1488, %v1766
  %v1776 = vxor.u32 %v1768, 2147483648
  %v1777 = vxor.u32 %v1769, 2147483648
  %v1778 = vxor.u32 %v1770, 2147483648
  %v1779 = vxor.u32 %v1772, 2147483648
  %v1780 = vxor.u32 %v1773, 2147483648
  %v1781 = vxor.u32 %v1774, 2147483648
  %v1782 = vmul.f32 %v1776, 1.442695
  %v1783 = vpow.pop %v1782
  %v1784 = vmul.f32 %v1777, 1.442695
  %v1785 = vpow.pop %v1784
  %v1786 = vmul.f32 %v1778, 1.442695
  %v1787 = vpow.pop %v1786
  %v1788 = vmul.f32 %v1779, 1.442695
  %v1789 = vpow.pop %v1788
  %v1790 = vmul.f32 %v1780, 1.442695
  %v1791 = vpow.pop %v1790
  %v1792 = vmul.f32 %v1781, 1.442695
  %v1793 = vpow.pop %v1792
  %v1794 = vadd.f32 %v1783, 1.0
  %v1795 = vadd.f32 %v1785, 1.0
  %v1796 = vadd.f32 %v1787, 1.0
  %v1797 = vadd.f32 %v1789, 1.0
  %v1798 = vadd.f32 %v1791, 1.0
  %v1799 = vadd.f32 %v1793, 1.0
  %v1800 = vrcp.pop %v1794
  %v1801 = vmul.f32 1.0, %v1800
  %v1802 = vrcp.pop %v1795
  %v1803 = vmul.f32 1.0, %v1802
  %v1804 = vrcp.pop %v1796
  %v1805 = vmul.f32 1.0, %v1804
  %v1806 = vrcp.pop %v1797
  %v1807 = vmul.f32 1.0, %v1806
  %v1808 = vrcp.pop %v1798
  %v1809 = vmul.f32 1.0, %v1808
  %v1810 = vrcp.pop %v1799
  %v1811 = vmul.f32 1.0, %v1810
  %v1812 = vtanh.pop %v1771
  %v1813 = vtanh.pop %v1775
  %v1814 = vmul.f32 %v1803, %v1098
  %v1815 = vmul.f32 %v1809, %v1099
  %v1816 = vmul.f32 %v1801, %v1812
  %v1817 = vmul.f32 %v1807, %v1813
  %v1818 = vadd.f32 %v1814, %v1816
  %v1819 = vadd.f32 %v1815, %v1817
  %v1820 = vtanh.pop %v1818
  %v1821 = vtanh.pop %v1819
  %v1822 = vmul.f32 %v1805, %v1820
  %v1823 = vmul.f32 %v1811, %v1821
  %s1824 = scalar_lea.vmem %s1, 160
  %v1825 = vld [vmem:[%s1824] sm:$0xff]
  %v1826 = vld [vmem:[%s1824 + $0x8] sm:$0xff]
  %v1827 = vld [vmem:[%s1824 + $0x10] sm:$0xff]
  %v1828 = vld [vmem:[%s1824 + $0x18] sm:$0xff]
  %v1829 = vunpack.c.l.bf16 %v1825
  %v1830 = vunpack.c.h.bf16 %v1825
  %v1831 = vunpack.c.l.bf16 %v1826
  %v1832 = vunpack.c.h.bf16 %v1826
  %v1833 = vunpack.c.l.bf16 %v1827
  %v1834 = vunpack.c.h.bf16 %v1827
  %v1835 = vunpack.c.l.bf16 %v1828
  %v1836 = vunpack.c.h.bf16 %v1828
  %v1837 = vpack.c.bf16 %v1451, %v1450
  %v1838 = vld [vmem:[%s3] sm:$0xff]
  %v1839 = vld [vmem:[%s3 + $0x8] sm:$0xff]
  %v1840 = vld [vmem:[%s3 + $0x10] sm:$0xff]
  %v1841 = vld [vmem:[%s3 + $0x18] sm:$0xff]
  %v1842 = vld [vmem:[%s3 + $0x20] sm:$0xff]
  %v1843 = vld [vmem:[%s3 + $0x28] sm:$0xff]
  %v1844 = vld [vmem:[%s3 + $0x30] sm:$0xff]
  %v1845 = vld [vmem:[%s3 + $0x38] sm:$0xff]
  %v1846 = vld [vmem:[%s3 + $0x40] sm:$0xff]
  %v1847 = vld [vmem:[%s3 + $0x48] sm:$0xff]
  %v1848 = vld [vmem:[%s3 + $0x50] sm:$0xff]
  %v1849 = vld [vmem:[%s3 + $0x58] sm:$0xff]
  %v1850 = vld [vmem:[%s3 + $0x60] sm:$0xff]
  %v1851 = vld [vmem:[%s3 + $0x68] sm:$0xff]
  %v1852 = vld [vmem:[%s3 + $0x70] sm:$0xff]
  %v1853 = vld [vmem:[%s3 + $0x78] sm:$0xff]
  %v1854 = vld [vmem:[%s3 + $0x80] sm:$0xff]
  %v1855 = vld [vmem:[%s3 + $0x88] sm:$0xff]
  %v1856 = vld [vmem:[%s3 + $0x90] sm:$0xff]
  %v1857 = vld [vmem:[%s3 + $0x98] sm:$0xff]
  %v1858 = vld [vmem:[%s3 + $0xa0] sm:$0xff]
  %v1859 = vld [vmem:[%s3 + $0xa8] sm:$0xff]
  %v1860 = vld [vmem:[%s3 + $0xb0] sm:$0xff]
  %v1861 = vld [vmem:[%s3 + $0xb8] sm:$0xff]
  %v1862 = vld [vmem:[%s3 + $0xc0] sm:$0xff]
  %v1863 = vld [vmem:[%s3 + $0xc8] sm:$0xff]
  %v1864 = vld [vmem:[%s3 + $0xd0] sm:$0xff]
  %v1865 = vld [vmem:[%s3 + $0xd8] sm:$0xff]
  %v1866 = vld [vmem:[%s3 + $0xe0] sm:$0xff]
  %v1867 = vld [vmem:[%s3 + $0xe8] sm:$0xff]
  %v1868 = vld [vmem:[%s3 + $0xf0] sm:$0xff]
  %v1869 = vld [vmem:[%s3 + $0xf8] sm:$0xff]
  %v1902 = vunpack.c.l.b16 %v1838
  %v1903 = vunpack.c.h.b16 %v1838
  %v1904 = vunpack.c.l.b16 %v1839
  %v1905 = vunpack.c.h.b16 %v1839
  %v1906 = vunpack.c.l.b16 %v1840
  %v1907 = vunpack.c.h.b16 %v1840
  %v1908 = vunpack.c.l.b16 %v1841
  %v1909 = vunpack.c.h.b16 %v1841
  %v1910 = vunpack.c.l.b16 %v1842
  %v1911 = vunpack.c.h.b16 %v1842
  %v1912 = vunpack.c.l.b16 %v1843
  %v1913 = vunpack.c.h.b16 %v1843
  %v1914 = vunpack.c.l.b16 %v1844
  %v1915 = vunpack.c.h.b16 %v1844
  %v1916 = vunpack.c.l.b16 %v1845
  %v1917 = vunpack.c.h.b16 %v1845
  %v1918 = vunpack.c.l.b16 %v1846
  %v1919 = vunpack.c.h.b16 %v1846
  %v1920 = vunpack.c.l.b16 %v1847
  %v1921 = vunpack.c.h.b16 %v1847
  %v1922 = vunpack.c.l.b16 %v1848
  %v1923 = vunpack.c.h.b16 %v1848
  %v1924 = vunpack.c.l.b16 %v1849
  %v1925 = vunpack.c.h.b16 %v1849
  %v1926 = vunpack.c.l.b16 %v1850
  %v1927 = vunpack.c.h.b16 %v1850
  %v1928 = vunpack.c.l.b16 %v1851
  %v1929 = vunpack.c.h.b16 %v1851
  %v1930 = vunpack.c.l.b16 %v1852
  %v1931 = vunpack.c.h.b16 %v1852
  %v1932 = vunpack.c.l.b16 %v1853
  %v1933 = vunpack.c.h.b16 %v1853
  %v1934 = vunpack.c.l.b16 %v1854
  %v1935 = vunpack.c.h.b16 %v1854
  %v1936 = vunpack.c.l.b16 %v1855
  %v1937 = vunpack.c.h.b16 %v1855
  %v1938 = vunpack.c.l.b16 %v1856
  %v1939 = vunpack.c.h.b16 %v1856
  %v1940 = vunpack.c.l.b16 %v1857
  %v1941 = vunpack.c.h.b16 %v1857
  %v1942 = vunpack.c.l.b16 %v1858
  %v1943 = vunpack.c.h.b16 %v1858
  %v1944 = vunpack.c.l.b16 %v1859
  %v1945 = vunpack.c.h.b16 %v1859
  %v1946 = vunpack.c.l.b16 %v1860
  %v1947 = vunpack.c.h.b16 %v1860
  %v1948 = vunpack.c.l.b16 %v1861
  %v1949 = vunpack.c.h.b16 %v1861
  %v1950 = vunpack.c.l.b16 %v1862
  %v1951 = vunpack.c.h.b16 %v1862
  %v1952 = vunpack.c.l.b16 %v1863
  %v1953 = vunpack.c.h.b16 %v1863
  %v1954 = vunpack.c.l.b16 %v1864
  %v1955 = vunpack.c.h.b16 %v1864
  %v1956 = vunpack.c.l.b16 %v1865
  %v1957 = vunpack.c.h.b16 %v1865
  %v1958 = vunpack.c.l.b16 %v1866
  %v1959 = vunpack.c.h.b16 %v1866
  %v1960 = vunpack.c.l.b16 %v1867
  %v1961 = vunpack.c.h.b16 %v1867
  %v1962 = vunpack.c.l.b16 %v1868
  %v1963 = vunpack.c.h.b16 %v1868
  %v1964 = vunpack.c.l.b16 %v1869
  %v1965 = vunpack.c.h.b16 %v1869
  %v1966 = vpack.c.b16 %v1906, %v1902
  %v1967 = vpack.c.b16 %v1907, %v1903
  %v1968 = vpack.c.b16 %v1908, %v1904
  %v1969 = vpack.c.b16 %v1909, %v1905
  %v1970 = vpack.c.b16 %v1914, %v1910
  %v1971 = vpack.c.b16 %v1915, %v1911
  %v1972 = vpack.c.b16 %v1916, %v1912
  %v1973 = vpack.c.b16 %v1917, %v1913
  %v1974 = vpack.c.b16 %v1922, %v1918
  %v1975 = vpack.c.b16 %v1923, %v1919
  %v1976 = vpack.c.b16 %v1924, %v1920
  %v1977 = vpack.c.b16 %v1925, %v1921
  %v1978 = vpack.c.b16 %v1930, %v1926
  %v1979 = vpack.c.b16 %v1931, %v1927
  %v1980 = vpack.c.b16 %v1932, %v1928
  %v1981 = vpack.c.b16 %v1933, %v1929
  %v1982 = vpack.c.b16 %v1938, %v1934
  %v1983 = vpack.c.b16 %v1939, %v1935
  %v1984 = vpack.c.b16 %v1940, %v1936
  %v1985 = vpack.c.b16 %v1941, %v1937
  %v1986 = vpack.c.b16 %v1946, %v1942
  %v1987 = vpack.c.b16 %v1947, %v1943
  %v1988 = vpack.c.b16 %v1948, %v1944
  %v1989 = vpack.c.b16 %v1949, %v1945
  %v1990 = vpack.c.b16 %v1954, %v1950
  %v1991 = vpack.c.b16 %v1955, %v1951
  %v1992 = vpack.c.b16 %v1956, %v1952
  %v1993 = vpack.c.b16 %v1957, %v1953
  %v1994 = vpack.c.b16 %v1962, %v1958
  %v1995 = vpack.c.b16 %v1963, %v1959
  %v1996 = vpack.c.b16 %v1964, %v1960
  %v1997 = vpack.c.b16 %v1965, %v1961
  %2030 = vmatprep.subr.bf16.mxu0 %v1967
  %2031 = vmatpush1.bf16.msra.mxu0 %v1966
  %2032 = vmatprep.subr.bf16.mxu0 %v1971
  %2033 = vmatpush1.bf16.msra.mxu0 %v1970
  %2034 = vmatprep.subr.bf16.mxu0 %v1975
  %2035 = vmatpush1.bf16.msra.mxu0 %v1974
  %2036 = vmatprep.subr.bf16.mxu0 %v1979
  %2037 = vmatpush1.bf16.msra.mxu0 %v1978
  %2038 = vmatprep.subr.bf16.mxu0 %v1983
  %2039 = vmatpush1.bf16.msra.mxu0 %v1982
  %2040 = vmatprep.subr.bf16.mxu0 %v1987
  %2041 = vmatpush1.bf16.msra.mxu0 %v1986
  %2042 = vmatprep.subr.bf16.mxu0 %v1991
  %2043 = vmatpush1.bf16.msra.mxu0 %v1990
  %2044 = vmatprep.subr.bf16.mxu0 %v1995
  %2045 = vmatpush1.bf16.msra.mxu0 %v1994
  %2046 = vmatprep.subr.bf16.mxu0 0
  %2047 = vmatpush1.bf16.msra.mxu0 0
  %2048 = vmatprep.subr.bf16.mxu0 0
  %2049 = vmatpush1.bf16.msra.mxu0 0
  %2050 = vmatprep.subr.bf16.mxu0 0
  %2051 = vmatpush1.bf16.msra.mxu0 0
  %2052 = vmatprep.subr.bf16.mxu0 0
  %2053 = vmatpush1.bf16.msra.mxu0 0
  %2054 = vmatprep.subr.bf16.mxu0 0
  %2055 = vmatpush1.bf16.msra.mxu0 0
  %2056 = vmatprep.subr.bf16.mxu0 0
  %2057 = vmatpush1.bf16.msra.mxu0 0
  %2058 = vmatprep.subr.bf16.mxu0 0
  %2059 = vmatpush1.bf16.msra.mxu0 0
  %2060 = vmatprep.subr.bf16.mxu0 0
  %2061 = vmatpush1.bf16.msra.mxu0 0
  %2062 = vmatprep.mubr.bf16.mxu0 0
  %2063 = vmatmul.mubr.bf16.gmra.mrb[0].mxu0 %v1837
  %v2064 = vpop.f32.mrb[0].mxu0
  %v2065 = vadd.f32 0.0, %v2064
  %v2066 = vpop.f32.mrb[0].mxu0
  %v2067 = vadd.f32 0.0, %v2066
  %v2068 = vpop.f32.mrb[0].mxu0
  %v2069 = vadd.f32 0.0, %v2068
  %v2070 = vpop.f32.mrb[0].mxu0
  %v2071 = vadd.f32 0.0, %v2070
  %2072 = vdwg.mxu0
  %2073 = vmatprep.subr.bf16.mxu0 %v1969
  %2074 = vmatpush1.bf16.msra.mxu0 %v1968
  %2075 = vmatprep.subr.bf16.mxu0 %v1973
  %2076 = vmatpush1.bf16.msra.mxu0 %v1972
  %2077 = vmatprep.subr.bf16.mxu0 %v1977
  %2078 = vmatpush1.bf16.msra.mxu0 %v1976
  %2079 = vmatprep.subr.bf16.mxu0 %v1981
  %2080 = vmatpush1.bf16.msra.mxu0 %v1980
  %2081 = vmatprep.subr.bf16.mxu0 %v1985
  %2082 = vmatpush1.bf16.msra.mxu0 %v1984
  %2083 = vmatprep.subr.bf16.mxu0 %v1989
  %2084 = vmatpush1.bf16.msra.mxu0 %v1988
  %2085 = vmatprep.subr.bf16.mxu0 %v1993
  %2086 = vmatpush1.bf16.msra.mxu0 %v1992
  %2087 = vmatprep.subr.bf16.mxu0 %v1997
  %2088 = vmatpush1.bf16.msra.mxu0 %v1996
  %2089 = vmatprep.subr.bf16.mxu0 0
  %2090 = vmatpush1.bf16.msra.mxu0 0
  %2091 = vmatprep.subr.bf16.mxu0 0
  %2092 = vmatpush1.bf16.msra.mxu0 0
  %2093 = vmatprep.subr.bf16.mxu0 0
  %2094 = vmatpush1.bf16.msra.mxu0 0
  %2095 = vmatprep.subr.bf16.mxu0 0
  %2096 = vmatpush1.bf16.msra.mxu0 0
  %2097 = vmatprep.subr.bf16.mxu0 0
  %2098 = vmatpush1.bf16.msra.mxu0 0
  %2099 = vmatprep.subr.bf16.mxu0 0
  %2100 = vmatpush1.bf16.msra.mxu0 0
  %2101 = vmatprep.subr.bf16.mxu0 0
  %2102 = vmatpush1.bf16.msra.mxu0 0
  %2103 = vmatprep.subr.bf16.mxu0 0
  %2104 = vmatpush1.bf16.msra.mxu0 0
  %2105 = vmatprep.mubr.bf16.mxu0 0
  %2106 = vmatmul.mubr.bf16.gmra.mrb[0].mxu0 %v1837
  %v2107 = vpop.f32.mrb[0].mxu0
  %v2108 = vadd.f32 0.0, %v2107
  %v2109 = vpop.f32.mrb[0].mxu0
  %v2110 = vadd.f32 0.0, %v2109
  %v2111 = vpop.f32.mrb[0].mxu0
  %v2112 = vadd.f32 0.0, %v2111
  %v2113 = vpop.f32.mrb[0].mxu0
  %v2114 = vadd.f32 0.0, %v2113
  %2115 = vdwg.mxu0
  %v2116 = vadd.f32 %v1829, %v2065
  %v2117 = vadd.f32 %v1830, %v2067
  %v2118 = vadd.f32 %v1831, %v2108
  %v2119 = vadd.f32 %v1832, %v2110
  %v2120 = vadd.f32 %v1833, %v2069
  %v2121 = vadd.f32 %v1834, %v2071
  %v2122 = vadd.f32 %v1835, %v2112
  %v2123 = vadd.f32 %v1836, %v2114
  %v2124 = vxor.u32 %v2116, 2147483648
  %v2125 = vxor.u32 %v2117, 2147483648
  %v2126 = vxor.u32 %v2118, 2147483648
  %v2127 = vxor.u32 %v2120, 2147483648
  %v2128 = vxor.u32 %v2121, 2147483648
  %v2129 = vxor.u32 %v2122, 2147483648
  %v2130 = vmul.f32 %v2124, 1.442695
  %v2131 = vpow.pop %v2130
  %v2132 = vmul.f32 %v2125, 1.442695
  %v2133 = vpow.pop %v2132
  %v2134 = vmul.f32 %v2126, 1.442695
  %v2135 = vpow.pop %v2134
  %v2136 = vmul.f32 %v2127, 1.442695
  %v2137 = vpow.pop %v2136
  %v2138 = vmul.f32 %v2128, 1.442695
  %v2139 = vpow.pop %v2138
  %v2140 = vmul.f32 %v2129, 1.442695
  %v2141 = vpow.pop %v2140
  %v2142 = vadd.f32 %v2131, 1.0
  %v2143 = vadd.f32 %v2133, 1.0
  %v2144 = vadd.f32 %v2135, 1.0
  %v2145 = vadd.f32 %v2137, 1.0
  %v2146 = vadd.f32 %v2139, 1.0
  %v2147 = vadd.f32 %v2141, 1.0
  %v2148 = vrcp.pop %v2142
  %v2149 = vmul.f32 1.0, %v2148
  %v2150 = vrcp.pop %v2143
  %v2151 = vmul.f32 1.0, %v2150
  %v2152 = vrcp.pop %v2144
  %v2153 = vmul.f32 1.0, %v2152
  %v2154 = vrcp.pop %v2145
  %v2155 = vmul.f32 1.0, %v2154
  %v2156 = vrcp.pop %v2146
  %v2157 = vmul.f32 1.0, %v2156
  %v2158 = vrcp.pop %v2147
  %v2159 = vmul.f32 1.0, %v2158
  %v2160 = vtanh.pop %v2119
  %v2161 = vtanh.pop %v2123
  %v2162 = vmul.f32 %v2151, %v1446
  %v2163 = vmul.f32 %v2157, %v1447
  %v2164 = vmul.f32 %v2149, %v2160
  %v2165 = vmul.f32 %v2155, %v2161
  %v2166 = vadd.f32 %v2162, %v2164
  %v2167 = vadd.f32 %v2163, %v2165
  %v2168 = vtanh.pop %v2166
  %v2169 = vtanh.pop %v2167
  %v2170 = vmul.f32 %v2153, %v2168
  %v2171 = vmul.f32 %v2159, %v2169
  %s2172 = scalar_lea.vmem %s6, 64
  %2173 = vst [vmem:[%s2172] sm:$0xff] %v1822
  %2174 = vst [vmem:[%s2172 + $0x10] sm:$0xff] %v1823
  %s2175 = scalar_lea.vmem %s6, 160
  %2176 = vst [vmem:[%s2175 + $0x8] sm:$0xff] %v2170
  %2177 = vst [vmem:[%s2175 + $0x18] sm:$0xff] %v2171
  %v2178 = vmul.f32 %v1822, %v730
  %v2179 = vmul.f32 %v1823, %v730
  %2180 = vadd.xlane.f32.xlu0 %v2178
  %v2181 = vpop.xlane.xlu0 %2180
  %2182 = vadd.xlane.f32.xlu0 %v2179
  %v2183 = vpop.xlane.xlu0 %2182
  %s2184 = scalar_lea.vmem [#allocation2], 32
  %2185 = vst.msk [vmem:[%s2184] sm:$0xff] %vm738, %v2181
  %2186 = vst.msk [vmem:[%s2184 + $0x8] sm:$0xff] %vm738, %v2183
  %v2187 = vmul.f32 %v2170, %v745
  %v2188 = vmul.f32 %v2171, %v745
  %2189 = vadd.xlane.f32.xlu0 %v2187
  %v2190 = vpop.xlane.xlu0 %2189
  %2191 = vadd.xlane.f32.xlu0 %v2188
  %v2192 = vpop.xlane.xlu0 %2191
  %s2193 = scalar_lea.vmem [#allocation3], 80
  %2194 = vst.msk [vmem:[%s2193] sm:$0xff] %vm738, %v2190
  %2195 = vst.msk [vmem:[%s2193 + $0x8] sm:$0xff] %vm738, %v2192
  %s2196 = scalar_lea.vmem %s0, 96
  %v2197 = vld [vmem:[%s2196] sm:$0xff]
  %v2198 = vld [vmem:[%s2196 + $0x8] sm:$0xff]
  %v2199 = vld [vmem:[%s2196 + $0x10] sm:$0xff]
  %v2200 = vld [vmem:[%s2196 + $0x18] sm:$0xff]
  %v2201 = vunpack.c.l.bf16 %v2197
  %v2202 = vunpack.c.h.bf16 %v2197
  %v2203 = vunpack.c.l.bf16 %v2198
  %v2204 = vunpack.c.h.bf16 %v2198
  %v2205 = vunpack.c.l.bf16 %v2199
  %v2206 = vunpack.c.h.bf16 %v2199
  %v2207 = vunpack.c.l.bf16 %v2200
  %v2208 = vunpack.c.h.bf16 %v2200
  %v2209 = vpack.c.bf16 %v1823, %v1822
  %v2210 = vld [vmem:[%s2] sm:$0xff]
  %v2211 = vld [vmem:[%s2 + $0x8] sm:$0xff]
  %v2212 = vld [vmem:[%s2 + $0x10] sm:$0xff]
  %v2213 = vld [vmem:[%s2 + $0x18] sm:$0xff]
  %v2214 = vld [vmem:[%s2 + $0x20] sm:$0xff]
  %v2215 = vld [vmem:[%s2 + $0x28] sm:$0xff]
  %v2216 = vld [vmem:[%s2 + $0x30] sm:$0xff]
  %v2217 = vld [vmem:[%s2 + $0x38] sm:$0xff]
  %v2218 = vld [vmem:[%s2 + $0x40] sm:$0xff]
  %v2219 = vld [vmem:[%s2 + $0x48] sm:$0xff]
  %v2220 = vld [vmem:[%s2 + $0x50] sm:$0xff]
  %v2221 = vld [vmem:[%s2 + $0x58] sm:$0xff]
  %v2222 = vld [vmem:[%s2 + $0x60] sm:$0xff]
  %v2223 = vld [vmem:[%s2 + $0x68] sm:$0xff]
  %v2224 = vld [vmem:[%s2 + $0x70] sm:$0xff]
  %v2225 = vld [vmem:[%s2 + $0x78] sm:$0xff]
  %v2226 = vld [vmem:[%s2 + $0x80] sm:$0xff]
  %v2227 = vld [vmem:[%s2 + $0x88] sm:$0xff]
  %v2228 = vld [vmem:[%s2 + $0x90] sm:$0xff]
  %v2229 = vld [vmem:[%s2 + $0x98] sm:$0xff]
  %v2230 = vld [vmem:[%s2 + $0xa0] sm:$0xff]
  %v2231 = vld [vmem:[%s2 + $0xa8] sm:$0xff]
  %v2232 = vld [vmem:[%s2 + $0xb0] sm:$0xff]
  %v2233 = vld [vmem:[%s2 + $0xb8] sm:$0xff]
  %v2234 = vld [vmem:[%s2 + $0xc0] sm:$0xff]
  %v2235 = vld [vmem:[%s2 + $0xc8] sm:$0xff]
  %v2236 = vld [vmem:[%s2 + $0xd0] sm:$0xff]
  %v2237 = vld [vmem:[%s2 + $0xd8] sm:$0xff]
  %v2238 = vld [vmem:[%s2 + $0xe0] sm:$0xff]
  %v2239 = vld [vmem:[%s2 + $0xe8] sm:$0xff]
  %v2240 = vld [vmem:[%s2 + $0xf0] sm:$0xff]
  %v2241 = vld [vmem:[%s2 + $0xf8] sm:$0xff]
  %v2274 = vunpack.c.l.b16 %v2210
  %v2275 = vunpack.c.h.b16 %v2210
  %v2276 = vunpack.c.l.b16 %v2211
  %v2277 = vunpack.c.h.b16 %v2211
  %v2278 = vunpack.c.l.b16 %v2212
  %v2279 = vunpack.c.h.b16 %v2212
  %v2280 = vunpack.c.l.b16 %v2213
  %v2281 = vunpack.c.h.b16 %v2213
  %v2282 = vunpack.c.l.b16 %v2214
  %v2283 = vunpack.c.h.b16 %v2214
  %v2284 = vunpack.c.l.b16 %v2215
  %v2285 = vunpack.c.h.b16 %v2215
  %v2286 = vunpack.c.l.b16 %v2216
  %v2287 = vunpack.c.h.b16 %v2216
  %v2288 = vunpack.c.l.b16 %v2217
  %v2289 = vunpack.c.h.b16 %v2217
  %v2290 = vunpack.c.l.b16 %v2218
  %v2291 = vunpack.c.h.b16 %v2218
  %v2292 = vunpack.c.l.b16 %v2219
  %v2293 = vunpack.c.h.b16 %v2219
  %v2294 = vunpack.c.l.b16 %v2220
  %v2295 = vunpack.c.h.b16 %v2220
  %v2296 = vunpack.c.l.b16 %v2221
  %v2297 = vunpack.c.h.b16 %v2221
  %v2298 = vunpack.c.l.b16 %v2222
  %v2299 = vunpack.c.h.b16 %v2222
  %v2300 = vunpack.c.l.b16 %v2223
  %v2301 = vunpack.c.h.b16 %v2223
  %v2302 = vunpack.c.l.b16 %v2224
  %v2303 = vunpack.c.h.b16 %v2224
  %v2304 = vunpack.c.l.b16 %v2225
  %v2305 = vunpack.c.h.b16 %v2225
  %v2306 = vunpack.c.l.b16 %v2226
  %v2307 = vunpack.c.h.b16 %v2226
  %v2308 = vunpack.c.l.b16 %v2227
  %v2309 = vunpack.c.h.b16 %v2227
  %v2310 = vunpack.c.l.b16 %v2228
  %v2311 = vunpack.c.h.b16 %v2228
  %v2312 = vunpack.c.l.b16 %v2229
  %v2313 = vunpack.c.h.b16 %v2229
  %v2314 = vunpack.c.l.b16 %v2230
  %v2315 = vunpack.c.h.b16 %v2230
  %v2316 = vunpack.c.l.b16 %v2231
  %v2317 = vunpack.c.h.b16 %v2231
  %v2318 = vunpack.c.l.b16 %v2232
  %v2319 = vunpack.c.h.b16 %v2232
  %v2320 = vunpack.c.l.b16 %v2233
  %v2321 = vunpack.c.h.b16 %v2233
  %v2322 = vunpack.c.l.b16 %v2234
  %v2323 = vunpack.c.h.b16 %v2234
  %v2324 = vunpack.c.l.b16 %v2235
  %v2325 = vunpack.c.h.b16 %v2235
  %v2326 = vunpack.c.l.b16 %v2236
  %v2327 = vunpack.c.h.b16 %v2236
  %v2328 = vunpack.c.l.b16 %v2237
  %v2329 = vunpack.c.h.b16 %v2237
  %v2330 = vunpack.c.l.b16 %v2238
  %v2331 = vunpack.c.h.b16 %v2238
  %v2332 = vunpack.c.l.b16 %v2239
  %v2333 = vunpack.c.h.b16 %v2239
  %v2334 = vunpack.c.l.b16 %v2240
  %v2335 = vunpack.c.h.b16 %v2240
  %v2336 = vunpack.c.l.b16 %v2241
  %v2337 = vunpack.c.h.b16 %v2241
  %v2338 = vpack.c.b16 %v2278, %v2274
  %v2339 = vpack.c.b16 %v2279, %v2275
  %v2340 = vpack.c.b16 %v2280, %v2276
  %v2341 = vpack.c.b16 %v2281, %v2277
  %v2342 = vpack.c.b16 %v2286, %v2282
  %v2343 = vpack.c.b16 %v2287, %v2283
  %v2344 = vpack.c.b16 %v2288, %v2284
  %v2345 = vpack.c.b16 %v2289, %v2285
  %v2346 = vpack.c.b16 %v2294, %v2290
  %v2347 = vpack.c.b16 %v2295, %v2291
  %v2348 = vpack.c.b16 %v2296, %v2292
  %v2349 = vpack.c.b16 %v2297, %v2293
  %v2350 = vpack.c.b16 %v2302, %v2298
  %v2351 = vpack.c.b16 %v2303, %v2299
  %v2352 = vpack.c.b16 %v2304, %v2300
  %v2353 = vpack.c.b16 %v2305, %v2301
  %v2354 = vpack.c.b16 %v2310, %v2306
  %v2355 = vpack.c.b16 %v2311, %v2307
  %v2356 = vpack.c.b16 %v2312, %v2308
  %v2357 = vpack.c.b16 %v2313, %v2309
  %v2358 = vpack.c.b16 %v2318, %v2314
  %v2359 = vpack.c.b16 %v2319, %v2315
  %v2360 = vpack.c.b16 %v2320, %v2316
  %v2361 = vpack.c.b16 %v2321, %v2317
  %v2362 = vpack.c.b16 %v2326, %v2322
  %v2363 = vpack.c.b16 %v2327, %v2323
  %v2364 = vpack.c.b16 %v2328, %v2324
  %v2365 = vpack.c.b16 %v2329, %v2325
  %v2366 = vpack.c.b16 %v2334, %v2330
  %v2367 = vpack.c.b16 %v2335, %v2331
  %v2368 = vpack.c.b16 %v2336, %v2332
  %v2369 = vpack.c.b16 %v2337, %v2333
  %2402 = vmatprep.subr.bf16.mxu0 %v2339
  %2403 = vmatpush1.bf16.msra.mxu0 %v2338
  %2404 = vmatprep.subr.bf16.mxu0 %v2343
  %2405 = vmatpush1.bf16.msra.mxu0 %v2342
  %2406 = vmatprep.subr.bf16.mxu0 %v2347
  %2407 = vmatpush1.bf16.msra.mxu0 %v2346
  %2408 = vmatprep.subr.bf16.mxu0 %v2351
  %2409 = vmatpush1.bf16.msra.mxu0 %v2350
  %2410 = vmatprep.subr.bf16.mxu0 %v2355
  %2411 = vmatpush1.bf16.msra.mxu0 %v2354
  %2412 = vmatprep.subr.bf16.mxu0 %v2359
  %2413 = vmatpush1.bf16.msra.mxu0 %v2358
  %2414 = vmatprep.subr.bf16.mxu0 %v2363
  %2415 = vmatpush1.bf16.msra.mxu0 %v2362
  %2416 = vmatprep.subr.bf16.mxu0 %v2367
  %2417 = vmatpush1.bf16.msra.mxu0 %v2366
  %2418 = vmatprep.subr.bf16.mxu0 0
  %2419 = vmatpush1.bf16.msra.mxu0 0
  %2420 = vmatprep.subr.bf16.mxu0 0
  %2421 = vmatpush1.bf16.msra.mxu0 0
  %2422 = vmatprep.subr.bf16.mxu0 0
  %2423 = vmatpush1.bf16.msra.mxu0 0
  %2424 = vmatprep.subr.bf16.mxu0 0
  %2425 = vmatpush1.bf16.msra.mxu0 0
  %2426 = vmatprep.subr.bf16.mxu0 0
  %2427 = vmatpush1.bf16.msra.mxu0 0
  %2428 = vmatprep.subr.bf16.mxu0 0
  %2429 = vmatpush1.bf16.msra.mxu0 0
  %2430 = vmatprep.subr.bf16.mxu0 0
  %2431 = vmatpush1.bf16.msra.mxu0 0
  %2432 = vmatprep.subr.bf16.mxu0 0
  %2433 = vmatpush1.bf16.msra.mxu0 0
  %2434 = vmatprep.mubr.bf16.mxu0 0
  %2435 = vmatmul.mubr.bf16.gmra.mrb[0].mxu0 %v2209
  %v2436 = vpop.f32.mrb[0].mxu0
  %v2437 = vadd.f32 0.0, %v2436
  %v2438 = vpop.f32.mrb[0].mxu0
  %v2439 = vadd.f32 0.0, %v2438
  %v2440 = vpop.f32.mrb[0].mxu0
  %v2441 = vadd.f32 0.0, %v2440
  %v2442 = vpop.f32.mrb[0].mxu0
  %v2443 = vadd.f32 0.0, %v2442
  %2444 = vdwg.mxu0
  %2445 = vmatprep.subr.bf16.mxu0 %v2341
  %2446 = vmatpush1.bf16.msra.mxu0 %v2340
  %2447 = vmatprep.subr.bf16.mxu0 %v2345
  %2448 = vmatpush1.bf16.msra.mxu0 %v2344
  %2449 = vmatprep.subr.bf16.mxu0 %v2349
  %2450 = vmatpush1.bf16.msra.mxu0 %v2348
  %2451 = vmatprep.subr.bf16.mxu0 %v2353
  %2452 = vmatpush1.bf16.msra.mxu0 %v2352
  %2453 = vmatprep.subr.bf16.mxu0 %v2357
  %2454 = vmatpush1.bf16.msra.mxu0 %v2356
  %2455 = vmatprep.subr.bf16.mxu0 %v2361
  %2456 = vmatpush1.bf16.msra.mxu0 %v2360
  %2457 = vmatprep.subr.bf16.mxu0 %v2365
  %2458 = vmatpush1.bf16.msra.mxu0 %v2364
  %2459 = vmatprep.subr.bf16.mxu0 %v2369
  %2460 = vmatpush1.bf16.msra.mxu0 %v2368
  %2461 = vmatprep.subr.bf16.mxu0 0
  %2462 = vmatpush1.bf16.msra.mxu0 0
  %2463 = vmatprep.subr.bf16.mxu0 0
  %2464 = vmatpush1.bf16.msra.mxu0 0
  %2465 = vmatprep.subr.bf16.mxu0 0
  %2466 = vmatpush1.bf16.msra.mxu0 0
  %2467 = vmatprep.subr.bf16.mxu0 0
  %2468 = vmatpush1.bf16.msra.mxu0 0
  %2469 = vmatprep.subr.bf16.mxu0 0
  %2470 = vmatpush1.bf16.msra.mxu0 0
  %2471 = vmatprep.subr.bf16.mxu0 0
  %2472 = vmatpush1.bf16.msra.mxu0 0
  %2473 = vmatprep.subr.bf16.mxu0 0
  %2474 = vmatpush1.bf16.msra.mxu0 0
  %2475 = vmatprep.subr.bf16.mxu0 0
  %2476 = vmatpush1.bf16.msra.mxu0 0
  %2477 = vmatprep.mubr.bf16.mxu0 0
  %2478 = vmatmul.mubr.bf16.gmra.mrb[0].mxu0 %v2209
  %v2479 = vpop.f32.mrb[0].mxu0
  %v2480 = vadd.f32 0.0, %v2479
  %v2481 = vpop.f32.mrb[0].mxu0
  %v2482 = vadd.f32 0.0, %v2481
  %v2483 = vpop.f32.mrb[0].mxu0
  %v2484 = vadd.f32 0.0, %v2483
  %v2485 = vpop.f32.mrb[0].mxu0
  %v2486 = vadd.f32 0.0, %v2485
  %2487 = vdwg.mxu0
  %v2488 = vadd.f32 %v2201, %v2437
  %v2489 = vadd.f32 %v2202, %v2439
  %v2490 = vadd.f32 %v2203, %v2480
  %v2491 = vadd.f32 %v2204, %v2482
  %v2492 = vadd.f32 %v2205, %v2441
  %v2493 = vadd.f32 %v2206, %v2443
  %v2494 = vadd.f32 %v2207, %v2484
  %v2495 = vadd.f32 %v2208, %v2486
  %v2496 = vxor.u32 %v2488, 2147483648
  %v2497 = vxor.u32 %v2489, 2147483648
  %v2498 = vxor.u32 %v2490, 2147483648
  %v2499 = vxor.u32 %v2492, 2147483648
  %v2500 = vxor.u32 %v2493, 2147483648
  %v2501 = vxor.u32 %v2494, 2147483648
  %v2502 = vmul.f32 %v2496, 1.442695
  %v2503 = vpow.pop %v2502
  %v2504 = vmul.f32 %v2497, 1.442695
  %v2505 = vpow.pop %v2504
  %v2506 = vmul.f32 %v2498, 1.442695
  %v2507 = vpow.pop %v2506
  %v2508 = vmul.f32 %v2499, 1.442695
  %v2509 = vpow.pop %v2508
  %v2510 = vmul.f32 %v2500, 1.442695
  %v2511 = vpow.pop %v2510
  %v2512 = vmul.f32 %v2501, 1.442695
  %v2513 = vpow.pop %v2512
  %v2514 = vadd.f32 %v2503, 1.0
  %v2515 = vadd.f32 %v2505, 1.0
  %v2516 = vadd.f32 %v2507, 1.0
  %v2517 = vadd.f32 %v2509, 1.0
  %v2518 = vadd.f32 %v2511, 1.0
  %v2519 = vadd.f32 %v2513, 1.0
  %v2520 = vrcp.pop %v2514
  %v2521 = vmul.f32 1.0, %v2520
  %v2522 = vrcp.pop %v2515
  %v2523 = vmul.f32 1.0, %v2522
  %v2524 = vrcp.pop %v2516
  %v2525 = vmul.f32 1.0, %v2524
  %v2526 = vrcp.pop %v2517
  %v2527 = vmul.f32 1.0, %v2526
  %v2528 = vrcp.pop %v2518
  %v2529 = vmul.f32 1.0, %v2528
  %v2530 = vrcp.pop %v2519
  %v2531 = vmul.f32 1.0, %v2530
  %v2532 = vtanh.pop %v2491
  %v2533 = vtanh.pop %v2495
  %v2534 = vmul.f32 %v2523, %v1818
  %v2535 = vmul.f32 %v2529, %v1819
  %v2536 = vmul.f32 %v2521, %v2532
  %v2537 = vmul.f32 %v2527, %v2533
  %v2538 = vadd.f32 %v2534, %v2536
  %v2539 = vadd.f32 %v2535, %v2537
  %v2540 = vtanh.pop %v2538
  %v2541 = vtanh.pop %v2539
  %v2542 = vmul.f32 %v2525, %v2540
  %v2543 = vmul.f32 %v2531, %v2541
  %s2544 = scalar_lea.vmem %s1, 128
  %v2545 = vld [vmem:[%s2544] sm:$0xff]
  %v2546 = vld [vmem:[%s2544 + $0x8] sm:$0xff]
  %v2547 = vld [vmem:[%s2544 + $0x10] sm:$0xff]
  %v2548 = vld [vmem:[%s2544 + $0x18] sm:$0xff]
  %v2549 = vunpack.c.l.bf16 %v2545
  %v2550 = vunpack.c.h.bf16 %v2545
  %v2551 = vunpack.c.l.bf16 %v2546
  %v2552 = vunpack.c.h.bf16 %v2546
  %v2553 = vunpack.c.l.bf16 %v2547
  %v2554 = vunpack.c.h.bf16 %v2547
  %v2555 = vunpack.c.l.bf16 %v2548
  %v2556 = vunpack.c.h.bf16 %v2548
  %v2557 = vpack.c.bf16 %v2171, %v2170
  %v2558 = vld [vmem:[%s3] sm:$0xff]
  %v2559 = vld [vmem:[%s3 + $0x8] sm:$0xff]
  %v2560 = vld [vmem:[%s3 + $0x10] sm:$0xff]
  %v2561 = vld [vmem:[%s3 + $0x18] sm:$0xff]
  %v2562 = vld [vmem:[%s3 + $0x20] sm:$0xff]
  %v2563 = vld [vmem:[%s3 + $0x28] sm:$0xff]
  %v2564 = vld [vmem:[%s3 + $0x30] sm:$0xff]
  %v2565 = vld [vmem:[%s3 + $0x38] sm:$0xff]
  %v2566 = vld [vmem:[%s3 + $0x40] sm:$0xff]
  %v2567 = vld [vmem:[%s3 + $0x48] sm:$0xff]
  %v2568 = vld [vmem:[%s3 + $0x50] sm:$0xff]
  %v2569 = vld [vmem:[%s3 + $0x58] sm:$0xff]
  %v2570 = vld [vmem:[%s3 + $0x60] sm:$0xff]
  %v2571 = vld [vmem:[%s3 + $0x68] sm:$0xff]
  %v2572 = vld [vmem:[%s3 + $0x70] sm:$0xff]
  %v2573 = vld [vmem:[%s3 + $0x78] sm:$0xff]
  %v2574 = vld [vmem:[%s3 + $0x80] sm:$0xff]
  %v2575 = vld [vmem:[%s3 + $0x88] sm:$0xff]
  %v2576 = vld [vmem:[%s3 + $0x90] sm:$0xff]
  %v2577 = vld [vmem:[%s3 + $0x98] sm:$0xff]
  %v2578 = vld [vmem:[%s3 + $0xa0] sm:$0xff]
  %v2579 = vld [vmem:[%s3 + $0xa8] sm:$0xff]
  %v2580 = vld [vmem:[%s3 + $0xb0] sm:$0xff]
  %v2581 = vld [vmem:[%s3 + $0xb8] sm:$0xff]
  %v2582 = vld [vmem:[%s3 + $0xc0] sm:$0xff]
  %v2583 = vld [vmem:[%s3 + $0xc8] sm:$0xff]
  %v2584 = vld [vmem:[%s3 + $0xd0] sm:$0xff]
  %v2585 = vld [vmem:[%s3 + $0xd8] sm:$0xff]
  %v2586 = vld [vmem:[%s3 + $0xe0] sm:$0xff]
  %v2587 = vld [vmem:[%s3 + $0xe8] sm:$0xff]
  %v2588 = vld [vmem:[%s3 + $0xf0] sm:$0xff]
  %v2589 = vld [vmem:[%s3 + $0xf8] sm:$0xff]
  %v2622 = vunpack.c.l.b16 %v2558
  %v2623 = vunpack.c.h.b16 %v2558
  %v2624 = vunpack.c.l.b16 %v2559
  %v2625 = vunpack.c.h.b16 %v2559
  %v2626 = vunpack.c.l.b16 %v2560
  %v2627 = vunpack.c.h.b16 %v2560
  %v2628 = vunpack.c.l.b16 %v2561
  %v2629 = vunpack.c.h.b16 %v2561
  %v2630 = vunpack.c.l.b16 %v2562
  %v2631 = vunpack.c.h.b16 %v2562
  %v2632 = vunpack.c.l.b16 %v2563
  %v2633 = vunpack.c.h.b16 %v2563
  %v2634 = vunpack.c.l.b16 %v2564
  %v2635 = vunpack.c.h.b16 %v2564
  %v2636 = vunpack.c.l.b16 %v2565
  %v2637 = vunpack.c.h.b16 %v2565
  %v2638 = vunpack.c.l.b16 %v2566
  %v2639 = vunpack.c.h.b16 %v2566
  %v2640 = vunpack.c.l.b16 %v2567
  %v2641 = vunpack.c.h.b16 %v2567
  %v2642 = vunpack.c.l.b16 %v2568
  %v2643 = vunpack.c.h.b16 %v2568
  %v2644 = vunpack.c.l.b16 %v2569
  %v2645 = vunpack.c.h.b16 %v2569
  %v2646 = vunpack.c.l.b16 %v2570
  %v2647 = vunpack.c.h.b16 %v2570
  %v2648 = vunpack.c.l.b16 %v2571
  %v2649 = vunpack.c.h.b16 %v2571
  %v2650 = vunpack.c.l.b16 %v2572
  %v2651 = vunpack.c.h.b16 %v2572
  %v2652 = vunpack.c.l.b16 %v2573
  %v2653 = vunpack.c.h.b16 %v2573
  %v2654 = vunpack.c.l.b16 %v2574
  %v2655 = vunpack.c.h.b16 %v2574
  %v2656 = vunpack.c.l.b16 %v2575
  %v2657 = vunpack.c.h.b16 %v2575
  %v2658 = vunpack.c.l.b16 %v2576
  %v2659 = vunpack.c.h.b16 %v2576
  %v2660 = vunpack.c.l.b16 %v2577
  %v2661 = vunpack.c.h.b16 %v2577
  %v2662 = vunpack.c.l.b16 %v2578
  %v2663 = vunpack.c.h.b16 %v2578
  %v2664 = vunpack.c.l.b16 %v2579
  %v2665 = vunpack.c.h.b16 %v2579
  %v2666 = vunpack.c.l.b16 %v2580
  %v2667 = vunpack.c.h.b16 %v2580
  %v2668 = vunpack.c.l.b16 %v2581
  %v2669 = vunpack.c.h.b16 %v2581
  %v2670 = vunpack.c.l.b16 %v2582
  %v2671 = vunpack.c.h.b16 %v2582
  %v2672 = vunpack.c.l.b16 %v2583
  %v2673 = vunpack.c.h.b16 %v2583
  %v2674 = vunpack.c.l.b16 %v2584
  %v2675 = vunpack.c.h.b16 %v2584
  %v2676 = vunpack.c.l.b16 %v2585
  %v2677 = vunpack.c.h.b16 %v2585
  %v2678 = vunpack.c.l.b16 %v2586
  %v2679 = vunpack.c.h.b16 %v2586
  %v2680 = vunpack.c.l.b16 %v2587
  %v2681 = vunpack.c.h.b16 %v2587
  %v2682 = vunpack.c.l.b16 %v2588
  %v2683 = vunpack.c.h.b16 %v2588
  %v2684 = vunpack.c.l.b16 %v2589
  %v2685 = vunpack.c.h.b16 %v2589
  %v2686 = vpack.c.b16 %v2626, %v2622
  %v2687 = vpack.c.b16 %v2627, %v2623
  %v2688 = vpack.c.b16 %v2628, %v2624
  %v2689 = vpack.c.b16 %v2629, %v2625
  %v2690 = vpack.c.b16 %v2634, %v2630
  %v2691 = vpack.c.b16 %v2635, %v2631
  %v2692 = vpack.c.b16 %v2636, %v2632
  %v2693 = vpack.c.b16 %v2637, %v2633
  %v2694 = vpack.c.b16 %v2642, %v2638
  %v2695 = vpack.c.b16 %v2643, %v2639
  %v2696 = vpack.c.b16 %v2644, %v2640
  %v2697 = vpack.c.b16 %v2645, %v2641
  %v2698 = vpack.c.b16 %v2650, %v2646
  %v2699 = vpack.c.b16 %v2651, %v2647
  %v2700 = vpack.c.b16 %v2652, %v2648
  %v2701 = vpack.c.b16 %v2653, %v2649
  %v2702 = vpack.c.b16 %v2658, %v2654
  %v2703 = vpack.c.b16 %v2659, %v2655
  %v2704 = vpack.c.b16 %v2660, %v2656
  %v2705 = vpack.c.b16 %v2661, %v2657
  %v2706 = vpack.c.b16 %v2666, %v2662
  %v2707 = vpack.c.b16 %v2667, %v2663
  %v2708 = vpack.c.b16 %v2668, %v2664
  %v2709 = vpack.c.b16 %v2669, %v2665
  %v2710 = vpack.c.b16 %v2674, %v2670
  %v2711 = vpack.c.b16 %v2675, %v2671
  %v2712 = vpack.c.b16 %v2676, %v2672
  %v2713 = vpack.c.b16 %v2677, %v2673
  %v2714 = vpack.c.b16 %v2682, %v2678
  %v2715 = vpack.c.b16 %v2683, %v2679
  %v2716 = vpack.c.b16 %v2684, %v2680
  %v2717 = vpack.c.b16 %v2685, %v2681
  %2750 = vmatprep.subr.bf16.mxu0 %v2687
  %2751 = vmatpush1.bf16.msra.mxu0 %v2686
  %2752 = vmatprep.subr.bf16.mxu0 %v2691
  %2753 = vmatpush1.bf16.msra.mxu0 %v2690
  %2754 = vmatprep.subr.bf16.mxu0 %v2695
  %2755 = vmatpush1.bf16.msra.mxu0 %v2694
  %2756 = vmatprep.subr.bf16.mxu0 %v2699
  %2757 = vmatpush1.bf16.msra.mxu0 %v2698
  %2758 = vmatprep.subr.bf16.mxu0 %v2703
  %2759 = vmatpush1.bf16.msra.mxu0 %v2702
  %2760 = vmatprep.subr.bf16.mxu0 %v2707
  %2761 = vmatpush1.bf16.msra.mxu0 %v2706
  %2762 = vmatprep.subr.bf16.mxu0 %v2711
  %2763 = vmatpush1.bf16.msra.mxu0 %v2710
  %2764 = vmatprep.subr.bf16.mxu0 %v2715
  %2765 = vmatpush1.bf16.msra.mxu0 %v2714
  %2766 = vmatprep.subr.bf16.mxu0 0
  %2767 = vmatpush1.bf16.msra.mxu0 0
  %2768 = vmatprep.subr.bf16.mxu0 0
  %2769 = vmatpush1.bf16.msra.mxu0 0
  %2770 = vmatprep.subr.bf16.mxu0 0
  %2771 = vmatpush1.bf16.msra.mxu0 0
  %2772 = vmatprep.subr.bf16.mxu0 0
  %2773 = vmatpush1.bf16.msra.mxu0 0
  %2774 = vmatprep.subr.bf16.mxu0 0
  %2775 = vmatpush1.bf16.msra.mxu0 0
  %2776 = vmatprep.subr.bf16.mxu0 0
  %2777 = vmatpush1.bf16.msra.mxu0 0
  %2778 = vmatprep.subr.bf16.mxu0 0
  %2779 = vmatpush1.bf16.msra.mxu0 0
  %2780 = vmatprep.subr.bf16.mxu0 0
  %2781 = vmatpush1.bf16.msra.mxu0 0
  %2782 = vmatprep.mubr.bf16.mxu0 0
  %2783 = vmatmul.mubr.bf16.gmra.mrb[0].mxu0 %v2557
  %v2784 = vpop.f32.mrb[0].mxu0
  %v2785 = vadd.f32 0.0, %v2784
  %v2786 = vpop.f32.mrb[0].mxu0
  %v2787 = vadd.f32 0.0, %v2786
  %v2788 = vpop.f32.mrb[0].mxu0
  %v2789 = vadd.f32 0.0, %v2788
  %v2790 = vpop.f32.mrb[0].mxu0
  %v2791 = vadd.f32 0.0, %v2790
  %2792 = vdwg.mxu0
  %2793 = vmatprep.subr.bf16.mxu0 %v2689
  %2794 = vmatpush1.bf16.msra.mxu0 %v2688
  %2795 = vmatprep.subr.bf16.mxu0 %v2693
  %2796 = vmatpush1.bf16.msra.mxu0 %v2692
  %2797 = vmatprep.subr.bf16.mxu0 %v2697
  %2798 = vmatpush1.bf16.msra.mxu0 %v2696
  %2799 = vmatprep.subr.bf16.mxu0 %v2701
  %2800 = vmatpush1.bf16.msra.mxu0 %v2700
  %2801 = vmatprep.subr.bf16.mxu0 %v2705
  %2802 = vmatpush1.bf16.msra.mxu0 %v2704
  %2803 = vmatprep.subr.bf16.mxu0 %v2709
  %2804 = vmatpush1.bf16.msra.mxu0 %v2708
  %2805 = vmatprep.subr.bf16.mxu0 %v2713
  %2806 = vmatpush1.bf16.msra.mxu0 %v2712
  %2807 = vmatprep.subr.bf16.mxu0 %v2717
  %2808 = vmatpush1.bf16.msra.mxu0 %v2716
  %2809 = vmatprep.subr.bf16.mxu0 0
  %2810 = vmatpush1.bf16.msra.mxu0 0
  %2811 = vmatprep.subr.bf16.mxu0 0
  %2812 = vmatpush1.bf16.msra.mxu0 0
  %2813 = vmatprep.subr.bf16.mxu0 0
  %2814 = vmatpush1.bf16.msra.mxu0 0
  %2815 = vmatprep.subr.bf16.mxu0 0
  %2816 = vmatpush1.bf16.msra.mxu0 0
  %2817 = vmatprep.subr.bf16.mxu0 0
  %2818 = vmatpush1.bf16.msra.mxu0 0
  %2819 = vmatprep.subr.bf16.mxu0 0
  %2820 = vmatpush1.bf16.msra.mxu0 0
  %2821 = vmatprep.subr.bf16.mxu0 0
  %2822 = vmatpush1.bf16.msra.mxu0 0
  %2823 = vmatprep.subr.bf16.mxu0 0
  %2824 = vmatpush1.bf16.msra.mxu0 0
  %2825 = vmatprep.mubr.bf16.mxu0 0
  %2826 = vmatmul.mubr.bf16.gmra.mrb[0].mxu0 %v2557
  %v2827 = vpop.f32.mrb[0].mxu0
  %v2828 = vadd.f32 0.0, %v2827
  %v2829 = vpop.f32.mrb[0].mxu0
  %v2830 = vadd.f32 0.0, %v2829
  %v2831 = vpop.f32.mrb[0].mxu0
  %v2832 = vadd.f32 0.0, %v2831
  %v2833 = vpop.f32.mrb[0].mxu0
  %v2834 = vadd.f32 0.0, %v2833
  %2835 = vdwg.mxu0
  %v2836 = vadd.f32 %v2549, %v2785
  %v2837 = vadd.f32 %v2550, %v2787
  %v2838 = vadd.f32 %v2551, %v2828
  %v2839 = vadd.f32 %v2552, %v2830
  %v2840 = vadd.f32 %v2553, %v2789
  %v2841 = vadd.f32 %v2554, %v2791
  %v2842 = vadd.f32 %v2555, %v2832
  %v2843 = vadd.f32 %v2556, %v2834
  %v2844 = vxor.u32 %v2836, 2147483648
  %v2845 = vxor.u32 %v2837, 2147483648
  %v2846 = vxor.u32 %v2838, 2147483648
  %v2847 = vxor.u32 %v2840, 2147483648
  %v2848 = vxor.u32 %v2841, 2147483648
  %v2849 = vxor.u32 %v2842, 2147483648
  %v2850 = vmul.f32 %v2844, 1.442695
  %v2851 = vpow.pop %v2850
  %v2852 = vmul.f32 %v2845, 1.442695
  %v2853 = vpow.pop %v2852
  %v2854 = vmul.f32 %v2846, 1.442695
  %v2855 = vpow.pop %v2854
  %v2856 = vmul.f32 %v2847, 1.442695
  %v2857 = vpow.pop %v2856
  %v2858 = vmul.f32 %v2848, 1.442695
  %v2859 = vpow.pop %v2858
  %v2860 = vmul.f32 %v2849, 1.442695
  %v2861 = vpow.pop %v2860
  %v2862 = vadd.f32 %v2851, 1.0
  %v2863 = vadd.f32 %v2853, 1.0
  %v2864 = vadd.f32 %v2855, 1.0
  %v2865 = vadd.f32 %v2857, 1.0
  %v2866 = vadd.f32 %v2859, 1.0
  %v2867 = vadd.f32 %v2861, 1.0
  %v2868 = vrcp.pop %v2862
  %v2869 = vmul.f32 1.0, %v2868
  %v2870 = vrcp.pop %v2863
  %v2871 = vmul.f32 1.0, %v2870
  %v2872 = vrcp.pop %v2864
  %v2873 = vmul.f32 1.0, %v2872
  %v2874 = vrcp.pop %v2865
  %v2875 = vmul.f32 1.0, %v2874
  %v2876 = vrcp.pop %v2866
  %v2877 = vmul.f32 1.0, %v2876
  %v2878 = vrcp.pop %v2867
  %v2879 = vmul.f32 1.0, %v2878
  %v2880 = vtanh.pop %v2839
  %v2881 = vtanh.pop %v2843
  %v2882 = vmul.f32 %v2871, %v2166
  %v2883 = vmul.f32 %v2877, %v2167
  %v2884 = vmul.f32 %v2869, %v2880
  %v2885 = vmul.f32 %v2875, %v2881
  %v2886 = vadd.f32 %v2882, %v2884
  %v2887 = vadd.f32 %v2883, %v2885
  %v2888 = vtanh.pop %v2886
  %v2889 = vtanh.pop %v2887
  %v2890 = vmul.f32 %v2873, %v2888
  %v2891 = vmul.f32 %v2879, %v2889
  %s2892 = scalar_lea.vmem %s6, 96
  %2893 = vst [vmem:[%s2892] sm:$0xff] %v2542
  %2894 = vst [vmem:[%s2892 + $0x10] sm:$0xff] %v2543
  %s2895 = scalar_lea.vmem %s6, 128
  %2896 = vst [vmem:[%s2895 + $0x8] sm:$0xff] %v2890
  %2897 = vst [vmem:[%s2895 + $0x18] sm:$0xff] %v2891
  %v2898 = vmul.f32 %v2542, %v730
  %v2899 = vmul.f32 %v2543, %v730
  %2900 = vadd.xlane.f32.xlu0 %v2898
  %v2901 = vpop.xlane.xlu0 %2900
  %2902 = vadd.xlane.f32.xlu0 %v2899
  %v2903 = vpop.xlane.xlu0 %2902
  %s2904 = scalar_lea.vmem [#allocation2], 48
  %2905 = vst.msk [vmem:[%s2904] sm:$0xff] %vm738, %v2901
  %2906 = vst.msk [vmem:[%s2904 + $0x8] sm:$0xff] %vm738, %v2903
  %v2907 = vmul.f32 %v2890, %v745
  %v2908 = vmul.f32 %v2891, %v745
  %2909 = vadd.xlane.f32.xlu0 %v2907
  %v2910 = vpop.xlane.xlu0 %2909
  %2911 = vadd.xlane.f32.xlu0 %v2908
  %v2912 = vpop.xlane.xlu0 %2911
  %s2913 = scalar_lea.vmem [#allocation3], 64
  %2914 = vst.msk [vmem:[%s2913] sm:$0xff] %vm738, %v2910
  %2915 = vst.msk [vmem:[%s2913 + $0x8] sm:$0xff] %vm738, %v2912
  %s2916 = scalar_lea.vmem %s0, 128
  %v2917 = vld [vmem:[%s2916] sm:$0xff]
  %v2918 = vld [vmem:[%s2916 + $0x8] sm:$0xff]
  %v2919 = vld [vmem:[%s2916 + $0x10] sm:$0xff]
  %v2920 = vld [vmem:[%s2916 + $0x18] sm:$0xff]
  %v2921 = vunpack.c.l.bf16 %v2917
  %v2922 = vunpack.c.h.bf16 %v2917
  %v2923 = vunpack.c.l.bf16 %v2918
  %v2924 = vunpack.c.h.bf16 %v2918
  %v2925 = vunpack.c.l.bf16 %v2919
  %v2926 = vunpack.c.h.bf16 %v2919
  %v2927 = vunpack.c.l.bf16 %v2920
  %v2928 = vunpack.c.h.bf16 %v2920
  %v2929 = vpack.c.bf16 %v2543, %v2542
  %v2930 = vld [vmem:[%s2] sm:$0xff]
  %v2931 = vld [vmem:[%s2 + $0x8] sm:$0xff]
  %v2932 = vld [vmem:[%s2 + $0x10] sm:$0xff]
  %v2933 = vld [vmem:[%s2 + $0x18] sm:$0xff]
  %v2934 = vld [vmem:[%s2 + $0x20] sm:$0xff]
  %v2935 = vld [vmem:[%s2 + $0x28] sm:$0xff]
  %v2936 = vld [vmem:[%s2 + $0x30] sm:$0xff]
  %v2937 = vld [vmem:[%s2 + $0x38] sm:$0xff]
  %v2938 = vld [vmem:[%s2 + $0x40] sm:$0xff]
  %v2939 = vld [vmem:[%s2 + $0x48] sm:$0xff]
  %v2940 = vld [vmem:[%s2 + $0x50] sm:$0xff]
  %v2941 = vld [vmem:[%s2 + $0x58] sm:$0xff]
  %v2942 = vld [vmem:[%s2 + $0x60] sm:$0xff]
  %v2943 = vld [vmem:[%s2 + $0x68] sm:$0xff]
  %v2944 = vld [vmem:[%s2 + $0x70] sm:$0xff]
  %v2945 = vld [vmem:[%s2 + $0x78] sm:$0xff]
  %v2946 = vld [vmem:[%s2 + $0x80] sm:$0xff]
  %v2947 = vld [vmem:[%s2 + $0x88] sm:$0xff]
  %v2948 = vld [vmem:[%s2 + $0x90] sm:$0xff]
  %v2949 = vld [vmem:[%s2 + $0x98] sm:$0xff]
  %v2950 = vld [vmem:[%s2 + $0xa0] sm:$0xff]
  %v2951 = vld [vmem:[%s2 + $0xa8] sm:$0xff]
  %v2952 = vld [vmem:[%s2 + $0xb0] sm:$0xff]
  %v2953 = vld [vmem:[%s2 + $0xb8] sm:$0xff]
  %v2954 = vld [vmem:[%s2 + $0xc0] sm:$0xff]
  %v2955 = vld [vmem:[%s2 + $0xc8] sm:$0xff]
  %v2956 = vld [vmem:[%s2 + $0xd0] sm:$0xff]
  %v2957 = vld [vmem:[%s2 + $0xd8] sm:$0xff]
  %v2958 = vld [vmem:[%s2 + $0xe0] sm:$0xff]
  %v2959 = vld [vmem:[%s2 + $0xe8] sm:$0xff]
  %v2960 = vld [vmem:[%s2 + $0xf0] sm:$0xff]
  %v2961 = vld [vmem:[%s2 + $0xf8] sm:$0xff]
  %v2994 = vunpack.c.l.b16 %v2930
  %v2995 = vunpack.c.h.b16 %v2930
  %v2996 = vunpack.c.l.b16 %v2931
  %v2997 = vunpack.c.h.b16 %v2931
  %v2998 = vunpack.c.l.b16 %v2932
  %v2999 = vunpack.c.h.b16 %v2932
  %v3000 = vunpack.c.l.b16 %v2933
  %v3001 = vunpack.c.h.b16 %v2933
  %v3002 = vunpack.c.l.b16 %v2934
  %v3003 = vunpack.c.h.b16 %v2934
  %v3004 = vunpack.c.l.b16 %v2935
  %v3005 = vunpack.c.h.b16 %v2935
  %v3006 = vunpack.c.l.b16 %v2936
  %v3007 = vunpack.c.h.b16 %v2936
  %v3008 = vunpack.c.l.b16 %v2937
  %v3009 = vunpack.c.h.b16 %v2937
  %v3010 = vunpack.c.l.b16 %v2938
  %v3011 = vunpack.c.h.b16 %v2938
  %v3012 = vunpack.c.l.b16 %v2939
  %v3013 = vunpack.c.h.b16 %v2939
  %v3014 = vunpack.c.l.b16 %v2940
  %v3015 = vunpack.c.h.b16 %v2940
  %v3016 = vunpack.c.l.b16 %v2941
  %v3017 = vunpack.c.h.b16 %v2941
  %v3018 = vunpack.c.l.b16 %v2942
  %v3019 = vunpack.c.h.b16 %v2942
  %v3020 = vunpack.c.l.b16 %v2943
  %v3021 = vunpack.c.h.b16 %v2943
  %v3022 = vunpack.c.l.b16 %v2944
  %v3023 = vunpack.c.h.b16 %v2944
  %v3024 = vunpack.c.l.b16 %v2945
  %v3025 = vunpack.c.h.b16 %v2945
  %v3026 = vunpack.c.l.b16 %v2946
  %v3027 = vunpack.c.h.b16 %v2946
  %v3028 = vunpack.c.l.b16 %v2947
  %v3029 = vunpack.c.h.b16 %v2947
  %v3030 = vunpack.c.l.b16 %v2948
  %v3031 = vunpack.c.h.b16 %v2948
  %v3032 = vunpack.c.l.b16 %v2949
  %v3033 = vunpack.c.h.b16 %v2949
  %v3034 = vunpack.c.l.b16 %v2950
  %v3035 = vunpack.c.h.b16 %v2950
  %v3036 = vunpack.c.l.b16 %v2951
  %v3037 = vunpack.c.h.b16 %v2951
  %v3038 = vunpack.c.l.b16 %v2952
  %v3039 = vunpack.c.h.b16 %v2952
  %v3040 = vunpack.c.l.b16 %v2953
  %v3041 = vunpack.c.h.b16 %v2953
  %v3042 = vunpack.c.l.b16 %v2954
  %v3043 = vunpack.c.h.b16 %v2954
  %v3044 = vunpack.c.l.b16 %v2955
  %v3045 = vunpack.c.h.b16 %v2955
  %v3046 = vunpack.c.l.b16 %v2956
  %v3047 = vunpack.c.h.b16 %v2956
  %v3048 = vunpack.c.l.b16 %v2957
  %v3049 = vunpack.c.h.b16 %v2957
  %v3050 = vunpack.c.l.b16 %v2958
  %v3051 = vunpack.c.h.b16 %v2958
  %v3052 = vunpack.c.l.b16 %v2959
  %v3053 = vunpack.c.h.b16 %v2959
  %v3054 = vunpack.c.l.b16 %v2960
  %v3055 = vunpack.c.h.b16 %v2960
  %v3056 = vunpack.c.l.b16 %v2961
  %v3057 = vunpack.c.h.b16 %v2961
  %v3058 = vpack.c.b16 %v2998, %v2994
  %v3059 = vpack.c.b16 %v2999, %v2995
  %v3060 = vpack.c.b16 %v3000, %v2996
  %v3061 = vpack.c.b16 %v3001, %v2997
  %v3062 = vpack.c.b16 %v3006, %v3002
  %v3063 = vpack.c.b16 %v3007, %v3003
  %v3064 = vpack.c.b16 %v3008, %v3004
  %v3065 = vpack.c.b16 %v3009, %v3005
  %v3066 = vpack.c.b16 %v3014, %v3010
  %v3067 = vpack.c.b16 %v3015, %v3011
  %v3068 = vpack.c.b16 %v3016, %v3012
  %v3069 = vpack.c.b16 %v3017, %v3013
  %v3070 = vpack.c.b16 %v3022, %v3018
  %v3071 = vpack.c.b16 %v3023, %v3019
  %v3072 = vpack.c.b16 %v3024, %v3020
  %v3073 = vpack.c.b16 %v3025, %v3021
  %v3074 = vpack.c.b16 %v3030, %v3026
  %v3075 = vpack.c.b16 %v3031, %v3027
  %v3076 = vpack.c.b16 %v3032, %v3028
  %v3077 = vpack.c.b16 %v3033, %v3029
  %v3078 = vpack.c.b16 %v3038, %v3034
  %v3079 = vpack.c.b16 %v3039, %v3035
  %v3080 = vpack.c.b16 %v3040, %v3036
  %v3081 = vpack.c.b16 %v3041, %v3037
  %v3082 = vpack.c.b16 %v3046, %v3042
  %v3083 = vpack.c.b16 %v3047, %v3043
  %v3084 = vpack.c.b16 %v3048, %v3044
  %v3085 = vpack.c.b16 %v3049, %v3045
  %v3086 = vpack.c.b16 %v3054, %v3050
  %v3087 = vpack.c.b16 %v3055, %v3051
  %v3088 = vpack.c.b16 %v3056, %v3052
  %v3089 = vpack.c.b16 %v3057, %v3053
  %3122 = vmatprep.subr.bf16.mxu0 %v3059
  %3123 = vmatpush1.bf16.msra.mxu0 %v3058
  %3124 = vmatprep.subr.bf16.mxu0 %v3063
  %3125 = vmatpush1.bf16.msra.mxu0 %v3062
  %3126 = vmatprep.subr.bf16.mxu0 %v3067
  %3127 = vmatpush1.bf16.msra.mxu0 %v3066
  %3128 = vmatprep.subr.bf16.mxu0 %v3071
  %3129 = vmatpush1.bf16.msra.mxu0 %v3070
  %3130 = vmatprep.subr.bf16.mxu0 %v3075
  %3131 = vmatpush1.bf16.msra.mxu0 %v3074
  %3132 = vmatprep.subr.bf16.mxu0 %v3079
  %3133 = vmatpush1.bf16.msra.mxu0 %v3078
  %3134 = vmatprep.subr.bf16.mxu0 %v3083
  %3135 = vmatpush1.bf16.msra.mxu0 %v3082
  %3136 = vmatprep.subr.bf16.mxu0 %v3087
  %3137 = vmatpush1.bf16.msra.mxu0 %v3086
  %3138 = vmatprep.subr.bf16.mxu0 0
  %3139 = vmatpush1.bf16.msra.mxu0 0
  %3140 = vmatprep.subr.bf16.mxu0 0
  %3141 = vmatpush1.bf16.msra.mxu0 0
  %3142 = vmatprep.subr.bf16.mxu0 0
  %3143 = vmatpush1.bf16.msra.mxu0 0
  %3144 = vmatprep.subr.bf16.mxu0 0
  %3145 = vmatpush1.bf16.msra.mxu0 0
  %3146 = vmatprep.subr.bf16.mxu0 0
  %3147 = vmatpush1.bf16.msra.mxu0 0
  %3148 = vmatprep.subr.bf16.mxu0 0
  %3149 = vmatpush1.bf16.msra.mxu0 0
  %3150 = vmatprep.subr.bf16.mxu0 0
  %3151 = vmatpush1.bf16.msra.mxu0 0
  %3152 = vmatprep.subr.bf16.mxu0 0
  %3153 = vmatpush1.bf16.msra.mxu0 0
  %3154 = vmatprep.mubr.bf16.mxu0 0
  %3155 = vmatmul.mubr.bf16.gmra.mrb[0].mxu0 %v2929
  %v3156 = vpop.f32.mrb[0].mxu0
  %v3157 = vadd.f32 0.0, %v3156
  %v3158 = vpop.f32.mrb[0].mxu0
  %v3159 = vadd.f32 0.0, %v3158
  %v3160 = vpop.f32.mrb[0].mxu0
  %v3161 = vadd.f32 0.0, %v3160
  %v3162 = vpop.f32.mrb[0].mxu0
  %v3163 = vadd.f32 0.0, %v3162
  %3164 = vdwg.mxu0
  %3165 = vmatprep.subr.bf16.mxu0 %v3061
  %3166 = vmatpush1.bf16.msra.mxu0 %v3060
  %3167 = vmatprep.subr.bf16.mxu0 %v3065
  %3168 = vmatpush1.bf16.msra.mxu0 %v3064
  %3169 = vmatprep.subr.bf16.mxu0 %v3069
  %3170 = vmatpush1.bf16.msra.mxu0 %v3068
  %3171 = vmatprep.subr.bf16.mxu0 %v3073
  %3172 = vmatpush1.bf16.msra.mxu0 %v3072
  %3173 = vmatprep.subr.bf16.mxu0 %v3077
  %3174 = vmatpush1.bf16.msra.mxu0 %v3076
  %3175 = vmatprep.subr.bf16.mxu0 %v3081
  %3176 = vmatpush1.bf16.msra.mxu0 %v3080
  %3177 = vmatprep.subr.bf16.mxu0 %v3085
  %3178 = vmatpush1.bf16.msra.mxu0 %v3084
  %3179 = vmatprep.subr.bf16.mxu0 %v3089
  %3180 = vmatpush1.bf16.msra.mxu0 %v3088
  %3181 = vmatprep.subr.bf16.mxu0 0
  %3182 = vmatpush1.bf16.msra.mxu0 0
  %3183 = vmatprep.subr.bf16.mxu0 0
  %3184 = vmatpush1.bf16.msra.mxu0 0
  %3185 = vmatprep.subr.bf16.mxu0 0
  %3186 = vmatpush1.bf16.msra.mxu0 0
  %3187 = vmatprep.subr.bf16.mxu0 0
  %3188 = vmatpush1.bf16.msra.mxu0 0
  %3189 = vmatprep.subr.bf16.mxu0 0
  %3190 = vmatpush1.bf16.msra.mxu0 0
  %3191 = vmatprep.subr.bf16.mxu0 0
  %3192 = vmatpush1.bf16.msra.mxu0 0
  %3193 = vmatprep.subr.bf16.mxu0 0
  %3194 = vmatpush1.bf16.msra.mxu0 0
  %3195 = vmatprep.subr.bf16.mxu0 0
  %3196 = vmatpush1.bf16.msra.mxu0 0
  %3197 = vmatprep.mubr.bf16.mxu0 0
  %3198 = vmatmul.mubr.bf16.gmra.mrb[0].mxu0 %v2929
  %v3199 = vpop.f32.mrb[0].mxu0
  %v3200 = vadd.f32 0.0, %v3199
  %v3201 = vpop.f32.mrb[0].mxu0
  %v3202 = vadd.f32 0.0, %v3201
  %v3203 = vpop.f32.mrb[0].mxu0
  %v3204 = vadd.f32 0.0, %v3203
  %v3205 = vpop.f32.mrb[0].mxu0
  %v3206 = vadd.f32 0.0, %v3205
  %3207 = vdwg.mxu0
  %v3208 = vadd.f32 %v2921, %v3157
  %v3209 = vadd.f32 %v2922, %v3159
  %v3210 = vadd.f32 %v2923, %v3200
  %v3211 = vadd.f32 %v2924, %v3202
  %v3212 = vadd.f32 %v2925, %v3161
  %v3213 = vadd.f32 %v2926, %v3163
  %v3214 = vadd.f32 %v2927, %v3204
  %v3215 = vadd.f32 %v2928, %v3206
  %v3216 = vxor.u32 %v3208, 2147483648
  %v3217 = vxor.u32 %v3209, 2147483648
  %v3218 = vxor.u32 %v3210, 2147483648
  %v3219 = vxor.u32 %v3212, 2147483648
  %v3220 = vxor.u32 %v3213, 2147483648
  %v3221 = vxor.u32 %v3214, 2147483648
  %v3222 = vmul.f32 %v3216, 1.442695
  %v3223 = vpow.pop %v3222
  %v3224 = vmul.f32 %v3217, 1.442695
  %v3225 = vpow.pop %v3224
  %v3226 = vmul.f32 %v3218, 1.442695
  %v3227 = vpow.pop %v3226
  %v3228 = vmul.f32 %v3219, 1.442695
  %v3229 = vpow.pop %v3228
  %v3230 = vmul.f32 %v3220, 1.442695
  %v3231 = vpow.pop %v3230
  %v3232 = vmul.f32 %v3221, 1.442695
  %v3233 = vpow.pop %v3232
  %v3234 = vadd.f32 %v3223, 1.0
  %v3235 = vadd.f32 %v3225, 1.0
  %v3236 = vadd.f32 %v3227, 1.0
  %v3237 = vadd.f32 %v3229, 1.0
  %v3238 = vadd.f32 %v3231, 1.0
  %v3239 = vadd.f32 %v3233, 1.0
  %v3240 = vrcp.pop %v3234
  %v3241 = vmul.f32 1.0, %v3240
  %v3242 = vrcp.pop %v3235
  %v3243 = vmul.f32 1.0, %v3242
  %v3244 = vrcp.pop %v3236
  %v3245 = vmul.f32 1.0, %v3244
  %v3246 = vrcp.pop %v3237
  %v3247 = vmul.f32 1.0, %v3246
  %v3248 = vrcp.pop %v3238
  %v3249 = vmul.f32 1.0, %v3248
  %v3250 = vrcp.pop %v3239
  %v3251 = vmul.f32 1.0, %v3250
  %v3252 = vtanh.pop %v3211
  %v3253 = vtanh.pop %v3215
  %v3254 = vmul.f32 %v3243, %v2538
  %v3255 = vmul.f32 %v3249, %v2539
  %v3256 = vmul.f32 %v3241, %v3252
  %v3257 = vmul.f32 %v3247, %v3253
  %v3258 = vadd.f32 %v3254, %v3256
  %v3259 = vadd.f32 %v3255, %v3257
  %v3260 = vtanh.pop %v3258
  %v3261 = vtanh.pop %v3259
  %v3262 = vmul.f32 %v3245, %v3260
  %v3263 = vmul.f32 %v3251, %v3261
  %s3264 = scalar_lea.vmem %s1, 96
  %v3265 = vld [vmem:[%s3264] sm:$0xff]
  %v3266 = vld [vmem:[%s3264 + $0x8] sm:$0xff]
  %v3267 = vld [vmem:[%s3264 + $0x10] sm:$0xff]
  %v3268 = vld [vmem:[%s3264 + $0x18] sm:$0xff]
  %v3269 = vunpack.c.l.bf16 %v3265
  %v3270 = vunpack.c.h.bf16 %v3265
  %v3271 = vunpack.c.l.bf16 %v3266
  %v3272 = vunpack.c.h.bf16 %v3266
  %v3273 = vunpack.c.l.bf16 %v3267
  %v3274 = vunpack.c.h.bf16 %v3267
  %v3275 = vunpack.c.l.bf16 %v3268
  %v3276 = vunpack.c.h.bf16 %v3268
  %v3277 = vpack.c.bf16 %v2891, %v2890
  %v3278 = vld [vmem:[%s3] sm:$0xff]
  %v3279 = vld [vmem:[%s3 + $0x8] sm:$0xff]
  %v3280 = vld [vmem:[%s3 + $0x10] sm:$0xff]
  %v3281 = vld [vmem:[%s3 + $0x18] sm:$0xff]
  %v3282 = vld [vmem:[%s3 + $0x20] sm:$0xff]
  %v3283 = vld [vmem:[%s3 + $0x28] sm:$0xff]
  %v3284 = vld [vmem:[%s3 + $0x30] sm:$0xff]
  %v3285 = vld [vmem:[%s3 + $0x38] sm:$0xff]
  %v3286 = vld [vmem:[%s3 + $0x40] sm:$0xff]
  %v3287 = vld [vmem:[%s3 + $0x48] sm:$0xff]
  %v3288 = vld [vmem:[%s3 + $0x50] sm:$0xff]
  %v3289 = vld [vmem:[%s3 + $0x58] sm:$0xff]
  %v3290 = vld [vmem:[%s3 + $0x60] sm:$0xff]
  %v3291 = vld [vmem:[%s3 + $0x68] sm:$0xff]
  %v3292 = vld [vmem:[%s3 + $0x70] sm:$0xff]
  %v3293 = vld [vmem:[%s3 + $0x78] sm:$0xff]
  %v3294 = vld [vmem:[%s3 + $0x80] sm:$0xff]
  %v3295 = vld [vmem:[%s3 + $0x88] sm:$0xff]
  %v3296 = vld [vmem:[%s3 + $0x90] sm:$0xff]
  %v3297 = vld [vmem:[%s3 + $0x98] sm:$0xff]
  %v3298 = vld [vmem:[%s3 + $0xa0] sm:$0xff]
  %v3299 = vld [vmem:[%s3 + $0xa8] sm:$0xff]
  %v3300 = vld [vmem:[%s3 + $0xb0] sm:$0xff]
  %v3301 = vld [vmem:[%s3 + $0xb8] sm:$0xff]
  %v3302 = vld [vmem:[%s3 + $0xc0] sm:$0xff]
  %v3303 = vld [vmem:[%s3 + $0xc8] sm:$0xff]
  %v3304 = vld [vmem:[%s3 + $0xd0] sm:$0xff]
  %v3305 = vld [vmem:[%s3 + $0xd8] sm:$0xff]
  %v3306 = vld [vmem:[%s3 + $0xe0] sm:$0xff]
  %v3307 = vld [vmem:[%s3 + $0xe8] sm:$0xff]
  %v3308 = vld [vmem:[%s3 + $0xf0] sm:$0xff]
  %v3309 = vld [vmem:[%s3 + $0xf8] sm:$0xff]
  %v3342 = vunpack.c.l.b16 %v3278
  %v3343 = vunpack.c.h.b16 %v3278
  %v3344 = vunpack.c.l.b16 %v3279
  %v3345 = vunpack.c.h.b16 %v3279
  %v3346 = vunpack.c.l.b16 %v3280
  %v3347 = vunpack.c.h.b16 %v3280
  %v3348 = vunpack.c.l.b16 %v3281
  %v3349 = vunpack.c.h.b16 %v3281
  %v3350 = vunpack.c.l.b16 %v3282
  %v3351 = vunpack.c.h.b16 %v3282
  %v3352 = vunpack.c.l.b16 %v3283
  %v3353 = vunpack.c.h.b16 %v3283
  %v3354 = vunpack.c.l.b16 %v3284
  %v3355 = vunpack.c.h.b16 %v3284
  %v3356 = vunpack.c.l.b16 %v3285
  %v3357 = vunpack.c.h.b16 %v3285
  %v3358 = vunpack.c.l.b16 %v3286
  %v3359 = vunpack.c.h.b16 %v3286
  %v3360 = vunpack.c.l.b16 %v3287
  %v3361 = vunpack.c.h.b16 %v3287
  %v3362 = vunpack.c.l.b16 %v3288
  %v3363 = vunpack.c.h.b16 %v3288
  %v3364 = vunpack.c.l.b16 %v3289
  %v3365 = vunpack.c.h.b16 %v3289
  %v3366 = vunpack.c.l.b16 %v3290
  %v3367 = vunpack.c.h.b16 %v3290
  %v3368 = vunpack.c.l.b16 %v3291
  %v3369 = vunpack.c.h.b16 %v3291
  %v3370 = vunpack.c.l.b16 %v3292
  %v3371 = vunpack.c.h.b16 %v3292
  %v3372 = vunpack.c.l.b16 %v3293
  %v3373 = vunpack.c.h.b16 %v3293
  %v3374 = vunpack.c.l.b16 %v3294
  %v3375 = vunpack.c.h.b16 %v3294
  %v3376 = vunpack.c.l.b16 %v3295
  %v3377 = vunpack.c.h.b16 %v3295
  %v3378 = vunpack.c.l.b16 %v3296
  %v3379 = vunpack.c.h.b16 %v3296
  %v3380 = vunpack.c.l.b16 %v3297
  %v3381 = vunpack.c.h.b16 %v3297
  %v3382 = vunpack.c.l.b16 %v3298
  %v3383 = vunpack.c.h.b16 %v3298
  %v3384 = vunpack.c.l.b16 %v3299
  %v3385 = vunpack.c.h.b16 %v3299
  %v3386 = vunpack.c.l.b16 %v3300
  %v3387 = vunpack.c.h.b16 %v3300
  %v3388 = vunpack.c.l.b16 %v3301
  %v3389 = vunpack.c.h.b16 %v3301
  %v3390 = vunpack.c.l.b16 %v3302
  %v3391 = vunpack.c.h.b16 %v3302
  %v3392 = vunpack.c.l.b16 %v3303
  %v3393 = vunpack.c.h.b16 %v3303
  %v3394 = vunpack.c.l.b16 %v3304
  %v3395 = vunpack.c.h.b16 %v3304
  %v3396 = vunpack.c.l.b16 %v3305
  %v3397 = vunpack.c.h.b16 %v3305
  %v3398 = vunpack.c.l.b16 %v3306
  %v3399 = vunpack.c.h.b16 %v3306
  %v3400 = vunpack.c.l.b16 %v3307
  %v3401 = vunpack.c.h.b16 %v3307
  %v3402 = vunpack.c.l.b16 %v3308
  %v3403 = vunpack.c.h.b16 %v3308
  %v3404 = vunpack.c.l.b16 %v3309
  %v3405 = vunpack.c.h.b16 %v3309
  %v3406 = vpack.c.b16 %v3346, %v3342
  %v3407 = vpack.c.b16 %v3347, %v3343
  %v3408 = vpack.c.b16 %v3348, %v3344
  %v3409 = vpack.c.b16 %v3349, %v3345
  %v3410 = vpack.c.b16 %v3354, %v3350
  %v3411 = vpack.c.b16 %v3355, %v3351
  %v3412 = vpack.c.b16 %v3356, %v3352
  %v3413 = vpack.c.b16 %v3357, %v3353
  %v3414 = vpack.c.b16 %v3362, %v3358
  %v3415 = vpack.c.b16 %v3363, %v3359
  %v3416 = vpack.c.b16 %v3364, %v3360
  %v3417 = vpack.c.b16 %v3365, %v3361
  %v3418 = vpack.c.b16 %v3370, %v3366
  %v3419 = vpack.c.b16 %v3371, %v3367
  %v3420 = vpack.c.b16 %v3372, %v3368
  %v3421 = vpack.c.b16 %v3373, %v3369
  %v3422 = vpack.c.b16 %v3378, %v3374
  %v3423 = vpack.c.b16 %v3379, %v3375
  %v3424 = vpack.c.b16 %v3380, %v3376
  %v3425 = vpack.c.b16 %v3381, %v3377
  %v3426 = vpack.c.b16 %v3386, %v3382
  %v3427 = vpack.c.b16 %v3387, %v3383
  %v3428 = vpack.c.b16 %v3388, %v3384
  %v3429 = vpack.c.b16 %v3389, %v3385
  %v3430 = vpack.c.b16 %v3394, %v3390
  %v3431 = vpack.c.b16 %v3395, %v3391
  %v3432 = vpack.c.b16 %v3396, %v3392
  %v3433 = vpack.c.b16 %v3397, %v3393
  %v3434 = vpack.c.b16 %v3402, %v3398
  %v3435 = vpack.c.b16 %v3403, %v3399
  %v3436 = vpack.c.b16 %v3404, %v3400
  %v3437 = vpack.c.b16 %v3405, %v3401
  %3470 = vmatprep.subr.bf16.mxu0 %v3407
  %3471 = vmatpush1.bf16.msra.mxu0 %v3406
  %3472 = vmatprep.subr.bf16.mxu0 %v3411
  %3473 = vmatpush1.bf16.msra.mxu0 %v3410
  %3474 = vmatprep.subr.bf16.mxu0 %v3415
  %3475 = vmatpush1.bf16.msra.mxu0 %v3414
  %3476 = vmatprep.subr.bf16.mxu0 %v3419
  %3477 = vmatpush1.bf16.msra.mxu0 %v3418
  %3478 = vmatprep.subr.bf16.mxu0 %v3423
  %3479 = vmatpush1.bf16.msra.mxu0 %v3422
  %3480 = vmatprep.subr.bf16.mxu0 %v3427
  %3481 = vmatpush1.bf16.msra.mxu0 %v3426
  %3482 = vmatprep.subr.bf16.mxu0 %v3431
  %3483 = vmatpush1.bf16.msra.mxu0 %v3430
  %3484 = vmatprep.subr.bf16.mxu0 %v3435
  %3485 = vmatpush1.bf16.msra.mxu0 %v3434
  %3486 = vmatprep.subr.bf16.mxu0 0
  %3487 = vmatpush1.bf16.msra.mxu0 0
  %3488 = vmatprep.subr.bf16.mxu0 0
  %3489 = vmatpush1.bf16.msra.mxu0 0
  %3490 = vmatprep.subr.bf16.mxu0 0
  %3491 = vmatpush1.bf16.msra.mxu0 0
  %3492 = vmatprep.subr.bf16.mxu0 0
  %3493 = vmatpush1.bf16.msra.mxu0 0
  %3494 = vmatprep.subr.bf16.mxu0 0
  %3495 = vmatpush1.bf16.msra.mxu0 0
  %3496 = vmatprep.subr.bf16.mxu0 0
  %3497 = vmatpush1.bf16.msra.mxu0 0
  %3498 = vmatprep.subr.bf16.mxu0 0
  %3499 = vmatpush1.bf16.msra.mxu0 0
  %3500 = vmatprep.subr.bf16.mxu0 0
  %3501 = vmatpush1.bf16.msra.mxu0 0
  %3502 = vmatprep.mubr.bf16.mxu0 0
  %3503 = vmatmul.mubr.bf16.gmra.mrb[0].mxu0 %v3277
  %v3504 = vpop.f32.mrb[0].mxu0
  %v3505 = vadd.f32 0.0, %v3504
  %v3506 = vpop.f32.mrb[0].mxu0
  %v3507 = vadd.f32 0.0, %v3506
  %v3508 = vpop.f32.mrb[0].mxu0
  %v3509 = vadd.f32 0.0, %v3508
  %v3510 = vpop.f32.mrb[0].mxu0
  %v3511 = vadd.f32 0.0, %v3510
  %3512 = vdwg.mxu0
  %3513 = vmatprep.subr.bf16.mxu0 %v3409
  %3514 = vmatpush1.bf16.msra.mxu0 %v3408
  %3515 = vmatprep.subr.bf16.mxu0 %v3413
  %3516 = vmatpush1.bf16.msra.mxu0 %v3412
  %3517 = vmatprep.subr.bf16.mxu0 %v3417
  %3518 = vmatpush1.bf16.msra.mxu0 %v3416
  %3519 = vmatprep.subr.bf16.mxu0 %v3421
  %3520 = vmatpush1.bf16.msra.mxu0 %v3420
  %3521 = vmatprep.subr.bf16.mxu0 %v3425
  %3522 = vmatpush1.bf16.msra.mxu0 %v3424
  %3523 = vmatprep.subr.bf16.mxu0 %v3429
  %3524 = vmatpush1.bf16.msra.mxu0 %v3428
  %3525 = vmatprep.subr.bf16.mxu0 %v3433
  %3526 = vmatpush1.bf16.msra.mxu0 %v3432
  %3527 = vmatprep.subr.bf16.mxu0 %v3437
  %3528 = vmatpush1.bf16.msra.mxu0 %v3436
  %3529 = vmatprep.subr.bf16.mxu0 0
  %3530 = vmatpush1.bf16.msra.mxu0 0
  %3531 = vmatprep.subr.bf16.mxu0 0
  %3532 = vmatpush1.bf16.msra.mxu0 0
  %3533 = vmatprep.subr.bf16.mxu0 0
  %3534 = vmatpush1.bf16.msra.mxu0 0
  %3535 = vmatprep.subr.bf16.mxu0 0
  %3536 = vmatpush1.bf16.msra.mxu0 0
  %3537 = vmatprep.subr.bf16.mxu0 0
  %3538 = vmatpush1.bf16.msra.mxu0 0
  %3539 = vmatprep.subr.bf16.mxu0 0
  %3540 = vmatpush1.bf16.msra.mxu0 0
  %3541 = vmatprep.subr.bf16.mxu0 0
  %3542 = vmatpush1.bf16.msra.mxu0 0
  %3543 = vmatprep.subr.bf16.mxu0 0
  %3544 = vmatpush1.bf16.msra.mxu0 0
  %3545 = vmatprep.mubr.bf16.mxu0 0
  %3546 = vmatmul.mubr.bf16.gmra.mrb[0].mxu0 %v3277
  %v3547 = vpop.f32.mrb[0].mxu0
  %v3548 = vadd.f32 0.0, %v3547
  %v3549 = vpop.f32.mrb[0].mxu0
  %v3550 = vadd.f32 0.0, %v3549
  %v3551 = vpop.f32.mrb[0].mxu0
  %v3552 = vadd.f32 0.0, %v3551
  %v3553 = vpop.f32.mrb[0].mxu0
  %v3554 = vadd.f32 0.0, %v3553
  %3555 = vdwg.mxu0
  %v3556 = vadd.f32 %v3269, %v3505
  %v3557 = vadd.f32 %v3270, %v3507
  %v3558 = vadd.f32 %v3271, %v3548
  %v3559 = vadd.f32 %v3272, %v3550
  %v3560 = vadd.f32 %v3273, %v3509
  %v3561 = vadd.f32 %v3274, %v3511
  %v3562 = vadd.f32 %v3275, %v3552
  %v3563 = vadd.f32 %v3276, %v3554
  %v3564 = vxor.u32 %v3556, 2147483648
  %v3565 = vxor.u32 %v3557, 2147483648
  %v3566 = vxor.u32 %v3558, 2147483648
  %v3567 = vxor.u32 %v3560, 2147483648
  %v3568 = vxor.u32 %v3561, 2147483648
  %v3569 = vxor.u32 %v3562, 2147483648
  %v3570 = vmul.f32 %v3564, 1.442695
  %v3571 = vpow.pop %v3570
  %v3572 = vmul.f32 %v3565, 1.442695
  %v3573 = vpow.pop %v3572
  %v3574 = vmul.f32 %v3566, 1.442695
  %v3575 = vpow.pop %v3574
  %v3576 = vmul.f32 %v3567, 1.442695
  %v3577 = vpow.pop %v3576
  %v3578 = vmul.f32 %v3568, 1.442695
  %v3579 = vpow.pop %v3578
  %v3580 = vmul.f32 %v3569, 1.442695
  %v3581 = vpow.pop %v3580
  %v3582 = vadd.f32 %v3571, 1.0
  %v3583 = vadd.f32 %v3573, 1.0
  %v3584 = vadd.f32 %v3575, 1.0
  %v3585 = vadd.f32 %v3577, 1.0
  %v3586 = vadd.f32 %v3579, 1.0
  %v3587 = vadd.f32 %v3581, 1.0
  %v3588 = vrcp.pop %v3582
  %v3589 = vmul.f32 1.0, %v3588
  %v3590 = vrcp.pop %v3583
  %v3591 = vmul.f32 1.0, %v3590
  %v3592 = vrcp.pop %v3584
  %v3593 = vmul.f32 1.0, %v3592
  %v3594 = vrcp.pop %v3585
  %v3595 = vmul.f32 1.0, %v3594
  %v3596 = vrcp.pop %v3586
  %v3597 = vmul.f32 1.0, %v3596
  %v3598 = vrcp.pop %v3587
  %v3599 = vmul.f32 1.0, %v3598
  %v3600 = vtanh.pop %v3559
  %v3601 = vtanh.pop %v3563
  %v3602 = vmul.f32 %v3591, %v2886
  %v3603 = vmul.f32 %v3597, %v2887
  %v3604 = vmul.f32 %v3589, %v3600
  %v3605 = vmul.f32 %v3595, %v3601
  %v3606 = vadd.f32 %v3602, %v3604
  %v3607 = vadd.f32 %v3603, %v3605
  %v3608 = vtanh.pop %v3606
  %v3609 = vtanh.pop %v3607
  %v3610 = vmul.f32 %v3593, %v3608
  %v3611 = vmul.f32 %v3599, %v3609
  %3612 = vst [vmem:[%s2895] sm:$0xff] %v3262
  %3613 = vst [vmem:[%s2895 + $0x10] sm:$0xff] %v3263
  %3614 = vst [vmem:[%s2892 + $0x8] sm:$0xff] %v3610
  %3615 = vst [vmem:[%s2892 + $0x18] sm:$0xff] %v3611
  %v3616 = vmul.f32 %v3262, %v730
  %v3617 = vmul.f32 %v3263, %v730
  %3618 = vadd.xlane.f32.xlu0 %v3616
  %v3619 = vpop.xlane.xlu0 %3618
  %3620 = vadd.xlane.f32.xlu0 %v3617
  %v3621 = vpop.xlane.xlu0 %3620
  %s3622 = scalar_lea.vmem [#allocation2], 64
  %3623 = vst.msk [vmem:[%s3622] sm:$0xff] %vm738, %v3619
  %3624 = vst.msk [vmem:[%s3622 + $0x8] sm:$0xff] %vm738, %v3621
  %v3625 = vmul.f32 %v3610, %v745
  %v3626 = vmul.f32 %v3611, %v745
  %3627 = vadd.xlane.f32.xlu0 %v3625
  %v3628 = vpop.xlane.xlu0 %3627
  %3629 = vadd.xlane.f32.xlu0 %v3626
  %v3630 = vpop.xlane.xlu0 %3629
  %s3631 = scalar_lea.vmem [#allocation3], 48
  %3632 = vst.msk [vmem:[%s3631] sm:$0xff] %vm738, %v3628
  %3633 = vst.msk [vmem:[%s3631 + $0x8] sm:$0xff] %vm738, %v3630
  %s3634 = scalar_lea.vmem %s0, 160
  %v3635 = vld [vmem:[%s3634] sm:$0xff]
  %v3636 = vld [vmem:[%s3634 + $0x8] sm:$0xff]
  %v3637 = vld [vmem:[%s3634 + $0x10] sm:$0xff]
  %v3638 = vld [vmem:[%s3634 + $0x18] sm:$0xff]
  %v3639 = vunpack.c.l.bf16 %v3635
  %v3640 = vunpack.c.h.bf16 %v3635
  %v3641 = vunpack.c.l.bf16 %v3636
  %v3642 = vunpack.c.h.bf16 %v3636
  %v3643 = vunpack.c.l.bf16 %v3637
  %v3644 = vunpack.c.h.bf16 %v3637
  %v3645 = vunpack.c.l.bf16 %v3638
  %v3646 = vunpack.c.h.bf16 %v3638
  %v3647 = vpack.c.bf16 %v3263, %v3262
  %v3648 = vld [vmem:[%s2] sm:$0xff]
  %v3649 = vld [vmem:[%s2 + $0x8] sm:$0xff]
  %v3650 = vld [vmem:[%s2 + $0x10] sm:$0xff]
  %v3651 = vld [vmem:[%s2 + $0x18] sm:$0xff]
  %v3652 = vld [vmem:[%s2 + $0x20] sm:$0xff]
  %v3653 = vld [vmem:[%s2 + $0x28] sm:$0xff]
  %v3654 = vld [vmem:[%s2 + $0x30] sm:$0xff]
  %v3655 = vld [vmem:[%s2 + $0x38] sm:$0xff]
  %v3656 = vld [vmem:[%s2 + $0x40] sm:$0xff]
  %v3657 = vld [vmem:[%s2 + $0x48] sm:$0xff]
  %v3658 = vld [vmem:[%s2 + $0x50] sm:$0xff]
  %v3659 = vld [vmem:[%s2 + $0x58] sm:$0xff]
  %v3660 = vld [vmem:[%s2 + $0x60] sm:$0xff]
  %v3661 = vld [vmem:[%s2 + $0x68] sm:$0xff]
  %v3662 = vld [vmem:[%s2 + $0x70] sm:$0xff]
  %v3663 = vld [vmem:[%s2 + $0x78] sm:$0xff]
  %v3664 = vld [vmem:[%s2 + $0x80] sm:$0xff]
  %v3665 = vld [vmem:[%s2 + $0x88] sm:$0xff]
  %v3666 = vld [vmem:[%s2 + $0x90] sm:$0xff]
  %v3667 = vld [vmem:[%s2 + $0x98] sm:$0xff]
  %v3668 = vld [vmem:[%s2 + $0xa0] sm:$0xff]
  %v3669 = vld [vmem:[%s2 + $0xa8] sm:$0xff]
  %v3670 = vld [vmem:[%s2 + $0xb0] sm:$0xff]
  %v3671 = vld [vmem:[%s2 + $0xb8] sm:$0xff]
  %v3672 = vld [vmem:[%s2 + $0xc0] sm:$0xff]
  %v3673 = vld [vmem:[%s2 + $0xc8] sm:$0xff]
  %v3674 = vld [vmem:[%s2 + $0xd0] sm:$0xff]
  %v3675 = vld [vmem:[%s2 + $0xd8] sm:$0xff]
  %v3676 = vld [vmem:[%s2 + $0xe0] sm:$0xff]
  %v3677 = vld [vmem:[%s2 + $0xe8] sm:$0xff]
  %v3678 = vld [vmem:[%s2 + $0xf0] sm:$0xff]
  %v3679 = vld [vmem:[%s2 + $0xf8] sm:$0xff]
  %v3712 = vunpack.c.l.b16 %v3648
  %v3713 = vunpack.c.h.b16 %v3648
  %v3714 = vunpack.c.l.b16 %v3649
  %v3715 = vunpack.c.h.b16 %v3649
  %v3716 = vunpack.c.l.b16 %v3650
  %v3717 = vunpack.c.h.b16 %v3650
  %v3718 = vunpack.c.l.b16 %v3651
  %v3719 = vunpack.c.h.b16 %v3651
  %v3720 = vunpack.c.l.b16 %v3652
  %v3721 = vunpack.c.h.b16 %v3652
  %v3722 = vunpack.c.l.b16 %v3653
  %v3723 = vunpack.c.h.b16 %v3653
  %v3724 = vunpack.c.l.b16 %v3654
  %v3725 = vunpack.c.h.b16 %v3654
  %v3726 = vunpack.c.l.b16 %v3655
  %v3727 = vunpack.c.h.b16 %v3655
  %v3728 = vunpack.c.l.b16 %v3656
  %v3729 = vunpack.c.h.b16 %v3656
  %v3730 = vunpack.c.l.b16 %v3657
  %v3731 = vunpack.c.h.b16 %v3657
  %v3732 = vunpack.c.l.b16 %v3658
  %v3733 = vunpack.c.h.b16 %v3658
  %v3734 = vunpack.c.l.b16 %v3659
  %v3735 = vunpack.c.h.b16 %v3659
  %v3736 = vunpack.c.l.b16 %v3660
  %v3737 = vunpack.c.h.b16 %v3660
  %v3738 = vunpack.c.l.b16 %v3661
  %v3739 = vunpack.c.h.b16 %v3661
  %v3740 = vunpack.c.l.b16 %v3662
  %v3741 = vunpack.c.h.b16 %v3662
  %v3742 = vunpack.c.l.b16 %v3663
  %v3743 = vunpack.c.h.b16 %v3663
  %v3744 = vunpack.c.l.b16 %v3664
  %v3745 = vunpack.c.h.b16 %v3664
  %v3746 = vunpack.c.l.b16 %v3665
  %v3747 = vunpack.c.h.b16 %v3665
  %v3748 = vunpack.c.l.b16 %v3666
  %v3749 = vunpack.c.h.b16 %v3666
  %v3750 = vunpack.c.l.b16 %v3667
  %v3751 = vunpack.c.h.b16 %v3667
  %v3752 = vunpack.c.l.b16 %v3668
  %v3753 = vunpack.c.h.b16 %v3668
  %v3754 = vunpack.c.l.b16 %v3669
  %v3755 = vunpack.c.h.b16 %v3669
  %v3756 = vunpack.c.l.b16 %v3670
  %v3757 = vunpack.c.h.b16 %v3670
  %v3758 = vunpack.c.l.b16 %v3671
  %v3759 = vunpack.c.h.b16 %v3671
  %v3760 = vunpack.c.l.b16 %v3672
  %v3761 = vunpack.c.h.b16 %v3672
  %v3762 = vunpack.c.l.b16 %v3673
  %v3763 = vunpack.c.h.b16 %v3673
  %v3764 = vunpack.c.l.b16 %v3674
  %v3765 = vunpack.c.h.b16 %v3674
  %v3766 = vunpack.c.l.b16 %v3675
  %v3767 = vunpack.c.h.b16 %v3675
  %v3768 = vunpack.c.l.b16 %v3676
  %v3769 = vunpack.c.h.b16 %v3676
  %v3770 = vunpack.c.l.b16 %v3677
  %v3771 = vunpack.c.h.b16 %v3677
  %v3772 = vunpack.c.l.b16 %v3678
  %v3773 = vunpack.c.h.b16 %v3678
  %v3774 = vunpack.c.l.b16 %v3679
  %v3775 = vunpack.c.h.b16 %v3679
  %v3776 = vpack.c.b16 %v3716, %v3712
  %v3777 = vpack.c.b16 %v3717, %v3713
  %v3778 = vpack.c.b16 %v3718, %v3714
  %v3779 = vpack.c.b16 %v3719, %v3715
  %v3780 = vpack.c.b16 %v3724, %v3720
  %v3781 = vpack.c.b16 %v3725, %v3721
  %v3782 = vpack.c.b16 %v3726, %v3722
  %v3783 = vpack.c.b16 %v3727, %v3723
  %v3784 = vpack.c.b16 %v3732, %v3728
  %v3785 = vpack.c.b16 %v3733, %v3729
  %v3786 = vpack.c.b16 %v3734, %v3730
  %v3787 = vpack.c.b16 %v3735, %v3731
  %v3788 = vpack.c.b16 %v3740, %v3736
  %v3789 = vpack.c.b16 %v3741, %v3737
  %v3790 = vpack.c.b16 %v3742, %v3738
  %v3791 = vpack.c.b16 %v3743, %v3739
  %v3792 = vpack.c.b16 %v3748, %v3744
  %v3793 = vpack.c.b16 %v3749, %v3745
  %v3794 = vpack.c.b16 %v3750, %v3746
  %v3795 = vpack.c.b16 %v3751, %v3747
  %v3796 = vpack.c.b16 %v3756, %v3752
  %v3797 = vpack.c.b16 %v3757, %v3753
  %v3798 = vpack.c.b16 %v3758, %v3754
  %v3799 = vpack.c.b16 %v3759, %v3755
  %v3800 = vpack.c.b16 %v3764, %v3760
  %v3801 = vpack.c.b16 %v3765, %v3761
  %v3802 = vpack.c.b16 %v3766, %v3762
  %v3803 = vpack.c.b16 %v3767, %v3763
  %v3804 = vpack.c.b16 %v3772, %v3768
  %v3805 = vpack.c.b16 %v3773, %v3769
  %v3806 = vpack.c.b16 %v3774, %v3770
  %v3807 = vpack.c.b16 %v3775, %v3771
  %3840 = vmatprep.subr.bf16.mxu0 %v3777
  %3841 = vmatpush1.bf16.msra.mxu0 %v3776
  %3842 = vmatprep.subr.bf16.mxu0 %v3781
  %3843 = vmatpush1.bf16.msra.mxu0 %v3780
  %3844 = vmatprep.subr.bf16.mxu0 %v3785
  %3845 = vmatpush1.bf16.msra.mxu0 %v3784
  %3846 = vmatprep.subr.bf16.mxu0 %v3789
  %3847 = vmatpush1.bf16.msra.mxu0 %v3788
  %3848 = vmatprep.subr.bf16.mxu0 %v3793
  %3849 = vmatpush1.bf16.msra.mxu0 %v3792
  %3850 = vmatprep.subr.bf16.mxu0 %v3797
  %3851 = vmatpush1.bf16.msra.mxu0 %v3796
  %3852 = vmatprep.subr.bf16.mxu0 %v3801
  %3853 = vmatpush1.bf16.msra.mxu0 %v3800
  %3854 = vmatprep.subr.bf16.mxu0 %v3805
  %3855 = vmatpush1.bf16.msra.mxu0 %v3804
  %3856 = vmatprep.subr.bf16.mxu0 0
  %3857 = vmatpush1.bf16.msra.mxu0 0
  %3858 = vmatprep.subr.bf16.mxu0 0
  %3859 = vmatpush1.bf16.msra.mxu0 0
  %3860 = vmatprep.subr.bf16.mxu0 0
  %3861 = vmatpush1.bf16.msra.mxu0 0
  %3862 = vmatprep.subr.bf16.mxu0 0
  %3863 = vmatpush1.bf16.msra.mxu0 0
  %3864 = vmatprep.subr.bf16.mxu0 0
  %3865 = vmatpush1.bf16.msra.mxu0 0
  %3866 = vmatprep.subr.bf16.mxu0 0
  %3867 = vmatpush1.bf16.msra.mxu0 0
  %3868 = vmatprep.subr.bf16.mxu0 0
  %3869 = vmatpush1.bf16.msra.mxu0 0
  %3870 = vmatprep.subr.bf16.mxu0 0
  %3871 = vmatpush1.bf16.msra.mxu0 0
  %3872 = vmatprep.mubr.bf16.mxu0 0
  %3873 = vmatmul.mubr.bf16.gmra.mrb[0].mxu0 %v3647
  %v3874 = vpop.f32.mrb[0].mxu0
  %v3875 = vadd.f32 0.0, %v3874
  %v3876 = vpop.f32.mrb[0].mxu0
  %v3877 = vadd.f32 0.0, %v3876
  %v3878 = vpop.f32.mrb[0].mxu0
  %v3879 = vadd.f32 0.0, %v3878
  %v3880 = vpop.f32.mrb[0].mxu0
  %v3881 = vadd.f32 0.0, %v3880
  %3882 = vdwg.mxu0
  %3883 = vmatprep.subr.bf16.mxu0 %v3779
  %3884 = vmatpush1.bf16.msra.mxu0 %v3778
  %3885 = vmatprep.subr.bf16.mxu0 %v3783
  %3886 = vmatpush1.bf16.msra.mxu0 %v3782
  %3887 = vmatprep.subr.bf16.mxu0 %v3787
  %3888 = vmatpush1.bf16.msra.mxu0 %v3786
  %3889 = vmatprep.subr.bf16.mxu0 %v3791
  %3890 = vmatpush1.bf16.msra.mxu0 %v3790
  %3891 = vmatprep.subr.bf16.mxu0 %v3795
  %3892 = vmatpush1.bf16.msra.mxu0 %v3794
  %3893 = vmatprep.subr.bf16.mxu0 %v3799
  %3894 = vmatpush1.bf16.msra.mxu0 %v3798
  %3895 = vmatprep.subr.bf16.mxu0 %v3803
  %3896 = vmatpush1.bf16.msra.mxu0 %v3802
  %3897 = vmatprep.subr.bf16.mxu0 %v3807
  %3898 = vmatpush1.bf16.msra.mxu0 %v3806
  %3899 = vmatprep.subr.bf16.mxu0 0
  %3900 = vmatpush1.bf16.msra.mxu0 0
  %3901 = vmatprep.subr.bf16.mxu0 0
  %3902 = vmatpush1.bf16.msra.mxu0 0
  %3903 = vmatprep.subr.bf16.mxu0 0
  %3904 = vmatpush1.bf16.msra.mxu0 0
  %3905 = vmatprep.subr.bf16.mxu0 0
  %3906 = vmatpush1.bf16.msra.mxu0 0
  %3907 = vmatprep.subr.bf16.mxu0 0
  %3908 = vmatpush1.bf16.msra.mxu0 0
  %3909 = vmatprep.subr.bf16.mxu0 0
  %3910 = vmatpush1.bf16.msra.mxu0 0
  %3911 = vmatprep.subr.bf16.mxu0 0
  %3912 = vmatpush1.bf16.msra.mxu0 0
  %3913 = vmatprep.subr.bf16.mxu0 0
  %3914 = vmatpush1.bf16.msra.mxu0 0
  %3915 = vmatprep.mubr.bf16.mxu0 0
  %3916 = vmatmul.mubr.bf16.gmra.mrb[0].mxu0 %v3647
  %v3917 = vpop.f32.mrb[0].mxu0
  %v3918 = vadd.f32 0.0, %v3917
  %v3919 = vpop.f32.mrb[0].mxu0
  %v3920 = vadd.f32 0.0, %v3919
  %v3921 = vpop.f32.mrb[0].mxu0
  %v3922 = vadd.f32 0.0, %v3921
  %v3923 = vpop.f32.mrb[0].mxu0
  %v3924 = vadd.f32 0.0, %v3923
  %3925 = vdwg.mxu0
  %v3926 = vadd.f32 %v3639, %v3875
  %v3927 = vadd.f32 %v3640, %v3877
  %v3928 = vadd.f32 %v3641, %v3918
  %v3929 = vadd.f32 %v3642, %v3920
  %v3930 = vadd.f32 %v3643, %v3879
  %v3931 = vadd.f32 %v3644, %v3881
  %v3932 = vadd.f32 %v3645, %v3922
  %v3933 = vadd.f32 %v3646, %v3924
  %v3934 = vxor.u32 %v3926, 2147483648
  %v3935 = vxor.u32 %v3927, 2147483648
  %v3936 = vxor.u32 %v3928, 2147483648
  %v3937 = vxor.u32 %v3930, 2147483648
  %v3938 = vxor.u32 %v3931, 2147483648
  %v3939 = vxor.u32 %v3932, 2147483648
  %v3940 = vmul.f32 %v3934, 1.442695
  %v3941 = vpow.pop %v3940
  %v3942 = vmul.f32 %v3935, 1.442695
  %v3943 = vpow.pop %v3942
  %v3944 = vmul.f32 %v3936, 1.442695
  %v3945 = vpow.pop %v3944
  %v3946 = vmul.f32 %v3937, 1.442695
  %v3947 = vpow.pop %v3946
  %v3948 = vmul.f32 %v3938, 1.442695
  %v3949 = vpow.pop %v3948
  %v3950 = vmul.f32 %v3939, 1.442695
  %v3951 = vpow.pop %v3950
  %v3952 = vadd.f32 %v3941, 1.0
  %v3953 = vadd.f32 %v3943, 1.0
  %v3954 = vadd.f32 %v3945, 1.0
  %v3955 = vadd.f32 %v3947, 1.0
  %v3956 = vadd.f32 %v3949, 1.0
  %v3957 = vadd.f32 %v3951, 1.0
  %v3958 = vrcp.pop %v3952
  %v3959 = vmul.f32 1.0, %v3958
  %v3960 = vrcp.pop %v3953
  %v3961 = vmul.f32 1.0, %v3960
  %v3962 = vrcp.pop %v3954
  %v3963 = vmul.f32 1.0, %v3962
  %v3964 = vrcp.pop %v3955
  %v3965 = vmul.f32 1.0, %v3964
  %v3966 = vrcp.pop %v3956
  %v3967 = vmul.f32 1.0, %v3966
  %v3968 = vrcp.pop %v3957
  %v3969 = vmul.f32 1.0, %v3968
  %v3970 = vtanh.pop %v3929
  %v3971 = vtanh.pop %v3933
  %v3972 = vmul.f32 %v3961, %v3258
  %v3973 = vmul.f32 %v3967, %v3259
  %v3974 = vmul.f32 %v3959, %v3970
  %v3975 = vmul.f32 %v3965, %v3971
  %v3976 = vadd.f32 %v3972, %v3974
  %v3977 = vadd.f32 %v3973, %v3975
  %v3978 = vtanh.pop %v3976
  %v3979 = vtanh.pop %v3977
  %v3980 = vmul.f32 %v3963, %v3978
  %v3981 = vmul.f32 %v3969, %v3979
  %s3982 = scalar_lea.vmem %s1, 64
  %v3983 = vld [vmem:[%s3982] sm:$0xff]
  %v3984 = vld [vmem:[%s3982 + $0x8] sm:$0xff]
  %v3985 = vld [vmem:[%s3982 + $0x10] sm:$0xff]
  %v3986 = vld [vmem:[%s3982 + $0x18] sm:$0xff]
  %v3987 = vunpack.c.l.bf16 %v3983
  %v3988 = vunpack.c.h.bf16 %v3983
  %v3989 = vunpack.c.l.bf16 %v3984
  %v3990 = vunpack.c.h.bf16 %v3984
  %v3991 = vunpack.c.l.bf16 %v3985
  %v3992 = vunpack.c.h.bf16 %v3985
  %v3993 = vunpack.c.l.bf16 %v3986
  %v3994 = vunpack.c.h.bf16 %v3986
  %v3995 = vpack.c.bf16 %v3611, %v3610
  %v3996 = vld [vmem:[%s3] sm:$0xff]
  %v3997 = vld [vmem:[%s3 + $0x8] sm:$0xff]
  %v3998 = vld [vmem:[%s3 + $0x10] sm:$0xff]
  %v3999 = vld [vmem:[%s3 + $0x18] sm:$0xff]
  %v4000 = vld [vmem:[%s3 + $0x20] sm:$0xff]
  %v4001 = vld [vmem:[%s3 + $0x28] sm:$0xff]
  %v4002 = vld [vmem:[%s3 + $0x30] sm:$0xff]
  %v4003 = vld [vmem:[%s3 + $0x38] sm:$0xff]
  %v4004 = vld [vmem:[%s3 + $0x40] sm:$0xff]
  %v4005 = vld [vmem:[%s3 + $0x48] sm:$0xff]
  %v4006 = vld [vmem:[%s3 + $0x50] sm:$0xff]
  %v4007 = vld [vmem:[%s3 + $0x58] sm:$0xff]
  %v4008 = vld [vmem:[%s3 + $0x60] sm:$0xff]
  %v4009 = vld [vmem:[%s3 + $0x68] sm:$0xff]
  %v4010 = vld [vmem:[%s3 + $0x70] sm:$0xff]
  %v4011 = vld [vmem:[%s3 + $0x78] sm:$0xff]
  %v4012 = vld [vmem:[%s3 + $0x80] sm:$0xff]
  %v4013 = vld [vmem:[%s3 + $0x88] sm:$0xff]
  %v4014 = vld [vmem:[%s3 + $0x90] sm:$0xff]
  %v4015 = vld [vmem:[%s3 + $0x98] sm:$0xff]
  %v4016 = vld [vmem:[%s3 + $0xa0] sm:$0xff]
  %v4017 = vld [vmem:[%s3 + $0xa8] sm:$0xff]
  %v4018 = vld [vmem:[%s3 + $0xb0] sm:$0xff]
  %v4019 = vld [vmem:[%s3 + $0xb8] sm:$0xff]
  %v4020 = vld [vmem:[%s3 + $0xc0] sm:$0xff]
  %v4021 = vld [vmem:[%s3 + $0xc8] sm:$0xff]
  %v4022 = vld [vmem:[%s3 + $0xd0] sm:$0xff]
  %v4023 = vld [vmem:[%s3 + $0xd8] sm:$0xff]
  %v4024 = vld [vmem:[%s3 + $0xe0] sm:$0xff]
  %v4025 = vld [vmem:[%s3 + $0xe8] sm:$0xff]
  %v4026 = vld [vmem:[%s3 + $0xf0] sm:$0xff]
  %v4027 = vld [vmem:[%s3 + $0xf8] sm:$0xff]
  %v4060 = vunpack.c.l.b16 %v3996
  %v4061 = vunpack.c.h.b16 %v3996
  %v4062 = vunpack.c.l.b16 %v3997
  %v4063 = vunpack.c.h.b16 %v3997
  %v4064 = vunpack.c.l.b16 %v3998
  %v4065 = vunpack.c.h.b16 %v3998
  %v4066 = vunpack.c.l.b16 %v3999
  %v4067 = vunpack.c.h.b16 %v3999
  %v4068 = vunpack.c.l.b16 %v4000
  %v4069 = vunpack.c.h.b16 %v4000
  %v4070 = vunpack.c.l.b16 %v4001
  %v4071 = vunpack.c.h.b16 %v4001
  %v4072 = vunpack.c.l.b16 %v4002
  %v4073 = vunpack.c.h.b16 %v4002
  %v4074 = vunpack.c.l.b16 %v4003
  %v4075 = vunpack.c.h.b16 %v4003
  %v4076 = vunpack.c.l.b16 %v4004
  %v4077 = vunpack.c.h.b16 %v4004
  %v4078 = vunpack.c.l.b16 %v4005
  %v4079 = vunpack.c.h.b16 %v4005
  %v4080 = vunpack.c.l.b16 %v4006
  %v4081 = vunpack.c.h.b16 %v4006
  %v4082 = vunpack.c.l.b16 %v4007
  %v4083 = vunpack.c.h.b16 %v4007
  %v4084 = vunpack.c.l.b16 %v4008
  %v4085 = vunpack.c.h.b16 %v4008
  %v4086 = vunpack.c.l.b16 %v4009
  %v4087 = vunpack.c.h.b16 %v4009
  %v4088 = vunpack.c.l.b16 %v4010
  %v4089 = vunpack.c.h.b16 %v4010
  %v4090 = vunpack.c.l.b16 %v4011
  %v4091 = vunpack.c.h.b16 %v4011
  %v4092 = vunpack.c.l.b16 %v4012
  %v4093 = vunpack.c.h.b16 %v4012
  %v4094 = vunpack.c.l.b16 %v4013
  %v4095 = vunpack.c.h.b16 %v4013
  %v4096 = vunpack.c.l.b16 %v4014
  %v4097 = vunpack.c.h.b16 %v4014
  %v4098 = vunpack.c.l.b16 %v4015
  %v4099 = vunpack.c.h.b16 %v4015
  %v4100 = vunpack.c.l.b16 %v4016
  %v4101 = vunpack.c.h.b16 %v4016
  %v4102 = vunpack.c.l.b16 %v4017
  %v4103 = vunpack.c.h.b16 %v4017
  %v4104 = vunpack.c.l.b16 %v4018
  %v4105 = vunpack.c.h.b16 %v4018
  %v4106 = vunpack.c.l.b16 %v4019
  %v4107 = vunpack.c.h.b16 %v4019
  %v4108 = vunpack.c.l.b16 %v4020
  %v4109 = vunpack.c.h.b16 %v4020
  %v4110 = vunpack.c.l.b16 %v4021
  %v4111 = vunpack.c.h.b16 %v4021
  %v4112 = vunpack.c.l.b16 %v4022
  %v4113 = vunpack.c.h.b16 %v4022
  %v4114 = vunpack.c.l.b16 %v4023
  %v4115 = vunpack.c.h.b16 %v4023
  %v4116 = vunpack.c.l.b16 %v4024
  %v4117 = vunpack.c.h.b16 %v4024
  %v4118 = vunpack.c.l.b16 %v4025
  %v4119 = vunpack.c.h.b16 %v4025
  %v4120 = vunpack.c.l.b16 %v4026
  %v4121 = vunpack.c.h.b16 %v4026
  %v4122 = vunpack.c.l.b16 %v4027
  %v4123 = vunpack.c.h.b16 %v4027
  %v4124 = vpack.c.b16 %v4064, %v4060
  %v4125 = vpack.c.b16 %v4065, %v4061
  %v4126 = vpack.c.b16 %v4066, %v4062
  %v4127 = vpack.c.b16 %v4067, %v4063
  %v4128 = vpack.c.b16 %v4072, %v4068
  %v4129 = vpack.c.b16 %v4073, %v4069
  %v4130 = vpack.c.b16 %v4074, %v4070
  %v4131 = vpack.c.b16 %v4075, %v4071
  %v4132 = vpack.c.b16 %v4080, %v4076
  %v4133 = vpack.c.b16 %v4081, %v4077
  %v4134 = vpack.c.b16 %v4082, %v4078
  %v4135 = vpack.c.b16 %v4083, %v4079
  %v4136 = vpack.c.b16 %v4088, %v4084
  %v4137 = vpack.c.b16 %v4089, %v4085
  %v4138 = vpack.c.b16 %v4090, %v4086
  %v4139 = vpack.c.b16 %v4091, %v4087
  %v4140 = vpack.c.b16 %v4096, %v4092
  %v4141 = vpack.c.b16 %v4097, %v4093
  %v4142 = vpack.c.b16 %v4098, %v4094
  %v4143 = vpack.c.b16 %v4099, %v4095
  %v4144 = vpack.c.b16 %v4104, %v4100
  %v4145 = vpack.c.b16 %v4105, %v4101
  %v4146 = vpack.c.b16 %v4106, %v4102
  %v4147 = vpack.c.b16 %v4107, %v4103
  %v4148 = vpack.c.b16 %v4112, %v4108
  %v4149 = vpack.c.b16 %v4113, %v4109
  %v4150 = vpack.c.b16 %v4114, %v4110
  %v4151 = vpack.c.b16 %v4115, %v4111
  %v4152 = vpack.c.b16 %v4120, %v4116
  %v4153 = vpack.c.b16 %v4121, %v4117
  %v4154 = vpack.c.b16 %v4122, %v4118
  %v4155 = vpack.c.b16 %v4123, %v4119
  %4188 = vmatprep.subr.bf16.mxu0 %v4125
  %4189 = vmatpush1.bf16.msra.mxu0 %v4124
  %4190 = vmatprep.subr.bf16.mxu0 %v4129
  %4191 = vmatpush1.bf16.msra.mxu0 %v4128
  %4192 = vmatprep.subr.bf16.mxu0 %v4133
  %4193 = vmatpush1.bf16.msra.mxu0 %v4132
  %4194 = vmatprep.subr.bf16.mxu0 %v4137
  %4195 = vmatpush1.bf16.msra.mxu0 %v4136
  %4196 = vmatprep.subr.bf16.mxu0 %v4141
  %4197 = vmatpush1.bf16.msra.mxu0 %v4140
  %4198 = vmatprep.subr.bf16.mxu0 %v4145
  %4199 = vmatpush1.bf16.msra.mxu0 %v4144
  %4200 = vmatprep.subr.bf16.mxu0 %v4149
  %4201 = vmatpush1.bf16.msra.mxu0 %v4148
  %4202 = vmatprep.subr.bf16.mxu0 %v4153
  %4203 = vmatpush1.bf16.msra.mxu0 %v4152
  %4204 = vmatprep.subr.bf16.mxu0 0
  %4205 = vmatpush1.bf16.msra.mxu0 0
  %4206 = vmatprep.subr.bf16.mxu0 0
  %4207 = vmatpush1.bf16.msra.mxu0 0
  %4208 = vmatprep.subr.bf16.mxu0 0
  %4209 = vmatpush1.bf16.msra.mxu0 0
  %4210 = vmatprep.subr.bf16.mxu0 0
  %4211 = vmatpush1.bf16.msra.mxu0 0
  %4212 = vmatprep.subr.bf16.mxu0 0
  %4213 = vmatpush1.bf16.msra.mxu0 0
  %4214 = vmatprep.subr.bf16.mxu0 0
  %4215 = vmatpush1.bf16.msra.mxu0 0
  %4216 = vmatprep.subr.bf16.mxu0 0
  %4217 = vmatpush1.bf16.msra.mxu0 0
  %4218 = vmatprep.subr.bf16.mxu0 0
  %4219 = vmatpush1.bf16.msra.mxu0 0
  %4220 = vmatprep.mubr.bf16.mxu0 0
  %4221 = vmatmul.mubr.bf16.gmra.mrb[0].mxu0 %v3995
  %v4222 = vpop.f32.mrb[0].mxu0
  %v4223 = vadd.f32 0.0, %v4222
  %v4224 = vpop.f32.mrb[0].mxu0
  %v4225 = vadd.f32 0.0, %v4224
  %v4226 = vpop.f32.mrb[0].mxu0
  %v4227 = vadd.f32 0.0, %v4226
  %v4228 = vpop.f32.mrb[0].mxu0
  %v4229 = vadd.f32 0.0, %v4228
  %4230 = vdwg.mxu0
  %4231 = vmatprep.subr.bf16.mxu0 %v4127
  %4232 = vmatpush1.bf16.msra.mxu0 %v4126
  %4233 = vmatprep.subr.bf16.mxu0 %v4131
  %4234 = vmatpush1.bf16.msra.mxu0 %v4130
  %4235 = vmatprep.subr.bf16.mxu0 %v4135
  %4236 = vmatpush1.bf16.msra.mxu0 %v4134
  %4237 = vmatprep.subr.bf16.mxu0 %v4139
  %4238 = vmatpush1.bf16.msra.mxu0 %v4138
  %4239 = vmatprep.subr.bf16.mxu0 %v4143
  %4240 = vmatpush1.bf16.msra.mxu0 %v4142
  %4241 = vmatprep.subr.bf16.mxu0 %v4147
  %4242 = vmatpush1.bf16.msra.mxu0 %v4146
  %4243 = vmatprep.subr.bf16.mxu0 %v4151
  %4244 = vmatpush1.bf16.msra.mxu0 %v4150
  %4245 = vmatprep.subr.bf16.mxu0 %v4155
  %4246 = vmatpush1.bf16.msra.mxu0 %v4154
  %4247 = vmatprep.subr.bf16.mxu0 0
  %4248 = vmatpush1.bf16.msra.mxu0 0
  %4249 = vmatprep.subr.bf16.mxu0 0
  %4250 = vmatpush1.bf16.msra.mxu0 0
  %4251 = vmatprep.subr.bf16.mxu0 0
  %4252 = vmatpush1.bf16.msra.mxu0 0
  %4253 = vmatprep.subr.bf16.mxu0 0
  %4254 = vmatpush1.bf16.msra.mxu0 0
  %4255 = vmatprep.subr.bf16.mxu0 0
  %4256 = vmatpush1.bf16.msra.mxu0 0
  %4257 = vmatprep.subr.bf16.mxu0 0
  %4258 = vmatpush1.bf16.msra.mxu0 0
  %4259 = vmatprep.subr.bf16.mxu0 0
  %4260 = vmatpush1.bf16.msra.mxu0 0
  %4261 = vmatprep.subr.bf16.mxu0 0
  %4262 = vmatpush1.bf16.msra.mxu0 0
  %4263 = vmatprep.mubr.bf16.mxu0 0
  %4264 = vmatmul.mubr.bf16.gmra.mrb[0].mxu0 %v3995
  %v4265 = vpop.f32.mrb[0].mxu0
  %v4266 = vadd.f32 0.0, %v4265
  %v4267 = vpop.f32.mrb[0].mxu0
  %v4268 = vadd.f32 0.0, %v4267
  %v4269 = vpop.f32.mrb[0].mxu0
  %v4270 = vadd.f32 0.0, %v4269
  %v4271 = vpop.f32.mrb[0].mxu0
  %v4272 = vadd.f32 0.0, %v4271
  %4273 = vdwg.mxu0
  %v4274 = vadd.f32 %v3987, %v4223
  %v4275 = vadd.f32 %v3988, %v4225
  %v4276 = vadd.f32 %v3989, %v4266
  %v4277 = vadd.f32 %v3990, %v4268
  %v4278 = vadd.f32 %v3991, %v4227
  %v4279 = vadd.f32 %v3992, %v4229
  %v4280 = vadd.f32 %v3993, %v4270
  %v4281 = vadd.f32 %v3994, %v4272
  %v4282 = vxor.u32 %v4274, 2147483648
  %v4283 = vxor.u32 %v4275, 2147483648
  %v4284 = vxor.u32 %v4276, 2147483648
  %v4285 = vxor.u32 %v4278, 2147483648
  %v4286 = vxor.u32 %v4279, 2147483648
  %v4287 = vxor.u32 %v4280, 2147483648
  %v4288 = vmul.f32 %v4282, 1.442695
  %v4289 = vpow.pop %v4288
  %v4290 = vmul.f32 %v4283, 1.442695
  %v4291 = vpow.pop %v4290
  %v4292 = vmul.f32 %v4284, 1.442695
  %v4293 = vpow.pop %v4292
  %v4294 = vmul.f32 %v4285, 1.442695
  %v4295 = vpow.pop %v4294
  %v4296 = vmul.f32 %v4286, 1.442695
  %v4297 = vpow.pop %v4296
  %v4298 = vmul.f32 %v4287, 1.442695
  %v4299 = vpow.pop %v4298
  %v4300 = vadd.f32 %v4289, 1.0
  %v4301 = vadd.f32 %v4291, 1.0
  %v4302 = vadd.f32 %v4293, 1.0
  %v4303 = vadd.f32 %v4295, 1.0
  %v4304 = vadd.f32 %v4297, 1.0
  %v4305 = vadd.f32 %v4299, 1.0
  %v4306 = vrcp.pop %v4300
  %v4307 = vmul.f32 1.0, %v4306
  %v4308 = vrcp.pop %v4301
  %v4309 = vmul.f32 1.0, %v4308
  %v4310 = vrcp.pop %v4302
  %v4311 = vmul.f32 1.0, %v4310
  %v4312 = vrcp.pop %v4303
  %v4313 = vmul.f32 1.0, %v4312
  %v4314 = vrcp.pop %v4304
  %v4315 = vmul.f32 1.0, %v4314
  %v4316 = vrcp.pop %v4305
  %v4317 = vmul.f32 1.0, %v4316
  %v4318 = vtanh.pop %v4277
  %v4319 = vtanh.pop %v4281
  %v4320 = vmul.f32 %v4309, %v3606
  %v4321 = vmul.f32 %v4315, %v3607
  %v4322 = vmul.f32 %v4307, %v4318
  %v4323 = vmul.f32 %v4313, %v4319
  %v4324 = vadd.f32 %v4320, %v4322
  %v4325 = vadd.f32 %v4321, %v4323
  %v4326 = vtanh.pop %v4324
  %v4327 = vtanh.pop %v4325
  %v4328 = vmul.f32 %v4311, %v4326
  %v4329 = vmul.f32 %v4317, %v4327
  %4330 = vst [vmem:[%s2175] sm:$0xff] %v3980
  %4331 = vst [vmem:[%s2175 + $0x10] sm:$0xff] %v3981
  %4332 = vst [vmem:[%s2172 + $0x8] sm:$0xff] %v4328
  %4333 = vst [vmem:[%s2172 + $0x18] sm:$0xff] %v4329
  %v4334 = vmul.f32 %v3980, %v730
  %v4335 = vmul.f32 %v3981, %v730
  %4336 = vadd.xlane.f32.xlu0 %v4334
  %v4337 = vpop.xlane.xlu0 %4336
  %4338 = vadd.xlane.f32.xlu0 %v4335
  %v4339 = vpop.xlane.xlu0 %4338
  %s4340 = scalar_lea.vmem [#allocation2], 80
  %4341 = vst.msk [vmem:[%s4340] sm:$0xff] %vm738, %v4337
  %4342 = vst.msk [vmem:[%s4340 + $0x8] sm:$0xff] %vm738, %v4339
  %v4343 = vmul.f32 %v4328, %v745
  %v4344 = vmul.f32 %v4329, %v745
  %4345 = vadd.xlane.f32.xlu0 %v4343
  %v4346 = vpop.xlane.xlu0 %4345
  %4347 = vadd.xlane.f32.xlu0 %v4344
  %v4348 = vpop.xlane.xlu0 %4347
  %s4349 = scalar_lea.vmem [#allocation3], 32
  %4350 = vst.msk [vmem:[%s4349] sm:$0xff] %vm738, %v4346
  %4351 = vst.msk [vmem:[%s4349 + $0x8] sm:$0xff] %vm738, %v4348
  %s4352 = scalar_lea.vmem %s0, 192
  %v4353 = vld [vmem:[%s4352] sm:$0xff]
  %v4354 = vld [vmem:[%s4352 + $0x8] sm:$0xff]
  %v4355 = vld [vmem:[%s4352 + $0x10] sm:$0xff]
  %v4356 = vld [vmem:[%s4352 + $0x18] sm:$0xff]
  %v4357 = vunpack.c.l.bf16 %v4353
  %v4358 = vunpack.c.h.bf16 %v4353
  %v4359 = vunpack.c.l.bf16 %v4354
  %v4360 = vunpack.c.h.bf16 %v4354
  %v4361 = vunpack.c.l.bf16 %v4355
  %v4362 = vunpack.c.h.bf16 %v4355
  %v4363 = vunpack.c.l.bf16 %v4356
  %v4364 = vunpack.c.h.bf16 %v4356
  %v4365 = vpack.c.bf16 %v3981, %v3980
  %v4366 = vld [vmem:[%s2] sm:$0xff]
  %v4367 = vld [vmem:[%s2 + $0x8] sm:$0xff]
  %v4368 = vld [vmem:[%s2 + $0x10] sm:$0xff]
  %v4369 = vld [vmem:[%s2 + $0x18] sm:$0xff]
  %v4370 = vld [vmem:[%s2 + $0x20] sm:$0xff]
  %v4371 = vld [vmem:[%s2 + $0x28] sm:$0xff]
  %v4372 = vld [vmem:[%s2 + $0x30] sm:$0xff]
  %v4373 = vld [vmem:[%s2 + $0x38] sm:$0xff]
  %v4374 = vld [vmem:[%s2 + $0x40] sm:$0xff]
  %v4375 = vld [vmem:[%s2 + $0x48] sm:$0xff]
  %v4376 = vld [vmem:[%s2 + $0x50] sm:$0xff]
  %v4377 = vld [vmem:[%s2 + $0x58] sm:$0xff]
  %v4378 = vld [vmem:[%s2 + $0x60] sm:$0xff]
  %v4379 = vld [vmem:[%s2 + $0x68] sm:$0xff]
  %v4380 = vld [vmem:[%s2 + $0x70] sm:$0xff]
  %v4381 = vld [vmem:[%s2 + $0x78] sm:$0xff]
  %v4382 = vld [vmem:[%s2 + $0x80] sm:$0xff]
  %v4383 = vld [vmem:[%s2 + $0x88] sm:$0xff]
  %v4384 = vld [vmem:[%s2 + $0x90] sm:$0xff]
  %v4385 = vld [vmem:[%s2 + $0x98] sm:$0xff]
  %v4386 = vld [vmem:[%s2 + $0xa0] sm:$0xff]
  %v4387 = vld [vmem:[%s2 + $0xa8] sm:$0xff]
  %v4388 = vld [vmem:[%s2 + $0xb0] sm:$0xff]
  %v4389 = vld [vmem:[%s2 + $0xb8] sm:$0xff]
  %v4390 = vld [vmem:[%s2 + $0xc0] sm:$0xff]
  %v4391 = vld [vmem:[%s2 + $0xc8] sm:$0xff]
  %v4392 = vld [vmem:[%s2 + $0xd0] sm:$0xff]
  %v4393 = vld [vmem:[%s2 + $0xd8] sm:$0xff]
  %v4394 = vld [vmem:[%s2 + $0xe0] sm:$0xff]
  %v4395 = vld [vmem:[%s2 + $0xe8] sm:$0xff]
  %v4396 = vld [vmem:[%s2 + $0xf0] sm:$0xff]
  %v4397 = vld [vmem:[%s2 + $0xf8] sm:$0xff]
  %v4430 = vunpack.c.l.b16 %v4366
  %v4431 = vunpack.c.h.b16 %v4366
  %v4432 = vunpack.c.l.b16 %v4367
  %v4433 = vunpack.c.h.b16 %v4367
  %v4434 = vunpack.c.l.b16 %v4368
  %v4435 = vunpack.c.h.b16 %v4368
  %v4436 = vunpack.c.l.b16 %v4369
  %v4437 = vunpack.c.h.b16 %v4369
  %v4438 = vunpack.c.l.b16 %v4370
  %v4439 = vunpack.c.h.b16 %v4370
  %v4440 = vunpack.c.l.b16 %v4371
  %v4441 = vunpack.c.h.b16 %v4371
  %v4442 = vunpack.c.l.b16 %v4372
  %v4443 = vunpack.c.h.b16 %v4372
  %v4444 = vunpack.c.l.b16 %v4373
  %v4445 = vunpack.c.h.b16 %v4373
  %v4446 = vunpack.c.l.b16 %v4374
  %v4447 = vunpack.c.h.b16 %v4374
  %v4448 = vunpack.c.l.b16 %v4375
  %v4449 = vunpack.c.h.b16 %v4375
  %v4450 = vunpack.c.l.b16 %v4376
  %v4451 = vunpack.c.h.b16 %v4376
  %v4452 = vunpack.c.l.b16 %v4377
  %v4453 = vunpack.c.h.b16 %v4377
  %v4454 = vunpack.c.l.b16 %v4378
  %v4455 = vunpack.c.h.b16 %v4378
  %v4456 = vunpack.c.l.b16 %v4379
  %v4457 = vunpack.c.h.b16 %v4379
  %v4458 = vunpack.c.l.b16 %v4380
  %v4459 = vunpack.c.h.b16 %v4380
  %v4460 = vunpack.c.l.b16 %v4381
  %v4461 = vunpack.c.h.b16 %v4381
  %v4462 = vunpack.c.l.b16 %v4382
  %v4463 = vunpack.c.h.b16 %v4382
  %v4464 = vunpack.c.l.b16 %v4383
  %v4465 = vunpack.c.h.b16 %v4383
  %v4466 = vunpack.c.l.b16 %v4384
  %v4467 = vunpack.c.h.b16 %v4384
  %v4468 = vunpack.c.l.b16 %v4385
  %v4469 = vunpack.c.h.b16 %v4385
  %v4470 = vunpack.c.l.b16 %v4386
  %v4471 = vunpack.c.h.b16 %v4386
  %v4472 = vunpack.c.l.b16 %v4387
  %v4473 = vunpack.c.h.b16 %v4387
  %v4474 = vunpack.c.l.b16 %v4388
  %v4475 = vunpack.c.h.b16 %v4388
  %v4476 = vunpack.c.l.b16 %v4389
  %v4477 = vunpack.c.h.b16 %v4389
  %v4478 = vunpack.c.l.b16 %v4390
  %v4479 = vunpack.c.h.b16 %v4390
  %v4480 = vunpack.c.l.b16 %v4391
  %v4481 = vunpack.c.h.b16 %v4391
  %v4482 = vunpack.c.l.b16 %v4392
  %v4483 = vunpack.c.h.b16 %v4392
  %v4484 = vunpack.c.l.b16 %v4393
  %v4485 = vunpack.c.h.b16 %v4393
  %v4486 = vunpack.c.l.b16 %v4394
  %v4487 = vunpack.c.h.b16 %v4394
  %v4488 = vunpack.c.l.b16 %v4395
  %v4489 = vunpack.c.h.b16 %v4395
  %v4490 = vunpack.c.l.b16 %v4396
  %v4491 = vunpack.c.h.b16 %v4396
  %v4492 = vunpack.c.l.b16 %v4397
  %v4493 = vunpack.c.h.b16 %v4397
  %v4494 = vpack.c.b16 %v4434, %v4430
  %v4495 = vpack.c.b16 %v4435, %v4431
  %v4496 = vpack.c.b16 %v4436, %v4432
  %v4497 = vpack.c.b16 %v4437, %v4433
  %v4498 = vpack.c.b16 %v4442, %v4438
  %v4499 = vpack.c.b16 %v4443, %v4439
  %v4500 = vpack.c.b16 %v4444, %v4440
  %v4501 = vpack.c.b16 %v4445, %v4441
  %v4502 = vpack.c.b16 %v4450, %v4446
  %v4503 = vpack.c.b16 %v4451, %v4447
  %v4504 = vpack.c.b16 %v4452, %v4448
  %v4505 = vpack.c.b16 %v4453, %v4449
  %v4506 = vpack.c.b16 %v4458, %v4454
  %v4507 = vpack.c.b16 %v4459, %v4455
  %v4508 = vpack.c.b16 %v4460, %v4456
  %v4509 = vpack.c.b16 %v4461, %v4457
  %v4510 = vpack.c.b16 %v4466, %v4462
  %v4511 = vpack.c.b16 %v4467, %v4463
  %v4512 = vpack.c.b16 %v4468, %v4464
  %v4513 = vpack.c.b16 %v4469, %v4465
  %v4514 = vpack.c.b16 %v4474, %v4470
  %v4515 = vpack.c.b16 %v4475, %v4471
  %v4516 = vpack.c.b16 %v4476, %v4472
  %v4517 = vpack.c.b16 %v4477, %v4473
  %v4518 = vpack.c.b16 %v4482, %v4478
  %v4519 = vpack.c.b16 %v4483, %v4479
  %v4520 = vpack.c.b16 %v4484, %v4480
  %v4521 = vpack.c.b16 %v4485, %v4481
  %v4522 = vpack.c.b16 %v4490, %v4486
  %v4523 = vpack.c.b16 %v4491, %v4487
  %v4524 = vpack.c.b16 %v4492, %v4488
  %v4525 = vpack.c.b16 %v4493, %v4489
  %4558 = vmatprep.subr.bf16.mxu0 %v4495
  %4559 = vmatpush1.bf16.msra.mxu0 %v4494
  %4560 = vmatprep.subr.bf16.mxu0 %v4499
  %4561 = vmatpush1.bf16.msra.mxu0 %v4498
  %4562 = vmatprep.subr.bf16.mxu0 %v4503
  %4563 = vmatpush1.bf16.msra.mxu0 %v4502
  %4564 = vmatprep.subr.bf16.mxu0 %v4507
  %4565 = vmatpush1.bf16.msra.mxu0 %v4506
  %4566 = vmatprep.subr.bf16.mxu0 %v4511
  %4567 = vmatpush1.bf16.msra.mxu0 %v4510
  %4568 = vmatprep.subr.bf16.mxu0 %v4515
  %4569 = vmatpush1.bf16.msra.mxu0 %v4514
  %4570 = vmatprep.subr.bf16.mxu0 %v4519
  %4571 = vmatpush1.bf16.msra.mxu0 %v4518
  %4572 = vmatprep.subr.bf16.mxu0 %v4523
  %4573 = vmatpush1.bf16.msra.mxu0 %v4522
  %4574 = vmatprep.subr.bf16.mxu0 0
  %4575 = vmatpush1.bf16.msra.mxu0 0
  %4576 = vmatprep.subr.bf16.mxu0 0
  %4577 = vmatpush1.bf16.msra.mxu0 0
  %4578 = vmatprep.subr.bf16.mxu0 0
  %4579 = vmatpush1.bf16.msra.mxu0 0
  %4580 = vmatprep.subr.bf16.mxu0 0
  %4581 = vmatpush1.bf16.msra.mxu0 0
  %4582 = vmatprep.subr.bf16.mxu0 0
  %4583 = vmatpush1.bf16.msra.mxu0 0
  %4584 = vmatprep.subr.bf16.mxu0 0
  %4585 = vmatpush1.bf16.msra.mxu0 0
  %4586 = vmatprep.subr.bf16.mxu0 0
  %4587 = vmatpush1.bf16.msra.mxu0 0
  %4588 = vmatprep.subr.bf16.mxu0 0
  %4589 = vmatpush1.bf16.msra.mxu0 0
  %4590 = vmatprep.mubr.bf16.mxu0 0
  %4591 = vmatmul.mubr.bf16.gmra.mrb[0].mxu0 %v4365
  %v4592 = vpop.f32.mrb[0].mxu0
  %v4593 = vadd.f32 0.0, %v4592
  %v4594 = vpop.f32.mrb[0].mxu0
  %v4595 = vadd.f32 0.0, %v4594
  %v4596 = vpop.f32.mrb[0].mxu0
  %v4597 = vadd.f32 0.0, %v4596
  %v4598 = vpop.f32.mrb[0].mxu0
  %v4599 = vadd.f32 0.0, %v4598
  %4600 = vdwg.mxu0
  %4601 = vmatprep.subr.bf16.mxu0 %v4497
  %4602 = vmatpush1.bf16.msra.mxu0 %v4496
  %4603 = vmatprep.subr.bf16.mxu0 %v4501
  %4604 = vmatpush1.bf16.msra.mxu0 %v4500
  %4605 = vmatprep.subr.bf16.mxu0 %v4505
  %4606 = vmatpush1.bf16.msra.mxu0 %v4504
  %4607 = vmatprep.subr.bf16.mxu0 %v4509
  %4608 = vmatpush1.bf16.msra.mxu0 %v4508
  %4609 = vmatprep.subr.bf16.mxu0 %v4513
  %4610 = vmatpush1.bf16.msra.mxu0 %v4512
  %4611 = vmatprep.subr.bf16.mxu0 %v4517
  %4612 = vmatpush1.bf16.msra.mxu0 %v4516
  %4613 = vmatprep.subr.bf16.mxu0 %v4521
  %4614 = vmatpush1.bf16.msra.mxu0 %v4520
  %4615 = vmatprep.subr.bf16.mxu0 %v4525
  %4616 = vmatpush1.bf16.msra.mxu0 %v4524
  %4617 = vmatprep.subr.bf16.mxu0 0
  %4618 = vmatpush1.bf16.msra.mxu0 0
  %4619 = vmatprep.subr.bf16.mxu0 0
  %4620 = vmatpush1.bf16.msra.mxu0 0
  %4621 = vmatprep.subr.bf16.mxu0 0
  %4622 = vmatpush1.bf16.msra.mxu0 0
  %4623 = vmatprep.subr.bf16.mxu0 0
  %4624 = vmatpush1.bf16.msra.mxu0 0
  %4625 = vmatprep.subr.bf16.mxu0 0
  %4626 = vmatpush1.bf16.msra.mxu0 0
  %4627 = vmatprep.subr.bf16.mxu0 0
  %4628 = vmatpush1.bf16.msra.mxu0 0
  %4629 = vmatprep.subr.bf16.mxu0 0
  %4630 = vmatpush1.bf16.msra.mxu0 0
  %4631 = vmatprep.subr.bf16.mxu0 0
  %4632 = vmatpush1.bf16.msra.mxu0 0
  %4633 = vmatprep.mubr.bf16.mxu0 0
  %4634 = vmatmul.mubr.bf16.gmra.mrb[0].mxu0 %v4365
  %v4635 = vpop.f32.mrb[0].mxu0
  %v4636 = vadd.f32 0.0, %v4635
  %v4637 = vpop.f32.mrb[0].mxu0
  %v4638 = vadd.f32 0.0, %v4637
  %v4639 = vpop.f32.mrb[0].mxu0
  %v4640 = vadd.f32 0.0, %v4639
  %v4641 = vpop.f32.mrb[0].mxu0
  %v4642 = vadd.f32 0.0, %v4641
  %4643 = vdwg.mxu0
  %v4644 = vadd.f32 %v4357, %v4593
  %v4645 = vadd.f32 %v4358, %v4595
  %v4646 = vadd.f32 %v4359, %v4636
  %v4647 = vadd.f32 %v4360, %v4638
  %v4648 = vadd.f32 %v4361, %v4597
  %v4649 = vadd.f32 %v4362, %v4599
  %v4650 = vadd.f32 %v4363, %v4640
  %v4651 = vadd.f32 %v4364, %v4642
  %v4652 = vxor.u32 %v4644, 2147483648
  %v4653 = vxor.u32 %v4645, 2147483648
  %v4654 = vxor.u32 %v4646, 2147483648
  %v4655 = vxor.u32 %v4648, 2147483648
  %v4656 = vxor.u32 %v4649, 2147483648
  %v4657 = vxor.u32 %v4650, 2147483648
  %v4658 = vmul.f32 %v4652, 1.442695
  %v4659 = vpow.pop %v4658
  %v4660 = vmul.f32 %v4653, 1.442695
  %v4661 = vpow.pop %v4660
  %v4662 = vmul.f32 %v4654, 1.442695
  %v4663 = vpow.pop %v4662
  %v4664 = vmul.f32 %v4655, 1.442695
  %v4665 = vpow.pop %v4664
  %v4666 = vmul.f32 %v4656, 1.442695
  %v4667 = vpow.pop %v4666
  %v4668 = vmul.f32 %v4657, 1.442695
  %v4669 = vpow.pop %v4668
  %v4670 = vadd.f32 %v4659, 1.0
  %v4671 = vadd.f32 %v4661, 1.0
  %v4672 = vadd.f32 %v4663, 1.0
  %v4673 = vadd.f32 %v4665, 1.0
  %v4674 = vadd.f32 %v4667, 1.0
  %v4675 = vadd.f32 %v4669, 1.0
  %v4676 = vrcp.pop %v4670
  %v4677 = vmul.f32 1.0, %v4676
  %v4678 = vrcp.pop %v4671
  %v4679 = vmul.f32 1.0, %v4678
  %v4680 = vrcp.pop %v4672
  %v4681 = vmul.f32 1.0, %v4680
  %v4682 = vrcp.pop %v4673
  %v4683 = vmul.f32 1.0, %v4682
  %v4684 = vrcp.pop %v4674
  %v4685 = vmul.f32 1.0, %v4684
  %v4686 = vrcp.pop %v4675
  %v4687 = vmul.f32 1.0, %v4686
  %v4688 = vtanh.pop %v4647
  %v4689 = vtanh.pop %v4651
  %v4690 = vmul.f32 %v4679, %v3976
  %v4691 = vmul.f32 %v4685, %v3977
  %v4692 = vmul.f32 %v4677, %v4688
  %v4693 = vmul.f32 %v4683, %v4689
  %v4694 = vadd.f32 %v4690, %v4692
  %v4695 = vadd.f32 %v4691, %v4693
  %v4696 = vtanh.pop %v4694
  %v4697 = vtanh.pop %v4695
  %v4698 = vmul.f32 %v4681, %v4696
  %v4699 = vmul.f32 %v4687, %v4697
  %s4700 = scalar_lea.vmem %s1, 32
  %v4701 = vld [vmem:[%s4700] sm:$0xff]
  %v4702 = vld [vmem:[%s4700 + $0x8] sm:$0xff]
  %v4703 = vld [vmem:[%s4700 + $0x10] sm:$0xff]
  %v4704 = vld [vmem:[%s4700 + $0x18] sm:$0xff]
  %v4705 = vunpack.c.l.bf16 %v4701
  %v4706 = vunpack.c.h.bf16 %v4701
  %v4707 = vunpack.c.l.bf16 %v4702
  %v4708 = vunpack.c.h.bf16 %v4702
  %v4709 = vunpack.c.l.bf16 %v4703
  %v4710 = vunpack.c.h.bf16 %v4703
  %v4711 = vunpack.c.l.bf16 %v4704
  %v4712 = vunpack.c.h.bf16 %v4704
  %v4713 = vpack.c.bf16 %v4329, %v4328
  %v4714 = vld [vmem:[%s3] sm:$0xff]
  %v4715 = vld [vmem:[%s3 + $0x8] sm:$0xff]
  %v4716 = vld [vmem:[%s3 + $0x10] sm:$0xff]
  %v4717 = vld [vmem:[%s3 + $0x18] sm:$0xff]
  %v4718 = vld [vmem:[%s3 + $0x20] sm:$0xff]
  %v4719 = vld [vmem:[%s3 + $0x28] sm:$0xff]
  %v4720 = vld [vmem:[%s3 + $0x30] sm:$0xff]
  %v4721 = vld [vmem:[%s3 + $0x38] sm:$0xff]
  %v4722 = vld [vmem:[%s3 + $0x40] sm:$0xff]
  %v4723 = vld [vmem:[%s3 + $0x48] sm:$0xff]
  %v4724 = vld [vmem:[%s3 + $0x50] sm:$0xff]
  %v4725 = vld [vmem:[%s3 + $0x58] sm:$0xff]
  %v4726 = vld [vmem:[%s3 + $0x60] sm:$0xff]
  %v4727 = vld [vmem:[%s3 + $0x68] sm:$0xff]
  %v4728 = vld [vmem:[%s3 + $0x70] sm:$0xff]
  %v4729 = vld [vmem:[%s3 + $0x78] sm:$0xff]
  %v4730 = vld [vmem:[%s3 + $0x80] sm:$0xff]
  %v4731 = vld [vmem:[%s3 + $0x88] sm:$0xff]
  %v4732 = vld [vmem:[%s3 + $0x90] sm:$0xff]
  %v4733 = vld [vmem:[%s3 + $0x98] sm:$0xff]
  %v4734 = vld [vmem:[%s3 + $0xa0] sm:$0xff]
  %v4735 = vld [vmem:[%s3 + $0xa8] sm:$0xff]
  %v4736 = vld [vmem:[%s3 + $0xb0] sm:$0xff]
  %v4737 = vld [vmem:[%s3 + $0xb8] sm:$0xff]
  %v4738 = vld [vmem:[%s3 + $0xc0] sm:$0xff]
  %v4739 = vld [vmem:[%s3 + $0xc8] sm:$0xff]
  %v4740 = vld [vmem:[%s3 + $0xd0] sm:$0xff]
  %v4741 = vld [vmem:[%s3 + $0xd8] sm:$0xff]
  %v4742 = vld [vmem:[%s3 + $0xe0] sm:$0xff]
  %v4743 = vld [vmem:[%s3 + $0xe8] sm:$0xff]
  %v4744 = vld [vmem:[%s3 + $0xf0] sm:$0xff]
  %v4745 = vld [vmem:[%s3 + $0xf8] sm:$0xff]
  %v4778 = vunpack.c.l.b16 %v4714
  %v4779 = vunpack.c.h.b16 %v4714
  %v4780 = vunpack.c.l.b16 %v4715
  %v4781 = vunpack.c.h.b16 %v4715
  %v4782 = vunpack.c.l.b16 %v4716
  %v4783 = vunpack.c.h.b16 %v4716
  %v4784 = vunpack.c.l.b16 %v4717
  %v4785 = vunpack.c.h.b16 %v4717
  %v4786 = vunpack.c.l.b16 %v4718
  %v4787 = vunpack.c.h.b16 %v4718
  %v4788 = vunpack.c.l.b16 %v4719
  %v4789 = vunpack.c.h.b16 %v4719
  %v4790 = vunpack.c.l.b16 %v4720
  %v4791 = vunpack.c.h.b16 %v4720
  %v4792 = vunpack.c.l.b16 %v4721
  %v4793 = vunpack.c.h.b16 %v4721
  %v4794 = vunpack.c.l.b16 %v4722
  %v4795 = vunpack.c.h.b16 %v4722
  %v4796 = vunpack.c.l.b16 %v4723
  %v4797 = vunpack.c.h.b16 %v4723
  %v4798 = vunpack.c.l.b16 %v4724
  %v4799 = vunpack.c.h.b16 %v4724
  %v4800 = vunpack.c.l.b16 %v4725
  %v4801 = vunpack.c.h.b16 %v4725
  %v4802 = vunpack.c.l.b16 %v4726
  %v4803 = vunpack.c.h.b16 %v4726
  %v4804 = vunpack.c.l.b16 %v4727
  %v4805 = vunpack.c.h.b16 %v4727
  %v4806 = vunpack.c.l.b16 %v4728
  %v4807 = vunpack.c.h.b16 %v4728
  %v4808 = vunpack.c.l.b16 %v4729
  %v4809 = vunpack.c.h.b16 %v4729
  %v4810 = vunpack.c.l.b16 %v4730
  %v4811 = vunpack.c.h.b16 %v4730
  %v4812 = vunpack.c.l.b16 %v4731
  %v4813 = vunpack.c.h.b16 %v4731
  %v4814 = vunpack.c.l.b16 %v4732
  %v4815 = vunpack.c.h.b16 %v4732
  %v4816 = vunpack.c.l.b16 %v4733
  %v4817 = vunpack.c.h.b16 %v4733
  %v4818 = vunpack.c.l.b16 %v4734
  %v4819 = vunpack.c.h.b16 %v4734
  %v4820 = vunpack.c.l.b16 %v4735
  %v4821 = vunpack.c.h.b16 %v4735
  %v4822 = vunpack.c.l.b16 %v4736
  %v4823 = vunpack.c.h.b16 %v4736
  %v4824 = vunpack.c.l.b16 %v4737
  %v4825 = vunpack.c.h.b16 %v4737
  %v4826 = vunpack.c.l.b16 %v4738
  %v4827 = vunpack.c.h.b16 %v4738
  %v4828 = vunpack.c.l.b16 %v4739
  %v4829 = vunpack.c.h.b16 %v4739
  %v4830 = vunpack.c.l.b16 %v4740
  %v4831 = vunpack.c.h.b16 %v4740
  %v4832 = vunpack.c.l.b16 %v4741
  %v4833 = vunpack.c.h.b16 %v4741
  %v4834 = vunpack.c.l.b16 %v4742
  %v4835 = vunpack.c.h.b16 %v4742
  %v4836 = vunpack.c.l.b16 %v4743
  %v4837 = vunpack.c.h.b16 %v4743
  %v4838 = vunpack.c.l.b16 %v4744
  %v4839 = vunpack.c.h.b16 %v4744
  %v4840 = vunpack.c.l.b16 %v4745
  %v4841 = vunpack.c.h.b16 %v4745
  %v4842 = vpack.c.b16 %v4782, %v4778
  %v4843 = vpack.c.b16 %v4783, %v4779
  %v4844 = vpack.c.b16 %v4784, %v4780
  %v4845 = vpack.c.b16 %v4785, %v4781
  %v4846 = vpack.c.b16 %v4790, %v4786
  %v4847 = vpack.c.b16 %v4791, %v4787
  %v4848 = vpack.c.b16 %v4792, %v4788
  %v4849 = vpack.c.b16 %v4793, %v4789
  %v4850 = vpack.c.b16 %v4798, %v4794
  %v4851 = vpack.c.b16 %v4799, %v4795
  %v4852 = vpack.c.b16 %v4800, %v4796
  %v4853 = vpack.c.b16 %v4801, %v4797
  %v4854 = vpack.c.b16 %v4806, %v4802
  %v4855 = vpack.c.b16 %v4807, %v4803
  %v4856 = vpack.c.b16 %v4808, %v4804
  %v4857 = vpack.c.b16 %v4809, %v4805
  %v4858 = vpack.c.b16 %v4814, %v4810
  %v4859 = vpack.c.b16 %v4815, %v4811
  %v4860 = vpack.c.b16 %v4816, %v4812
  %v4861 = vpack.c.b16 %v4817, %v4813
  %v4862 = vpack.c.b16 %v4822, %v4818
  %v4863 = vpack.c.b16 %v4823, %v4819
  %v4864 = vpack.c.b16 %v4824, %v4820
  %v4865 = vpack.c.b16 %v4825, %v4821
  %v4866 = vpack.c.b16 %v4830, %v4826
  %v4867 = vpack.c.b16 %v4831, %v4827
  %v4868 = vpack.c.b16 %v4832, %v4828
  %v4869 = vpack.c.b16 %v4833, %v4829
  %v4870 = vpack.c.b16 %v4838, %v4834
  %v4871 = vpack.c.b16 %v4839, %v4835
  %v4872 = vpack.c.b16 %v4840, %v4836
  %v4873 = vpack.c.b16 %v4841, %v4837
  %4906 = vmatprep.subr.bf16.mxu0 %v4843
  %4907 = vmatpush1.bf16.msra.mxu0 %v4842
  %4908 = vmatprep.subr.bf16.mxu0 %v4847
  %4909 = vmatpush1.bf16.msra.mxu0 %v4846
  %4910 = vmatprep.subr.bf16.mxu0 %v4851
  %4911 = vmatpush1.bf16.msra.mxu0 %v4850
  %4912 = vmatprep.subr.bf16.mxu0 %v4855
  %4913 = vmatpush1.bf16.msra.mxu0 %v4854
  %4914 = vmatprep.subr.bf16.mxu0 %v4859
  %4915 = vmatpush1.bf16.msra.mxu0 %v4858
  %4916 = vmatprep.subr.bf16.mxu0 %v4863
  %4917 = vmatpush1.bf16.msra.mxu0 %v4862
  %4918 = vmatprep.subr.bf16.mxu0 %v4867
  %4919 = vmatpush1.bf16.msra.mxu0 %v4866
  %4920 = vmatprep.subr.bf16.mxu0 %v4871
  %4921 = vmatpush1.bf16.msra.mxu0 %v4870
  %4922 = vmatprep.subr.bf16.mxu0 0
  %4923 = vmatpush1.bf16.msra.mxu0 0
  %4924 = vmatprep.subr.bf16.mxu0 0
  %4925 = vmatpush1.bf16.msra.mxu0 0
  %4926 = vmatprep.subr.bf16.mxu0 0
  %4927 = vmatpush1.bf16.msra.mxu0 0
  %4928 = vmatprep.subr.bf16.mxu0 0
  %4929 = vmatpush1.bf16.msra.mxu0 0
  %4930 = vmatprep.subr.bf16.mxu0 0
  %4931 = vmatpush1.bf16.msra.mxu0 0
  %4932 = vmatprep.subr.bf16.mxu0 0
  %4933 = vmatpush1.bf16.msra.mxu0 0
  %4934 = vmatprep.subr.bf16.mxu0 0
  %4935 = vmatpush1.bf16.msra.mxu0 0
  %4936 = vmatprep.subr.bf16.mxu0 0
  %4937 = vmatpush1.bf16.msra.mxu0 0
  %4938 = vmatprep.mubr.bf16.mxu0 0
  %4939 = vmatmul.mubr.bf16.gmra.mrb[0].mxu0 %v4713
  %v4940 = vpop.f32.mrb[0].mxu0
  %v4941 = vadd.f32 0.0, %v4940
  %v4942 = vpop.f32.mrb[0].mxu0
  %v4943 = vadd.f32 0.0, %v4942
  %v4944 = vpop.f32.mrb[0].mxu0
  %v4945 = vadd.f32 0.0, %v4944
  %v4946 = vpop.f32.mrb[0].mxu0
  %v4947 = vadd.f32 0.0, %v4946
  %4948 = vdwg.mxu0
  %4949 = vmatprep.subr.bf16.mxu0 %v4845
  %4950 = vmatpush1.bf16.msra.mxu0 %v4844
  %4951 = vmatprep.subr.bf16.mxu0 %v4849
  %4952 = vmatpush1.bf16.msra.mxu0 %v4848
  %4953 = vmatprep.subr.bf16.mxu0 %v4853
  %4954 = vmatpush1.bf16.msra.mxu0 %v4852
  %4955 = vmatprep.subr.bf16.mxu0 %v4857
  %4956 = vmatpush1.bf16.msra.mxu0 %v4856
  %4957 = vmatprep.subr.bf16.mxu0 %v4861
  %4958 = vmatpush1.bf16.msra.mxu0 %v4860
  %4959 = vmatprep.subr.bf16.mxu0 %v4865
  %4960 = vmatpush1.bf16.msra.mxu0 %v4864
  %4961 = vmatprep.subr.bf16.mxu0 %v4869
  %4962 = vmatpush1.bf16.msra.mxu0 %v4868
  %4963 = vmatprep.subr.bf16.mxu0 %v4873
  %4964 = vmatpush1.bf16.msra.mxu0 %v4872
  %4965 = vmatprep.subr.bf16.mxu0 0
  %4966 = vmatpush1.bf16.msra.mxu0 0
  %4967 = vmatprep.subr.bf16.mxu0 0
  %4968 = vmatpush1.bf16.msra.mxu0 0
  %4969 = vmatprep.subr.bf16.mxu0 0
  %4970 = vmatpush1.bf16.msra.mxu0 0
  %4971 = vmatprep.subr.bf16.mxu0 0
  %4972 = vmatpush1.bf16.msra.mxu0 0
  %4973 = vmatprep.subr.bf16.mxu0 0
  %4974 = vmatpush1.bf16.msra.mxu0 0
  %4975 = vmatprep.subr.bf16.mxu0 0
  %4976 = vmatpush1.bf16.msra.mxu0 0
  %4977 = vmatprep.subr.bf16.mxu0 0
  %4978 = vmatpush1.bf16.msra.mxu0 0
  %4979 = vmatprep.subr.bf16.mxu0 0
  %4980 = vmatpush1.bf16.msra.mxu0 0
  %4981 = vmatprep.mubr.bf16.mxu0 0
  %4982 = vmatmul.mubr.bf16.gmra.mrb[0].mxu0 %v4713
  %v4983 = vpop.f32.mrb[0].mxu0
  %v4984 = vadd.f32 0.0, %v4983
  %v4985 = vpop.f32.mrb[0].mxu0
  %v4986 = vadd.f32 0.0, %v4985
  %v4987 = vpop.f32.mrb[0].mxu0
  %v4988 = vadd.f32 0.0, %v4987
  %v4989 = vpop.f32.mrb[0].mxu0
  %v4990 = vadd.f32 0.0, %v4989
  %4991 = vdwg.mxu0
  %v4992 = vadd.f32 %v4705, %v4941
  %v4993 = vadd.f32 %v4706, %v4943
  %v4994 = vadd.f32 %v4707, %v4984
  %v4995 = vadd.f32 %v4708, %v4986
  %v4996 = vadd.f32 %v4709, %v4945
  %v4997 = vadd.f32 %v4710, %v4947
  %v4998 = vadd.f32 %v4711, %v4988
  %v4999 = vadd.f32 %v4712, %v4990
  %v5000 = vxor.u32 %v4992, 2147483648
  %v5001 = vxor.u32 %v4993, 2147483648
  %v5002 = vxor.u32 %v4994, 2147483648
  %v5003 = vxor.u32 %v4996, 2147483648
  %v5004 = vxor.u32 %v4997, 2147483648
  %v5005 = vxor.u32 %v4998, 2147483648
  %v5006 = vmul.f32 %v5000, 1.442695
  %v5007 = vpow.pop %v5006
  %v5008 = vmul.f32 %v5001, 1.442695
  %v5009 = vpow.pop %v5008
  %v5010 = vmul.f32 %v5002, 1.442695
  %v5011 = vpow.pop %v5010
  %v5012 = vmul.f32 %v5003, 1.442695
  %v5013 = vpow.pop %v5012
  %v5014 = vmul.f32 %v5004, 1.442695
  %v5015 = vpow.pop %v5014
  %v5016 = vmul.f32 %v5005, 1.442695
  %v5017 = vpow.pop %v5016
  %v5018 = vadd.f32 %v5007, 1.0
  %v5019 = vadd.f32 %v5009, 1.0
  %v5020 = vadd.f32 %v5011, 1.0
  %v5021 = vadd.f32 %v5013, 1.0
  %v5022 = vadd.f32 %v5015, 1.0
  %v5023 = vadd.f32 %v5017, 1.0
  %v5024 = vrcp.pop %v5018
  %v5025 = vmul.f32 1.0, %v5024
  %v5026 = vrcp.pop %v5019
  %v5027 = vmul.f32 1.0, %v5026
  %v5028 = vrcp.pop %v5020
  %v5029 = vmul.f32 1.0, %v5028
  %v5030 = vrcp.pop %v5021
  %v5031 = vmul.f32 1.0, %v5030
  %v5032 = vrcp.pop %v5022
  %v5033 = vmul.f32 1.0, %v5032
  %v5034 = vrcp.pop %v5023
  %v5035 = vmul.f32 1.0, %v5034
  %v5036 = vtanh.pop %v4995
  %v5037 = vtanh.pop %v4999
  %v5038 = vmul.f32 %v5027, %v4324
  %v5039 = vmul.f32 %v5033, %v4325
  %v5040 = vmul.f32 %v5025, %v5036
  %v5041 = vmul.f32 %v5031, %v5037
  %v5042 = vadd.f32 %v5038, %v5040
  %v5043 = vadd.f32 %v5039, %v5041
  %v5044 = vtanh.pop %v5042
  %v5045 = vtanh.pop %v5043
  %v5046 = vmul.f32 %v5029, %v5044
  %v5047 = vmul.f32 %v5035, %v5045
  %5048 = vst [vmem:[%s1455] sm:$0xff] %v4698
  %5049 = vst [vmem:[%s1455 + $0x10] sm:$0xff] %v4699
  %5050 = vst [vmem:[%s1452 + $0x8] sm:$0xff] %v5046
  %5051 = vst [vmem:[%s1452 + $0x18] sm:$0xff] %v5047
  %v5052 = vmul.f32 %v4698, %v730
  %v5053 = vmul.f32 %v4699, %v730
  %5054 = vadd.xlane.f32.xlu0 %v5052
  %v5055 = vpop.xlane.xlu0 %5054
  %5056 = vadd.xlane.f32.xlu0 %v5053
  %v5057 = vpop.xlane.xlu0 %5056
  %s5058 = scalar_lea.vmem [#allocation2], 96
  %5059 = vst.msk [vmem:[%s5058] sm:$0xff] %vm738, %v5055
  %5060 = vst.msk [vmem:[%s5058 + $0x8] sm:$0xff] %vm738, %v5057
  %v5061 = vmul.f32 %v5046, %v745
  %v5062 = vmul.f32 %v5047, %v745
  %5063 = vadd.xlane.f32.xlu0 %v5061
  %v5064 = vpop.xlane.xlu0 %5063
  %5065 = vadd.xlane.f32.xlu0 %v5062
  %v5066 = vpop.xlane.xlu0 %5065
  %s5067 = scalar_lea.vmem [#allocation3], 16
  %5068 = vst.msk [vmem:[%s5067] sm:$0xff] %vm738, %v5064
  %5069 = vst.msk [vmem:[%s5067 + $0x8] sm:$0xff] %vm738, %v5066
  %s5070 = scalar_lea.vmem %s0, 224
  %v5071 = vld [vmem:[%s5070] sm:$0xff]
  %v5072 = vld [vmem:[%s5070 + $0x8] sm:$0xff]
  %v5073 = vld [vmem:[%s5070 + $0x10] sm:$0xff]
  %v5074 = vld [vmem:[%s5070 + $0x18] sm:$0xff]
  %v5075 = vunpack.c.l.bf16 %v5071
  %v5076 = vunpack.c.h.bf16 %v5071
  %v5077 = vunpack.c.l.bf16 %v5072
  %v5078 = vunpack.c.h.bf16 %v5072
  %v5079 = vunpack.c.l.bf16 %v5073
  %v5080 = vunpack.c.h.bf16 %v5073
  %v5081 = vunpack.c.l.bf16 %v5074
  %v5082 = vunpack.c.h.bf16 %v5074
  %v5083 = vpack.c.bf16 %v4699, %v4698
  %v5084 = vld [vmem:[%s2] sm:$0xff]
  %v5085 = vld [vmem:[%s2 + $0x8] sm:$0xff]
  %v5086 = vld [vmem:[%s2 + $0x10] sm:$0xff]
  %v5087 = vld [vmem:[%s2 + $0x18] sm:$0xff]
  %v5088 = vld [vmem:[%s2 + $0x20] sm:$0xff]
  %v5089 = vld [vmem:[%s2 + $0x28] sm:$0xff]
  %v5090 = vld [vmem:[%s2 + $0x30] sm:$0xff]
  %v5091 = vld [vmem:[%s2 + $0x38] sm:$0xff]
  %v5092 = vld [vmem:[%s2 + $0x40] sm:$0xff]
  %v5093 = vld [vmem:[%s2 + $0x48] sm:$0xff]
  %v5094 = vld [vmem:[%s2 + $0x50] sm:$0xff]
  %v5095 = vld [vmem:[%s2 + $0x58] sm:$0xff]
  %v5096 = vld [vmem:[%s2 + $0x60] sm:$0xff]
  %v5097 = vld [vmem:[%s2 + $0x68] sm:$0xff]
  %v5098 = vld [vmem:[%s2 + $0x70] sm:$0xff]
  %v5099 = vld [vmem:[%s2 + $0x78] sm:$0xff]
  %v5100 = vld [vmem:[%s2 + $0x80] sm:$0xff]
  %v5101 = vld [vmem:[%s2 + $0x88] sm:$0xff]
  %v5102 = vld [vmem:[%s2 + $0x90] sm:$0xff]
  %v5103 = vld [vmem:[%s2 + $0x98] sm:$0xff]
  %v5104 = vld [vmem:[%s2 + $0xa0] sm:$0xff]
  %v5105 = vld [vmem:[%s2 + $0xa8] sm:$0xff]
  %v5106 = vld [vmem:[%s2 + $0xb0] sm:$0xff]
  %v5107 = vld [vmem:[%s2 + $0xb8] sm:$0xff]
  %v5108 = vld [vmem:[%s2 + $0xc0] sm:$0xff]
  %v5109 = vld [vmem:[%s2 + $0xc8] sm:$0xff]
  %v5110 = vld [vmem:[%s2 + $0xd0] sm:$0xff]
  %v5111 = vld [vmem:[%s2 + $0xd8] sm:$0xff]
  %v5112 = vld [vmem:[%s2 + $0xe0] sm:$0xff]
  %v5113 = vld [vmem:[%s2 + $0xe8] sm:$0xff]
  %v5114 = vld [vmem:[%s2 + $0xf0] sm:$0xff]
  %v5115 = vld [vmem:[%s2 + $0xf8] sm:$0xff]
  %v5148 = vunpack.c.l.b16 %v5084
  %v5149 = vunpack.c.h.b16 %v5084
  %v5150 = vunpack.c.l.b16 %v5085
  %v5151 = vunpack.c.h.b16 %v5085
  %v5152 = vunpack.c.l.b16 %v5086
  %v5153 = vunpack.c.h.b16 %v5086
  %v5154 = vunpack.c.l.b16 %v5087
  %v5155 = vunpack.c.h.b16 %v5087
  %v5156 = vunpack.c.l.b16 %v5088
  %v5157 = vunpack.c.h.b16 %v5088
  %v5158 = vunpack.c.l.b16 %v5089
  %v5159 = vunpack.c.h.b16 %v5089
  %v5160 = vunpack.c.l.b16 %v5090
  %v5161 = vunpack.c.h.b16 %v5090
  %v5162 = vunpack.c.l.b16 %v5091
  %v5163 = vunpack.c.h.b16 %v5091
  %v5164 = vunpack.c.l.b16 %v5092
  %v5165 = vunpack.c.h.b16 %v5092
  %v5166 = vunpack.c.l.b16 %v5093
  %v5167 = vunpack.c.h.b16 %v5093
  %v5168 = vunpack.c.l.b16 %v5094
  %v5169 = vunpack.c.h.b16 %v5094
  %v5170 = vunpack.c.l.b16 %v5095
  %v5171 = vunpack.c.h.b16 %v5095
  %v5172 = vunpack.c.l.b16 %v5096
  %v5173 = vunpack.c.h.b16 %v5096
  %v5174 = vunpack.c.l.b16 %v5097
  %v5175 = vunpack.c.h.b16 %v5097
  %v5176 = vunpack.c.l.b16 %v5098
  %v5177 = vunpack.c.h.b16 %v5098
  %v5178 = vunpack.c.l.b16 %v5099
  %v5179 = vunpack.c.h.b16 %v5099
  %v5180 = vunpack.c.l.b16 %v5100
  %v5181 = vunpack.c.h.b16 %v5100
  %v5182 = vunpack.c.l.b16 %v5101
  %v5183 = vunpack.c.h.b16 %v5101
  %v5184 = vunpack.c.l.b16 %v5102
  %v5185 = vunpack.c.h.b16 %v5102
  %v5186 = vunpack.c.l.b16 %v5103
  %v5187 = vunpack.c.h.b16 %v5103
  %v5188 = vunpack.c.l.b16 %v5104
  %v5189 = vunpack.c.h.b16 %v5104
  %v5190 = vunpack.c.l.b16 %v5105
  %v5191 = vunpack.c.h.b16 %v5105
  %v5192 = vunpack.c.l.b16 %v5106
  %v5193 = vunpack.c.h.b16 %v5106
  %v5194 = vunpack.c.l.b16 %v5107
  %v5195 = vunpack.c.h.b16 %v5107
  %v5196 = vunpack.c.l.b16 %v5108
  %v5197 = vunpack.c.h.b16 %v5108
  %v5198 = vunpack.c.l.b16 %v5109
  %v5199 = vunpack.c.h.b16 %v5109
  %v5200 = vunpack.c.l.b16 %v5110
  %v5201 = vunpack.c.h.b16 %v5110
  %v5202 = vunpack.c.l.b16 %v5111
  %v5203 = vunpack.c.h.b16 %v5111
  %v5204 = vunpack.c.l.b16 %v5112
  %v5205 = vunpack.c.h.b16 %v5112
  %v5206 = vunpack.c.l.b16 %v5113
  %v5207 = vunpack.c.h.b16 %v5113
  %v5208 = vunpack.c.l.b16 %v5114
  %v5209 = vunpack.c.h.b16 %v5114
  %v5210 = vunpack.c.l.b16 %v5115
  %v5211 = vunpack.c.h.b16 %v5115
  %v5212 = vpack.c.b16 %v5152, %v5148
  %v5213 = vpack.c.b16 %v5153, %v5149
  %v5214 = vpack.c.b16 %v5154, %v5150
  %v5215 = vpack.c.b16 %v5155, %v5151
  %v5216 = vpack.c.b16 %v5160, %v5156
  %v5217 = vpack.c.b16 %v5161, %v5157
  %v5218 = vpack.c.b16 %v5162, %v5158
  %v5219 = vpack.c.b16 %v5163, %v5159
  %v5220 = vpack.c.b16 %v5168, %v5164
  %v5221 = vpack.c.b16 %v5169, %v5165
  %v5222 = vpack.c.b16 %v5170, %v5166
  %v5223 = vpack.c.b16 %v5171, %v5167
  %v5224 = vpack.c.b16 %v5176, %v5172
  %v5225 = vpack.c.b16 %v5177, %v5173
  %v5226 = vpack.c.b16 %v5178, %v5174
  %v5227 = vpack.c.b16 %v5179, %v5175
  %v5228 = vpack.c.b16 %v5184, %v5180
  %v5229 = vpack.c.b16 %v5185, %v5181
  %v5230 = vpack.c.b16 %v5186, %v5182
  %v5231 = vpack.c.b16 %v5187, %v5183
  %v5232 = vpack.c.b16 %v5192, %v5188
  %v5233 = vpack.c.b16 %v5193, %v5189
  %v5234 = vpack.c.b16 %v5194, %v5190
  %v5235 = vpack.c.b16 %v5195, %v5191
  %v5236 = vpack.c.b16 %v5200, %v5196
  %v5237 = vpack.c.b16 %v5201, %v5197
  %v5238 = vpack.c.b16 %v5202, %v5198
  %v5239 = vpack.c.b16 %v5203, %v5199
  %v5240 = vpack.c.b16 %v5208, %v5204
  %v5241 = vpack.c.b16 %v5209, %v5205
  %v5242 = vpack.c.b16 %v5210, %v5206
  %v5243 = vpack.c.b16 %v5211, %v5207
  %5276 = vmatprep.subr.bf16.mxu0 %v5213
  %5277 = vmatpush1.bf16.msra.mxu0 %v5212
  %5278 = vmatprep.subr.bf16.mxu0 %v5217
  %5279 = vmatpush1.bf16.msra.mxu0 %v5216
  %5280 = vmatprep.subr.bf16.mxu0 %v5221
  %5281 = vmatpush1.bf16.msra.mxu0 %v5220
  %5282 = vmatprep.subr.bf16.mxu0 %v5225
  %5283 = vmatpush1.bf16.msra.mxu0 %v5224
  %5284 = vmatprep.subr.bf16.mxu0 %v5229
  %5285 = vmatpush1.bf16.msra.mxu0 %v5228
  %5286 = vmatprep.subr.bf16.mxu0 %v5233
  %5287 = vmatpush1.bf16.msra.mxu0 %v5232
  %5288 = vmatprep.subr.bf16.mxu0 %v5237
  %5289 = vmatpush1.bf16.msra.mxu0 %v5236
  %5290 = vmatprep.subr.bf16.mxu0 %v5241
  %5291 = vmatpush1.bf16.msra.mxu0 %v5240
  %5292 = vmatprep.subr.bf16.mxu0 0
  %5293 = vmatpush1.bf16.msra.mxu0 0
  %5294 = vmatprep.subr.bf16.mxu0 0
  %5295 = vmatpush1.bf16.msra.mxu0 0
  %5296 = vmatprep.subr.bf16.mxu0 0
  %5297 = vmatpush1.bf16.msra.mxu0 0
  %5298 = vmatprep.subr.bf16.mxu0 0
  %5299 = vmatpush1.bf16.msra.mxu0 0
  %5300 = vmatprep.subr.bf16.mxu0 0
  %5301 = vmatpush1.bf16.msra.mxu0 0
  %5302 = vmatprep.subr.bf16.mxu0 0
  %5303 = vmatpush1.bf16.msra.mxu0 0
  %5304 = vmatprep.subr.bf16.mxu0 0
  %5305 = vmatpush1.bf16.msra.mxu0 0
  %5306 = vmatprep.subr.bf16.mxu0 0
  %5307 = vmatpush1.bf16.msra.mxu0 0
  %5308 = vmatprep.mubr.bf16.mxu0 0
  %5309 = vmatmul.mubr.bf16.gmra.mrb[0].mxu0 %v5083
  %v5310 = vpop.f32.mrb[0].mxu0
  %v5311 = vadd.f32 0.0, %v5310
  %v5312 = vpop.f32.mrb[0].mxu0
  %v5313 = vadd.f32 0.0, %v5312
  %v5314 = vpop.f32.mrb[0].mxu0
  %v5315 = vadd.f32 0.0, %v5314
  %v5316 = vpop.f32.mrb[0].mxu0
  %v5317 = vadd.f32 0.0, %v5316
  %5318 = vdwg.mxu0
  %5319 = vmatprep.subr.bf16.mxu0 %v5215
  %5320 = vmatpush1.bf16.msra.mxu0 %v5214
  %5321 = vmatprep.subr.bf16.mxu0 %v5219
  %5322 = vmatpush1.bf16.msra.mxu0 %v5218
  %5323 = vmatprep.subr.bf16.mxu0 %v5223
  %5324 = vmatpush1.bf16.msra.mxu0 %v5222
  %5325 = vmatprep.subr.bf16.mxu0 %v5227
  %5326 = vmatpush1.bf16.msra.mxu0 %v5226
  %5327 = vmatprep.subr.bf16.mxu0 %v5231
  %5328 = vmatpush1.bf16.msra.mxu0 %v5230
  %5329 = vmatprep.subr.bf16.mxu0 %v5235
  %5330 = vmatpush1.bf16.msra.mxu0 %v5234
  %5331 = vmatprep.subr.bf16.mxu0 %v5239
  %5332 = vmatpush1.bf16.msra.mxu0 %v5238
  %5333 = vmatprep.subr.bf16.mxu0 %v5243
  %5334 = vmatpush1.bf16.msra.mxu0 %v5242
  %5335 = vmatprep.subr.bf16.mxu0 0
  %5336 = vmatpush1.bf16.msra.mxu0 0
  %5337 = vmatprep.subr.bf16.mxu0 0
  %5338 = vmatpush1.bf16.msra.mxu0 0
  %5339 = vmatprep.subr.bf16.mxu0 0
  %5340 = vmatpush1.bf16.msra.mxu0 0
  %5341 = vmatprep.subr.bf16.mxu0 0
  %5342 = vmatpush1.bf16.msra.mxu0 0
  %5343 = vmatprep.subr.bf16.mxu0 0
  %5344 = vmatpush1.bf16.msra.mxu0 0
  %5345 = vmatprep.subr.bf16.mxu0 0
  %5346 = vmatpush1.bf16.msra.mxu0 0
  %5347 = vmatprep.subr.bf16.mxu0 0
  %5348 = vmatpush1.bf16.msra.mxu0 0
  %5349 = vmatprep.subr.bf16.mxu0 0
  %5350 = vmatpush1.bf16.msra.mxu0 0
  %5351 = vmatprep.mubr.bf16.mxu0 0
  %5352 = vmatmul.mubr.bf16.gmra.mrb[0].mxu0 %v5083
  %v5353 = vpop.f32.mrb[0].mxu0
  %v5354 = vadd.f32 0.0, %v5353
  %v5355 = vpop.f32.mrb[0].mxu0
  %v5356 = vadd.f32 0.0, %v5355
  %v5357 = vpop.f32.mrb[0].mxu0
  %v5358 = vadd.f32 0.0, %v5357
  %v5359 = vpop.f32.mrb[0].mxu0
  %v5360 = vadd.f32 0.0, %v5359
  %5361 = vdwg.mxu0
  %v5362 = vadd.f32 %v5075, %v5311
  %v5363 = vadd.f32 %v5076, %v5313
  %v5364 = vadd.f32 %v5077, %v5354
  %v5365 = vadd.f32 %v5078, %v5356
  %v5366 = vadd.f32 %v5079, %v5315
  %v5367 = vadd.f32 %v5080, %v5317
  %v5368 = vadd.f32 %v5081, %v5358
  %v5369 = vadd.f32 %v5082, %v5360
  %v5370 = vxor.u32 %v5362, 2147483648
  %v5371 = vxor.u32 %v5363, 2147483648
  %v5372 = vxor.u32 %v5364, 2147483648
  %v5373 = vxor.u32 %v5366, 2147483648
  %v5374 = vxor.u32 %v5367, 2147483648
  %v5375 = vxor.u32 %v5368, 2147483648
  %v5376 = vmul.f32 %v5370, 1.442695
  %v5377 = vpow.pop %v5376
  %v5378 = vmul.f32 %v5371, 1.442695
  %v5379 = vpow.pop %v5378
  %v5380 = vmul.f32 %v5372, 1.442695
  %v5381 = vpow.pop %v5380
  %v5382 = vmul.f32 %v5373, 1.442695
  %v5383 = vpow.pop %v5382
  %v5384 = vmul.f32 %v5374, 1.442695
  %v5385 = vpow.pop %v5384
  %v5386 = vmul.f32 %v5375, 1.442695
  %v5387 = vpow.pop %v5386
  %v5388 = vadd.f32 %v5377, 1.0
  %v5389 = vadd.f32 %v5379, 1.0
  %v5390 = vadd.f32 %v5381, 1.0
  %v5391 = vadd.f32 %v5383, 1.0
  %v5392 = vadd.f32 %v5385, 1.0
  %v5393 = vadd.f32 %v5387, 1.0
  %v5394 = vrcp.pop %v5388
  %v5395 = vmul.f32 1.0, %v5394
  %v5396 = vrcp.pop %v5389
  %v5397 = vmul.f32 1.0, %v5396
  %v5398 = vrcp.pop %v5390
  %v5399 = vmul.f32 1.0, %v5398
  %v5400 = vrcp.pop %v5391
  %v5401 = vmul.f32 1.0, %v5400
  %v5402 = vrcp.pop %v5392
  %v5403 = vmul.f32 1.0, %v5402
  %v5404 = vrcp.pop %v5393
  %v5405 = vmul.f32 1.0, %v5404
  %v5406 = vtanh.pop %v5365
  %v5407 = vtanh.pop %v5369
  %v5408 = vmul.f32 %v5397, %v4694
  %v5409 = vmul.f32 %v5403, %v4695
  %v5410 = vmul.f32 %v5395, %v5406
  %v5411 = vmul.f32 %v5401, %v5407
  %v5412 = vadd.f32 %v5408, %v5410
  %v5413 = vadd.f32 %v5409, %v5411
  %v5414 = vtanh.pop %v5412
  %v5415 = vtanh.pop %v5413
  %v5416 = vmul.f32 %v5399, %v5414
  %v5417 = vmul.f32 %v5405, %v5415
  %v5418 = vld [vmem:[%s1] sm:$0xff]
  %v5419 = vld [vmem:[%s1 + $0x8] sm:$0xff]
  %v5420 = vld [vmem:[%s1 + $0x10] sm:$0xff]
  %v5421 = vld [vmem:[%s1 + $0x18] sm:$0xff]
  %v5422 = vunpack.c.l.bf16 %v5418
  %v5423 = vunpack.c.h.bf16 %v5418
  %v5424 = vunpack.c.l.bf16 %v5419
  %v5425 = vunpack.c.h.bf16 %v5419
  %v5426 = vunpack.c.l.bf16 %v5420
  %v5427 = vunpack.c.h.bf16 %v5420
  %v5428 = vunpack.c.l.bf16 %v5421
  %v5429 = vunpack.c.h.bf16 %v5421
  %v5430 = vpack.c.bf16 %v5047, %v5046
  %v5431 = vld [vmem:[%s3] sm:$0xff]
  %v5432 = vld [vmem:[%s3 + $0x8] sm:$0xff]
  %v5433 = vld [vmem:[%s3 + $0x10] sm:$0xff]
  %v5434 = vld [vmem:[%s3 + $0x18] sm:$0xff]
  %v5435 = vld [vmem:[%s3 + $0x20] sm:$0xff]
  %v5436 = vld [vmem:[%s3 + $0x28] sm:$0xff]
  %v5437 = vld [vmem:[%s3 + $0x30] sm:$0xff]
  %v5438 = vld [vmem:[%s3 + $0x38] sm:$0xff]
  %v5439 = vld [vmem:[%s3 + $0x40] sm:$0xff]
  %v5440 = vld [vmem:[%s3 + $0x48] sm:$0xff]
  %v5441 = vld [vmem:[%s3 + $0x50] sm:$0xff]
  %v5442 = vld [vmem:[%s3 + $0x58] sm:$0xff]
  %v5443 = vld [vmem:[%s3 + $0x60] sm:$0xff]
  %v5444 = vld [vmem:[%s3 + $0x68] sm:$0xff]
  %v5445 = vld [vmem:[%s3 + $0x70] sm:$0xff]
  %v5446 = vld [vmem:[%s3 + $0x78] sm:$0xff]
  %v5447 = vld [vmem:[%s3 + $0x80] sm:$0xff]
  %v5448 = vld [vmem:[%s3 + $0x88] sm:$0xff]
  %v5449 = vld [vmem:[%s3 + $0x90] sm:$0xff]
  %v5450 = vld [vmem:[%s3 + $0x98] sm:$0xff]
  %v5451 = vld [vmem:[%s3 + $0xa0] sm:$0xff]
  %v5452 = vld [vmem:[%s3 + $0xa8] sm:$0xff]
  %v5453 = vld [vmem:[%s3 + $0xb0] sm:$0xff]
  %v5454 = vld [vmem:[%s3 + $0xb8] sm:$0xff]
  %v5455 = vld [vmem:[%s3 + $0xc0] sm:$0xff]
  %v5456 = vld [vmem:[%s3 + $0xc8] sm:$0xff]
  %v5457 = vld [vmem:[%s3 + $0xd0] sm:$0xff]
  %v5458 = vld [vmem:[%s3 + $0xd8] sm:$0xff]
  %v5459 = vld [vmem:[%s3 + $0xe0] sm:$0xff]
  %v5460 = vld [vmem:[%s3 + $0xe8] sm:$0xff]
  %v5461 = vld [vmem:[%s3 + $0xf0] sm:$0xff]
  %v5462 = vld [vmem:[%s3 + $0xf8] sm:$0xff]
  %v5495 = vunpack.c.l.b16 %v5431
  %v5496 = vunpack.c.h.b16 %v5431
  %v5497 = vunpack.c.l.b16 %v5432
  %v5498 = vunpack.c.h.b16 %v5432
  %v5499 = vunpack.c.l.b16 %v5433
  %v5500 = vunpack.c.h.b16 %v5433
  %v5501 = vunpack.c.l.b16 %v5434
  %v5502 = vunpack.c.h.b16 %v5434
  %v5503 = vunpack.c.l.b16 %v5435
  %v5504 = vunpack.c.h.b16 %v5435
  %v5505 = vunpack.c.l.b16 %v5436
  %v5506 = vunpack.c.h.b16 %v5436
  %v5507 = vunpack.c.l.b16 %v5437
  %v5508 = vunpack.c.h.b16 %v5437
  %v5509 = vunpack.c.l.b16 %v5438
  %v5510 = vunpack.c.h.b16 %v5438
  %v5511 = vunpack.c.l.b16 %v5439
  %v5512 = vunpack.c.h.b16 %v5439
  %v5513 = vunpack.c.l.b16 %v5440
  %v5514 = vunpack.c.h.b16 %v5440
  %v5515 = vunpack.c.l.b16 %v5441
  %v5516 = vunpack.c.h.b16 %v5441
  %v5517 = vunpack.c.l.b16 %v5442
  %v5518 = vunpack.c.h.b16 %v5442
  %v5519 = vunpack.c.l.b16 %v5443
  %v5520 = vunpack.c.h.b16 %v5443
  %v5521 = vunpack.c.l.b16 %v5444
  %v5522 = vunpack.c.h.b16 %v5444
  %v5523 = vunpack.c.l.b16 %v5445
  %v5524 = vunpack.c.h.b16 %v5445
  %v5525 = vunpack.c.l.b16 %v5446
  %v5526 = vunpack.c.h.b16 %v5446
  %v5527 = vunpack.c.l.b16 %v5447
  %v5528 = vunpack.c.h.b16 %v5447
  %v5529 = vunpack.c.l.b16 %v5448
  %v5530 = vunpack.c.h.b16 %v5448
  %v5531 = vunpack.c.l.b16 %v5449
  %v5532 = vunpack.c.h.b16 %v5449
  %v5533 = vunpack.c.l.b16 %v5450
  %v5534 = vunpack.c.h.b16 %v5450
  %v5535 = vunpack.c.l.b16 %v5451
  %v5536 = vunpack.c.h.b16 %v5451
  %v5537 = vunpack.c.l.b16 %v5452
  %v5538 = vunpack.c.h.b16 %v5452
  %v5539 = vunpack.c.l.b16 %v5453
  %v5540 = vunpack.c.h.b16 %v5453
  %v5541 = vunpack.c.l.b16 %v5454
  %v5542 = vunpack.c.h.b16 %v5454
  %v5543 = vunpack.c.l.b16 %v5455
  %v5544 = vunpack.c.h.b16 %v5455
  %v5545 = vunpack.c.l.b16 %v5456
  %v5546 = vunpack.c.h.b16 %v5456
  %v5547 = vunpack.c.l.b16 %v5457
  %v5548 = vunpack.c.h.b16 %v5457
  %v5549 = vunpack.c.l.b16 %v5458
  %v5550 = vunpack.c.h.b16 %v5458
  %v5551 = vunpack.c.l.b16 %v5459
  %v5552 = vunpack.c.h.b16 %v5459
  %v5553 = vunpack.c.l.b16 %v5460
  %v5554 = vunpack.c.h.b16 %v5460
  %v5555 = vunpack.c.l.b16 %v5461
  %v5556 = vunpack.c.h.b16 %v5461
  %v5557 = vunpack.c.l.b16 %v5462
  %v5558 = vunpack.c.h.b16 %v5462
  %v5559 = vpack.c.b16 %v5499, %v5495
  %v5560 = vpack.c.b16 %v5500, %v5496
  %v5561 = vpack.c.b16 %v5501, %v5497
  %v5562 = vpack.c.b16 %v5502, %v5498
  %v5563 = vpack.c.b16 %v5507, %v5503
  %v5564 = vpack.c.b16 %v5508, %v5504
  %v5565 = vpack.c.b16 %v5509, %v5505
  %v5566 = vpack.c.b16 %v5510, %v5506
  %v5567 = vpack.c.b16 %v5515, %v5511
  %v5568 = vpack.c.b16 %v5516, %v5512
  %v5569 = vpack.c.b16 %v5517, %v5513
  %v5570 = vpack.c.b16 %v5518, %v5514
  %v5571 = vpack.c.b16 %v5523, %v5519
  %v5572 = vpack.c.b16 %v5524, %v5520
  %v5573 = vpack.c.b16 %v5525, %v5521
  %v5574 = vpack.c.b16 %v5526, %v5522
  %v5575 = vpack.c.b16 %v5531, %v5527
  %v5576 = vpack.c.b16 %v5532, %v5528
  %v5577 = vpack.c.b16 %v5533, %v5529
  %v5578 = vpack.c.b16 %v5534, %v5530
  %v5579 = vpack.c.b16 %v5539, %v5535
  %v5580 = vpack.c.b16 %v5540, %v5536
  %v5581 = vpack.c.b16 %v5541, %v5537
  %v5582 = vpack.c.b16 %v5542, %v5538
  %v5583 = vpack.c.b16 %v5547, %v5543
  %v5584 = vpack.c.b16 %v5548, %v5544
  %v5585 = vpack.c.b16 %v5549, %v5545
  %v5586 = vpack.c.b16 %v5550, %v5546
  %v5587 = vpack.c.b16 %v5555, %v5551
  %v5588 = vpack.c.b16 %v5556, %v5552
  %v5589 = vpack.c.b16 %v5557, %v5553
  %v5590 = vpack.c.b16 %v5558, %v5554
  %5623 = vmatprep.subr.bf16.mxu0 %v5560
  %5624 = vmatpush1.bf16.msra.mxu0 %v5559
  %5625 = vmatprep.subr.bf16.mxu0 %v5564
  %5626 = vmatpush1.bf16.msra.mxu0 %v5563
  %5627 = vmatprep.subr.bf16.mxu0 %v5568
  %5628 = vmatpush1.bf16.msra.mxu0 %v5567
  %5629 = vmatprep.subr.bf16.mxu0 %v5572
  %5630 = vmatpush1.bf16.msra.mxu0 %v5571
  %5631 = vmatprep.subr.bf16.mxu0 %v5576
  %5632 = vmatpush1.bf16.msra.mxu0 %v5575
  %5633 = vmatprep.subr.bf16.mxu0 %v5580
  %5634 = vmatpush1.bf16.msra.mxu0 %v5579
  %5635 = vmatprep.subr.bf16.mxu0 %v5584
  %5636 = vmatpush1.bf16.msra.mxu0 %v5583
  %5637 = vmatprep.subr.bf16.mxu0 %v5588
  %5638 = vmatpush1.bf16.msra.mxu0 %v5587
  %5639 = vmatprep.subr.bf16.mxu0 0
  %5640 = vmatpush1.bf16.msra.mxu0 0
  %5641 = vmatprep.subr.bf16.mxu0 0
  %5642 = vmatpush1.bf16.msra.mxu0 0
  %5643 = vmatprep.subr.bf16.mxu0 0
  %5644 = vmatpush1.bf16.msra.mxu0 0
  %5645 = vmatprep.subr.bf16.mxu0 0
  %5646 = vmatpush1.bf16.msra.mxu0 0
  %5647 = vmatprep.subr.bf16.mxu0 0
  %5648 = vmatpush1.bf16.msra.mxu0 0
  %5649 = vmatprep.subr.bf16.mxu0 0
  %5650 = vmatpush1.bf16.msra.mxu0 0
  %5651 = vmatprep.subr.bf16.mxu0 0
  %5652 = vmatpush1.bf16.msra.mxu0 0
  %5653 = vmatprep.subr.bf16.mxu0 0
  %5654 = vmatpush1.bf16.msra.mxu0 0
  %5655 = vmatprep.mubr.bf16.mxu0 0
  %5656 = vmatmul.mubr.bf16.gmra.mrb[0].mxu0 %v5430
  %v5657 = vpop.f32.mrb[0].mxu0
  %v5658 = vadd.f32 0.0, %v5657
  %v5659 = vpop.f32.mrb[0].mxu0
  %v5660 = vadd.f32 0.0, %v5659
  %v5661 = vpop.f32.mrb[0].mxu0
  %v5662 = vadd.f32 0.0, %v5661
  %v5663 = vpop.f32.mrb[0].mxu0
  %v5664 = vadd.f32 0.0, %v5663
  %5665 = vdwg.mxu0
  %5666 = vmatprep.subr.bf16.mxu0 %v5562
  %5667 = vmatpush1.bf16.msra.mxu0 %v5561
  %5668 = vmatprep.subr.bf16.mxu0 %v5566
  %5669 = vmatpush1.bf16.msra.mxu0 %v5565
  %5670 = vmatprep.subr.bf16.mxu0 %v5570
  %5671 = vmatpush1.bf16.msra.mxu0 %v5569
  %5672 = vmatprep.subr.bf16.mxu0 %v5574
  %5673 = vmatpush1.bf16.msra.mxu0 %v5573
  %5674 = vmatprep.subr.bf16.mxu0 %v5578
  %5675 = vmatpush1.bf16.msra.mxu0 %v5577
  %5676 = vmatprep.subr.bf16.mxu0 %v5582
  %5677 = vmatpush1.bf16.msra.mxu0 %v5581
  %5678 = vmatprep.subr.bf16.mxu0 %v5586
  %5679 = vmatpush1.bf16.msra.mxu0 %v5585
  %5680 = vmatprep.subr.bf16.mxu0 %v5590
  %5681 = vmatpush1.bf16.msra.mxu0 %v5589
  %5682 = vmatprep.subr.bf16.mxu0 0
  %5683 = vmatpush1.bf16.msra.mxu0 0
  %5684 = vmatprep.subr.bf16.mxu0 0
  %5685 = vmatpush1.bf16.msra.mxu0 0
  %5686 = vmatprep.subr.bf16.mxu0 0
  %5687 = vmatpush1.bf16.msra.mxu0 0
  %5688 = vmatprep.subr.bf16.mxu0 0
  %5689 = vmatpush1.bf16.msra.mxu0 0
  %5690 = vmatprep.subr.bf16.mxu0 0
  %5691 = vmatpush1.bf16.msra.mxu0 0
  %5692 = vmatprep.subr.bf16.mxu0 0
  %5693 = vmatpush1.bf16.msra.mxu0 0
  %5694 = vmatprep.subr.bf16.mxu0 0
  %5695 = vmatpush1.bf16.msra.mxu0 0
  %5696 = vmatprep.subr.bf16.mxu0 0
  %5697 = vmatpush1.bf16.msra.mxu0 0
  %5698 = vmatprep.mubr.bf16.mxu0 0
  %5699 = vmatmul.mubr.bf16.gmra.mrb[0].mxu0 %v5430
  %v5700 = vpop.f32.mrb[0].mxu0
  %v5701 = vadd.f32 0.0, %v5700
  %v5702 = vpop.f32.mrb[0].mxu0
  %v5703 = vadd.f32 0.0, %v5702
  %v5704 = vpop.f32.mrb[0].mxu0
  %v5705 = vadd.f32 0.0, %v5704
  %v5706 = vpop.f32.mrb[0].mxu0
  %v5707 = vadd.f32 0.0, %v5706
  %5708 = vdwg.mxu0
  %v5709 = vadd.f32 %v5422, %v5658
  %v5710 = vadd.f32 %v5423, %v5660
  %v5711 = vadd.f32 %v5424, %v5701
  %v5712 = vadd.f32 %v5425, %v5703
  %v5713 = vadd.f32 %v5426, %v5662
  %v5714 = vadd.f32 %v5427, %v5664
  %v5715 = vadd.f32 %v5428, %v5705
  %v5716 = vadd.f32 %v5429, %v5707
  %v5717 = vxor.u32 %v5709, 2147483648
  %v5718 = vxor.u32 %v5710, 2147483648
  %v5719 = vxor.u32 %v5711, 2147483648
  %v5720 = vxor.u32 %v5713, 2147483648
  %v5721 = vxor.u32 %v5714, 2147483648
  %v5722 = vxor.u32 %v5715, 2147483648
  %v5723 = vmul.f32 %v5717, 1.442695
  %v5724 = vpow.pop %v5723
  %v5725 = vmul.f32 %v5718, 1.442695
  %v5726 = vpow.pop %v5725
  %v5727 = vmul.f32 %v5719, 1.442695
  %v5728 = vpow.pop %v5727
  %v5729 = vmul.f32 %v5720, 1.442695
  %v5730 = vpow.pop %v5729
  %v5731 = vmul.f32 %v5721, 1.442695
  %v5732 = vpow.pop %v5731
  %v5733 = vmul.f32 %v5722, 1.442695
  %v5734 = vpow.pop %v5733
  %v5735 = vadd.f32 %v5724, 1.0
  %v5736 = vadd.f32 %v5726, 1.0
  %v5737 = vadd.f32 %v5728, 1.0
  %v5738 = vadd.f32 %v5730, 1.0
  %v5739 = vadd.f32 %v5732, 1.0
  %v5740 = vadd.f32 %v5734, 1.0
  %v5741 = vrcp.pop %v5735
  %v5742 = vmul.f32 1.0, %v5741
  %v5743 = vrcp.pop %v5736
  %v5744 = vmul.f32 1.0, %v5743
  %v5745 = vrcp.pop %v5737
  %v5746 = vmul.f32 1.0, %v5745
  %v5747 = vrcp.pop %v5738
  %v5748 = vmul.f32 1.0, %v5747
  %v5749 = vrcp.pop %v5739
  %v5750 = vmul.f32 1.0, %v5749
  %v5751 = vrcp.pop %v5740
  %v5752 = vmul.f32 1.0, %v5751
  %v5753 = vtanh.pop %v5712
  %v5754 = vtanh.pop %v5716
  %v5755 = vmul.f32 %v5744, %v5042
  %v5756 = vmul.f32 %v5750, %v5043
  %v5757 = vmul.f32 %v5742, %v5753
  %v5758 = vmul.f32 %v5748, %v5754
  %v5759 = vadd.f32 %v5755, %v5757
  %v5760 = vadd.f32 %v5756, %v5758
  %v5761 = vtanh.pop %v5759
  %v5762 = vtanh.pop %v5760
  %v5763 = vmul.f32 %v5746, %v5761
  %v5764 = vmul.f32 %v5752, %v5762
  %5765 = vst [vmem:[%s723] sm:$0xff] %v5416
  %5766 = vst [vmem:[%s723 + $0x10] sm:$0xff] %v5417
  %5767 = vst [vmem:[%s6 + $0x8] sm:$0xff] %v5763
  %5768 = vst [vmem:[%s6 + $0x18] sm:$0xff] %v5764
  %v5769 = vmul.f32 %v5416, %v730
  %v5770 = vmul.f32 %v5417, %v730
  %5771 = vadd.xlane.f32.xlu0 %v5769
  %v5772 = vpop.xlane.xlu0 %5771
  %5773 = vadd.xlane.f32.xlu0 %v5770
  %v5774 = vpop.xlane.xlu0 %5773
  %s5775 = scalar_lea.vmem [#allocation2], 112
  %5776 = vst.msk [vmem:[%s5775] sm:$0xff] %vm738, %v5772
  %5777 = vst.msk [vmem:[%s5775 + $0x8] sm:$0xff] %vm738, %v5774
  %v5778 = vmul.f32 %v5763, %v745
  %v5779 = vmul.f32 %v5764, %v745
  %5780 = vadd.xlane.f32.xlu0 %v5778
  %v5781 = vpop.xlane.xlu0 %5780
  %5782 = vadd.xlane.f32.xlu0 %v5779
  %v5783 = vpop.xlane.xlu0 %5782
  %5784 = vst.msk [vmem:[#allocation3] sm:$0xff] %vm738, %v5781
  %5785 = vst.msk [vmem:[#allocation3 + $0x8] sm:$0xff] %vm738, %v5783
  %v5786 = vld [vmem:[#allocation2] sm:$0xff]
  %v5787 = vld [vmem:[#allocation2 + $0x8] sm:$0xff]
  %v5788 = vld [vmem:[#allocation3] sm:$0xff]
  %v5789 = vld [vmem:[#allocation3 + $0x8] sm:$0xff]
  %v5790 = vadd.f32 %v5786, %v5788
  %v5791 = vadd.f32 %v5787, %v5789
  %v5792 = vld [vmem:[%s6] sm:$0xff]
  %v5793 = vld [vmem:[%s6 + $0x10] sm:$0xff]
  %v5794 = vld [vmem:[%s6 + $0x8] sm:$0xff]
  %v5795 = vld [vmem:[%s6 + $0x18] sm:$0xff]
  %v5796 = vsub.f32 -inf, %v5790
  %v5797 = vsub.f32 -inf, %v5791
  %v5798 = vmul.f32 %v5796, 1.442695
  %v5799 = vpow.pop %v5798
  %v5800 = vmul.f32 %v5797, 1.442695
  %v5801 = vpow.pop %v5800
  %v5802 = vsub.f32 %v5790, %v5790
  %v5803 = vsub.f32 %v5791, %v5791
  %v5804 = vmul.f32 %v5802, 1.442695
  %v5805 = vpow.pop %v5804
  %v5806 = vmul.f32 %v5803, 1.442695
  %v5807 = vpow.pop %v5806
  %v5808 = vmul.f32 %v5799, 0.0
  %v5809 = vmul.f32 %v5801, 0.0
  %v5810 = vadd.f32 %v5808, %v5805
  %v5811 = vadd.f32 %v5809, %v5807
  %5813 = vset.pattern.permute.xlu0 0
  %5814 = vperm.xlu0 %5813, %v5799
  %v5815 = vpop.permute.xlu0 %5814
  %5818 = vset.pattern.permute.xlu0 0
  %5819 = vperm.xlu0 %5818, %v5801
  %v5820 = vpop.permute.xlu0 %5819
  %v5822 = vmul.f32 %v5815, 0.0
  %v5823 = vmul.f32 %v5820, 0.0
  %5825 = vset.pattern.permute.xlu0 0
  %5826 = vperm.xlu0 %5825, %v5805
  %v5827 = vpop.permute.xlu0 %5826
  %5830 = vset.pattern.permute.xlu0 0
  %5831 = vperm.xlu0 %5830, %v5807
  %v5832 = vpop.permute.xlu0 %5831
  %v5834 = vmul.f32 %v5827, %v5792
  %v5835 = vmul.f32 %v5832, %v5793
  %v5836 = vadd.f32 %v5822, %v5834
  %v5837 = vadd.f32 %v5823, %v5835
  %v5838 = vmul.f32 %v5827, %v5794
  %v5839 = vmul.f32 %v5832, %v5795
  %v5840 = vadd.f32 %v5822, %v5838
  %v5841 = vadd.f32 %v5823, %v5839
  %v5842 = vld [vmem:[%s1464] sm:$0xff]
  %v5843 = vld [vmem:[%s1464 + $0x8] sm:$0xff]
  %v5844 = vld [vmem:[%s5067] sm:$0xff]
  %v5845 = vld [vmem:[%s5067 + $0x8] sm:$0xff]
  %v5846 = vadd.f32 %v5842, %v5844
  %v5847 = vadd.f32 %v5843, %v5845
  %v5848 = vld [vmem:[%s1452] sm:$0xff]
  %v5849 = vld [vmem:[%s1452 + $0x10] sm:$0xff]
  %v5850 = vld [vmem:[%s1452 + $0x8] sm:$0xff]
  %v5851 = vld [vmem:[%s1452 + $0x18] sm:$0xff]
  %v5852 = vmax.f32 %v5790, %v5846
  %v5853 = vmax.f32 %v5791, %v5847
  %v5854 = vsub.f32 %v5790, %v5852
  %v5855 = vsub.f32 %v5791, %v5853
  %v5856 = vmul.f32 %v5854, 1.442695
  %v5857 = vpow.pop %v5856
  %v5858 = vmul.f32 %v5855, 1.442695
  %v5859 = vpow.pop %v5858
  %v5860 = vsub.f32 %v5846, %v5852
  %v5861 = vsub.f32 %v5847, %v5853
  %v5862 = vmul.f32 %v5860, 1.442695
  %v5863 = vpow.pop %v5862
  %v5864 = vmul.f32 %v5861, 1.442695
  %v5865 = vpow.pop %v5864
  %v5866 = vmul.f32 %v5810, %v5857
  %v5867 = vmul.f32 %v5811, %v5859
  %v5868 = vadd.f32 %v5866, %v5863
  %v5869 = vadd.f32 %v5867, %v5865
  %5871 = vset.pattern.permute.xlu0 0
  %5872 = vperm.xlu0 %5871, %v5857
  %v5873 = vpop.permute.xlu0 %5872
  %5876 = vset.pattern.permute.xlu0 0
  %5877 = vperm.xlu0 %5876, %v5859
  %v5878 = vpop.permute.xlu0 %5877
  %v5880 = vmul.f32 %v5836, %v5873
  %v5881 = vmul.f32 %v5837, %v5878
  %5883 = vset.pattern.permute.xlu0 0
  %5884 = vperm.xlu0 %5883, %v5863
  %v5885 = vpop.permute.xlu0 %5884
  %5888 = vset.pattern.permute.xlu0 0
  %5889 = vperm.xlu0 %5888, %v5865
  %v5890 = vpop.permute.xlu0 %5889
  %v5892 = vmul.f32 %v5885, %v5848
  %v5893 = vmul.f32 %v5890, %v5849
  %v5894 = vadd.f32 %v5880, %v5892
  %v5895 = vadd.f32 %v5881, %v5893
  %v5896 = vmul.f32 %v5840, %v5873
  %v5897 = vmul.f32 %v5841, %v5878
  %v5898 = vmul.f32 %v5885, %v5850
  %v5899 = vmul.f32 %v5890, %v5851
  %v5900 = vadd.f32 %v5896, %v5898
  %v5901 = vadd.f32 %v5897, %v5899
  %v5902 = vld [vmem:[%s2184] sm:$0xff]
  %v5903 = vld [vmem:[%s2184 + $0x8] sm:$0xff]
  %v5904 = vld [vmem:[%s4349] sm:$0xff]
  %v5905 = vld [vmem:[%s4349 + $0x8] sm:$0xff]
  %v5906 = vadd.f32 %v5902, %v5904
  %v5907 = vadd.f32 %v5903, %v5905
  %v5908 = vld [vmem:[%s2172] sm:$0xff]
  %v5909 = vld [vmem:[%s2172 + $0x10] sm:$0xff]
  %v5910 = vld [vmem:[%s2172 + $0x8] sm:$0xff]
  %v5911 = vld [vmem:[%s2172 + $0x18] sm:$0xff]
  %v5912 = vmax.f32 %v5852, %v5906
  %v5913 = vmax.f32 %v5853, %v5907
  %v5914 = vsub.f32 %v5852, %v5912
  %v5915 = vsub.f32 %v5853, %v5913
  %v5916 = vmul.f32 %v5914, 1.442695
  %v5917 = vpow.pop %v5916
  %v5918 = vmul.f32 %v5915, 1.442695
  %v5919 = vpow.pop %v5918
  %v5920 = vsub.f32 %v5906, %v5912
  %v5921 = vsub.f32 %v5907, %v5913
  %v5922 = vmul.f32 %v5920, 1.442695
  %v5923 = vpow.pop %v5922
  %v5924 = vmul.f32 %v5921, 1.442695
  %v5925 = vpow.pop %v5924
  %v5926 = vmul.f32 %v5868, %v5917
  %v5927 = vmul.f32 %v5869, %v5919
  %v5928 = vadd.f32 %v5926, %v5923
  %v5929 = vadd.f32 %v5927, %v5925
  %5931 = vset.pattern.permute.xlu0 0
  %5932 = vperm.xlu0 %5931, %v5917
  %v5933 = vpop.permute.xlu0 %5932
  %5936 = vset.pattern.permute.xlu0 0
  %5937 = vperm.xlu0 %5936, %v5919
  %v5938 = vpop.permute.xlu0 %5937
  %v5940 = vmul.f32 %v5894, %v5933
  %v5941 = vmul.f32 %v5895, %v5938
  %5943 = vset.pattern.permute.xlu0 0
  %5944 = vperm.xlu0 %5943, %v5923
  %v5945 = vpop.permute.xlu0 %5944
  %5948 = vset.pattern.permute.xlu0 0
  %5949 = vperm.xlu0 %5948, %v5925
  %v5950 = vpop.permute.xlu0 %5949
  %v5952 = vmul.f32 %v5945, %v5908
  %v5953 = vmul.f32 %v5950, %v5909
  %v5954 = vadd.f32 %v5940, %v5952
  %v5955 = vadd.f32 %v5941, %v5953
  %v5956 = vmul.f32 %v5900, %v5933
  %v5957 = vmul.f32 %v5901, %v5938
  %v5958 = vmul.f32 %v5945, %v5910
  %v5959 = vmul.f32 %v5950, %v5911
  %v5960 = vadd.f32 %v5956, %v5958
  %v5961 = vadd.f32 %v5957, %v5959
  %v5962 = vld [vmem:[%s2904] sm:$0xff]
  %v5963 = vld [vmem:[%s2904 + $0x8] sm:$0xff]
  %v5964 = vld [vmem:[%s3631] sm:$0xff]
  %v5965 = vld [vmem:[%s3631 + $0x8] sm:$0xff]
  %v5966 = vadd.f32 %v5962, %v5964
  %v5967 = vadd.f32 %v5963, %v5965
  %v5968 = vld [vmem:[%s2892] sm:$0xff]
  %v5969 = vld [vmem:[%s2892 + $0x10] sm:$0xff]
  %v5970 = vld [vmem:[%s2892 + $0x8] sm:$0xff]
  %v5971 = vld [vmem:[%s2892 + $0x18] sm:$0xff]
  %v5972 = vmax.f32 %v5912, %v5966
  %v5973 = vmax.f32 %v5913, %v5967
  %v5974 = vsub.f32 %v5912, %v5972
  %v5975 = vsub.f32 %v5913, %v5973
  %v5976 = vmul.f32 %v5974, 1.442695
  %v5977 = vpow.pop %v5976
  %v5978 = vmul.f32 %v5975, 1.442695
  %v5979 = vpow.pop %v5978
  %v5980 = vsub.f32 %v5966, %v5972
  %v5981 = vsub.f32 %v5967, %v5973
  %v5982 = vmul.f32 %v5980, 1.442695
  %v5983 = vpow.pop %v5982
  %v5984 = vmul.f32 %v5981, 1.442695
  %v5985 = vpow.pop %v5984
  %v5986 = vmul.f32 %v5928, %v5977
  %v5987 = vmul.f32 %v5929, %v5979
  %v5988 = vadd.f32 %v5986, %v5983
  %v5989 = vadd.f32 %v5987, %v5985
  %5991 = vset.pattern.permute.xlu0 0
  %5992 = vperm.xlu0 %5991, %v5977
  %v5993 = vpop.permute.xlu0 %5992
  %5996 = vset.pattern.permute.xlu0 0
  %5997 = vperm.xlu0 %5996, %v5979
  %v5998 = vpop.permute.xlu0 %5997
  %v6000 = vmul.f32 %v5954, %v5993
  %v6001 = vmul.f32 %v5955, %v5998
  %6003 = vset.pattern.permute.xlu0 0
  %6004 = vperm.xlu0 %6003, %v5983
  %v6005 = vpop.permute.xlu0 %6004
  %6008 = vset.pattern.permute.xlu0 0
  %6009 = vperm.xlu0 %6008, %v5985
  %v6010 = vpop.permute.xlu0 %6009
  %v6012 = vmul.f32 %v6005, %v5968
  %v6013 = vmul.f32 %v6010, %v5969
  %v6014 = vadd.f32 %v6000, %v6012
  %v6015 = vadd.f32 %v6001, %v6013
  %v6016 = vmul.f32 %v5960, %v5993
  %v6017 = vmul.f32 %v5961, %v5998
  %v6018 = vmul.f32 %v6005, %v5970
  %v6019 = vmul.f32 %v6010, %v5971
  %v6020 = vadd.f32 %v6016, %v6018
  %v6021 = vadd.f32 %v6017, %v6019
  %v6022 = vld [vmem:[%s3622] sm:$0xff]
  %v6023 = vld [vmem:[%s3622 + $0x8] sm:$0xff]
  %v6024 = vld [vmem:[%s2913] sm:$0xff]
  %v6025 = vld [vmem:[%s2913 + $0x8] sm:$0xff]
  %v6026 = vadd.f32 %v6022, %v6024
  %v6027 = vadd.f32 %v6023, %v6025
  %v6028 = vld [vmem:[%s2895] sm:$0xff]
  %v6029 = vld [vmem:[%s2895 + $0x10] sm:$0xff]
  %v6030 = vld [vmem:[%s2895 + $0x8] sm:$0xff]
  %v6031 = vld [vmem:[%s2895 + $0x18] sm:$0xff]
  %v6032 = vmax.f32 %v5972, %v6026
  %v6033 = vmax.f32 %v5973, %v6027
  %v6034 = vsub.f32 %v5972, %v6032
  %v6035 = vsub.f32 %v5973, %v6033
  %v6036 = vmul.f32 %v6034, 1.442695
  %v6037 = vpow.pop %v6036
  %v6038 = vmul.f32 %v6035, 1.442695
  %v6039 = vpow.pop %v6038
  %v6040 = vsub.f32 %v6026, %v6032
  %v6041 = vsub.f32 %v6027, %v6033
  %v6042 = vmul.f32 %v6040, 1.442695
  %v6043 = vpow.pop %v6042
  %v6044 = vmul.f32 %v6041, 1.442695
  %v6045 = vpow.pop %v6044
  %v6046 = vmul.f32 %v5988, %v6037
  %v6047 = vmul.f32 %v5989, %v6039
  %v6048 = vadd.f32 %v6046, %v6043
  %v6049 = vadd.f32 %v6047, %v6045
  %6051 = vset.pattern.permute.xlu0 0
  %6052 = vperm.xlu0 %6051, %v6037
  %v6053 = vpop.permute.xlu0 %6052
  %6056 = vset.pattern.permute.xlu0 0
  %6057 = vperm.xlu0 %6056, %v6039
  %v6058 = vpop.permute.xlu0 %6057
  %v6060 = vmul.f32 %v6014, %v6053
  %v6061 = vmul.f32 %v6015, %v6058
  %6063 = vset.pattern.permute.xlu0 0
  %6064 = vperm.xlu0 %6063, %v6043
  %v6065 = vpop.permute.xlu0 %6064
  %6068 = vset.pattern.permute.xlu0 0
  %6069 = vperm.xlu0 %6068, %v6045
  %v6070 = vpop.permute.xlu0 %6069
  %v6072 = vmul.f32 %v6065, %v6028
  %v6073 = vmul.f32 %v6070, %v6029
  %v6074 = vadd.f32 %v6060, %v6072
  %v6075 = vadd.f32 %v6061, %v6073
  %v6076 = vmul.f32 %v6020, %v6053
  %v6077 = vmul.f32 %v6021, %v6058
  %v6078 = vmul.f32 %v6065, %v6030
  %v6079 = vmul.f32 %v6070, %v6031
  %v6080 = vadd.f32 %v6076, %v6078
  %v6081 = vadd.f32 %v6077, %v6079
  %v6082 = vld [vmem:[%s4340] sm:$0xff]
  %v6083 = vld [vmem:[%s4340 + $0x8] sm:$0xff]
  %v6084 = vld [vmem:[%s2193] sm:$0xff]
  %v6085 = vld [vmem:[%s2193 + $0x8] sm:$0xff]
  %v6086 = vadd.f32 %v6082, %v6084
  %v6087 = vadd.f32 %v6083, %v6085
  %v6088 = vld [vmem:[%s2175] sm:$0xff]
  %v6089 = vld [vmem:[%s2175 + $0x10] sm:$0xff]
  %v6090 = vld [vmem:[%s2175 + $0x8] sm:$0xff]
  %v6091 = vld [vmem:[%s2175 + $0x18] sm:$0xff]
  %v6092 = vmax.f32 %v6032, %v6086
  %v6093 = vmax.f32 %v6033, %v6087
  %v6094 = vsub.f32 %v6032, %v6092
  %v6095 = vsub.f32 %v6033, %v6093
  %v6096 = vmul.f32 %v6094, 1.442695
  %v6097 = vpow.pop %v6096
  %v6098 = vmul.f32 %v6095, 1.442695
  %v6099 = vpow.pop %v6098
  %v6100 = vsub.f32 %v6086, %v6092
  %v6101 = vsub.f32 %v6087, %v6093
  %v6102 = vmul.f32 %v6100, 1.442695
  %v6103 = vpow.pop %v6102
  %v6104 = vmul.f32 %v6101, 1.442695
  %v6105 = vpow.pop %v6104
  %v6106 = vmul.f32 %v6048, %v6097
  %v6107 = vmul.f32 %v6049, %v6099
  %v6108 = vadd.f32 %v6106, %v6103
  %v6109 = vadd.f32 %v6107, %v6105
  %6111 = vset.pattern.permute.xlu0 0
  %6112 = vperm.xlu0 %6111, %v6097
  %v6113 = vpop.permute.xlu0 %6112
  %6116 = vset.pattern.permute.xlu0 0
  %6117 = vperm.xlu0 %6116, %v6099
  %v6118 = vpop.permute.xlu0 %6117
  %v6120 = vmul.f32 %v6074, %v6113
  %v6121 = vmul.f32 %v6075, %v6118
  %6123 = vset.pattern.permute.xlu0 0
  %6124 = vperm.xlu0 %6123, %v6103
  %v6125 = vpop.permute.xlu0 %6124
  %6128 = vset.pattern.permute.xlu0 0
  %6129 = vperm.xlu0 %6128, %v6105
  %v6130 = vpop.permute.xlu0 %6129
  %v6132 = vmul.f32 %v6125, %v6088
  %v6133 = vmul.f32 %v6130, %v6089
  %v6134 = vadd.f32 %v6120, %v6132
  %v6135 = vadd.f32 %v6121, %v6133
  %v6136 = vmul.f32 %v6080, %v6113
  %v6137 = vmul.f32 %v6081, %v6118
  %v6138 = vmul.f32 %v6125, %v6090
  %v6139 = vmul.f32 %v6130, %v6091
  %v6140 = vadd.f32 %v6136, %v6138
  %v6141 = vadd.f32 %v6137, %v6139
  %v6142 = vld [vmem:[%s5058] sm:$0xff]
  %v6143 = vld [vmem:[%s5058 + $0x8] sm:$0xff]
  %v6144 = vld [vmem:[%s1473] sm:$0xff]
  %v6145 = vld [vmem:[%s1473 + $0x8] sm:$0xff]
  %v6146 = vadd.f32 %v6142, %v6144
  %v6147 = vadd.f32 %v6143, %v6145
  %v6148 = vld [vmem:[%s1455] sm:$0xff]
  %v6149 = vld [vmem:[%s1455 + $0x10] sm:$0xff]
  %v6150 = vld [vmem:[%s1455 + $0x8] sm:$0xff]
  %v6151 = vld [vmem:[%s1455 + $0x18] sm:$0xff]
  %v6152 = vmax.f32 %v6092, %v6146
  %v6153 = vmax.f32 %v6093, %v6147
  %v6154 = vsub.f32 %v6092, %v6152
  %v6155 = vsub.f32 %v6093, %v6153
  %v6156 = vmul.f32 %v6154, 1.442695
  %v6157 = vpow.pop %v6156
  %v6158 = vmul.f32 %v6155, 1.442695
  %v6159 = vpow.pop %v6158
  %v6160 = vsub.f32 %v6146, %v6152
  %v6161 = vsub.f32 %v6147, %v6153
  %v6162 = vmul.f32 %v6160, 1.442695
  %v6163 = vpow.pop %v6162
  %v6164 = vmul.f32 %v6161, 1.442695
  %v6165 = vpow.pop %v6164
  %v6166 = vmul.f32 %v6108, %v6157
  %v6167 = vmul.f32 %v6109, %v6159
  %v6168 = vadd.f32 %v6166, %v6163
  %v6169 = vadd.f32 %v6167, %v6165
  %6171 = vset.pattern.permute.xlu0 0
  %6172 = vperm.xlu0 %6171, %v6157
  %v6173 = vpop.permute.xlu0 %6172
  %6176 = vset.pattern.permute.xlu0 0
  %6177 = vperm.xlu0 %6176, %v6159
  %v6178 = vpop.permute.xlu0 %6177
  %v6180 = vmul.f32 %v6134, %v6173
  %v6181 = vmul.f32 %v6135, %v6178
  %6183 = vset.pattern.permute.xlu0 0
  %6184 = vperm.xlu0 %6183, %v6163
  %v6185 = vpop.permute.xlu0 %6184
  %6188 = vset.pattern.permute.xlu0 0
  %6189 = vperm.xlu0 %6188, %v6165
  %v6190 = vpop.permute.xlu0 %6189
  %v6192 = vmul.f32 %v6185, %v6148
  %v6193 = vmul.f32 %v6190, %v6149
  %v6194 = vadd.f32 %v6180, %v6192
  %v6195 = vadd.f32 %v6181, %v6193
  %v6196 = vmul.f32 %v6140, %v6173
  %v6197 = vmul.f32 %v6141, %v6178
  %v6198 = vmul.f32 %v6185, %v6150
  %v6199 = vmul.f32 %v6190, %v6151
  %v6200 = vadd.f32 %v6196, %v6198
  %v6201 = vadd.f32 %v6197, %v6199
  %v6202 = vld [vmem:[%s5775] sm:$0xff]
  %v6203 = vld [vmem:[%s5775 + $0x8] sm:$0xff]
  %v6204 = vld [vmem:[%s753] sm:$0xff]
  %v6205 = vld [vmem:[%s753 + $0x8] sm:$0xff]
  %v6206 = vadd.f32 %v6202, %v6204
  %v6207 = vadd.f32 %v6203, %v6205
  %v6208 = vld [vmem:[%s723] sm:$0xff]
  %v6209 = vld [vmem:[%s723 + $0x10] sm:$0xff]
  %v6210 = vld [vmem:[%s723 + $0x8] sm:$0xff]
  %v6211 = vld [vmem:[%s723 + $0x18] sm:$0xff]
  %v6212 = vmax.f32 %v6152, %v6206
  %v6213 = vmax.f32 %v6153, %v6207
  %v6214 = vsub.f32 %v6152, %v6212
  %v6215 = vsub.f32 %v6153, %v6213
  %v6216 = vmul.f32 %v6214, 1.442695
  %v6217 = vpow.pop %v6216
  %v6218 = vmul.f32 %v6215, 1.442695
  %v6219 = vpow.pop %v6218
  %v6220 = vsub.f32 %v6206, %v6212
  %v6221 = vsub.f32 %v6207, %v6213
  %v6222 = vmul.f32 %v6220, 1.442695
  %v6223 = vpow.pop %v6222
  %v6224 = vmul.f32 %v6221, 1.442695
  %v6225 = vpow.pop %v6224
  %v6226 = vmul.f32 %v6168, %v6217
  %v6227 = vmul.f32 %v6169, %v6219
  %v6228 = vadd.f32 %v6226, %v6223
  %v6229 = vadd.f32 %v6227, %v6225
  %6231 = vset.pattern.permute.xlu0 0
  %6232 = vperm.xlu0 %6231, %v6217
  %v6233 = vpop.permute.xlu0 %6232
  %6236 = vset.pattern.permute.xlu0 0
  %6237 = vperm.xlu0 %6236, %v6219
  %v6238 = vpop.permute.xlu0 %6237
  %v6240 = vmul.f32 %v6194, %v6233
  %v6241 = vmul.f32 %v6195, %v6238
  %6243 = vset.pattern.permute.xlu0 0
  %6244 = vperm.xlu0 %6243, %v6223
  %v6245 = vpop.permute.xlu0 %6244
  %6248 = vset.pattern.permute.xlu0 0
  %6249 = vperm.xlu0 %6248, %v6225
  %v6250 = vpop.permute.xlu0 %6249
  %v6252 = vmul.f32 %v6245, %v6208
  %v6253 = vmul.f32 %v6250, %v6209
  %v6254 = vadd.f32 %v6240, %v6252
  %v6255 = vadd.f32 %v6241, %v6253
  %v6256 = vmul.f32 %v6200, %v6233
  %v6257 = vmul.f32 %v6201, %v6238
  %v6258 = vmul.f32 %v6245, %v6210
  %v6259 = vmul.f32 %v6250, %v6211
  %v6260 = vadd.f32 %v6256, %v6258
  %v6261 = vadd.f32 %v6257, %v6259
  %v6262 = vrcp.pop %v6228
  %v6263 = vrcp.pop %v6229
  %6265 = vset.pattern.permute.xlu0 0
  %6266 = vperm.xlu0 %6265, %v6262
  %v6267 = vpop.permute.xlu0 %6266
  %6270 = vset.pattern.permute.xlu0 0
  %6271 = vperm.xlu0 %6270, %v6263
  %v6272 = vpop.permute.xlu0 %6271
  %v6274 = vmul.f32 %v6254, %v6267
  %v6275 = vmul.f32 %v6255, %v6272
  %6276 = vst [vmem:[%s7] sm:$0xff] %v6274
  %6277 = vst [vmem:[%s7 + $0x10] sm:$0xff] %v6275
  %v6278 = vmul.f32 %v6260, %v6267
  %v6279 = vmul.f32 %v6261, %v6272
  %6280 = vst [vmem:[%s7 + $0x8] sm:$0xff] %v6278
  %6281 = vst [vmem:[%s7 + $0x18] sm:$0xff] %v6279
  // Predicated region
  $region26: #{bilstm_attention_forward.1} parent=0 // pred_check
    _
  $region27: #{bilstm_attention_forward.1} parent=0 // pred_check_branch
    %6283 = sbr.rel (0) target = $region29
  $region28: #{bilstm_attention_forward.1} parent=0 // pred_region
    _
  $region29: #{bilstm_attention_forward.1} parent=0 // pred_fallthru
    _
  // Predicated region
  $region30: #{bilstm_attention_forward.1} parent=0 // pred_check
    _
  $region31: #{bilstm_attention_forward.1} parent=0 // pred_check_branch
    %6285 = sbr.rel (0) target = $region33
  $region32: #{bilstm_attention_forward.1} parent=0 // pred_region
    _
  $region33: #{bilstm_attention_forward.1} parent=0 // pred_fallthru
    _
  // Predicated region
  $region34: #{bilstm_attention_forward.1} parent=0 // pred_check
    _
  $region35: #{bilstm_attention_forward.1} parent=0 // pred_check_branch
    %6287 = sbr.rel (0) target = $region37
  $region36: #{bilstm_attention_forward.1} parent=0 // pred_region
    _
  $region37: #{bilstm_attention_forward.1} parent=0 // pred_fallthru
    _
  // Predicated region
  $region38: #{bilstm_attention_forward.1} parent=0 // pred_check
    _
  $region39: #{bilstm_attention_forward.1} parent=0 // pred_check_branch
    %6289 = sbr.rel (0) target = $region41
  $region40: #{bilstm_attention_forward.1} parent=0 // pred_region
    _
  $region41: #{bilstm_attention_forward.1} parent=0 // pred_fallthru
    _

</llo_original>
